<compile_context>
chip_gen: v6e
topology: v6e:2x2x1
jax: 0.10.0
libtpu: 0.0.40
codegen_flags: <defaults>
</compile_context>

<pallas_src>
import math

import jax
import jax.numpy as jnp
from jax import lax
from jax.experimental import pallas as pl
from jax.experimental.pallas import tpu as pltpu

EPS = 1e-5      # nn.BatchNorm2d default eps
LANES = 128     # channels are padded to a multiple of the TPU lane width


def _round_up(x, m):
    return (x + m - 1) // m * m


# ----------------------------- fused stack kernel -----------------------------

def _make_stack_kernel(num_blocks, ho, wo, c_pad, first_from_cols, cin0, cout0):
    """Build the fused whole-stack kernel (all blocks, activations stay in VMEM)."""
    pnum = ho * wo
    need_mask0 = cout0 < cin0   # F.pad with negative channel pad crops channels

    def kernel(in0_ref, w1_ref, w2_ref, sb_ref, out_ref, pad_ref):
        # Zero only the 1-wide halo border of the scratch (interior is fully overwritten
        # by every conv).  Per grid step -> megacore-safe, and far cheaper than full fills.
        zrow = jnp.zeros((1, wo + 2, c_pad), pad_ref.dtype)
        zcol = jnp.zeros((ho + 2, 1, c_pad), pad_ref.dtype)
        pad_ref[0:1, :, :] = zrow
        pad_ref[ho + 1:ho + 2, :, :] = zrow
        pad_ref[:, 0:1, :] = zcol
        pad_ref[:, wo + 1:wo + 2, :] = zcol

        def conv3x3_s1(act_f32, w_ref, b):
            """Stride-1 3x3 conv of act (P, C) f32 with block b's (9C, C) bf16 weights.
            Three accumulating K=3C MXU matmuls grouped by ky; taps cast to bf16."""
            pad_ref[1:ho + 1, 1:wo + 1, :] = act_f32.reshape(ho, wo, c_pad)
            acc = None
            for ky in range(3):
                cols = jnp.concatenate(
                    [pad_ref[ky:ky + ho, kx:kx + wo, :].astype(jnp.bfloat16)
                     for kx in range(3)],
                    axis=-1).reshape(pnum, 3 * c_pad)
                part = jnp.dot(cols,
                               w_ref[b, ky * 3 * c_pad:(ky + 1) * 3 * c_pad, :],
                               preferred_element_type=jnp.float32)
                acc = part if acc is None else acc + part
            return acc

        act = None
        for b in range(num_blocks):
            sb = sb_ref[b]                                     # (4, C) f32 scale/bias rows
            if b == 0:
                if first_from_cols:
                    cols1 = in0_ref[0]                         # (P, 9C) bf16 strided im2col
                    # Residual skip == centre tap (ky=1,kx=1) of the strided im2col.
                    skip = cols1[:, 4 * c_pad:5 * c_pad].astype(jnp.float32)
                    acc1 = jnp.dot(cols1, w1_ref[0],
                                   preferred_element_type=jnp.float32)
                else:
                    x = in0_ref[0].reshape(pnum, c_pad)        # (P, C) f32
                    skip = x
                    acc1 = conv3x3_s1(x, w1_ref, 0)
                if need_mask0:
                    lane = lax.broadcasted_iota(jnp.int32, (1, c_pad), 1)
                    skip = jnp.where(lane < cout0, skip, 0.0)
            else:
                skip = act                                     # identity skip, never leaves VMEM
                acc1 = conv3x3_s1(act, w1_ref, b)
            h1 = jnp.maximum(acc1 * sb[0:1, :] + sb[1:2, :], 0.0)
            acc2 = conv3x3_s1(h1, w2_ref, b)
            act = jnp.maximum(acc2 * sb[2:3, :] + sb[3:4, :] + skip, 0.0)

        out_ref[0] = act.reshape(ho, wo, c_pad).astype(out_ref.dtype)

    return kernel


# --------------------------- parameter preparation ---------------------------

def _fold_bn_scale_bias(p, idx):
    scale = p[f"gamma{idx}"] / jnp.sqrt(p[f"var{idx}"] + EPS)
    bias = p[f"beta{idx}"] + scale * (p[f"b{idx}"] - p[f"mean{idx}"])
    return scale, bias


def _prep_weights(p, c_pad):
    """Channel-pad conv weights to (c_pad, c_pad), lay out for im2col as (9C, C) bf16,
    and fold conv-bias + BN (eval mode) into per-channel scale/bias rows (4, C) f32."""
    def w9(w):
        kh, kw, ci, co = w.shape
        wp = jnp.zeros((kh, kw, c_pad, c_pad), jnp.float32).at[:, :, :ci, :co].set(w)
        return wp.reshape(kh * kw * c_pad, c_pad).astype(jnp.bfloat16)

    s1, b1 = _fold_bn_scale_bias(p, 1)
    s2, b2 = _fold_bn_scale_bias(p, 2)
    co = s1.shape[0]
    sb = jnp.zeros((4, c_pad), jnp.float32)
    sb = sb.at[0, :co].set(s1).at[1, :co].set(b1).at[2, :co].set(s2).at[3, :co].set(b2)
    return w9(p["w1"]), w9(p["w2"]), sb


def prepare_stack_params(block_params, stride):
    """Run ONCE (outside jit): fold BN, pad channels, stack per-block weight slabs."""
    cin0 = block_params[0]["w1"].shape[2]
    cout0 = block_params[0]["w1"].shape[3]
    cmax = max(max(p["w1"].shape[2], p["w1"].shape[3]) for p in block_params)
    c_pad = _round_up(cmax, LANES)          # lane-dense channel dim (see review note on 256)
    w1s, w2s, sbs = [], [], []
    for p in block_params:
        w1, w2, sb = _prep_weights(p, c_pad)
        w1s.append(w1); w2s.append(w2); sbs.append(sb)
    return {
        "w1": jnp.stack(w1s),               # (nb, 9*c_pad, c_pad) bf16
        "w2": jnp.stack(w2s),               # (nb, 9*c_pad, c_pad) bf16
        "sb": jnp.stack(sbs),               # (nb, 4, c_pad) f32
        "c_pad": c_pad,
        "cin0": cin0,
        "cout0": cout0,
        "cout_final": block_params[-1]["w2"].shape[3],
        "stride": stride,
        "num_blocks": len(block_params),
    }


# ----------------------------- compiler parameters -----------------------------

def _vmem_limit_bytes():
    # Tie the scoped-VMEM budget to the chip generation (v5e/v6e: 128 MiB physical,
    # v7x: 64 MiB); fall back to the previously-proven 32 MiB if the query fails.
    try:
        cap = int(pltpu.get_tpu_info().vmem_capacity_bytes)
        return int(min(max(cap * 3 // 4, 32 * 1024 * 1024), 112 * 1024 * 1024))
    except Exception:
        return 32 * 1024 * 1024


def _compiler_params():
    return pltpu.CompilerParams(
        dimension_semantics=("parallel",),   # batch axis -> megacore parallel
        vmem_limit_bytes=_vmem_limit_bytes(),
    )


# ------------------------------ stack forward ------------------------------

def residual_stack_forward(x_nchw, prepped):
    """x_nchw: (N, Cin, H, W) f32.  prepped: output of prepare_stack_params (constants)."""
    c_pad = prepped["c_pad"]
    stride = prepped["stride"]
    cin0, cout0 = prepped["cin0"], prepped["cout0"]
    nb = prepped["num_blocks"]

    n, cin, h, w = x_nchw.shape
    x = jnp.transpose(x_nchw, (0, 2, 3, 1))                       # NCHW -> NHWC (C -> lanes)
    x = jnp.pad(x, ((0, 0), (0, 0), (0, 0), (0, c_pad - cin)))    # pad channels ONCE at entry

    first_from_cols = (stride > 1) or (cin0 != cout0)
    if first_from_cols:
        # Only tap materialization in the whole stack: strided im2col of the first conv.
        ho = (h - 1) // stride + 1
        wo = (w - 1) // stride + 1
        xp = jnp.pad(x, ((0, 0), (1, 1), (1, 1), (0, 0)))
        taps = [xp[:, ky:ky + stride * (ho - 1) + 1:stride,
                      kx:kx + stride * (wo - 1) + 1:stride, :]
                for ky in range(3) for kx in range(3)]
        in0 = jnp.concatenate(taps, axis=-1).reshape(n, ho * wo, 9 * c_pad)
        in0 = in0.astype(jnp.bfloat16)
        in0_spec = pl.BlockSpec((1, ho * wo, 9 * c_pad), lambda b: (b, 0, 0))
    else:
        ho, wo = h, w
        in0 = x
        in0_spec = pl.BlockSpec((1, h, w, c_pad), lambda b: (b, 0, 0, 0))

    kernel = _make_stack_kernel(nb, ho, wo, c_pad, first_from_cols, cin0, cout0)

    out = pl.pallas_call(
        kernel,
        out_shape=jax.ShapeDtypeStruct((n, ho, wo, c_pad), jnp.float32),
        grid_spec=pltpu.PrefetchScalarGridSpec(
            num_scalar_prefetch=0,
            grid=(n,),
            in_specs=[
                in0_spec,
                pl.BlockSpec((nb, 9 * c_pad, c_pad), lambda b: (0, 0, 0)),
                pl.BlockSpec((nb, 9 * c_pad, c_pad), lambda b: (0, 0, 0)),
                pl.BlockSpec((nb, 4, c_pad), lambda b: (0, 0, 0)),
            ],
            out_specs=pl.BlockSpec((1, ho, wo, c_pad), lambda b: (b, 0, 0, 0)),
            scratch_shapes=[pltpu.VMEM((ho + 2, wo + 2, c_pad), jnp.float32)],
        ),
        compiler_params=_compiler_params(),
    )(in0, prepped["w1"], prepped["w2"], prepped["sb"])

    out = out[..., :prepped["cout_final"]]                        # drop channel padding ONCE
    return jnp.transpose(out, (0, 3, 1, 2))                       # NHWC -> NCHW


# --------------------------- parameter creation ---------------------------

def init_block_params(key, cin, cout):
    ks = jax.random.split(key, 12)

    def conv_w(k, ci, co):
        return jax.random.normal(k, (3, 3, ci, co), jnp.float32) * math.sqrt(2.0 / (9 * ci))

    return {
        "w1": conv_w(ks[0], cin, cout),
        "b1": 0.01 * jax.random.normal(ks[1], (cout,), jnp.float32),
        "gamma1": 1.0 + 0.1 * jax.random.normal(ks[2], (cout,), jnp.float32),
        "beta1": 0.1 * jax.random.normal(ks[3], (cout,), jnp.float32),
        "mean1": 0.05 * jax.random.normal(ks[4], (cout,), jnp.float32),
        "var1": 1.0 + 0.1 * jax.random.uniform(ks[5], (cout,), jnp.float32),
        "w2": conv_w(ks[6], cout, cout),
        "b2": 0.01 * jax.random.normal(ks[7], (cout,), jnp.float32),
        "gamma2": 1.0 + 0.1 * jax.random.normal(ks[8], (cout,), jnp.float32),
        "beta2": 0.1 * jax.random.normal(ks[9], (cout,), jnp.float32),
        "mean2": 0.05 * jax.random.normal(ks[10], (cout,), jnp.float32),
        "var2": 1.0 + 0.1 * jax.random.uniform(ks[11], (cout,), jnp.float32),
    }


# ----------------------------- pure-JAX reference -----------------------------

def _ref_conv_bn(x_nhwc, w, b, gamma, beta, mean, var, stride):
    y = lax.conv_general_dilated(
        x_nhwc, w, (stride, stride), [(1, 1), (1, 1)],
        dimension_numbers=("NHWC", "HWIO", "NHWC"))
    y = y + b
    return (y - mean) / jnp.sqrt(var + EPS) * gamma + beta


def _ref_block(x_nhwc, p, stride):
    cin = x_nhwc.shape[-1]
    cout = p["w1"].shape[-1]
    skip = x_nhwc[:, ::stride, ::stride, :]
    if cout > cin:
        skip = jnp.pad(skip, ((0, 0), (0, 0), (0, 0), (0, cout - cin)))
    elif cout < cin:
        skip = skip[..., :cout]
    h = jnp.maximum(_ref_conv_bn(x_nhwc, p["w1"], p["b1"], p["gamma1"], p["beta1"],
                                 p["mean1"], p["var1"], stride), 0.0)
    y = _ref_conv_bn(h, p["w2"], p["b2"], p["gamma2"], p["beta2"],
                     p["mean2"], p["var2"], 1)
    return jnp.maximum(y + skip, 0.0)


def reference_forward(x_nchw, block_params, stride):
    x = jnp.transpose(x_nchw, (0, 2, 3, 1))
    for i, p in enumerate(block_params):
        s = stride if i == 0 else 1
        x = _ref_block(x, p, s)
    return jnp.transpose(x, (0, 3, 1, 2))


# ----------------------------------- main -----------------------------------

if __name__ == "__main__":
    key = jax.random.PRNGKey(0)
    N, C_IN, H, W = 2, 4, 16, 16
    C_OUT, STRIDE, NUM_BLOCKS = 8, 2, 3

    k_x, k_p = jax.random.split(key)
    x = jax.random.normal(k_x, (N, C_IN, H, W), jnp.float32)  # PyTorch-style NCHW input

    block_keys = jax.random.split(k_p, NUM_BLOCKS)
    blocks = [init_block_params(block_keys[0], C_IN, C_OUT)]
    for i in range(1, NUM_BLOCKS):
        blocks.append(init_block_params(block_keys[i], C_OUT, C_OUT))

    # BN folding / channel padding / bf16 cast / stacking happens ONCE, outside the jit.
    prepped = prepare_stack_params(blocks, STRIDE)
    prepped = jax.tree_util.tree_map(
        lambda v: jax.block_until_ready(v) if isinstance(v, jax.Array) else v, prepped)

    fwd = jax.jit(lambda xi: residual_stack_forward(xi, prepped))
    out = jax.block_until_ready(fwd(x))

    ref = jax.block_until_ready(reference_forward(x, blocks, STRIDE))
    assert out.shape == ref.shape == (N, C_OUT, H // STRIDE, W // STRIDE), (out.shape, ref.shape)
    # bf16 matmul operands (and bf16 centre-tap skip for the first block) with f32
    # accumulation -> bf16-level tolerance.
    assert jnp.allclose(out, ref, atol=5e-2, rtol=5e-2), float(jnp.max(jnp.abs(out - ref)))

    print("KERNEL_OK")
</pallas_src>

<mosaic_0001>
module attributes {stable_mosaic.version = 11 : i64} {
  func.func @kernel(%arg0: i32, %arg1: memref<1x64x1152xbf16, #tpu.memory_space<vmem>>, %arg2: memref<3x1152x128xbf16, #tpu.memory_space<vmem>>, %arg3: memref<3x1152x128xbf16, #tpu.memory_space<vmem>>, %arg4: memref<3x4x128xf32, #tpu.memory_space<vmem>>, %arg5: memref<1x8x8x128xf32, #tpu.memory_space<vmem>>, %arg6: memref<10x10x128xf32, #tpu.memory_space<vmem>>) attributes {dimension_semantics = [#tpu.dimension_semantics<parallel>], iteration_bounds = array<i64: 2>, scalar_prefetch = 0 : i64, scratch_operands = 1 : i64, tpu.core_type = #tpu.core_type<tc>, window_params = [{transform_indices = @transform_0, window_bounds = array<i64: 1, 64, 1152>}, {pipeline_mode = #tpu.pipeline_mode<synchronous>, transform_indices = @transform_1, window_bounds = array<i64: 3, 1152, 128>}, {pipeline_mode = #tpu.pipeline_mode<synchronous>, transform_indices = @transform_2, window_bounds = array<i64: 3, 1152, 128>}, {pipeline_mode = #tpu.pipeline_mode<synchronous>, transform_indices = @transform_3, window_bounds = array<i64: 3, 4, 128>}, {transform_indices = @transform_4, window_bounds = array<i64: 1, 8, 8, 128>}]} {
    %cst = arith.constant 0.000000e+00 : f32
    %0 = vector.broadcast %cst : f32 to vector<1x10x128xf32>
    %cst_0 = arith.constant 0.000000e+00 : f32
    %1 = vector.broadcast %cst_0 : f32 to vector<10x1x128xf32>
    %c0 = arith.constant 0 : index
    %c0_1 = arith.constant 0 : index
    %c0_2 = arith.constant 0 : index
    %2 = vector.load %arg6[%c0, %c0_1, %c0_2] : memref<10x10x128xf32, #tpu.memory_space<vmem>>, vector<1x10x128xf32>
    tpu.vector_store %arg6[%c0, %c0_1, %c0_2], %0 {strides = array<i32>} : memref<10x10x128xf32, #tpu.memory_space<vmem>>, vector<1x10x128xf32>,
    %c9 = arith.constant 9 : index
    %c0_3 = arith.constant 0 : index
    %c0_4 = arith.constant 0 : index
    %3 = vector.load %arg6[%c9, %c0_3, %c0_4] : memref<10x10x128xf32, #tpu.memory_space<vmem>>, vector<1x10x128xf32>
    tpu.vector_store %arg6[%c9, %c0_3, %c0_4], %0 {strides = array<i32>} : memref<10x10x128xf32, #tpu.memory_space<vmem>>, vector<1x10x128xf32>,
    %c0_5 = arith.constant 0 : index
    %c0_6 = arith.constant 0 : index
    %c0_7 = arith.constant 0 : index
    %4 = vector.load %arg6[%c0_5, %c0_6, %c0_7] : memref<10x10x128xf32, #tpu.memory_space<vmem>>, vector<10x1x128xf32>
    tpu.vector_store %arg6[%c0_5, %c0_6, %c0_7], %1 {strides = array<i32>} : memref<10x10x128xf32, #tpu.memory_space<vmem>>, vector<10x1x128xf32>,
    %c0_8 = arith.constant 0 : index
    %c9_9 = arith.constant 9 : index
    %c0_10 = arith.constant 0 : index
    %5 = vector.load %arg6[%c0_8, %c9_9, %c0_10] : memref<10x10x128xf32, #tpu.memory_space<vmem>>, vector<10x1x128xf32>
    tpu.vector_store %arg6[%c0_8, %c9_9, %c0_10], %1 {strides = array<i32>} : memref<10x10x128xf32, #tpu.memory_space<vmem>>, vector<10x1x128xf32>,
    %c0_11 = arith.constant 0 : index
    %c0_12 = arith.constant 0 : index
    %c0_13 = arith.constant 0 : index
    %6 = vector.load %arg4[%c0_11, %c0_12, %c0_13] : memref<3x4x128xf32, #tpu.memory_space<vmem>>, vector<1x4x128xf32>
    %7 = vector.shape_cast %6 : vector<1x4x128xf32> to vector<4x128xf32>
    %c0_14 = arith.constant 0 : index
    %c0_15 = arith.constant 0 : index
    %c0_16 = arith.constant 0 : index
    %8 = vector.load %arg1[%c0_14, %c0_15, %c0_16] : memref<1x64x1152xbf16, #tpu.memory_space<vmem>>, vector<1x64x1152xbf16>
    %9 = vector.shape_cast %8 : vector<1x64x1152xbf16> to vector<64x1152xbf16>
    %10 = vector.extract_strided_slice %9 {offsets = [0, 512], sizes = [64, 128], strides = [1, 1]} : vector<64x1152xbf16> to vector<64x128xbf16>
    %11 = arith.extf %10 : vector<64x128xbf16> to vector<64x128xf32>
    %c0_17 = arith.constant 0 : index
    %c0_18 = arith.constant 0 : index
    %c0_19 = arith.constant 0 : index
    %12 = vector.load %arg2[%c0_17, %c0_18, %c0_19] : memref<3x1152x128xbf16, #tpu.memory_space<vmem>>, vector<1x1152x128xbf16>
    %13 = vector.shape_cast %12 : vector<1x1152x128xbf16> to vector<1152x128xbf16>
    %cst_20 = arith.constant dense<0.000000e+00> : vector<64x128xf32>
    %14 = tpu.matmul %9, %13, %cst_20 {dimension_numbers = #tpu.dot_dimension_numbers<[1], [0], [0], [1], [0, 0, 1, 1], [], []>} : vector<64x1152xbf16>, vector<1152x128xbf16>, vector<64x128xf32> -> vector<64x128xf32>
    %15 = vector.extract_strided_slice %7 {offsets = [0, 0], sizes = [1, 128], strides = [1, 1]} : vector<4x128xf32> to vector<1x128xf32>
    %16 = vector.broadcast %15 : vector<1x128xf32> to vector<64x128xf32>
    %17 = arith.mulf %14, %16 : vector<64x128xf32>
    %18 = vector.extract_strided_slice %7 {offsets = [1, 0], sizes = [1, 128], strides = [1, 1]} : vector<4x128xf32> to vector<1x128xf32>
    %19 = vector.broadcast %18 : vector<1x128xf32> to vector<64x128xf32>
    %20 = arith.addf %17, %19 : vector<64x128xf32>
    %cst_21 = arith.constant 0.000000e+00 : f32
    %21 = vector.broadcast %cst_21 : f32 to vector<64x128xf32>
    %22 = arith.maximumf %20, %21 : vector<64x128xf32>
    %23 = vector.shape_cast %22 : vector<64x128xf32> to vector<8x8x128xf32>
    %c1 = arith.constant 1 : index
    %c1_22 = arith.constant 1 : index
    %c0_23 = arith.constant 0 : index
    %24 = vector.load %arg6[%c1, %c1_22, %c0_23] : memref<10x10x128xf32, #tpu.memory_space<vmem>>, vector<8x8x128xf32>
    tpu.vector_store %arg6[%c1, %c1_22, %c0_23], %23 {strides = array<i32>} : memref<10x10x128xf32, #tpu.memory_space<vmem>>, vector<8x8x128xf32>,
    %c0_24 = arith.constant 0 : index
    %c0_25 = arith.constant 0 : index
    %c0_26 = arith.constant 0 : index
    %25 = vector.load %arg6[%c0_24, %c0_25, %c0_26] : memref<10x10x128xf32, #tpu.memory_space<vmem>>, vector<8x8x128xf32>
    %26 = arith.truncf %25 : vector<8x8x128xf32> to vector<8x8x128xbf16>
    %c0_27 = arith.constant 0 : index
    %c1_28 = arith.constant 1 : index
    %c0_29 = arith.constant 0 : index
    %27 = vector.load %arg6[%c0_27, %c1_28, %c0_29] : memref<10x10x128xf32, #tpu.memory_space<vmem>>, vector<8x8x128xf32>
    %28 = arith.truncf %27 : vector<8x8x128xf32> to vector<8x8x128xbf16>
    %c0_30 = arith.constant 0 : index
    %c2 = arith.constant 2 : index
    %c0_31 = arith.constant 0 : index
    %29 = vector.load %arg6[%c0_30, %c2, %c0_31] : memref<10x10x128xf32, #tpu.memory_space<vmem>>, vector<8x8x128xf32>
    %30 = arith.truncf %29 : vector<8x8x128xf32> to vector<8x8x128xbf16>
    %31 = tpu.concatenate %26, %28, %30 in 2 : vector<8x8x128xbf16>, vector<8x8x128xbf16>, vector<8x8x128xbf16> -> vector<8x8x384xbf16>
    %32 = vector.shape_cast %31 : vector<8x8x384xbf16> to vector<64x384xbf16>
    %c0_32 = arith.constant 0 : index
    %c0_33 = arith.constant 0 : index
    %c0_34 = arith.constant 0 : index
    %33 = vector.load %arg3[%c0_32, %c0_33, %c0_34] : memref<3x1152x128xbf16, #tpu.memory_space<vmem>>, vector<1x384x128xbf16>
    %34 = vector.shape_cast %33 : vector<1x384x128xbf16> to vector<384x128xbf16>
    %cst_35 = arith.constant dense<0.000000e+00> : vector<64x128xf32>
    %35 = tpu.matmul %32, %34, %cst_35 {dimension_numbers = #tpu.dot_dimension_numbers<[1], [0], [0], [1], [0, 0, 1, 1], [], []>} : vector<64x384xbf16>, vector<384x128xbf16>, vector<64x128xf32> -> vector<64x128xf32>
    %c1_36 = arith.constant 1 : index
    %c0_37 = arith.constant 0 : index
    %c0_38 = arith.constant 0 : index
    %36 = vector.load %arg6[%c1_36, %c0_37, %c0_38] : memref<10x10x128xf32, #tpu.memory_space<vmem>>, vector<8x8x128xf32>
    %37 = arith.truncf %36 : vector<8x8x128xf32> to vector<8x8x128xbf16>
    %c1_39 = arith.constant 1 : index
    %c1_40 = arith.constant 1 : index
    %c0_41 = arith.constant 0 : index
    %38 = vector.load %arg6[%c1_39, %c1_40, %c0_41] : memref<10x10x128xf32, #tpu.memory_space<vmem>>, vector<8x8x128xf32>
    %39 = arith.truncf %38 : vector<8x8x128xf32> to vector<8x8x128xbf16>
    %c1_42 = arith.constant 1 : index
    %c2_43 = arith.constant 2 : index
    %c0_44 = arith.constant 0 : index
    %40 = vector.load %arg6[%c1_42, %c2_43, %c0_44] : memref<10x10x128xf32, #tpu.memory_space<vmem>>, vector<8x8x128xf32>
    %41 = arith.truncf %40 : vector<8x8x128xf32> to vector<8x8x128xbf16>
    %42 = tpu.concatenate %37, %39, %41 in 2 : vector<8x8x128xbf16>, vector<8x8x128xbf16>, vector<8x8x128xbf16> -> vector<8x8x384xbf16>
    %43 = vector.shape_cast %42 : vector<8x8x384xbf16> to vector<64x384xbf16>
    %c0_45 = arith.constant 0 : index
    %c384 = arith.constant 384 : index
    %c0_46 = arith.constant 0 : index
    %44 = vector.load %arg3[%c0_45, %c384, %c0_46] : memref<3x1152x128xbf16, #tpu.memory_space<vmem>>, vector<1x384x128xbf16>
    %45 = vector.shape_cast %44 : vector<1x384x128xbf16> to vector<384x128xbf16>
    %cst_47 = arith.constant dense<0.000000e+00> : vector<64x128xf32>
    %46 = tpu.matmul %43, %45, %cst_47 {dimension_numbers = #tpu.dot_dimension_numbers<[1], [0], [0], [1], [0, 0, 1, 1], [], []>} : vector<64x384xbf16>, vector<384x128xbf16>, vector<64x128xf32> -> vector<64x128xf32>
    %47 = arith.addf %35, %46 : vector<64x128xf32>
    %c2_48 = arith.constant 2 : index
    %c0_49 = arith.constant 0 : index
    %c0_50 = arith.constant 0 : index
    %48 = vector.load %arg6[%c2_48, %c0_49, %c0_50] : memref<10x10x128xf32, #tpu.memory_space<vmem>>, vector<8x8x128xf32>
    %49 = arith.truncf %48 : vector<8x8x128xf32> to vector<8x8x128xbf16>
    %c2_51 = arith.constant 2 : index
    %c1_52 = arith.constant 1 : index
    %c0_53 = arith.constant 0 : index
    %50 = vector.load %arg6[%c2_51, %c1_52, %c0_53] : memref<10x10x128xf32, #tpu.memory_space<vmem>>, vector<8x8x128xf32>
    %51 = arith.truncf %50 : vector<8x8x128xf32> to vector<8x8x128xbf16>
    %c2_54 = arith.constant 2 : index
    %c2_55 = arith.constant 2 : index
    %c0_56 = arith.constant 0 : index
    %52 = vector.load %arg6[%c2_54, %c2_55, %c0_56] : memref<10x10x128xf32, #tpu.memory_space<vmem>>, vector<8x8x128xf32>
    %53 = arith.truncf %52 : vector<8x8x128xf32> to vector<8x8x128xbf16>
    %54 = tpu.concatenate %49, %51, %53 in 2 : vector<8x8x128xbf16>, vector<8x8x128xbf16>, vector<8x8x128xbf16> -> vector<8x8x384xbf16>
    %55 = vector.shape_cast %54 : vector<8x8x384xbf16> to vector<64x384xbf16>
    %c0_57 = arith.constant 0 : index
    %c768 = arith.constant 768 : index
    %c0_58 = arith.constant 0 : index
    %56 = vector.load %arg3[%c0_57, %c768, %c0_58] : memref<3x1152x128xbf16, #tpu.memory_space<vmem>>, vector<1x384x128xbf16>
    %57 = vector.shape_cast %56 : vector<1x384x128xbf16> to vector<384x128xbf16>
    %cst_59 = arith.constant dense<0.000000e+00> : vector<64x128xf32>
    %58 = tpu.matmul %55, %57, %cst_59 {dimension_numbers = #tpu.dot_dimension_numbers<[1], [0], [0], [1], [0, 0, 1, 1], [], []>} : vector<64x384xbf16>, vector<384x128xbf16>, vector<64x128xf32> -> vector<64x128xf32>
    %59 = arith.addf %47, %58 : vector<64x128xf32>
    %60 = vector.extract_strided_slice %7 {offsets = [2, 0], sizes = [1, 128], strides = [1, 1]} : vector<4x128xf32> to vector<1x128xf32>
    %61 = vector.broadcast %60 : vector<1x128xf32> to vector<64x128xf32>
    %62 = arith.mulf %59, %61 : vector<64x128xf32>
    %63 = vector.extract_strided_slice %7 {offsets = [3, 0], sizes = [1, 128], strides = [1, 1]} : vector<4x128xf32> to vector<1x128xf32>
    %64 = vector.broadcast %63 : vector<1x128xf32> to vector<64x128xf32>
    %65 = arith.addf %62, %64 : vector<64x128xf32>
    %66 = arith.addf %65, %11 : vector<64x128xf32>
    %cst_60 = arith.constant 0.000000e+00 : f32
    %67 = vector.broadcast %cst_60 : f32 to vector<64x128xf32>
    %68 = arith.maximumf %66, %67 : vector<64x128xf32>
    %c1_61 = arith.constant 1 : index
    %c0_62 = arith.constant 0 : index
    %c0_63 = arith.constant 0 : index
    %69 = vector.load %arg4[%c1_61, %c0_62, %c0_63] : memref<3x4x128xf32, #tpu.memory_space<vmem>>, vector<1x4x128xf32>
    %70 = vector.shape_cast %69 : vector<1x4x128xf32> to vector<4x128xf32>
    %71 = vector.shape_cast %68 : vector<64x128xf32> to vector<8x8x128xf32>
    %c1_64 = arith.constant 1 : index
    %c1_65 = arith.constant 1 : index
    %c0_66 = arith.constant 0 : index
    %72 = vector.load %arg6[%c1_64, %c1_65, %c0_66] : memref<10x10x128xf32, #tpu.memory_space<vmem>>, vector<8x8x128xf32>
    tpu.vector_store %arg6[%c1_64, %c1_65, %c0_66], %71 {strides = array<i32>} : memref<10x10x128xf32, #tpu.memory_space<vmem>>, vector<8x8x128xf32>,
    %c0_67 = arith.constant 0 : index
    %c0_68 = arith.constant 0 : index
    %c0_69 = arith.constant 0 : index
    %73 = vector.load %arg6[%c0_67, %c0_68, %c0_69] : memref<10x10x128xf32, #tpu.memory_space<vmem>>, vector<8x8x128xf32>
    %74 = arith.truncf %73 : vector<8x8x128xf32> to vector<8x8x128xbf16>
    %c0_70 = arith.constant 0 : index
    %c1_71 = arith.constant 1 : index
    %c0_72 = arith.constant 0 : index
    %75 = vector.load %arg6[%c0_70, %c1_71, %c0_72] : memref<10x10x128xf32, #tpu.memory_space<vmem>>, vector<8x8x128xf32>
    %76 = arith.truncf %75 : vector<8x8x128xf32> to vector<8x8x128xbf16>
    %c0_73 = arith.constant 0 : index
    %c2_74 = arith.constant 2 : index
    %c0_75 = arith.constant 0 : index
    %77 = vector.load %arg6[%c0_73, %c2_74, %c0_75] : memref<10x10x128xf32, #tpu.memory_space<vmem>>, vector<8x8x128xf32>
    %78 = arith.truncf %77 : vector<8x8x128xf32> to vector<8x8x128xbf16>
    %79 = tpu.concatenate %74, %76, %78 in 2 : vector<8x8x128xbf16>, vector<8x8x128xbf16>, vector<8x8x128xbf16> -> vector<8x8x384xbf16>
    %80 = vector.shape_cast %79 : vector<8x8x384xbf16> to vector<64x384xbf16>
    %c1_76 = arith.constant 1 : index
    %c0_77 = arith.constant 0 : index
    %c0_78 = arith.constant 0 : index
    %81 = vector.load %arg2[%c1_76, %c0_77, %c0_78] : memref<3x1152x128xbf16, #tpu.memory_space<vmem>>, vector<1x384x128xbf16>
    %82 = vector.shape_cast %81 : vector<1x384x128xbf16> to vector<384x128xbf16>
    %cst_79 = arith.constant dense<0.000000e+00> : vector<64x128xf32>
    %83 = tpu.matmul %80, %82, %cst_79 {dimension_numbers = #tpu.dot_dimension_numbers<[1], [0], [0], [1], [0, 0, 1, 1], [], []>} : vector<64x384xbf16>, vector<384x128xbf16>, vector<64x128xf32> -> vector<64x128xf32>
    %c1_80 = arith.constant 1 : index
    %c0_81 = arith.constant 0 : index
    %c0_82 = arith.constant 0 : index
    %84 = vector.load %arg6[%c1_80, %c0_81, %c0_82] : memref<10x10x128xf32, #tpu.memory_space<vmem>>, vector<8x8x128xf32>
    %85 = arith.truncf %84 : vector<8x8x128xf32> to vector<8x8x128xbf16>
    %c1_83 = arith.constant 1 : index
    %c1_84 = arith.constant 1 : index
    %c0_85 = arith.constant 0 : index
    %86 = vector.load %arg6[%c1_83, %c1_84, %c0_85] : memref<10x10x128xf32, #tpu.memory_space<vmem>>, vector<8x8x128xf32>
    %87 = arith.truncf %86 : vector<8x8x128xf32> to vector<8x8x128xbf16>
    %c1_86 = arith.constant 1 : index
    %c2_87 = arith.constant 2 : index
    %c0_88 = arith.constant 0 : index
    %88 = vector.load %arg6[%c1_86, %c2_87, %c0_88] : memref<10x10x128xf32, #tpu.memory_space<vmem>>, vector<8x8x128xf32>
    %89 = arith.truncf %88 : vector<8x8x128xf32> to vector<8x8x128xbf16>
    %90 = tpu.concatenate %85, %87, %89 in 2 : vector<8x8x128xbf16>, vector<8x8x128xbf16>, vector<8x8x128xbf16> -> vector<8x8x384xbf16>
    %91 = vector.shape_cast %90 : vector<8x8x384xbf16> to vector<64x384xbf16>
    %c1_89 = arith.constant 1 : index
    %c384_90 = arith.constant 384 : index
    %c0_91 = arith.constant 0 : index
    %92 = vector.load %arg2[%c1_89, %c384_90, %c0_91] : memref<3x1152x128xbf16, #tpu.memory_space<vmem>>, vector<1x384x128xbf16>
    %93 = vector.shape_cast %92 : vector<1x384x128xbf16> to vector<384x128xbf16>
    %cst_92 = arith.constant dense<0.000000e+00> : vector<64x128xf32>
    %94 = tpu.matmul %91, %93, %cst_92 {dimension_numbers = #tpu.dot_dimension_numbers<[1], [0], [0], [1], [0, 0, 1, 1], [], []>} : vector<64x384xbf16>, vector<384x128xbf16>, vector<64x128xf32> -> vector<64x128xf32>
    %95 = arith.addf %83, %94 : vector<64x128xf32>
    %c2_93 = arith.constant 2 : index
    %c0_94 = arith.constant 0 : index
    %c0_95 = arith.constant 0 : index
    %96 = vector.load %arg6[%c2_93, %c0_94, %c0_95] : memref<10x10x128xf32, #tpu.memory_space<vmem>>, vector<8x8x128xf32>
    %97 = arith.truncf %96 : vector<8x8x128xf32> to vector<8x8x128xbf16>
    %c2_96 = arith.constant 2 : index
    %c1_97 = arith.constant 1 : index
    %c0_98 = arith.constant 0 : index
    %98 = vector.load %arg6[%c2_96, %c1_97, %c0_98] : memref<10x10x128xf32, #tpu.memory_space<vmem>>, vector<8x8x128xf32>
    %99 = arith.truncf %98 : vector<8x8x128xf32> to vector<8x8x128xbf16>
    %c2_99 = arith.constant 2 : index
    %c2_100 = arith.constant 2 : index
    %c0_101 = arith.constant 0 : index
    %100 = vector.load %arg6[%c2_99, %c2_100, %c0_101] : memref<10x10x128xf32, #tpu.memory_space<vmem>>, vector<8x8x128xf32>
    %101 = arith.truncf %100 : vector<8x8x128xf32> to vector<8x8x128xbf16>
    %102 = tpu.concatenate %97, %99, %101 in 2 : vector<8x8x128xbf16>, vector<8x8x128xbf16>, vector<8x8x128xbf16> -> vector<8x8x384xbf16>
    %103 = vector.shape_cast %102 : vector<8x8x384xbf16> to vector<64x384xbf16>
    %c1_102 = arith.constant 1 : index
    %c768_103 = arith.constant 768 : index
    %c0_104 = arith.constant 0 : index
    %104 = vector.load %arg2[%c1_102, %c768_103, %c0_104] : memref<3x1152x128xbf16, #tpu.memory_space<vmem>>, vector<1x384x128xbf16>
    %105 = vector.shape_cast %104 : vector<1x384x128xbf16> to vector<384x128xbf16>
    %cst_105 = arith.constant dense<0.000000e+00> : vector<64x128xf32>
    %106 = tpu.matmul %103, %105, %cst_105 {dimension_numbers = #tpu.dot_dimension_numbers<[1], [0], [0], [1], [0, 0, 1, 1], [], []>} : vector<64x384xbf16>, vector<384x128xbf16>, vector<64x128xf32> -> vector<64x128xf32>
    %107 = arith.addf %95, %106 : vector<64x128xf32>
    %108 = vector.extract_strided_slice %70 {offsets = [0, 0], sizes = [1, 128], strides = [1, 1]} : vector<4x128xf32> to vector<1x128xf32>
    %109 = vector.broadcast %108 : vector<1x128xf32> to vector<64x128xf32>
    %110 = arith.mulf %107, %109 : vector<64x128xf32>
    %111 = vector.extract_strided_slice %70 {offsets = [1, 0], sizes = [1, 128], strides = [1, 1]} : vector<4x128xf32> to vector<1x128xf32>
    %112 = vector.broadcast %111 : vector<1x128xf32> to vector<64x128xf32>
    %113 = arith.addf %110, %112 : vector<64x128xf32>
    %cst_106 = arith.constant 0.000000e+00 : f32
    %114 = vector.broadcast %cst_106 : f32 to vector<64x128xf32>
    %115 = arith.maximumf %113, %114 : vector<64x128xf32>
    %116 = vector.shape_cast %115 : vector<64x128xf32> to vector<8x8x128xf32>
    %c1_107 = arith.constant 1 : index
    %c1_108 = arith.constant 1 : index
    %c0_109 = arith.constant 0 : index
    %117 = vector.load %arg6[%c1_107, %c1_108, %c0_109] : memref<10x10x128xf32, #tpu.memory_space<vmem>>, vector<8x8x128xf32>
    tpu.vector_store %arg6[%c1_107, %c1_108, %c0_109], %116 {strides = array<i32>} : memref<10x10x128xf32, #tpu.memory_space<vmem>>, vector<8x8x128xf32>,
    %c0_110 = arith.constant 0 : index
    %c0_111 = arith.constant 0 : index
    %c0_112 = arith.constant 0 : index
    %118 = vector.load %arg6[%c0_110, %c0_111, %c0_112] : memref<10x10x128xf32, #tpu.memory_space<vmem>>, vector<8x8x128xf32>
    %119 = arith.truncf %118 : vector<8x8x128xf32> to vector<8x8x128xbf16>
    %c0_113 = arith.constant 0 : index
    %c1_114 = arith.constant 1 : index
    %c0_115 = arith.constant 0 : index
    %120 = vector.load %arg6[%c0_113, %c1_114, %c0_115] : memref<10x10x128xf32, #tpu.memory_space<vmem>>, vector<8x8x128xf32>
    %121 = arith.truncf %120 : vector<8x8x128xf32> to vector<8x8x128xbf16>
    %c0_116 = arith.constant 0 : index
    %c2_117 = arith.constant 2 : index
    %c0_118 = arith.constant 0 : index
    %122 = vector.load %arg6[%c0_116, %c2_117, %c0_118] : memref<10x10x128xf32, #tpu.memory_space<vmem>>, vector<8x8x128xf32>
    %123 = arith.truncf %122 : vector<8x8x128xf32> to vector<8x8x128xbf16>
    %124 = tpu.concatenate %119, %121, %123 in 2 : vector<8x8x128xbf16>, vector<8x8x128xbf16>, vector<8x8x128xbf16> -> vector<8x8x384xbf16>
    %125 = vector.shape_cast %124 : vector<8x8x384xbf16> to vector<64x384xbf16>
    %c1_119 = arith.constant 1 : index
    %c0_120 = arith.constant 0 : index
    %c0_121 = arith.constant 0 : index
    %126 = vector.load %arg3[%c1_119, %c0_120, %c0_121] : memref<3x1152x128xbf16, #tpu.memory_space<vmem>>, vector<1x384x128xbf16>
    %127 = vector.shape_cast %126 : vector<1x384x128xbf16> to vector<384x128xbf16>
    %cst_122 = arith.constant dense<0.000000e+00> : vector<64x128xf32>
    %128 = tpu.matmul %125, %127, %cst_122 {dimension_numbers = #tpu.dot_dimension_numbers<[1], [0], [0], [1], [0, 0, 1, 1], [], []>} : vector<64x384xbf16>, vector<384x128xbf16>, vector<64x128xf32> -> vector<64x128xf32>
    %c1_123 = arith.constant 1 : index
    %c0_124 = arith.constant 0 : index
    %c0_125 = arith.constant 0 : index
    %129 = vector.load %arg6[%c1_123, %c0_124, %c0_125] : memref<10x10x128xf32, #tpu.memory_space<vmem>>, vector<8x8x128xf32>
    %130 = arith.truncf %129 : vector<8x8x128xf32> to vector<8x8x128xbf16>
    %c1_126 = arith.constant 1 : index
    %c1_127 = arith.constant 1 : index
    %c0_128 = arith.constant 0 : index
    %131 = vector.load %arg6[%c1_126, %c1_127, %c0_128] : memref<10x10x128xf32, #tpu.memory_space<vmem>>, vector<8x8x128xf32>
    %132 = arith.truncf %131 : vector<8x8x128xf32> to vector<8x8x128xbf16>
    %c1_129 = arith.constant 1 : index
    %c2_130 = arith.constant 2 : index
    %c0_131 = arith.constant 0 : index
    %133 = vector.load %arg6[%c1_129, %c2_130, %c0_131] : memref<10x10x128xf32, #tpu.memory_space<vmem>>, vector<8x8x128xf32>
    %134 = arith.truncf %133 : vector<8x8x128xf32> to vector<8x8x128xbf16>
    %135 = tpu.concatenate %130, %132, %134 in 2 : vector<8x8x128xbf16>, vector<8x8x128xbf16>, vector<8x8x128xbf16> -> vector<8x8x384xbf16>
    %136 = vector.shape_cast %135 : vector<8x8x384xbf16> to vector<64x384xbf16>
    %c1_132 = arith.constant 1 : index
    %c384_133 = arith.constant 384 : index
    %c0_134 = arith.constant 0 : index
    %137 = vector.load %arg3[%c1_132, %c384_133, %c0_134] : memref<3x1152x128xbf16, #tpu.memory_space<vmem>>, vector<1x384x128xbf16>
    %138 = vector.shape_cast %137 : vector<1x384x128xbf16> to vector<384x128xbf16>
    %cst_135 = arith.constant dense<0.000000e+00> : vector<64x128xf32>
    %139 = tpu.matmul %136, %138, %cst_135 {dimension_numbers = #tpu.dot_dimension_numbers<[1], [0], [0], [1], [0, 0, 1, 1], [], []>} : vector<64x384xbf16>, vector<384x128xbf16>, vector<64x128xf32> -> vector<64x128xf32>
    %140 = arith.addf %128, %139 : vector<64x128xf32>
    %c2_136 = arith.constant 2 : index
    %c0_137 = arith.constant 0 : index
    %c0_138 = arith.constant 0 : index
    %141 = vector.load %arg6[%c2_136, %c0_137, %c0_138] : memref<10x10x128xf32, #tpu.memory_space<vmem>>, vector<8x8x128xf32>
    %142 = arith.truncf %141 : vector<8x8x128xf32> to vector<8x8x128xbf16>
    %c2_139 = arith.constant 2 : index
    %c1_140 = arith.constant 1 : index
    %c0_141 = arith.constant 0 : index
    %143 = vector.load %arg6[%c2_139, %c1_140, %c0_141] : memref<10x10x128xf32, #tpu.memory_space<vmem>>, vector<8x8x128xf32>
    %144 = arith.truncf %143 : vector<8x8x128xf32> to vector<8x8x128xbf16>
    %c2_142 = arith.constant 2 : index
    %c2_143 = arith.constant 2 : index
    %c0_144 = arith.constant 0 : index
    %145 = vector.load %arg6[%c2_142, %c2_143, %c0_144] : memref<10x10x128xf32, #tpu.memory_space<vmem>>, vector<8x8x128xf32>
    %146 = arith.truncf %145 : vector<8x8x128xf32> to vector<8x8x128xbf16>
    %147 = tpu.concatenate %142, %144, %146 in 2 : vector<8x8x128xbf16>, vector<8x8x128xbf16>, vector<8x8x128xbf16> -> vector<8x8x384xbf16>
    %148 = vector.shape_cast %147 : vector<8x8x384xbf16> to vector<64x384xbf16>
    %c1_145 = arith.constant 1 : index
    %c768_146 = arith.constant 768 : index
    %c0_147 = arith.constant 0 : index
    %149 = vector.load %arg3[%c1_145, %c768_146, %c0_147] : memref<3x1152x128xbf16, #tpu.memory_space<vmem>>, vector<1x384x128xbf16>
    %150 = vector.shape_cast %149 : vector<1x384x128xbf16> to vector<384x128xbf16>
    %cst_148 = arith.constant dense<0.000000e+00> : vector<64x128xf32>
    %151 = tpu.matmul %148, %150, %cst_148 {dimension_numbers = #tpu.dot_dimension_numbers<[1], [0], [0], [1], [0, 0, 1, 1], [], []>} : vector<64x384xbf16>, vector<384x128xbf16>, vector<64x128xf32> -> vector<64x128xf32>
    %152 = arith.addf %140, %151 : vector<64x128xf32>
    %153 = vector.extract_strided_slice %70 {offsets = [2, 0], sizes = [1, 128], strides = [1, 1]} : vector<4x128xf32> to vector<1x128xf32>
    %154 = vector.broadcast %153 : vector<1x128xf32> to vector<64x128xf32>
    %155 = arith.mulf %152, %154 : vector<64x128xf32>
    %156 = vector.extract_strided_slice %70 {offsets = [3, 0], sizes = [1, 128], strides = [1, 1]} : vector<4x128xf32> to vector<1x128xf32>
    %157 = vector.broadcast %156 : vector<1x128xf32> to vector<64x128xf32>
    %158 = arith.addf %155, %157 : vector<64x128xf32>
    %159 = arith.addf %158, %68 : vector<64x128xf32>
    %cst_149 = arith.constant 0.000000e+00 : f32
    %160 = vector.broadcast %cst_149 : f32 to vector<64x128xf32>
    %161 = arith.maximumf %159, %160 : vector<64x128xf32>
    %c2_150 = arith.constant 2 : index
    %c0_151 = arith.constant 0 : index
    %c0_152 = arith.constant 0 : index
    %162 = vector.load %arg4[%c2_150, %c0_151, %c0_152] : memref<3x4x128xf32, #tpu.memory_space<vmem>>, vector<1x4x128xf32>
    %163 = vector.shape_cast %162 : vector<1x4x128xf32> to vector<4x128xf32>
    %164 = vector.shape_cast %161 : vector<64x128xf32> to vector<8x8x128xf32>
    %c1_153 = arith.constant 1 : index
    %c1_154 = arith.constant 1 : index
    %c0_155 = arith.constant 0 : index
    %165 = vector.load %arg6[%c1_153, %c1_154, %c0_155] : memref<10x10x128xf32, #tpu.memory_space<vmem>>, vector<8x8x128xf32>
    tpu.vector_store %arg6[%c1_153, %c1_154, %c0_155], %164 {strides = array<i32>} : memref<10x10x128xf32, #tpu.memory_space<vmem>>, vector<8x8x128xf32>,
    %c0_156 = arith.constant 0 : index
    %c0_157 = arith.constant 0 : index
    %c0_158 = arith.constant 0 : index
    %166 = vector.load %arg6[%c0_156, %c0_157, %c0_158] : memref<10x10x128xf32, #tpu.memory_space<vmem>>, vector<8x8x128xf32>
    %167 = arith.truncf %166 : vector<8x8x128xf32> to vector<8x8x128xbf16>
    %c0_159 = arith.constant 0 : index
    %c1_160 = arith.constant 1 : index
    %c0_161 = arith.constant 0 : index
    %168 = vector.load %arg6[%c0_159, %c1_160, %c0_161] : memref<10x10x128xf32, #tpu.memory_space<vmem>>, vector<8x8x128xf32>
    %169 = arith.truncf %168 : vector<8x8x128xf32> to vector<8x8x128xbf16>
    %c0_162 = arith.constant 0 : index
    %c2_163 = arith.constant 2 : index
    %c0_164 = arith.constant 0 : index
    %170 = vector.load %arg6[%c0_162, %c2_163, %c0_164] : memref<10x10x128xf32, #tpu.memory_space<vmem>>, vector<8x8x128xf32>
    %171 = arith.truncf %170 : vector<8x8x128xf32> to vector<8x8x128xbf16>
    %172 = tpu.concatenate %167, %169, %171 in 2 : vector<8x8x128xbf16>, vector<8x8x128xbf16>, vector<8x8x128xbf16> -> vector<8x8x384xbf16>
    %173 = vector.shape_cast %172 : vector<8x8x384xbf16> to vector<64x384xbf16>
    %c2_165 = arith.constant 2 : index
    %c0_166 = arith.constant 0 : index
    %c0_167 = arith.constant 0 : index
    %174 = vector.load %arg2[%c2_165, %c0_166, %c0_167] : memref<3x1152x128xbf16, #tpu.memory_space<vmem>>, vector<1x384x128xbf16>
    %175 = vector.shape_cast %174 : vector<1x384x128xbf16> to vector<384x128xbf16>
    %cst_168 = arith.constant dense<0.000000e+00> : vector<64x128xf32>
    %176 = tpu.matmul %173, %175, %cst_168 {dimension_numbers = #tpu.dot_dimension_numbers<[1], [0], [0], [1], [0, 0, 1, 1], [], []>} : vector<64x384xbf16>, vector<384x128xbf16>, vector<64x128xf32> -> vector<64x128xf32>
    %c1_169 = arith.constant 1 : index
    %c0_170 = arith.constant 0 : index
    %c0_171 = arith.constant 0 : index
    %177 = vector.load %arg6[%c1_169, %c0_170, %c0_171] : memref<10x10x128xf32, #tpu.memory_space<vmem>>, vector<8x8x128xf32>
    %178 = arith.truncf %177 : vector<8x8x128xf32> to vector<8x8x128xbf16>
    %c1_172 = arith.constant 1 : index
    %c1_173 = arith.constant 1 : index
    %c0_174 = arith.constant 0 : index
    %179 = vector.load %arg6[%c1_172, %c1_173, %c0_174] : memref<10x10x128xf32, #tpu.memory_space<vmem>>, vector<8x8x128xf32>
    %180 = arith.truncf %179 : vector<8x8x128xf32> to vector<8x8x128xbf16>
    %c1_175 = arith.constant 1 : index
    %c2_176 = arith.constant 2 : index
    %c0_177 = arith.constant 0 : index
    %181 = vector.load %arg6[%c1_175, %c2_176, %c0_177] : memref<10x10x128xf32, #tpu.memory_space<vmem>>, vector<8x8x128xf32>
    %182 = arith.truncf %181 : vector<8x8x128xf32> to vector<8x8x128xbf16>
    %183 = tpu.concatenate %178, %180, %182 in 2 : vector<8x8x128xbf16>, vector<8x8x128xbf16>, vector<8x8x128xbf16> -> vector<8x8x384xbf16>
    %184 = vector.shape_cast %183 : vector<8x8x384xbf16> to vector<64x384xbf16>
    %c2_178 = arith.constant 2 : index
    %c384_179 = arith.constant 384 : index
    %c0_180 = arith.constant 0 : index
    %185 = vector.load %arg2[%c2_178, %c384_179, %c0_180] : memref<3x1152x128xbf16, #tpu.memory_space<vmem>>, vector<1x384x128xbf16>
    %186 = vector.shape_cast %185 : vector<1x384x128xbf16> to vector<384x128xbf16>
    %cst_181 = arith.constant dense<0.000000e+00> : vector<64x128xf32>
    %187 = tpu.matmul %184, %186, %cst_181 {dimension_numbers = #tpu.dot_dimension_numbers<[1], [0], [0], [1], [0, 0, 1, 1], [], []>} : vector<64x384xbf16>, vector<384x128xbf16>, vector<64x128xf32> -> vector<64x128xf32>
    %188 = arith.addf %176, %187 : vector<64x128xf32>
    %c2_182 = arith.constant 2 : index
    %c0_183 = arith.constant 0 : index
    %c0_184 = arith.constant 0 : index
    %189 = vector.load %arg6[%c2_182, %c0_183, %c0_184] : memref<10x10x128xf32, #tpu.memory_space<vmem>>, vector<8x8x128xf32>
    %190 = arith.truncf %189 : vector<8x8x128xf32> to vector<8x8x128xbf16>
    %c2_185 = arith.constant 2 : index
    %c1_186 = arith.constant 1 : index
    %c0_187 = arith.constant 0 : index
    %191 = vector.load %arg6[%c2_185, %c1_186, %c0_187] : memref<10x10x128xf32, #tpu.memory_space<vmem>>, vector<8x8x128xf32>
    %192 = arith.truncf %191 : vector<8x8x128xf32> to vector<8x8x128xbf16>
    %c2_188 = arith.constant 2 : index
    %c2_189 = arith.constant 2 : index
    %c0_190 = arith.constant 0 : index
    %193 = vector.load %arg6[%c2_188, %c2_189, %c0_190] : memref<10x10x128xf32, #tpu.memory_space<vmem>>, vector<8x8x128xf32>
    %194 = arith.truncf %193 : vector<8x8x128xf32> to vector<8x8x128xbf16>
    %195 = tpu.concatenate %190, %192, %194 in 2 : vector<8x8x128xbf16>, vector<8x8x128xbf16>, vector<8x8x128xbf16> -> vector<8x8x384xbf16>
    %196 = vector.shape_cast %195 : vector<8x8x384xbf16> to vector<64x384xbf16>
    %c2_191 = arith.constant 2 : index
    %c768_192 = arith.constant 768 : index
    %c0_193 = arith.constant 0 : index
    %197 = vector.load %arg2[%c2_191, %c768_192, %c0_193] : memref<3x1152x128xbf16, #tpu.memory_space<vmem>>, vector<1x384x128xbf16>
    %198 = vector.shape_cast %197 : vector<1x384x128xbf16> to vector<384x128xbf16>
    %cst_194 = arith.constant dense<0.000000e+00> : vector<64x128xf32>
    %199 = tpu.matmul %196, %198, %cst_194 {dimension_numbers = #tpu.dot_dimension_numbers<[1], [0], [0], [1], [0, 0, 1, 1], [], []>} : vector<64x384xbf16>, vector<384x128xbf16>, vector<64x128xf32> -> vector<64x128xf32>
    %200 = arith.addf %188, %199 : vector<64x128xf32>
    %201 = vector.extract_strided_slice %163 {offsets = [0, 0], sizes = [1, 128], strides = [1, 1]} : vector<4x128xf32> to vector<1x128xf32>
    %202 = vector.broadcast %201 : vector<1x128xf32> to vector<64x128xf32>
    %203 = arith.mulf %200, %202 : vector<64x128xf32>
    %204 = vector.extract_strided_slice %163 {offsets = [1, 0], sizes = [1, 128], strides = [1, 1]} : vector<4x128xf32> to vector<1x128xf32>
    %205 = vector.broadcast %204 : vector<1x128xf32> to vector<64x128xf32>
    %206 = arith.addf %203, %205 : vector<64x128xf32>
    %cst_195 = arith.constant 0.000000e+00 : f32
    %207 = vector.broadcast %cst_195 : f32 to vector<64x128xf32>
    %208 = arith.maximumf %206, %207 : vector<64x128xf32>
    %209 = vector.shape_cast %208 : vector<64x128xf32> to vector<8x8x128xf32>
    %c1_196 = arith.constant 1 : index
    %c1_197 = arith.constant 1 : index
    %c0_198 = arith.constant 0 : index
    %210 = vector.load %arg6[%c1_196, %c1_197, %c0_198] : memref<10x10x128xf32, #tpu.memory_space<vmem>>, vector<8x8x128xf32>
    tpu.vector_store %arg6[%c1_196, %c1_197, %c0_198], %209 {strides = array<i32>} : memref<10x10x128xf32, #tpu.memory_space<vmem>>, vector<8x8x128xf32>,
    %c0_199 = arith.constant 0 : index
    %c0_200 = arith.constant 0 : index
    %c0_201 = arith.constant 0 : index
    %211 = vector.load %arg6[%c0_199, %c0_200, %c0_201] : memref<10x10x128xf32, #tpu.memory_space<vmem>>, vector<8x8x128xf32>
    %212 = arith.truncf %211 : vector<8x8x128xf32> to vector<8x8x128xbf16>
    %c0_202 = arith.constant 0 : index
    %c1_203 = arith.constant 1 : index
    %c0_204 = arith.constant 0 : index
    %213 = vector.load %arg6[%c0_202, %c1_203, %c0_204] : memref<10x10x128xf32, #tpu.memory_space<vmem>>, vector<8x8x128xf32>
    %214 = arith.truncf %213 : vector<8x8x128xf32> to vector<8x8x128xbf16>
    %c0_205 = arith.constant 0 : index
    %c2_206 = arith.constant 2 : index
    %c0_207 = arith.constant 0 : index
    %215 = vector.load %arg6[%c0_205, %c2_206, %c0_207] : memref<10x10x128xf32, #tpu.memory_space<vmem>>, vector<8x8x128xf32>
    %216 = arith.truncf %215 : vector<8x8x128xf32> to vector<8x8x128xbf16>
    %217 = tpu.concatenate %212, %214, %216 in 2 : vector<8x8x128xbf16>, vector<8x8x128xbf16>, vector<8x8x128xbf16> -> vector<8x8x384xbf16>
    %218 = vector.shape_cast %217 : vector<8x8x384xbf16> to vector<64x384xbf16>
    %c2_208 = arith.constant 2 : index
    %c0_209 = arith.constant 0 : index
    %c0_210 = arith.constant 0 : index
    %219 = vector.load %arg3[%c2_208, %c0_209, %c0_210] : memref<3x1152x128xbf16, #tpu.memory_space<vmem>>, vector<1x384x128xbf16>
    %220 = vector.shape_cast %219 : vector<1x384x128xbf16> to vector<384x128xbf16>
    %cst_211 = arith.constant dense<0.000000e+00> : vector<64x128xf32>
    %221 = tpu.matmul %218, %220, %cst_211 {dimension_numbers = #tpu.dot_dimension_numbers<[1], [0], [0], [1], [0, 0, 1, 1], [], []>} : vector<64x384xbf16>, vector<384x128xbf16>, vector<64x128xf32> -> vector<64x128xf32>
    %c1_212 = arith.constant 1 : index
    %c0_213 = arith.constant 0 : index
    %c0_214 = arith.constant 0 : index
    %222 = vector.load %arg6[%c1_212, %c0_213, %c0_214] : memref<10x10x128xf32, #tpu.memory_space<vmem>>, vector<8x8x128xf32>
    %223 = arith.truncf %222 : vector<8x8x128xf32> to vector<8x8x128xbf16>
    %c1_215 = arith.constant 1 : index
    %c1_216 = arith.constant 1 : index
    %c0_217 = arith.constant 0 : index
    %224 = vector.load %arg6[%c1_215, %c1_216, %c0_217] : memref<10x10x128xf32, #tpu.memory_space<vmem>>, vector<8x8x128xf32>
    %225 = arith.truncf %224 : vector<8x8x128xf32> to vector<8x8x128xbf16>
    %c1_218 = arith.constant 1 : index
    %c2_219 = arith.constant 2 : index
    %c0_220 = arith.constant 0 : index
    %226 = vector.load %arg6[%c1_218, %c2_219, %c0_220] : memref<10x10x128xf32, #tpu.memory_space<vmem>>, vector<8x8x128xf32>
    %227 = arith.truncf %226 : vector<8x8x128xf32> to vector<8x8x128xbf16>
    %228 = tpu.concatenate %223, %225, %227 in 2 : vector<8x8x128xbf16>, vector<8x8x128xbf16>, vector<8x8x128xbf16> -> vector<8x8x384xbf16>
    %229 = vector.shape_cast %228 : vector<8x8x384xbf16> to vector<64x384xbf16>
    %c2_221 = arith.constant 2 : index
    %c384_222 = arith.constant 384 : index
    %c0_223 = arith.constant 0 : index
    %230 = vector.load %arg3[%c2_221, %c384_222, %c0_223] : memref<3x1152x128xbf16, #tpu.memory_space<vmem>>, vector<1x384x128xbf16>
    %231 = vector.shape_cast %230 : vector<1x384x128xbf16> to vector<384x128xbf16>
    %cst_224 = arith.constant dense<0.000000e+00> : vector<64x128xf32>
    %232 = tpu.matmul %229, %231, %cst_224 {dimension_numbers = #tpu.dot_dimension_numbers<[1], [0], [0], [1], [0, 0, 1, 1], [], []>} : vector<64x384xbf16>, vector<384x128xbf16>, vector<64x128xf32> -> vector<64x128xf32>
    %233 = arith.addf %221, %232 : vector<64x128xf32>
    %c2_225 = arith.constant 2 : index
    %c0_226 = arith.constant 0 : index
    %c0_227 = arith.constant 0 : index
    %234 = vector.load %arg6[%c2_225, %c0_226, %c0_227] : memref<10x10x128xf32, #tpu.memory_space<vmem>>, vector<8x8x128xf32>
    %235 = arith.truncf %234 : vector<8x8x128xf32> to vector<8x8x128xbf16>
    %c2_228 = arith.constant 2 : index
    %c1_229 = arith.constant 1 : index
    %c0_230 = arith.constant 0 : index
    %236 = vector.load %arg6[%c2_228, %c1_229, %c0_230] : memref<10x10x128xf32, #tpu.memory_space<vmem>>, vector<8x8x128xf32>
    %237 = arith.truncf %236 : vector<8x8x128xf32> to vector<8x8x128xbf16>
    %c2_231 = arith.constant 2 : index
    %c2_232 = arith.constant 2 : index
    %c0_233 = arith.constant 0 : index
    %238 = vector.load %arg6[%c2_231, %c2_232, %c0_233] : memref<10x10x128xf32, #tpu.memory_space<vmem>>, vector<8x8x128xf32>
    %239 = arith.truncf %238 : vector<8x8x128xf32> to vector<8x8x128xbf16>
    %240 = tpu.concatenate %235, %237, %239 in 2 : vector<8x8x128xbf16>, vector<8x8x128xbf16>, vector<8x8x128xbf16> -> vector<8x8x384xbf16>
    %241 = vector.shape_cast %240 : vector<8x8x384xbf16> to vector<64x384xbf16>
    %c2_234 = arith.constant 2 : index
    %c768_235 = arith.constant 768 : index
    %c0_236 = arith.constant 0 : index
    %242 = vector.load %arg3[%c2_234, %c768_235, %c0_236] : memref<3x1152x128xbf16, #tpu.memory_space<vmem>>, vector<1x384x128xbf16>
    %243 = vector.shape_cast %242 : vector<1x384x128xbf16> to vector<384x128xbf16>
    %cst_237 = arith.constant dense<0.000000e+00> : vector<64x128xf32>
    %244 = tpu.matmul %241, %243, %cst_237 {dimension_numbers = #tpu.dot_dimension_numbers<[1], [0], [0], [1], [0, 0, 1, 1], [], []>} : vector<64x384xbf16>, vector<384x128xbf16>, vector<64x128xf32> -> vector<64x128xf32>
    %245 = arith.addf %233, %244 : vector<64x128xf32>
    %246 = vector.extract_strided_slice %163 {offsets = [2, 0], sizes = [1, 128], strides = [1, 1]} : vector<4x128xf32> to vector<1x128xf32>
    %247 = vector.broadcast %246 : vector<1x128xf32> to vector<64x128xf32>
    %248 = arith.mulf %245, %247 : vector<64x128xf32>
    %249 = vector.extract_strided_slice %163 {offsets = [3, 0], sizes = [1, 128], strides = [1, 1]} : vector<4x128xf32> to vector<1x128xf32>
    %250 = vector.broadcast %249 : vector<1x128xf32> to vector<64x128xf32>
    %251 = arith.addf %248, %250 : vector<64x128xf32>
    %252 = arith.addf %251, %161 : vector<64x128xf32>
    %cst_238 = arith.constant 0.000000e+00 : f32
    %253 = vector.broadcast %cst_238 : f32 to vector<64x128xf32>
    %254 = arith.maximumf %252, %253 : vector<64x128xf32>
    %255 = vector.shape_cast %254 : vector<64x128xf32> to vector<8x8x128xf32>
    %c0_239 = arith.constant 0 : index
    %c0_240 = arith.constant 0 : index
    %c0_241 = arith.constant 0 : index
    %c0_242 = arith.constant 0 : index
    %256 = vector.load %arg5[%c0_239, %c0_240, %c0_241, %c0_242] : memref<1x8x8x128xf32, #tpu.memory_space<vmem>>, vector<1x8x8x128xf32>
    %257 = vector.shape_cast %256 : vector<1x8x8x128xf32> to vector<8x8x128xf32>
    %258 = vector.shape_cast %255 : vector<8x8x128xf32> to vector<1x8x8x128xf32>
    tpu.vector_store %arg5[%c0_239, %c0_240, %c0_241, %c0_242], %258 {strides = array<i32>} : memref<1x8x8x128xf32, #tpu.memory_space<vmem>>, vector<1x8x8x128xf32>,
    return
  }
  func.func @transform_0(%arg0: i32) -> (i32, i32, i32) {
    %c0_i32 = arith.constant 0 : i32
    %c0_i32_0 = arith.constant 0 : i32
    %c0_i32_1 = arith.constant 0 : i32
    return %arg0, %c0_i32, %c0_i32_0 : i32, i32, i32
  }
  func.func @transform_1(%arg0: i32) -> (i32, i32, i32) {
    %c0_i32 = arith.constant 0 : i32
    %c0_i32_0 = arith.constant 0 : i32
    %c0_i32_1 = arith.constant 0 : i32
    %c0_i32_2 = arith.constant 0 : i32
    return %c0_i32, %c0_i32_0, %c0_i32_1 : i32, i32, i32
  }
  func.func @transform_2(%arg0: i32) -> (i32, i32, i32) {
    %c0_i32 = arith.constant 0 : i32
    %c0_i32_0 = arith.constant 0 : i32
    %c0_i32_1 = arith.constant 0 : i32
    %c0_i32_2 = arith.constant 0 : i32
    return %c0_i32, %c0_i32_0, %c0_i32_1 : i32, i32, i32
  }
  func.func @transform_3(%arg0: i32) -> (i32, i32, i32) {
    %c0_i32 = arith.constant 0 : i32
    %c0_i32_0 = arith.constant 0 : i32
    %c0_i32_1 = arith.constant 0 : i32
    %c0_i32_2 = arith.constant 0 : i32
    return %c0_i32, %c0_i32_0, %c0_i32_1 : i32, i32, i32
  }
  func.func @transform_4(%arg0: i32) -> (i32, i32, i32, i32) {
    %c0_i32 = arith.constant 0 : i32
    %c0_i32_0 = arith.constant 0 : i32
    %c0_i32_1 = arith.constant 0 : i32
    %c0_i32_2 = arith.constant 0 : i32
    return %arg0, %c0_i32, %c0_i32_0, %c0_i32_1 : i32, i32, i32, i32
  }
}

</mosaic_0001>

<llo_original>
// kernel: _lambda_.1
$region0: #{_lambda_.1}
  #allocation0 [shape = 'u32[]', space=smem, size = 0x4, offset = 0x4, fixed_abs, tag = 'smem constant byte address 0x4 - core index']
  #allocation1 [shape = 'u32[144,128]{1,0:T(1,128)}', space=vmem, size = 0x12000, scoped, tag = 'internal scratch']
  #allocation2 [shape = 'f32[10,10,128]{2,1,0:T(8,128)}', space=vmem, size = 0x14000, scoped, tag = 'scratch operand']
  %s0 = inlined_call_operand.vmem [shape: bf16[2,64,1152], index: 0, kind: input, shape index: {}]
  %s1 = inlined_call_operand.vmem [shape: bf16[3,1152,128], index: 1, kind: input, shape index: {}]
  %s2 = inlined_call_operand.hbm [shape: bf16[3,1152,128], index: 2, kind: input, shape index: {}]
  %s3 = inlined_call_operand.vmem [shape: f32[3,4,128], index: 3, kind: input, shape index: {}]
  %s4 = inlined_call_operand.vmem [shape: f32[2,8,8,128], index: 4, kind: output, shape index: {}]
  %s5 = sld [smem:[#allocation0]]
  $region53: #{_lambda_.1} parent=0
    _
  %s7 = ssub.s32 1, %s5
  %s8 = scalar_select 0, %s7, %s5
  $region1: #{_lambda_.1} parent=0
    #allocation3 [shape = 'u8[884736]{0}', space=vmem, size = 0xd8000, scoped, tag = 'input window, operand 2, single buffered']
    #allocation4 [shape = 's32[2]{0}', space=sflag, size = 0x8, scoped, tag = 'scoped memory for _lambda_.1']
    %9 = vsyncpa [#allocation4], 0
    loop: start=0, step=1, limit=4
    $region2: #{_lambda_.1} parent=1 // loop_pre_header
      _
    $region3: #{_lambda_.1} parent=1 // loop_header
      %s11 = sphi 0, %s15
      %p12 = scmp.ge.s32.totalorder %s11, 4
      %s21 = sphi 0, %s23
      %s24 = sphi 0, %s21
      %s25 = sphi 0, %s24
      %s41 = sphi 0, %s25
      %s45 = sphi 0, %s45
      %s47 = sphi 0, %s45
      %s48 = sphi 0, %s47
      %s62 = sphi 0, %s48
      %s66 = sphi 0, %s66
      %s68 = sphi 0, %s66
      %s69 = sphi 0, %s68
      %s83 = sphi 0, %s69
      %s87 = sphi 0, %s87
      %s89 = sphi 0, %s87
      %s90 = sphi 0, %s89
      %s104 = sphi 0, %s90
      %s110 = sphi 0, %s112
      %s113 = sphi 0, %s110
      %s114 = sphi 0, %s113
      %s130 = sphi 0, %s114
    $region4: #{_lambda_.1} parent=1 // loop_header_branch
      %14 = sbr.rel (%p12) target = $region8
    $region5: #{_lambda_.1} parent=1 // loop_body
      %s16 = ssub.s32 %s11, 1
      %s17 = ssub.s32 %s11, 2
      %s18 = sadd.s32 %s11, 1
      %s19 = ssub.s32 %s11, %s18
      %p20 = scmp.eq.s32.totalorder %s19, 0
      %s22 = sadd.s32 %s21, 1
      %s23 = scalar_select %p20, %s21, %s22
      %p26 = pneg %p20
      %p27 = scmp.eq.s32.totalorder %s11, 1
      %p28 = por %p26, %p27
      %p29 = scmp.ne.s32.totalorder %s21, %s24
      %p30 = scmp.eq.s32.totalorder %s11, 0
      %p31 = por %p29, %p30
      %p32 = scmp.ne.s32.totalorder %s21, %s24
      %p33 = scmp.eq.s32.totalorder %s16, 1
      %p34 = por %p32, %p33
      %p35 = scmp.ne.s32.totalorder %s24, %s25
      %p36 = scmp.eq.s32.totalorder %s16, 0
      %p37 = por %p35, %p36
      %p38 = scmp.ne.s32.totalorder %s24, %s25
      %p39 = scmp.eq.s32.totalorder %s17, 1
      %p40 = por %p38, %p39
      %p42 = scmp.ne.s32.totalorder %s25, %s41
      %p43 = scmp.eq.s32.totalorder %s17, 0
      %p44 = por %p42, %p43
      %s46 = sadd.s32 %s45, 1
      %p49 = scmp.eq.s32.totalorder %s11, 1
      %p50 = scmp.ne.s32.totalorder %s45, %s47
      %p51 = scmp.eq.s32.totalorder %s11, 0
      %p52 = por %p50, %p51
      %p53 = scmp.ne.s32.totalorder %s45, %s47
      %p54 = scmp.eq.s32.totalorder %s16, 1
      %p55 = por %p53, %p54
      %p56 = scmp.ne.s32.totalorder %s47, %s48
      %p57 = scmp.eq.s32.totalorder %s16, 0
      %p58 = por %p56, %p57
      %p59 = scmp.ne.s32.totalorder %s47, %s48
      %p60 = scmp.eq.s32.totalorder %s17, 1
      %p61 = por %p59, %p60
      %p63 = scmp.ne.s32.totalorder %s48, %s62
      %p64 = scmp.eq.s32.totalorder %s17, 0
      %p65 = por %p63, %p64
      %s67 = sadd.s32 %s66, 1
      %p70 = scmp.eq.s32.totalorder %s11, 1
      %p71 = scmp.ne.s32.totalorder %s66, %s68
      %p72 = scmp.eq.s32.totalorder %s11, 0
      %p73 = por %p71, %p72
      %p74 = scmp.ne.s32.totalorder %s66, %s68
      %p75 = scmp.eq.s32.totalorder %s16, 1
      %p76 = por %p74, %p75
      %p77 = scmp.ne.s32.totalorder %s68, %s69
      %p78 = scmp.eq.s32.totalorder %s16, 0
      %p79 = por %p77, %p78
      %p80 = scmp.ne.s32.totalorder %s68, %s69
      %p81 = scmp.eq.s32.totalorder %s17, 1
      %p82 = por %p80, %p81
      %p84 = scmp.ne.s32.totalorder %s69, %s83
      %p85 = scmp.eq.s32.totalorder %s17, 0
      %p86 = por %p84, %p85
      %s88 = sadd.s32 %s87, 1
      %p91 = scmp.eq.s32.totalorder %s11, 1
      %p92 = scmp.ne.s32.totalorder %s87, %s89
      %p93 = scmp.eq.s32.totalorder %s11, 0
      %p94 = por %p92, %p93
      %p95 = scmp.ne.s32.totalorder %s87, %s89
      %p96 = scmp.eq.s32.totalorder %s16, 1
      %p97 = por %p95, %p96
      %p98 = scmp.ne.s32.totalorder %s89, %s90
      %p99 = scmp.eq.s32.totalorder %s16, 0
      %p100 = por %p98, %p99
      %p101 = scmp.ne.s32.totalorder %s89, %s90
      %p102 = scmp.eq.s32.totalorder %s17, 1
      %p103 = por %p101, %p102
      %p105 = scmp.ne.s32.totalorder %s90, %s104
      %p106 = scmp.eq.s32.totalorder %s17, 0
      %p107 = por %p105, %p106
      %s108 = ssub.s32 %s11, %s18
      %p109 = scmp.eq.s32.totalorder %s108, 0
      %s111 = sadd.s32 %s110, 1
      %s112 = scalar_select %p109, %s110, %s111
      %p115 = pneg %p109
      %p116 = scmp.eq.s32.totalorder %s11, 1
      %p117 = por %p115, %p116
      %p118 = scmp.ne.s32.totalorder %s110, %s113
      %p119 = scmp.eq.s32.totalorder %s11, 0
      %p120 = por %p118, %p119
      %p121 = scmp.ne.s32.totalorder %s110, %s113
      %p122 = scmp.eq.s32.totalorder %s16, 1
      %p123 = por %p121, %p122
      %p124 = scmp.ne.s32.totalorder %s113, %s114
      %p125 = scmp.eq.s32.totalorder %s16, 0
      %p126 = por %p124, %p125
      %p127 = scmp.ne.s32.totalorder %s113, %s114
      %p128 = scmp.eq.s32.totalorder %s17, 1
      %p129 = por %p127, %p128
      %p131 = scmp.ne.s32.totalorder %s114, %s130
      %p132 = scmp.eq.s32.totalorder %s17, 0
      %p133 = por %p131, %p132
      %p134 = scmp.le.s32.totalorder 1, %s11
      %p135 = scmp.lt.s32.totalorder %s11, 3
      %p136 = pnand %p134, %p135
      %p137 = pneg %p136
      // Predicated region
      $region9: #{_lambda_.1} parent=5 // pred_check
        _
      $region10: #{_lambda_.1} parent=5 // pred_check_branch
        %139 = sbr.rel (%p136) target = $region12
      $region11: #{_lambda_.1} parent=5 // pred_region
        %s140 = ssub.s32 %s11, 1
        // Predicated region
        $region13: #{_lambda_.1} parent=11 // pred_check
          %p141 = pneg %p58
        $region14: #{_lambda_.1} parent=11 // pred_check_branch
          %143 = sbr.rel (%p141) target = $region16
        $region15: #{_lambda_.1} parent=11 // pred_region
          _
        $region16: #{_lambda_.1} parent=11 // pred_fallthru
          _
        // Predicated region
        $region17: #{_lambda_.1} parent=11 // pred_check
          %p144 = pneg %p79
        $region18: #{_lambda_.1} parent=11 // pred_check_branch
          %146 = sbr.rel (%p144) target = $region20
        $region19: #{_lambda_.1} parent=11 // pred_region
          %s148 = ssub.s32 27648, 27648
          %149 = vsyncadd [#allocation4], %s148
          %s150 = sshll.u32 [#allocation3], 4
          %s151 = int_to_ptr.vmem [resolvable:$true] %s150
          %156 = dma.hbm_to_vmem [thread:$0]  %s2, 27648, %s151, [#allocation4], 64, 64, 4
        $region20: #{_lambda_.1} parent=11 // pred_fallthru
          _
        // Predicated region
        $region21: #{_lambda_.1} parent=11 // pred_check
          %p157 = pneg %p100
        $region22: #{_lambda_.1} parent=11 // pred_check_branch
          %159 = sbr.rel (%p157) target = $region24
        $region23: #{_lambda_.1} parent=11 // pred_region
          _
        $region24: #{_lambda_.1} parent=11 // pred_fallthru
          _
      $region12: #{_lambda_.1} parent=5 // pred_fallthru
        _
      %p160 = scmp.lt.s32.totalorder %s11, 2
      // Predicated region
      $region25: #{_lambda_.1} parent=5 // pred_check
        %p161 = pneg %p160
      $region26: #{_lambda_.1} parent=5 // pred_check_branch
        %163 = sbr.rel (%p161) target = $region28
      $region27: #{_lambda_.1} parent=5 // pred_region
        // Predicated region
        $region29: #{_lambda_.1} parent=27 // pred_check
          %p164 = pneg %p31
        $region30: #{_lambda_.1} parent=27 // pred_check_branch
          %166 = sbr.rel (%p164) target = $region32
        $region31: #{_lambda_.1} parent=27 // pred_region
          %p167 = scmp.lt.s32.totalorder %s11, 1
          %s168 = scalar_select %p167, %s11, 1
          %s169 = smul.addr %s168, 72
          %s170 = smul.addr %s169, 4
          %s171 = scalar_lea.vmem %s0, %s170
        $region32: #{_lambda_.1} parent=27 // pred_fallthru
          _
      $region28: #{_lambda_.1} parent=5 // pred_fallthru
        _
      %p172 = scmp.le.s32.totalorder 1, %s11
      %p173 = scmp.lt.s32.totalorder %s11, 3
      %p174 = pnand %p172, %p173
      %p175 = pneg %p174
      // Predicated region
      $region33: #{_lambda_.1} parent=5 // pred_check
        _
      $region34: #{_lambda_.1} parent=5 // pred_check_branch
        %177 = sbr.rel (%p174) target = $region36
      $region35: #{_lambda_.1} parent=5 // pred_region
        %s178 = ssub.s32 %s11, 1
        // Predicated region
        $region37: #{_lambda_.1} parent=35 // pred_check
          %p179 = pneg %p79
        $region38: #{_lambda_.1} parent=35 // pred_check_branch
          %181 = sbr.rel (%p179) target = $region40
        $region39: #{_lambda_.1} parent=35 // pred_region
          %182 = dma.done [#allocation4], 27648
        $region40: #{_lambda_.1} parent=35 // pred_fallthru
          _
        %p183 = scmp.lt.s32.totalorder %s16, 1
        %s184 = scalar_select %p183, %s16, 1
        %s185 = smul.addr %s184, 72
        %s186 = smul.addr %s185, 4
        %s187 = scalar_lea.vmem %s0, %s186
        %p188 = pneg %p37
        %p189 = pneg %p34
        %p190 = pneg %p58
        %p191 = pneg %p55
        %p192 = pneg %p79
        %p193 = pneg %p76
        %p194 = pneg %p100
        %p195 = pneg %p97
        %p196 = pneg %p126
        %p197 = pneg %p123
        %p198 = scmp.lt.s32.totalorder %s16, 1
        %s199 = scalar_select %p198, %s16, 1
        %s200 = smul.addr %s199, 8
        %s201 = smul.addr %s200, 8
        %s202 = scalar_lea.vmem %s4, %s201
        %p203 = scmp.lt.s32.totalorder %s16, 1
        %s204 = scalar_select %p203, %s16, 1
        %s205 = smul.addr %s204, 72
        %s206 = smul.addr %s205, 4
        %s207 = scalar_lea.vmem %s0, %s206
        %p208 = scmp.lt.s32.totalorder %s16, 1
        %s209 = scalar_select %p208, %s16, 1
        %s210 = smul.addr %s209, 8
        %s211 = smul.addr %s210, 8
        %s212 = scalar_lea.vmem %s4, %s211
        %214 = vst [vmem:[#allocation2] sm:$0xff] 0.0
        %215 = vst [vmem:[#allocation2 + $0x8] sm:$0x3] 0.0
        %s216 = scalar_lea.vmem [#allocation2], 144
        %217 = vst [vmem:[%s216] sm:$0xff] 0.0
        %218 = vst [vmem:[%s216 + $0x8] sm:$0x3] 0.0
        %219 = vst [vmem:[#allocation2] sm:$0x1] 0.0
        %220 = vst [vmem:[#allocation2 + $0x10] sm:$0x1] 0.0
        %221 = vst [vmem:[#allocation2 + $0x20] sm:$0x1] 0.0
        %222 = vst [vmem:[#allocation2 + $0x30] sm:$0x1] 0.0
        %223 = vst [vmem:[#allocation2 + $0x40] sm:$0x1] 0.0
        %224 = vst [vmem:[#allocation2 + $0x50] sm:$0x1] 0.0
        %225 = vst [vmem:[#allocation2 + $0x60] sm:$0x1] 0.0
        %226 = vst [vmem:[#allocation2 + $0x70] sm:$0x1] 0.0
        %227 = vst [vmem:[#allocation2 + $0x80] sm:$0x1] 0.0
        %228 = vst [vmem:[#allocation2 + $0x90] sm:$0x1] 0.0
        %229 = vst [vmem:[#allocation2 + $0x9] sm:$0x1] 0.0
        %230 = vst [vmem:[#allocation2 + $0x19] sm:$0x1] 0.0
        %231 = vst [vmem:[#allocation2 + $0x29] sm:$0x1] 0.0
        %232 = vst [vmem:[#allocation2 + $0x39] sm:$0x1] 0.0
        %233 = vst [vmem:[#allocation2 + $0x49] sm:$0x1] 0.0
        %234 = vst [vmem:[#allocation2 + $0x59] sm:$0x1] 0.0
        %235 = vst [vmem:[#allocation2 + $0x69] sm:$0x1] 0.0
        %236 = vst [vmem:[#allocation2 + $0x79] sm:$0x1] 0.0
        %237 = vst [vmem:[#allocation2 + $0x89] sm:$0x1] 0.0
        %238 = vst [vmem:[#allocation2 + $0x99] sm:$0x1] 0.0
        %v239 = vld [vmem:[%s3] sm:$0xf]
        %v240 = vld [vmem:[%s207] sm:$0xff]
        %v241 = vld [vmem:[%s207 + $0x8] sm:$0xff]
        %v242 = vld [vmem:[%s207 + $0x10] sm:$0xff]
        %v243 = vld [vmem:[%s207 + $0x18] sm:$0xff]
        %v244 = vld [vmem:[%s207 + $0x20] sm:$0xf]
        %v245 = vld [vmem:[%s207 + $0x24] sm:$0xff]
        %v246 = vld [vmem:[%s207 + $0x2c] sm:$0xff]
        %v247 = vld [vmem:[%s207 + $0x34] sm:$0xff]
        %v248 = vld [vmem:[%s207 + $0x3c] sm:$0xff]
        %v249 = vld [vmem:[%s207 + $0x44] sm:$0xf]
        %v250 = vld [vmem:[%s207 + $0x48] sm:$0xff]
        %v251 = vld [vmem:[%s207 + $0x50] sm:$0xff]
        %v252 = vld [vmem:[%s207 + $0x58] sm:$0xff]
        %v253 = vld [vmem:[%s207 + $0x60] sm:$0xff]
        %v254 = vld [vmem:[%s207 + $0x68] sm:$0xf]
        %v255 = vld [vmem:[%s207 + $0x6c] sm:$0xff]
        %v256 = vld [vmem:[%s207 + $0x74] sm:$0xff]
        %v257 = vld [vmem:[%s207 + $0x7c] sm:$0xff]
        %v258 = vld [vmem:[%s207 + $0x84] sm:$0xff]
        %v259 = vld [vmem:[%s207 + $0x8c] sm:$0xf]
        %v260 = vld [vmem:[%s207 + $0x90] sm:$0xff]
        %v261 = vld [vmem:[%s207 + $0x98] sm:$0xff]
        %v262 = vld [vmem:[%s207 + $0xa0] sm:$0xff]
        %v263 = vld [vmem:[%s207 + $0xa8] sm:$0xff]
        %v264 = vld [vmem:[%s207 + $0xb0] sm:$0xf]
        %v265 = vld [vmem:[%s207 + $0xb4] sm:$0xff]
        %v266 = vld [vmem:[%s207 + $0xbc] sm:$0xff]
        %v267 = vld [vmem:[%s207 + $0xc4] sm:$0xff]
        %v268 = vld [vmem:[%s207 + $0xcc] sm:$0xff]
        %v269 = vld [vmem:[%s207 + $0xd4] sm:$0xf]
        %v270 = vld [vmem:[%s207 + $0xd8] sm:$0xff]
        %v271 = vld [vmem:[%s207 + $0xe0] sm:$0xff]
        %v272 = vld [vmem:[%s207 + $0xe8] sm:$0xff]
        %v273 = vld [vmem:[%s207 + $0xf0] sm:$0xff]
        %v274 = vld [vmem:[%s207 + $0xf8] sm:$0xf]
        %v275 = vld [vmem:[%s207 + $0xfc] sm:$0xff]
        %v276 = vld [vmem:[%s207 + $0x104] sm:$0xff]
        %v277 = vld [vmem:[%s207 + $0x10c] sm:$0xff]
        %v278 = vld [vmem:[%s207 + $0x114] sm:$0xff]
        %v279 = vld [vmem:[%s207 + $0x11c] sm:$0xf]
        %v280 = vunpack.c.l.bf16 %v242
        %v281 = vunpack.c.l.bf16 %v247
        %v282 = vunpack.c.l.bf16 %v252
        %v283 = vunpack.c.l.bf16 %v257
        %v284 = vunpack.c.l.bf16 %v262
        %v285 = vunpack.c.l.bf16 %v267
        %v286 = vunpack.c.l.bf16 %v272
        %v287 = vunpack.c.l.bf16 %v277
        %v288 = vld [vmem:[%s1] sm:$0xf]
        %v289 = vld [vmem:[%s1 + $0x4] sm:$0xf]
        %v290 = vld [vmem:[%s1 + $0x8] sm:$0xf]
        %v291 = vld [vmem:[%s1 + $0xc] sm:$0xf]
        %v292 = vld [vmem:[%s1 + $0x10] sm:$0xf]
        %v293 = vld [vmem:[%s1 + $0x14] sm:$0xf]
        %v294 = vld [vmem:[%s1 + $0x18] sm:$0xf]
        %v295 = vld [vmem:[%s1 + $0x1c] sm:$0xf]
        %v296 = vld [vmem:[%s1 + $0x20] sm:$0xf]
        %v297 = vld [vmem:[%s1 + $0x24] sm:$0xf]
        %v298 = vld [vmem:[%s1 + $0x28] sm:$0xf]
        %v299 = vld [vmem:[%s1 + $0x2c] sm:$0xf]
        %v300 = vld [vmem:[%s1 + $0x30] sm:$0xf]
        %v301 = vld [vmem:[%s1 + $0x34] sm:$0xf]
        %v302 = vld [vmem:[%s1 + $0x38] sm:$0xf]
        %v303 = vld [vmem:[%s1 + $0x3c] sm:$0xf]
        %v304 = vld [vmem:[%s1 + $0x40] sm:$0xf]
        %v305 = vld [vmem:[%s1 + $0x44] sm:$0xf]
        %v306 = vld [vmem:[%s1 + $0x48] sm:$0xf]
        %v307 = vld [vmem:[%s1 + $0x4c] sm:$0xf]
        %v308 = vld [vmem:[%s1 + $0x50] sm:$0xf]
        %v309 = vld [vmem:[%s1 + $0x54] sm:$0xf]
        %v310 = vld [vmem:[%s1 + $0x58] sm:$0xf]
        %v311 = vld [vmem:[%s1 + $0x5c] sm:$0xf]
        %v312 = vld [vmem:[%s1 + $0x60] sm:$0xf]
        %v313 = vld [vmem:[%s1 + $0x64] sm:$0xf]
        %v314 = vld [vmem:[%s1 + $0x68] sm:$0xf]
        %v315 = vld [vmem:[%s1 + $0x6c] sm:$0xf]
        %v316 = vld [vmem:[%s1 + $0x70] sm:$0xf]
        %v317 = vld [vmem:[%s1 + $0x74] sm:$0xf]
        %v318 = vld [vmem:[%s1 + $0x78] sm:$0xf]
        %v319 = vld [vmem:[%s1 + $0x7c] sm:$0xf]
        %v320 = vld [vmem:[%s1 + $0x80] sm:$0xf]
        %v321 = vld [vmem:[%s1 + $0x84] sm:$0xf]
        %v322 = vld [vmem:[%s1 + $0x88] sm:$0xf]
        %v323 = vld [vmem:[%s1 + $0x8c] sm:$0xf]
        %v324 = vld [vmem:[%s1 + $0x90] sm:$0xf]
        %v325 = vld [vmem:[%s1 + $0x94] sm:$0xf]
        %v326 = vld [vmem:[%s1 + $0x98] sm:$0xf]
        %v327 = vld [vmem:[%s1 + $0x9c] sm:$0xf]
        %v328 = vld [vmem:[%s1 + $0xa0] sm:$0xf]
        %v329 = vld [vmem:[%s1 + $0xa4] sm:$0xf]
        %v330 = vld [vmem:[%s1 + $0xa8] sm:$0xf]
        %v331 = vld [vmem:[%s1 + $0xac] sm:$0xf]
        %v332 = vld [vmem:[%s1 + $0xb0] sm:$0xf]
        %v333 = vld [vmem:[%s1 + $0xb4] sm:$0xf]
        %v334 = vld [vmem:[%s1 + $0xb8] sm:$0xf]
        %v335 = vld [vmem:[%s1 + $0xbc] sm:$0xf]
        %v336 = vld [vmem:[%s1 + $0xc0] sm:$0xf]
        %v337 = vld [vmem:[%s1 + $0xc4] sm:$0xf]
        %v338 = vld [vmem:[%s1 + $0xc8] sm:$0xf]
        %v339 = vld [vmem:[%s1 + $0xcc] sm:$0xf]
        %v340 = vld [vmem:[%s1 + $0xd0] sm:$0xf]
        %v341 = vld [vmem:[%s1 + $0xd4] sm:$0xf]
        %v342 = vld [vmem:[%s1 + $0xd8] sm:$0xf]
        %v343 = vld [vmem:[%s1 + $0xdc] sm:$0xf]
        %v344 = vld [vmem:[%s1 + $0xe0] sm:$0xf]
        %v345 = vld [vmem:[%s1 + $0xe4] sm:$0xf]
        %v346 = vld [vmem:[%s1 + $0xe8] sm:$0xf]
        %v347 = vld [vmem:[%s1 + $0xec] sm:$0xf]
        %v348 = vld [vmem:[%s1 + $0xf0] sm:$0xf]
        %v349 = vld [vmem:[%s1 + $0xf4] sm:$0xf]
        %v350 = vld [vmem:[%s1 + $0xf8] sm:$0xf]
        %v351 = vld [vmem:[%s1 + $0xfc] sm:$0xf]
        %v352 = vld [vmem:[%s1 + $0x100] sm:$0xf]
        %v353 = vld [vmem:[%s1 + $0x104] sm:$0xf]
        %v354 = vld [vmem:[%s1 + $0x108] sm:$0xf]
        %v355 = vld [vmem:[%s1 + $0x10c] sm:$0xf]
        %v356 = vld [vmem:[%s1 + $0x110] sm:$0xf]
        %v357 = vld [vmem:[%s1 + $0x114] sm:$0xf]
        %v358 = vld [vmem:[%s1 + $0x118] sm:$0xf]
        %v359 = vld [vmem:[%s1 + $0x11c] sm:$0xf]
        %v360 = vld [vmem:[%s1 + $0x120] sm:$0xf]
        %v361 = vld [vmem:[%s1 + $0x124] sm:$0xf]
        %v362 = vld [vmem:[%s1 + $0x128] sm:$0xf]
        %v363 = vld [vmem:[%s1 + $0x12c] sm:$0xf]
        %v364 = vld [vmem:[%s1 + $0x130] sm:$0xf]
        %v365 = vld [vmem:[%s1 + $0x134] sm:$0xf]
        %v366 = vld [vmem:[%s1 + $0x138] sm:$0xf]
        %v367 = vld [vmem:[%s1 + $0x13c] sm:$0xf]
        %v368 = vld [vmem:[%s1 + $0x140] sm:$0xf]
        %v369 = vld [vmem:[%s1 + $0x144] sm:$0xf]
        %v370 = vld [vmem:[%s1 + $0x148] sm:$0xf]
        %v371 = vld [vmem:[%s1 + $0x14c] sm:$0xf]
        %v372 = vld [vmem:[%s1 + $0x150] sm:$0xf]
        %v373 = vld [vmem:[%s1 + $0x154] sm:$0xf]
        %v374 = vld [vmem:[%s1 + $0x158] sm:$0xf]
        %v375 = vld [vmem:[%s1 + $0x15c] sm:$0xf]
        %v376 = vld [vmem:[%s1 + $0x160] sm:$0xf]
        %v377 = vld [vmem:[%s1 + $0x164] sm:$0xf]
        %v378 = vld [vmem:[%s1 + $0x168] sm:$0xf]
        %v379 = vld [vmem:[%s1 + $0x16c] sm:$0xf]
        %v380 = vld [vmem:[%s1 + $0x170] sm:$0xf]
        %v381 = vld [vmem:[%s1 + $0x174] sm:$0xf]
        %v382 = vld [vmem:[%s1 + $0x178] sm:$0xf]
        %v383 = vld [vmem:[%s1 + $0x17c] sm:$0xf]
        %v384 = vld [vmem:[%s1 + $0x180] sm:$0xf]
        %v385 = vld [vmem:[%s1 + $0x184] sm:$0xf]
        %v386 = vld [vmem:[%s1 + $0x188] sm:$0xf]
        %v387 = vld [vmem:[%s1 + $0x18c] sm:$0xf]
        %v388 = vld [vmem:[%s1 + $0x190] sm:$0xf]
        %v389 = vld [vmem:[%s1 + $0x194] sm:$0xf]
        %v390 = vld [vmem:[%s1 + $0x198] sm:$0xf]
        %v391 = vld [vmem:[%s1 + $0x19c] sm:$0xf]
        %v392 = vld [vmem:[%s1 + $0x1a0] sm:$0xf]
        %v393 = vld [vmem:[%s1 + $0x1a4] sm:$0xf]
        %v394 = vld [vmem:[%s1 + $0x1a8] sm:$0xf]
        %v395 = vld [vmem:[%s1 + $0x1ac] sm:$0xf]
        %v396 = vld [vmem:[%s1 + $0x1b0] sm:$0xf]
        %v397 = vld [vmem:[%s1 + $0x1b4] sm:$0xf]
        %v398 = vld [vmem:[%s1 + $0x1b8] sm:$0xf]
        %v399 = vld [vmem:[%s1 + $0x1bc] sm:$0xf]
        %v400 = vld [vmem:[%s1 + $0x1c0] sm:$0xf]
        %v401 = vld [vmem:[%s1 + $0x1c4] sm:$0xf]
        %v402 = vld [vmem:[%s1 + $0x1c8] sm:$0xf]
        %v403 = vld [vmem:[%s1 + $0x1cc] sm:$0xf]
        %v404 = vld [vmem:[%s1 + $0x1d0] sm:$0xf]
        %v405 = vld [vmem:[%s1 + $0x1d4] sm:$0xf]
        %v406 = vld [vmem:[%s1 + $0x1d8] sm:$0xf]
        %v407 = vld [vmem:[%s1 + $0x1dc] sm:$0xf]
        %v408 = vld [vmem:[%s1 + $0x1e0] sm:$0xf]
        %v409 = vld [vmem:[%s1 + $0x1e4] sm:$0xf]
        %v410 = vld [vmem:[%s1 + $0x1e8] sm:$0xf]
        %v411 = vld [vmem:[%s1 + $0x1ec] sm:$0xf]
        %v412 = vld [vmem:[%s1 + $0x1f0] sm:$0xf]
        %v413 = vld [vmem:[%s1 + $0x1f4] sm:$0xf]
        %v414 = vld [vmem:[%s1 + $0x1f8] sm:$0xf]
        %v415 = vld [vmem:[%s1 + $0x1fc] sm:$0xf]
        %v416 = vld [vmem:[%s1 + $0x200] sm:$0xf]
        %v417 = vld [vmem:[%s1 + $0x204] sm:$0xf]
        %v418 = vld [vmem:[%s1 + $0x208] sm:$0xf]
        %v419 = vld [vmem:[%s1 + $0x20c] sm:$0xf]
        %v420 = vld [vmem:[%s1 + $0x210] sm:$0xf]
        %v421 = vld [vmem:[%s1 + $0x214] sm:$0xf]
        %v422 = vld [vmem:[%s1 + $0x218] sm:$0xf]
        %v423 = vld [vmem:[%s1 + $0x21c] sm:$0xf]
        %v424 = vld [vmem:[%s1 + $0x220] sm:$0xf]
        %v425 = vld [vmem:[%s1 + $0x224] sm:$0xf]
        %v426 = vld [vmem:[%s1 + $0x228] sm:$0xf]
        %v427 = vld [vmem:[%s1 + $0x22c] sm:$0xf]
        %v428 = vld [vmem:[%s1 + $0x230] sm:$0xf]
        %v429 = vld [vmem:[%s1 + $0x234] sm:$0xf]
        %v430 = vld [vmem:[%s1 + $0x238] sm:$0xf]
        %v431 = vld [vmem:[%s1 + $0x23c] sm:$0xf]
        %v472 = vunpack.c.l.b16 %v240
        %v473 = vunpack.c.h.b16 %v240
        %v474 = vunpack.c.l.b16 %v241
        %v475 = vunpack.c.h.b16 %v241
        %v476 = vunpack.c.l.b16 %v242
        %v477 = vunpack.c.h.b16 %v242
        %v478 = vunpack.c.l.b16 %v243
        %v479 = vunpack.c.h.b16 %v243
        %v480 = vunpack.c.l.b16 %v244
        %v481 = vunpack.c.l.b16 %v245
        %v482 = vunpack.c.h.b16 %v245
        %v483 = vunpack.c.l.b16 %v246
        %v484 = vunpack.c.h.b16 %v246
        %v485 = vunpack.c.l.b16 %v247
        %v486 = vunpack.c.h.b16 %v247
        %v487 = vunpack.c.l.b16 %v248
        %v488 = vunpack.c.h.b16 %v248
        %v489 = vunpack.c.l.b16 %v249
        %v490 = vunpack.c.l.b16 %v250
        %v491 = vunpack.c.h.b16 %v250
        %v492 = vunpack.c.l.b16 %v251
        %v493 = vunpack.c.h.b16 %v251
        %v494 = vunpack.c.l.b16 %v252
        %v495 = vunpack.c.h.b16 %v252
        %v496 = vunpack.c.l.b16 %v253
        %v497 = vunpack.c.h.b16 %v253
        %v498 = vunpack.c.l.b16 %v254
        %v499 = vunpack.c.l.b16 %v255
        %v500 = vunpack.c.h.b16 %v255
        %v501 = vunpack.c.l.b16 %v256
        %v502 = vunpack.c.h.b16 %v256
        %v503 = vunpack.c.l.b16 %v257
        %v504 = vunpack.c.h.b16 %v257
        %v505 = vunpack.c.l.b16 %v258
        %v506 = vunpack.c.h.b16 %v258
        %v507 = vunpack.c.l.b16 %v259
        %v508 = vunpack.c.l.b16 %v260
        %v509 = vunpack.c.h.b16 %v260
        %v510 = vunpack.c.l.b16 %v261
        %v511 = vunpack.c.h.b16 %v261
        %v512 = vunpack.c.l.b16 %v262
        %v513 = vunpack.c.h.b16 %v262
        %v514 = vunpack.c.l.b16 %v263
        %v515 = vunpack.c.h.b16 %v263
        %v516 = vunpack.c.l.b16 %v264
        %v517 = vunpack.c.l.b16 %v265
        %v518 = vunpack.c.h.b16 %v265
        %v519 = vunpack.c.l.b16 %v266
        %v520 = vunpack.c.h.b16 %v266
        %v521 = vunpack.c.l.b16 %v267
        %v522 = vunpack.c.h.b16 %v267
        %v523 = vunpack.c.l.b16 %v268
        %v524 = vunpack.c.h.b16 %v268
        %v525 = vunpack.c.l.b16 %v269
        %v526 = vunpack.c.l.b16 %v270
        %v527 = vunpack.c.h.b16 %v270
        %v528 = vunpack.c.l.b16 %v271
        %v529 = vunpack.c.h.b16 %v271
        %v530 = vunpack.c.l.b16 %v272
        %v531 = vunpack.c.h.b16 %v272
        %v532 = vunpack.c.l.b16 %v273
        %v533 = vunpack.c.h.b16 %v273
        %v534 = vunpack.c.l.b16 %v274
        %v535 = vunpack.c.l.b16 %v275
        %v536 = vunpack.c.h.b16 %v275
        %v537 = vunpack.c.l.b16 %v276
        %v538 = vunpack.c.h.b16 %v276
        %v539 = vunpack.c.l.b16 %v277
        %v540 = vunpack.c.h.b16 %v277
        %v541 = vunpack.c.l.b16 %v278
        %v542 = vunpack.c.h.b16 %v278
        %v543 = vunpack.c.l.b16 %v279
        %v544 = vpack.c.b16 %v481, %v472
        %v545 = vpack.c.b16 %v482, %v473
        %v546 = vpack.c.b16 %v483, %v474
        %v547 = vpack.c.b16 %v484, %v475
        %v548 = vpack.c.b16 %v485, %v476
        %v549 = vpack.c.b16 %v486, %v477
        %v550 = vpack.c.b16 %v487, %v478
        %v551 = vpack.c.b16 %v488, %v479
        %v552 = vpack.c.b16 %v489, %v480
        %v553 = vpack.c.b16 %v499, %v490
        %v554 = vpack.c.b16 %v500, %v491
        %v555 = vpack.c.b16 %v501, %v492
        %v556 = vpack.c.b16 %v502, %v493
        %v557 = vpack.c.b16 %v503, %v494
        %v558 = vpack.c.b16 %v504, %v495
        %v559 = vpack.c.b16 %v505, %v496
        %v560 = vpack.c.b16 %v506, %v497
        %v561 = vpack.c.b16 %v507, %v498
        %v562 = vpack.c.b16 %v517, %v508
        %v563 = vpack.c.b16 %v518, %v509
        %v564 = vpack.c.b16 %v519, %v510
        %v565 = vpack.c.b16 %v520, %v511
        %v566 = vpack.c.b16 %v521, %v512
        %v567 = vpack.c.b16 %v522, %v513
        %v568 = vpack.c.b16 %v523, %v514
        %v569 = vpack.c.b16 %v524, %v515
        %v570 = vpack.c.b16 %v525, %v516
        %v571 = vpack.c.b16 %v535, %v526
        %v572 = vpack.c.b16 %v536, %v527
        %v573 = vpack.c.b16 %v537, %v528
        %v574 = vpack.c.b16 %v538, %v529
        %v575 = vpack.c.b16 %v539, %v530
        %v576 = vpack.c.b16 %v540, %v531
        %v577 = vpack.c.b16 %v541, %v532
        %v578 = vpack.c.b16 %v542, %v533
        %v579 = vpack.c.b16 %v543, %v534
        %v760 = vunpack.c.l.b16 %v288
        %v761 = vunpack.c.l.b16 %v289
        %v762 = vunpack.c.l.b16 %v290
        %v763 = vunpack.c.l.b16 %v291
        %v764 = vunpack.c.l.b16 %v292
        %v765 = vunpack.c.l.b16 %v293
        %v766 = vunpack.c.l.b16 %v294
        %v767 = vunpack.c.l.b16 %v295
        %v768 = vunpack.c.l.b16 %v296
        %v769 = vunpack.c.l.b16 %v297
        %v770 = vunpack.c.l.b16 %v298
        %v771 = vunpack.c.l.b16 %v299
        %v772 = vunpack.c.l.b16 %v300
        %v773 = vunpack.c.l.b16 %v301
        %v774 = vunpack.c.l.b16 %v302
        %v775 = vunpack.c.l.b16 %v303
        %v776 = vunpack.c.l.b16 %v304
        %v777 = vunpack.c.l.b16 %v305
        %v778 = vunpack.c.l.b16 %v306
        %v779 = vunpack.c.l.b16 %v307
        %v780 = vunpack.c.l.b16 %v308
        %v781 = vunpack.c.l.b16 %v309
        %v782 = vunpack.c.l.b16 %v310
        %v783 = vunpack.c.l.b16 %v311
        %v784 = vunpack.c.l.b16 %v312
        %v785 = vunpack.c.l.b16 %v313
        %v786 = vunpack.c.l.b16 %v314
        %v787 = vunpack.c.l.b16 %v315
        %v788 = vunpack.c.l.b16 %v316
        %v789 = vunpack.c.l.b16 %v317
        %v790 = vunpack.c.l.b16 %v318
        %v791 = vunpack.c.l.b16 %v319
        %v792 = vunpack.c.l.b16 %v320
        %v793 = vunpack.c.l.b16 %v321
        %v794 = vunpack.c.l.b16 %v322
        %v795 = vunpack.c.l.b16 %v323
        %v796 = vunpack.c.l.b16 %v324
        %v797 = vunpack.c.l.b16 %v325
        %v798 = vunpack.c.l.b16 %v326
        %v799 = vunpack.c.l.b16 %v327
        %v800 = vunpack.c.l.b16 %v328
        %v801 = vunpack.c.l.b16 %v329
        %v802 = vunpack.c.l.b16 %v330
        %v803 = vunpack.c.l.b16 %v331
        %v804 = vunpack.c.l.b16 %v332
        %v805 = vunpack.c.l.b16 %v333
        %v806 = vunpack.c.l.b16 %v334
        %v807 = vunpack.c.l.b16 %v335
        %v808 = vunpack.c.l.b16 %v336
        %v809 = vunpack.c.l.b16 %v337
        %v810 = vunpack.c.l.b16 %v338
        %v811 = vunpack.c.l.b16 %v339
        %v812 = vunpack.c.l.b16 %v340
        %v813 = vunpack.c.l.b16 %v341
        %v814 = vunpack.c.l.b16 %v342
        %v815 = vunpack.c.l.b16 %v343
        %v816 = vunpack.c.l.b16 %v344
        %v817 = vunpack.c.l.b16 %v345
        %v818 = vunpack.c.l.b16 %v346
        %v819 = vunpack.c.l.b16 %v347
        %v820 = vunpack.c.l.b16 %v348
        %v821 = vunpack.c.l.b16 %v349
        %v822 = vunpack.c.l.b16 %v350
        %v823 = vunpack.c.l.b16 %v351
        %v824 = vunpack.c.l.b16 %v352
        %v825 = vunpack.c.l.b16 %v353
        %v826 = vunpack.c.l.b16 %v354
        %v827 = vunpack.c.l.b16 %v355
        %v828 = vunpack.c.l.b16 %v356
        %v829 = vunpack.c.l.b16 %v357
        %v830 = vunpack.c.l.b16 %v358
        %v831 = vunpack.c.l.b16 %v359
        %v832 = vunpack.c.l.b16 %v360
        %v833 = vunpack.c.l.b16 %v361
        %v834 = vunpack.c.l.b16 %v362
        %v835 = vunpack.c.l.b16 %v363
        %v836 = vunpack.c.l.b16 %v364
        %v837 = vunpack.c.l.b16 %v365
        %v838 = vunpack.c.l.b16 %v366
        %v839 = vunpack.c.l.b16 %v367
        %v840 = vunpack.c.l.b16 %v368
        %v841 = vunpack.c.l.b16 %v369
        %v842 = vunpack.c.l.b16 %v370
        %v843 = vunpack.c.l.b16 %v371
        %v844 = vunpack.c.l.b16 %v372
        %v845 = vunpack.c.l.b16 %v373
        %v846 = vunpack.c.l.b16 %v374
        %v847 = vunpack.c.l.b16 %v375
        %v848 = vunpack.c.l.b16 %v376
        %v849 = vunpack.c.l.b16 %v377
        %v850 = vunpack.c.l.b16 %v378
        %v851 = vunpack.c.l.b16 %v379
        %v852 = vunpack.c.l.b16 %v380
        %v853 = vunpack.c.l.b16 %v381
        %v854 = vunpack.c.l.b16 %v382
        %v855 = vunpack.c.l.b16 %v383
        %v856 = vunpack.c.l.b16 %v384
        %v857 = vunpack.c.l.b16 %v385
        %v858 = vunpack.c.l.b16 %v386
        %v859 = vunpack.c.l.b16 %v387
        %v860 = vunpack.c.l.b16 %v388
        %v861 = vunpack.c.l.b16 %v389
        %v862 = vunpack.c.l.b16 %v390
        %v863 = vunpack.c.l.b16 %v391
        %v864 = vunpack.c.l.b16 %v392
        %v865 = vunpack.c.l.b16 %v393
        %v866 = vunpack.c.l.b16 %v394
        %v867 = vunpack.c.l.b16 %v395
        %v868 = vunpack.c.l.b16 %v396
        %v869 = vunpack.c.l.b16 %v397
        %v870 = vunpack.c.l.b16 %v398
        %v871 = vunpack.c.l.b16 %v399
        %v872 = vunpack.c.l.b16 %v400
        %v873 = vunpack.c.l.b16 %v401
        %v874 = vunpack.c.l.b16 %v402
        %v875 = vunpack.c.l.b16 %v403
        %v876 = vunpack.c.l.b16 %v404
        %v877 = vunpack.c.l.b16 %v405
        %v878 = vunpack.c.l.b16 %v406
        %v879 = vunpack.c.l.b16 %v407
        %v880 = vunpack.c.l.b16 %v408
        %v881 = vunpack.c.l.b16 %v409
        %v882 = vunpack.c.l.b16 %v410
        %v883 = vunpack.c.l.b16 %v411
        %v884 = vunpack.c.l.b16 %v412
        %v885 = vunpack.c.l.b16 %v413
        %v886 = vunpack.c.l.b16 %v414
        %v887 = vunpack.c.l.b16 %v415
        %v888 = vunpack.c.l.b16 %v416
        %v889 = vunpack.c.l.b16 %v417
        %v890 = vunpack.c.l.b16 %v418
        %v891 = vunpack.c.l.b16 %v419
        %v892 = vunpack.c.l.b16 %v420
        %v893 = vunpack.c.l.b16 %v421
        %v894 = vunpack.c.l.b16 %v422
        %v895 = vunpack.c.l.b16 %v423
        %v896 = vunpack.c.l.b16 %v424
        %v897 = vunpack.c.l.b16 %v425
        %v898 = vunpack.c.l.b16 %v426
        %v899 = vunpack.c.l.b16 %v427
        %v900 = vunpack.c.l.b16 %v428
        %v901 = vunpack.c.l.b16 %v429
        %v902 = vunpack.c.l.b16 %v430
        %v903 = vunpack.c.l.b16 %v431
        %v904 = vpack.c.b16 %v761, %v760
        %v905 = vpack.c.b16 %v763, %v762
        %v906 = vpack.c.b16 %v765, %v764
        %v907 = vpack.c.b16 %v767, %v766
        %v908 = vpack.c.b16 %v769, %v768
        %v909 = vpack.c.b16 %v771, %v770
        %v910 = vpack.c.b16 %v773, %v772
        %v911 = vpack.c.b16 %v775, %v774
        %v912 = vpack.c.b16 %v777, %v776
        %v913 = vpack.c.b16 %v779, %v778
        %v914 = vpack.c.b16 %v781, %v780
        %v915 = vpack.c.b16 %v783, %v782
        %v916 = vpack.c.b16 %v785, %v784
        %v917 = vpack.c.b16 %v787, %v786
        %v918 = vpack.c.b16 %v789, %v788
        %v919 = vpack.c.b16 %v791, %v790
        %v920 = vpack.c.b16 %v793, %v792
        %v921 = vpack.c.b16 %v795, %v794
        %v922 = vpack.c.b16 %v797, %v796
        %v923 = vpack.c.b16 %v799, %v798
        %v924 = vpack.c.b16 %v801, %v800
        %v925 = vpack.c.b16 %v803, %v802
        %v926 = vpack.c.b16 %v805, %v804
        %v927 = vpack.c.b16 %v807, %v806
        %v928 = vpack.c.b16 %v809, %v808
        %v929 = vpack.c.b16 %v811, %v810
        %v930 = vpack.c.b16 %v813, %v812
        %v931 = vpack.c.b16 %v815, %v814
        %v932 = vpack.c.b16 %v817, %v816
        %v933 = vpack.c.b16 %v819, %v818
        %v934 = vpack.c.b16 %v821, %v820
        %v935 = vpack.c.b16 %v823, %v822
        %v936 = vpack.c.b16 %v825, %v824
        %v937 = vpack.c.b16 %v827, %v826
        %v938 = vpack.c.b16 %v829, %v828
        %v939 = vpack.c.b16 %v831, %v830
        %v940 = vpack.c.b16 %v833, %v832
        %v941 = vpack.c.b16 %v835, %v834
        %v942 = vpack.c.b16 %v837, %v836
        %v943 = vpack.c.b16 %v839, %v838
        %v944 = vpack.c.b16 %v841, %v840
        %v945 = vpack.c.b16 %v843, %v842
        %v946 = vpack.c.b16 %v845, %v844
        %v947 = vpack.c.b16 %v847, %v846
        %v948 = vpack.c.b16 %v849, %v848
        %v949 = vpack.c.b16 %v851, %v850
        %v950 = vpack.c.b16 %v853, %v852
        %v951 = vpack.c.b16 %v855, %v854
        %v952 = vpack.c.b16 %v857, %v856
        %v953 = vpack.c.b16 %v859, %v858
        %v954 = vpack.c.b16 %v861, %v860
        %v955 = vpack.c.b16 %v863, %v862
        %v956 = vpack.c.b16 %v865, %v864
        %v957 = vpack.c.b16 %v867, %v866
        %v958 = vpack.c.b16 %v869, %v868
        %v959 = vpack.c.b16 %v871, %v870
        %v960 = vpack.c.b16 %v873, %v872
        %v961 = vpack.c.b16 %v875, %v874
        %v962 = vpack.c.b16 %v877, %v876
        %v963 = vpack.c.b16 %v879, %v878
        %v964 = vpack.c.b16 %v881, %v880
        %v965 = vpack.c.b16 %v883, %v882
        %v966 = vpack.c.b16 %v885, %v884
        %v967 = vpack.c.b16 %v887, %v886
        %v968 = vpack.c.b16 %v889, %v888
        %v969 = vpack.c.b16 %v891, %v890
        %v970 = vpack.c.b16 %v893, %v892
        %v971 = vpack.c.b16 %v895, %v894
        %v972 = vpack.c.b16 %v897, %v896
        %v973 = vpack.c.b16 %v899, %v898
        %v974 = vpack.c.b16 %v901, %v900
        %v975 = vpack.c.b16 %v903, %v902
        %1048 = vmatprep.subr.bf16.mxu0 0
        %1049 = vmatpush1.bf16.msra.mxu0 %v911
        %1050 = vmatprep.subr.bf16.mxu0 0
        %1051 = vmatpush1.bf16.msra.mxu0 %v910
        %1052 = vmatprep.subr.bf16.mxu0 0
        %1053 = vmatpush1.bf16.msra.mxu0 %v909
        %1054 = vmatprep.subr.bf16.mxu0 0
        %1055 = vmatpush1.bf16.msra.mxu0 %v908
        %1056 = vmatprep.subr.bf16.mxu0 0
        %1057 = vmatpush1.bf16.msra.mxu0 %v907
        %1058 = vmatprep.subr.bf16.mxu0 0
        %1059 = vmatpush1.bf16.msra.mxu0 %v906
        %1060 = vmatprep.subr.bf16.mxu0 0
        %1061 = vmatpush1.bf16.msra.mxu0 %v905
        %1062 = vmatprep.subr.bf16.mxu0 0
        %1063 = vmatpush1.bf16.msra.mxu0 %v904
        %1064 = vmatprep.subr.bf16.mxu0 0
        %1065 = vmatpush2.bf16.msra.mxu0 %v919
        %1066 = vmatprep.subr.bf16.mxu0 0
        %1067 = vmatpush2.bf16.msra.mxu0 %v918
        %1068 = vmatprep.subr.bf16.mxu0 0
        %1069 = vmatpush2.bf16.msra.mxu0 %v917
        %1070 = vmatprep.subr.bf16.mxu0 0
        %1071 = vmatpush2.bf16.msra.mxu0 %v916
        %1072 = vmatprep.subr.bf16.mxu0 0
        %1073 = vmatpush2.bf16.msra.mxu0 %v915
        %1074 = vmatprep.subr.bf16.mxu0 0
        %1075 = vmatpush2.bf16.msra.mxu0 %v914
        %1076 = vmatprep.subr.bf16.mxu0 0
        %1077 = vmatpush2.bf16.msra.mxu0 %v913
        %1078 = vmatprep.subr.bf16.mxu0 0
        %1079 = vmatpush2.bf16.msra.mxu0 %v912
        %1080 = vmatprep.mubr.bf16.mxu0 %v545
        %1081 = vmatmul.mubr.bf16.gmra.mxu0 %v544
        %v1082 = vpop.f32.mrf.mxu0
        %v1083 = vadd.f32 0.0, %v1082
        %v1084 = vpop.f32.mrf.mxu0
        %v1085 = vpop.f32.mrf.mxu0
        %v1086 = vadd.f32 0.0, %v1085
        %v1087 = vpop.f32.mrf.mxu0
        %1088 = vmatprep.mubr.bf16.mxu0 %v554
        %1089 = vmatmul.mubr.bf16.gmra.mxu0 %v553
        %v1090 = vpop.f32.mrf.mxu0
        %v1091 = vadd.f32 0.0, %v1090
        %v1092 = vpop.f32.mrf.mxu0
        %v1093 = vpop.f32.mrf.mxu0
        %v1094 = vadd.f32 0.0, %v1093
        %v1095 = vpop.f32.mrf.mxu0
        %1096 = vmatprep.mubr.bf16.mxu0 %v563
        %1097 = vmatmul.mubr.bf16.gmra.mxu0 %v562
        %v1098 = vpop.f32.mrf.mxu0
        %v1099 = vadd.f32 0.0, %v1098
        %v1100 = vpop.f32.mrf.mxu0
        %v1101 = vpop.f32.mrf.mxu0
        %v1102 = vadd.f32 0.0, %v1101
        %v1103 = vpop.f32.mrf.mxu0
        %1104 = vmatprep.mubr.bf16.mxu0 %v572
        %1105 = vmatmul.mubr.bf16.gmra.mxu0 %v571
        %v1106 = vpop.f32.mrf.mxu0
        %v1107 = vadd.f32 0.0, %v1106
        %v1108 = vpop.f32.mrf.mxu0
        %v1109 = vpop.f32.mrf.mxu0
        %v1110 = vadd.f32 0.0, %v1109
        %v1111 = vpop.f32.mrf.mxu0
        %1112 = vdwg.mxu0
        %1113 = vmatprep.subr.bf16.mxu0 0
        %1114 = vmatpush1.bf16.msra.mxu0 %v927
        %1115 = vmatprep.subr.bf16.mxu0 0
        %1116 = vmatpush1.bf16.msra.mxu0 %v926
        %1117 = vmatprep.subr.bf16.mxu0 0
        %1118 = vmatpush1.bf16.msra.mxu0 %v925
        %1119 = vmatprep.subr.bf16.mxu0 0
        %1120 = vmatpush1.bf16.msra.mxu0 %v924
        %1121 = vmatprep.subr.bf16.mxu0 0
        %1122 = vmatpush1.bf16.msra.mxu0 %v923
        %1123 = vmatprep.subr.bf16.mxu0 0
        %1124 = vmatpush1.bf16.msra.mxu0 %v922
        %1125 = vmatprep.subr.bf16.mxu0 0
        %1126 = vmatpush1.bf16.msra.mxu0 %v921
        %1127 = vmatprep.subr.bf16.mxu0 0
        %1128 = vmatpush1.bf16.msra.mxu0 %v920
        %1129 = vmatprep.subr.bf16.mxu0 0
        %1130 = vmatpush2.bf16.msra.mxu0 %v935
        %1131 = vmatprep.subr.bf16.mxu0 0
        %1132 = vmatpush2.bf16.msra.mxu0 %v934
        %1133 = vmatprep.subr.bf16.mxu0 0
        %1134 = vmatpush2.bf16.msra.mxu0 %v933
        %1135 = vmatprep.subr.bf16.mxu0 0
        %1136 = vmatpush2.bf16.msra.mxu0 %v932
        %1137 = vmatprep.subr.bf16.mxu0 0
        %1138 = vmatpush2.bf16.msra.mxu0 %v931
        %1139 = vmatprep.subr.bf16.mxu0 0
        %1140 = vmatpush2.bf16.msra.mxu0 %v930
        %1141 = vmatprep.subr.bf16.mxu0 0
        %1142 = vmatpush2.bf16.msra.mxu0 %v929
        %1143 = vmatprep.subr.bf16.mxu0 0
        %1144 = vmatpush2.bf16.msra.mxu0 %v928
        %1145 = vmatprep.mubr.bf16.mxu0 %v547
        %1146 = vmatmul.mubr.bf16.gmra.mxu0 %v546
        %v1147 = vpop.f32.mrf.mxu0
        %v1148 = vadd.f32 %v1083, %v1147
        %v1149 = vpop.f32.mrf.mxu0
        %v1150 = vpop.f32.mrf.mxu0
        %v1151 = vadd.f32 %v1086, %v1150
        %v1152 = vpop.f32.mrf.mxu0
        %1153 = vmatprep.mubr.bf16.mxu0 %v556
        %1154 = vmatmul.mubr.bf16.gmra.mxu0 %v555
        %v1155 = vpop.f32.mrf.mxu0
        %v1156 = vadd.f32 %v1091, %v1155
        %v1157 = vpop.f32.mrf.mxu0
        %v1158 = vpop.f32.mrf.mxu0
        %v1159 = vadd.f32 %v1094, %v1158
        %v1160 = vpop.f32.mrf.mxu0
        %1161 = vmatprep.mubr.bf16.mxu0 %v565
        %1162 = vmatmul.mubr.bf16.gmra.mxu0 %v564
        %v1163 = vpop.f32.mrf.mxu0
        %v1164 = vadd.f32 %v1099, %v1163
        %v1165 = vpop.f32.mrf.mxu0
        %v1166 = vpop.f32.mrf.mxu0
        %v1167 = vadd.f32 %v1102, %v1166
        %v1168 = vpop.f32.mrf.mxu0
        %1169 = vmatprep.mubr.bf16.mxu0 %v574
        %1170 = vmatmul.mubr.bf16.gmra.mxu0 %v573
        %v1171 = vpop.f32.mrf.mxu0
        %v1172 = vadd.f32 %v1107, %v1171
        %v1173 = vpop.f32.mrf.mxu0
        %v1174 = vpop.f32.mrf.mxu0
        %v1175 = vadd.f32 %v1110, %v1174
        %v1176 = vpop.f32.mrf.mxu0
        %1177 = vdwg.mxu0
        %1178 = vmatprep.subr.bf16.mxu0 0
        %1179 = vmatpush1.bf16.msra.mxu0 %v943
        %1180 = vmatprep.subr.bf16.mxu0 0
        %1181 = vmatpush1.bf16.msra.mxu0 %v942
        %1182 = vmatprep.subr.bf16.mxu0 0
        %1183 = vmatpush1.bf16.msra.mxu0 %v941
        %1184 = vmatprep.subr.bf16.mxu0 0
        %1185 = vmatpush1.bf16.msra.mxu0 %v940
        %1186 = vmatprep.subr.bf16.mxu0 0
        %1187 = vmatpush1.bf16.msra.mxu0 %v939
        %1188 = vmatprep.subr.bf16.mxu0 0
        %1189 = vmatpush1.bf16.msra.mxu0 %v938
        %1190 = vmatprep.subr.bf16.mxu0 0
        %1191 = vmatpush1.bf16.msra.mxu0 %v937
        %1192 = vmatprep.subr.bf16.mxu0 0
        %1193 = vmatpush1.bf16.msra.mxu0 %v936
        %1194 = vmatprep.subr.bf16.mxu0 0
        %1195 = vmatpush2.bf16.msra.mxu0 %v951
        %1196 = vmatprep.subr.bf16.mxu0 0
        %1197 = vmatpush2.bf16.msra.mxu0 %v950
        %1198 = vmatprep.subr.bf16.mxu0 0
        %1199 = vmatpush2.bf16.msra.mxu0 %v949
        %1200 = vmatprep.subr.bf16.mxu0 0
        %1201 = vmatpush2.bf16.msra.mxu0 %v948
        %1202 = vmatprep.subr.bf16.mxu0 0
        %1203 = vmatpush2.bf16.msra.mxu0 %v947
        %1204 = vmatprep.subr.bf16.mxu0 0
        %1205 = vmatpush2.bf16.msra.mxu0 %v946
        %1206 = vmatprep.subr.bf16.mxu0 0
        %1207 = vmatpush2.bf16.msra.mxu0 %v945
        %1208 = vmatprep.subr.bf16.mxu0 0
        %1209 = vmatpush2.bf16.msra.mxu0 %v944
        %1210 = vmatprep.mubr.bf16.mxu0 %v549
        %1211 = vmatmul.mubr.bf16.gmra.mxu0 %v548
        %v1212 = vpop.f32.mrf.mxu0
        %v1213 = vadd.f32 %v1148, %v1212
        %v1214 = vpop.f32.mrf.mxu0
        %v1215 = vpop.f32.mrf.mxu0
        %v1216 = vadd.f32 %v1151, %v1215
        %v1217 = vpop.f32.mrf.mxu0
        %1218 = vmatprep.mubr.bf16.mxu0 %v558
        %1219 = vmatmul.mubr.bf16.gmra.mxu0 %v557
        %v1220 = vpop.f32.mrf.mxu0
        %v1221 = vadd.f32 %v1156, %v1220
        %v1222 = vpop.f32.mrf.mxu0
        %v1223 = vpop.f32.mrf.mxu0
        %v1224 = vadd.f32 %v1159, %v1223
        %v1225 = vpop.f32.mrf.mxu0
        %1226 = vmatprep.mubr.bf16.mxu0 %v567
        %1227 = vmatmul.mubr.bf16.gmra.mxu0 %v566
        %v1228 = vpop.f32.mrf.mxu0
        %v1229 = vadd.f32 %v1164, %v1228
        %v1230 = vpop.f32.mrf.mxu0
        %v1231 = vpop.f32.mrf.mxu0
        %v1232 = vadd.f32 %v1167, %v1231
        %v1233 = vpop.f32.mrf.mxu0
        %1234 = vmatprep.mubr.bf16.mxu0 %v576
        %1235 = vmatmul.mubr.bf16.gmra.mxu0 %v575
        %v1236 = vpop.f32.mrf.mxu0
        %v1237 = vadd.f32 %v1172, %v1236
        %v1238 = vpop.f32.mrf.mxu0
        %v1239 = vpop.f32.mrf.mxu0
        %v1240 = vadd.f32 %v1175, %v1239
        %v1241 = vpop.f32.mrf.mxu0
        %1242 = vdwg.mxu0
        %1243 = vmatprep.subr.bf16.mxu0 0
        %1244 = vmatpush1.bf16.msra.mxu0 %v959
        %1245 = vmatprep.subr.bf16.mxu0 0
        %1246 = vmatpush1.bf16.msra.mxu0 %v958
        %1247 = vmatprep.subr.bf16.mxu0 0
        %1248 = vmatpush1.bf16.msra.mxu0 %v957
        %1249 = vmatprep.subr.bf16.mxu0 0
        %1250 = vmatpush1.bf16.msra.mxu0 %v956
        %1251 = vmatprep.subr.bf16.mxu0 0
        %1252 = vmatpush1.bf16.msra.mxu0 %v955
        %1253 = vmatprep.subr.bf16.mxu0 0
        %1254 = vmatpush1.bf16.msra.mxu0 %v954
        %1255 = vmatprep.subr.bf16.mxu0 0
        %1256 = vmatpush1.bf16.msra.mxu0 %v953
        %1257 = vmatprep.subr.bf16.mxu0 0
        %1258 = vmatpush1.bf16.msra.mxu0 %v952
        %1259 = vmatprep.subr.bf16.mxu0 0
        %1260 = vmatpush2.bf16.msra.mxu0 %v967
        %1261 = vmatprep.subr.bf16.mxu0 0
        %1262 = vmatpush2.bf16.msra.mxu0 %v966
        %1263 = vmatprep.subr.bf16.mxu0 0
        %1264 = vmatpush2.bf16.msra.mxu0 %v965
        %1265 = vmatprep.subr.bf16.mxu0 0
        %1266 = vmatpush2.bf16.msra.mxu0 %v964
        %1267 = vmatprep.subr.bf16.mxu0 0
        %1268 = vmatpush2.bf16.msra.mxu0 %v963
        %1269 = vmatprep.subr.bf16.mxu0 0
        %1270 = vmatpush2.bf16.msra.mxu0 %v962
        %1271 = vmatprep.subr.bf16.mxu0 0
        %1272 = vmatpush2.bf16.msra.mxu0 %v961
        %1273 = vmatprep.subr.bf16.mxu0 0
        %1274 = vmatpush2.bf16.msra.mxu0 %v960
        %1275 = vmatprep.mubr.bf16.mxu0 %v551
        %1276 = vmatmul.mubr.bf16.gmra.mxu0 %v550
        %v1277 = vpop.f32.mrf.mxu0
        %v1278 = vadd.f32 %v1213, %v1277
        %v1279 = vpop.f32.mrf.mxu0
        %v1280 = vpop.f32.mrf.mxu0
        %v1281 = vadd.f32 %v1216, %v1280
        %v1282 = vpop.f32.mrf.mxu0
        %1283 = vmatprep.mubr.bf16.mxu0 %v560
        %1284 = vmatmul.mubr.bf16.gmra.mxu0 %v559
        %v1285 = vpop.f32.mrf.mxu0
        %v1286 = vadd.f32 %v1221, %v1285
        %v1287 = vpop.f32.mrf.mxu0
        %v1288 = vpop.f32.mrf.mxu0
        %v1289 = vadd.f32 %v1224, %v1288
        %v1290 = vpop.f32.mrf.mxu0
        %1291 = vmatprep.mubr.bf16.mxu0 %v569
        %1292 = vmatmul.mubr.bf16.gmra.mxu0 %v568
        %v1293 = vpop.f32.mrf.mxu0
        %v1294 = vadd.f32 %v1229, %v1293
        %v1295 = vpop.f32.mrf.mxu0
        %v1296 = vpop.f32.mrf.mxu0
        %v1297 = vadd.f32 %v1232, %v1296
        %v1298 = vpop.f32.mrf.mxu0
        %1299 = vmatprep.mubr.bf16.mxu0 %v578
        %1300 = vmatmul.mubr.bf16.gmra.mxu0 %v577
        %v1301 = vpop.f32.mrf.mxu0
        %v1302 = vadd.f32 %v1237, %v1301
        %v1303 = vpop.f32.mrf.mxu0
        %v1304 = vpop.f32.mrf.mxu0
        %v1305 = vadd.f32 %v1240, %v1304
        %v1306 = vpop.f32.mrf.mxu0
        %1307 = vdwg.mxu0
        %1308 = vmatprep.subr.bf16.mxu0 0
        %1309 = vmatpush1.bf16.msra.mxu0 %v975
        %1310 = vmatprep.subr.bf16.mxu0 0
        %1311 = vmatpush1.bf16.msra.mxu0 %v974
        %1312 = vmatprep.subr.bf16.mxu0 0
        %1313 = vmatpush1.bf16.msra.mxu0 %v973
        %1314 = vmatprep.subr.bf16.mxu0 0
        %1315 = vmatpush1.bf16.msra.mxu0 %v972
        %1316 = vmatprep.subr.bf16.mxu0 0
        %1317 = vmatpush1.bf16.msra.mxu0 %v971
        %1318 = vmatprep.subr.bf16.mxu0 0
        %1319 = vmatpush1.bf16.msra.mxu0 %v970
        %1320 = vmatprep.subr.bf16.mxu0 0
        %1321 = vmatpush1.bf16.msra.mxu0 %v969
        %1322 = vmatprep.subr.bf16.mxu0 0
        %1323 = vmatpush1.bf16.msra.mxu0 %v968
        %1324 = vmatprep.subr.bf16.mxu0 0
        %1325 = vmatpush2.bf16.msra.mxu0 0
        %1326 = vmatprep.subr.bf16.mxu0 0
        %1327 = vmatpush2.bf16.msra.mxu0 0
        %1328 = vmatprep.subr.bf16.mxu0 0
        %1329 = vmatpush2.bf16.msra.mxu0 0
        %1330 = vmatprep.subr.bf16.mxu0 0
        %1331 = vmatpush2.bf16.msra.mxu0 0
        %1332 = vmatprep.subr.bf16.mxu0 0
        %1333 = vmatpush2.bf16.msra.mxu0 0
        %1334 = vmatprep.subr.bf16.mxu0 0
        %1335 = vmatpush2.bf16.msra.mxu0 0
        %1336 = vmatprep.subr.bf16.mxu0 0
        %1337 = vmatpush2.bf16.msra.mxu0 0
        %1338 = vmatprep.subr.bf16.mxu0 0
        %1339 = vmatpush2.bf16.msra.mxu0 0
        %1340 = vmatprep.mubr.bf16.mxu0 0
        %1341 = vmatmul.mubr.bf16.gmra.mxu0 %v552
        %v1342 = vpop.f32.mrf.mxu0
        %v1343 = vadd.f32 %v1278, %v1342
        %v1344 = vpop.f32.mrf.mxu0
        %v1345 = vpop.f32.mrf.mxu0
        %v1346 = vadd.f32 %v1281, %v1345
        %v1347 = vpop.f32.mrf.mxu0
        %1348 = vmatprep.mubr.bf16.mxu0 0
        %1349 = vmatmul.mubr.bf16.gmra.mxu0 %v561
        %v1350 = vpop.f32.mrf.mxu0
        %v1351 = vadd.f32 %v1286, %v1350
        %v1352 = vpop.f32.mrf.mxu0
        %v1353 = vpop.f32.mrf.mxu0
        %v1354 = vadd.f32 %v1289, %v1353
        %v1355 = vpop.f32.mrf.mxu0
        %1356 = vmatprep.mubr.bf16.mxu0 0
        %1357 = vmatmul.mubr.bf16.gmra.mxu0 %v570
        %v1358 = vpop.f32.mrf.mxu0
        %v1359 = vadd.f32 %v1294, %v1358
        %v1360 = vpop.f32.mrf.mxu0
        %v1361 = vpop.f32.mrf.mxu0
        %v1362 = vadd.f32 %v1297, %v1361
        %v1363 = vpop.f32.mrf.mxu0
        %1364 = vmatprep.mubr.bf16.mxu0 0
        %1365 = vmatmul.mubr.bf16.gmra.mxu0 %v579
        %v1366 = vpop.f32.mrf.mxu0
        %v1367 = vadd.f32 %v1302, %v1366
        %v1368 = vpop.f32.mrf.mxu0
        %v1369 = vpop.f32.mrf.mxu0
        %v1370 = vadd.f32 %v1305, %v1369
        %v1371 = vpop.f32.mrf.mxu0
        %1372 = vdwg.mxu0
        %v1373 = vlaneseq
        %v1374 = vshrl.u32 %v1373, 7
        %v1375 = vsub.s32 0, %v1374
        %v1376 = vrot.slane %v239, %v1375
        %v1377 = vmul.f32 %v1343, %v1376
        %v1378 = vmul.f32 %v1346, %v1376
        %v1379 = vmul.f32 %v1351, %v1376
        %v1380 = vmul.f32 %v1354, %v1376
        %v1381 = vmul.f32 %v1359, %v1376
        %v1382 = vmul.f32 %v1362, %v1376
        %v1383 = vmul.f32 %v1367, %v1376
        %v1384 = vmul.f32 %v1370, %v1376
        %v1385 = vlaneseq
        %v1386 = vshrl.u32 %v1385, 7
        %v1387 = vsub.s32 1, %v1386
        %v1388 = vrot.slane %v239, %v1387
        %v1389 = vadd.f32 %v1377, %v1388
        %v1390 = vadd.f32 %v1378, %v1388
        %v1391 = vadd.f32 %v1379, %v1388
        %v1392 = vadd.f32 %v1380, %v1388
        %v1393 = vadd.f32 %v1381, %v1388
        %v1394 = vadd.f32 %v1382, %v1388
        %v1395 = vadd.f32 %v1383, %v1388
        %v1396 = vadd.f32 %v1384, %v1388
        %v1397 = vmax.f32 %v1389, 0.0
        %v1398 = vmax.f32 %v1390, 0.0
        %v1399 = vmax.f32 %v1391, 0.0
        %v1400 = vmax.f32 %v1392, 0.0
        %v1401 = vmax.f32 %v1393, 0.0
        %v1402 = vmax.f32 %v1394, 0.0
        %v1403 = vmax.f32 %v1395, 0.0
        %v1404 = vmax.f32 %v1396, 0.0
        %s1405 = scalar_lea.vmem [#allocation2], 16
        %1406 = vst [vmem:[%s1405 + $0x1] sm:$0xff] %v1397
        %1407 = vst [vmem:[%s1405 + $0x11] sm:$0xff] %v1398
        %1408 = vst [vmem:[%s1405 + $0x21] sm:$0xff] %v1399
        %1409 = vst [vmem:[%s1405 + $0x31] sm:$0xff] %v1400
        %1410 = vst [vmem:[%s1405 + $0x41] sm:$0xff] %v1401
        %1411 = vst [vmem:[%s1405 + $0x51] sm:$0xff] %v1402
        %1412 = vst [vmem:[%s1405 + $0x61] sm:$0xff] %v1403
        %1413 = vst [vmem:[%s1405 + $0x71] sm:$0xff] %v1404
        %v1414 = vld [vmem:[#allocation2] sm:$0xff]
        %v1415 = vld [vmem:[#allocation2 + $0x10] sm:$0xff]
        %v1416 = vld [vmem:[#allocation2 + $0x20] sm:$0xff]
        %v1417 = vld [vmem:[#allocation2 + $0x30] sm:$0xff]
        %v1418 = vld [vmem:[#allocation2 + $0x40] sm:$0xff]
        %v1419 = vld [vmem:[#allocation2 + $0x50] sm:$0xff]
        %v1420 = vld [vmem:[#allocation2 + $0x60] sm:$0xff]
        %v1421 = vld [vmem:[#allocation2 + $0x70] sm:$0xff]
        %v1422 = vpack.c.bf16 %v1414, %v1414
        %v1423 = vpack.c.bf16 %v1415, %v1415
        %v1424 = vpack.c.bf16 %v1416, %v1416
        %v1425 = vpack.c.bf16 %v1417, %v1417
        %v1426 = vpack.c.bf16 %v1418, %v1418
        %v1427 = vpack.c.bf16 %v1419, %v1419
        %v1428 = vpack.c.bf16 %v1420, %v1420
        %v1429 = vpack.c.bf16 %v1421, %v1421
        %v1430 = vld [vmem:[#allocation2 + $0x1] sm:$0xff]
        %v1431 = vld [vmem:[#allocation2 + $0x11] sm:$0xff]
        %v1432 = vld [vmem:[#allocation2 + $0x21] sm:$0xff]
        %v1433 = vld [vmem:[#allocation2 + $0x31] sm:$0xff]
        %v1434 = vld [vmem:[#allocation2 + $0x41] sm:$0xff]
        %v1435 = vld [vmem:[#allocation2 + $0x51] sm:$0xff]
        %v1436 = vld [vmem:[#allocation2 + $0x61] sm:$0xff]
        %v1437 = vld [vmem:[#allocation2 + $0x71] sm:$0xff]
        %v1438 = vpack.c.bf16 %v1430, %v1430
        %v1439 = vpack.c.bf16 %v1431, %v1431
        %v1440 = vpack.c.bf16 %v1432, %v1432
        %v1441 = vpack.c.bf16 %v1433, %v1433
        %v1442 = vpack.c.bf16 %v1434, %v1434
        %v1443 = vpack.c.bf16 %v1435, %v1435
        %v1444 = vpack.c.bf16 %v1436, %v1436
        %v1445 = vpack.c.bf16 %v1437, %v1437
        %v1446 = vld [vmem:[#allocation2 + $0x2] sm:$0xff]
        %v1447 = vld [vmem:[#allocation2 + $0x12] sm:$0xff]
        %v1448 = vld [vmem:[#allocation2 + $0x22] sm:$0xff]
        %v1449 = vld [vmem:[#allocation2 + $0x32] sm:$0xff]
        %v1450 = vld [vmem:[#allocation2 + $0x42] sm:$0xff]
        %v1451 = vld [vmem:[#allocation2 + $0x52] sm:$0xff]
        %v1452 = vld [vmem:[#allocation2 + $0x62] sm:$0xff]
        %v1453 = vld [vmem:[#allocation2 + $0x72] sm:$0xff]
        %v1454 = vpack.c.bf16 %v1446, %v1446
        %v1455 = vpack.c.bf16 %v1447, %v1447
        %v1456 = vpack.c.bf16 %v1448, %v1448
        %v1457 = vpack.c.bf16 %v1449, %v1449
        %v1458 = vpack.c.bf16 %v1450, %v1450
        %v1459 = vpack.c.bf16 %v1451, %v1451
        %v1460 = vpack.c.bf16 %v1452, %v1452
        %v1461 = vpack.c.bf16 %v1453, %v1453
        %v1486 = vunpack.c.l.b16 %v1422
        %v1487 = vunpack.c.l.b16 %v1438
        %v1488 = vunpack.c.l.b16 %v1454
        %v1489 = vunpack.c.l.b16 %v1423
        %v1490 = vunpack.c.l.b16 %v1439
        %v1491 = vunpack.c.l.b16 %v1455
        %v1492 = vunpack.c.l.b16 %v1424
        %v1493 = vunpack.c.l.b16 %v1440
        %v1494 = vunpack.c.l.b16 %v1456
        %v1495 = vunpack.c.l.b16 %v1425
        %v1496 = vunpack.c.l.b16 %v1441
        %v1497 = vunpack.c.l.b16 %v1457
        %v1498 = vunpack.c.l.b16 %v1426
        %v1499 = vunpack.c.l.b16 %v1442
        %v1500 = vunpack.c.l.b16 %v1458
        %v1501 = vunpack.c.l.b16 %v1427
        %v1502 = vunpack.c.l.b16 %v1443
        %v1503 = vunpack.c.l.b16 %v1459
        %v1504 = vunpack.c.l.b16 %v1428
        %v1505 = vunpack.c.l.b16 %v1444
        %v1506 = vunpack.c.l.b16 %v1460
        %v1507 = vunpack.c.l.b16 %v1429
        %v1508 = vunpack.c.l.b16 %v1445
        %v1509 = vunpack.c.l.b16 %v1461
        %v1510 = vld [vmem:[#allocation3] sm:$0xf]
        %v1511 = vld [vmem:[#allocation3 + $0x4] sm:$0xf]
        %v1512 = vld [vmem:[#allocation3 + $0x8] sm:$0xf]
        %v1513 = vld [vmem:[#allocation3 + $0xc] sm:$0xf]
        %v1514 = vld [vmem:[#allocation3 + $0x10] sm:$0xf]
        %v1515 = vld [vmem:[#allocation3 + $0x14] sm:$0xf]
        %v1516 = vld [vmem:[#allocation3 + $0x18] sm:$0xf]
        %v1517 = vld [vmem:[#allocation3 + $0x1c] sm:$0xf]
        %v1518 = vld [vmem:[#allocation3 + $0x20] sm:$0xf]
        %v1519 = vld [vmem:[#allocation3 + $0x24] sm:$0xf]
        %v1520 = vld [vmem:[#allocation3 + $0x28] sm:$0xf]
        %v1521 = vld [vmem:[#allocation3 + $0x2c] sm:$0xf]
        %v1522 = vld [vmem:[#allocation3 + $0x30] sm:$0xf]
        %v1523 = vld [vmem:[#allocation3 + $0x34] sm:$0xf]
        %v1524 = vld [vmem:[#allocation3 + $0x38] sm:$0xf]
        %v1525 = vld [vmem:[#allocation3 + $0x3c] sm:$0xf]
        %v1526 = vld [vmem:[#allocation3 + $0x40] sm:$0xf]
        %v1527 = vld [vmem:[#allocation3 + $0x44] sm:$0xf]
        %v1528 = vld [vmem:[#allocation3 + $0x48] sm:$0xf]
        %v1529 = vld [vmem:[#allocation3 + $0x4c] sm:$0xf]
        %v1530 = vld [vmem:[#allocation3 + $0x50] sm:$0xf]
        %v1531 = vld [vmem:[#allocation3 + $0x54] sm:$0xf]
        %v1532 = vld [vmem:[#allocation3 + $0x58] sm:$0xf]
        %v1533 = vld [vmem:[#allocation3 + $0x5c] sm:$0xf]
        %v1534 = vld [vmem:[#allocation3 + $0x60] sm:$0xf]
        %v1535 = vld [vmem:[#allocation3 + $0x64] sm:$0xf]
        %v1536 = vld [vmem:[#allocation3 + $0x68] sm:$0xf]
        %v1537 = vld [vmem:[#allocation3 + $0x6c] sm:$0xf]
        %v1538 = vld [vmem:[#allocation3 + $0x70] sm:$0xf]
        %v1539 = vld [vmem:[#allocation3 + $0x74] sm:$0xf]
        %v1540 = vld [vmem:[#allocation3 + $0x78] sm:$0xf]
        %v1541 = vld [vmem:[#allocation3 + $0x7c] sm:$0xf]
        %v1542 = vld [vmem:[#allocation3 + $0x80] sm:$0xf]
        %v1543 = vld [vmem:[#allocation3 + $0x84] sm:$0xf]
        %v1544 = vld [vmem:[#allocation3 + $0x88] sm:$0xf]
        %v1545 = vld [vmem:[#allocation3 + $0x8c] sm:$0xf]
        %v1546 = vld [vmem:[#allocation3 + $0x90] sm:$0xf]
        %v1547 = vld [vmem:[#allocation3 + $0x94] sm:$0xf]
        %v1548 = vld [vmem:[#allocation3 + $0x98] sm:$0xf]
        %v1549 = vld [vmem:[#allocation3 + $0x9c] sm:$0xf]
        %v1550 = vld [vmem:[#allocation3 + $0xa0] sm:$0xf]
        %v1551 = vld [vmem:[#allocation3 + $0xa4] sm:$0xf]
        %v1552 = vld [vmem:[#allocation3 + $0xa8] sm:$0xf]
        %v1553 = vld [vmem:[#allocation3 + $0xac] sm:$0xf]
        %v1554 = vld [vmem:[#allocation3 + $0xb0] sm:$0xf]
        %v1555 = vld [vmem:[#allocation3 + $0xb4] sm:$0xf]
        %v1556 = vld [vmem:[#allocation3 + $0xb8] sm:$0xf]
        %v1557 = vld [vmem:[#allocation3 + $0xbc] sm:$0xf]
        %v1558 = vld [vmem:[%s1405] sm:$0xff]
        %v1559 = vld [vmem:[%s1405 + $0x10] sm:$0xff]
        %v1560 = vld [vmem:[%s1405 + $0x20] sm:$0xff]
        %v1561 = vld [vmem:[%s1405 + $0x30] sm:$0xff]
        %v1562 = vld [vmem:[%s1405 + $0x40] sm:$0xff]
        %v1563 = vld [vmem:[%s1405 + $0x50] sm:$0xff]
        %v1564 = vld [vmem:[%s1405 + $0x60] sm:$0xff]
        %v1565 = vld [vmem:[%s1405 + $0x70] sm:$0xff]
        %v1566 = vpack.c.bf16 %v1558, %v1558
        %v1567 = vpack.c.bf16 %v1559, %v1559
        %v1568 = vpack.c.bf16 %v1560, %v1560
        %v1569 = vpack.c.bf16 %v1561, %v1561
        %v1570 = vpack.c.bf16 %v1562, %v1562
        %v1571 = vpack.c.bf16 %v1563, %v1563
        %v1572 = vpack.c.bf16 %v1564, %v1564
        %v1573 = vpack.c.bf16 %v1565, %v1565
        %v1574 = vld [vmem:[%s1405 + $0x1] sm:$0xff]
        %v1575 = vld [vmem:[%s1405 + $0x11] sm:$0xff]
        %v1576 = vld [vmem:[%s1405 + $0x21] sm:$0xff]
        %v1577 = vld [vmem:[%s1405 + $0x31] sm:$0xff]
        %v1578 = vld [vmem:[%s1405 + $0x41] sm:$0xff]
        %v1579 = vld [vmem:[%s1405 + $0x51] sm:$0xff]
        %v1580 = vld [vmem:[%s1405 + $0x61] sm:$0xff]
        %v1581 = vld [vmem:[%s1405 + $0x71] sm:$0xff]
        %v1582 = vpack.c.bf16 %v1574, %v1574
        %v1583 = vpack.c.bf16 %v1575, %v1575
        %v1584 = vpack.c.bf16 %v1576, %v1576
        %v1585 = vpack.c.bf16 %v1577, %v1577
        %v1586 = vpack.c.bf16 %v1578, %v1578
        %v1587 = vpack.c.bf16 %v1579, %v1579
        %v1588 = vpack.c.bf16 %v1580, %v1580
        %v1589 = vpack.c.bf16 %v1581, %v1581
        %v1590 = vld [vmem:[%s1405 + $0x2] sm:$0xff]
        %v1591 = vld [vmem:[%s1405 + $0x12] sm:$0xff]
        %v1592 = vld [vmem:[%s1405 + $0x22] sm:$0xff]
        %v1593 = vld [vmem:[%s1405 + $0x32] sm:$0xff]
        %v1594 = vld [vmem:[%s1405 + $0x42] sm:$0xff]
        %v1595 = vld [vmem:[%s1405 + $0x52] sm:$0xff]
        %v1596 = vld [vmem:[%s1405 + $0x62] sm:$0xff]
        %v1597 = vld [vmem:[%s1405 + $0x72] sm:$0xff]
        %v1598 = vpack.c.bf16 %v1590, %v1590
        %v1599 = vpack.c.bf16 %v1591, %v1591
        %v1600 = vpack.c.bf16 %v1592, %v1592
        %v1601 = vpack.c.bf16 %v1593, %v1593
        %v1602 = vpack.c.bf16 %v1594, %v1594
        %v1603 = vpack.c.bf16 %v1595, %v1595
        %v1604 = vpack.c.bf16 %v1596, %v1596
        %v1605 = vpack.c.bf16 %v1597, %v1597
        %v1630 = vunpack.c.l.b16 %v1566
        %v1631 = vunpack.c.l.b16 %v1582
        %v1632 = vunpack.c.l.b16 %v1598
        %v1633 = vunpack.c.l.b16 %v1567
        %v1634 = vunpack.c.l.b16 %v1583
        %v1635 = vunpack.c.l.b16 %v1599
        %v1636 = vunpack.c.l.b16 %v1568
        %v1637 = vunpack.c.l.b16 %v1584
        %v1638 = vunpack.c.l.b16 %v1600
        %v1639 = vunpack.c.l.b16 %v1569
        %v1640 = vunpack.c.l.b16 %v1585
        %v1641 = vunpack.c.l.b16 %v1601
        %v1642 = vunpack.c.l.b16 %v1570
        %v1643 = vunpack.c.l.b16 %v1586
        %v1644 = vunpack.c.l.b16 %v1602
        %v1645 = vunpack.c.l.b16 %v1571
        %v1646 = vunpack.c.l.b16 %v1587
        %v1647 = vunpack.c.l.b16 %v1603
        %v1648 = vunpack.c.l.b16 %v1572
        %v1649 = vunpack.c.l.b16 %v1588
        %v1650 = vunpack.c.l.b16 %v1604
        %v1651 = vunpack.c.l.b16 %v1573
        %v1652 = vunpack.c.l.b16 %v1589
        %v1653 = vunpack.c.l.b16 %v1605
        %v1654 = vld [vmem:[#allocation3 + $0xc0] sm:$0xf]
        %v1655 = vld [vmem:[#allocation3 + $0xc4] sm:$0xf]
        %v1656 = vld [vmem:[#allocation3 + $0xc8] sm:$0xf]
        %v1657 = vld [vmem:[#allocation3 + $0xcc] sm:$0xf]
        %v1658 = vld [vmem:[#allocation3 + $0xd0] sm:$0xf]
        %v1659 = vld [vmem:[#allocation3 + $0xd4] sm:$0xf]
        %v1660 = vld [vmem:[#allocation3 + $0xd8] sm:$0xf]
        %v1661 = vld [vmem:[#allocation3 + $0xdc] sm:$0xf]
        %v1662 = vld [vmem:[#allocation3 + $0xe0] sm:$0xf]
        %v1663 = vld [vmem:[#allocation3 + $0xe4] sm:$0xf]
        %v1664 = vld [vmem:[#allocation3 + $0xe8] sm:$0xf]
        %v1665 = vld [vmem:[#allocation3 + $0xec] sm:$0xf]
        %v1666 = vld [vmem:[#allocation3 + $0xf0] sm:$0xf]
        %v1667 = vld [vmem:[#allocation3 + $0xf4] sm:$0xf]
        %v1668 = vld [vmem:[#allocation3 + $0xf8] sm:$0xf]
        %v1669 = vld [vmem:[#allocation3 + $0xfc] sm:$0xf]
        %v1670 = vld [vmem:[#allocation3 + $0x100] sm:$0xf]
        %v1671 = vld [vmem:[#allocation3 + $0x104] sm:$0xf]
        %v1672 = vld [vmem:[#allocation3 + $0x108] sm:$0xf]
        %v1673 = vld [vmem:[#allocation3 + $0x10c] sm:$0xf]
        %v1674 = vld [vmem:[#allocation3 + $0x110] sm:$0xf]
        %v1675 = vld [vmem:[#allocation3 + $0x114] sm:$0xf]
        %v1676 = vld [vmem:[#allocation3 + $0x118] sm:$0xf]
        %v1677 = vld [vmem:[#allocation3 + $0x11c] sm:$0xf]
        %v1678 = vld [vmem:[#allocation3 + $0x120] sm:$0xf]
        %v1679 = vld [vmem:[#allocation3 + $0x124] sm:$0xf]
        %v1680 = vld [vmem:[#allocation3 + $0x128] sm:$0xf]
        %v1681 = vld [vmem:[#allocation3 + $0x12c] sm:$0xf]
        %v1682 = vld [vmem:[#allocation3 + $0x130] sm:$0xf]
        %v1683 = vld [vmem:[#allocation3 + $0x134] sm:$0xf]
        %v1684 = vld [vmem:[#allocation3 + $0x138] sm:$0xf]
        %v1685 = vld [vmem:[#allocation3 + $0x13c] sm:$0xf]
        %v1686 = vld [vmem:[#allocation3 + $0x140] sm:$0xf]
        %v1687 = vld [vmem:[#allocation3 + $0x144] sm:$0xf]
        %v1688 = vld [vmem:[#allocation3 + $0x148] sm:$0xf]
        %v1689 = vld [vmem:[#allocation3 + $0x14c] sm:$0xf]
        %v1690 = vld [vmem:[#allocation3 + $0x150] sm:$0xf]
        %v1691 = vld [vmem:[#allocation3 + $0x154] sm:$0xf]
        %v1692 = vld [vmem:[#allocation3 + $0x158] sm:$0xf]
        %v1693 = vld [vmem:[#allocation3 + $0x15c] sm:$0xf]
        %v1694 = vld [vmem:[#allocation3 + $0x160] sm:$0xf]
        %v1695 = vld [vmem:[#allocation3 + $0x164] sm:$0xf]
        %v1696 = vld [vmem:[#allocation3 + $0x168] sm:$0xf]
        %v1697 = vld [vmem:[#allocation3 + $0x16c] sm:$0xf]
        %v1698 = vld [vmem:[#allocation3 + $0x170] sm:$0xf]
        %v1699 = vld [vmem:[#allocation3 + $0x174] sm:$0xf]
        %v1700 = vld [vmem:[#allocation3 + $0x178] sm:$0xf]
        %v1701 = vld [vmem:[#allocation3 + $0x17c] sm:$0xf]
        %v1702 = vpack.c.b16 %v1633, %v1630
        %v1703 = vpack.c.b16 %v1634, %v1631
        %v1704 = vpack.c.b16 %v1635, %v1632
        %v1705 = vpack.c.b16 %v1639, %v1636
        %v1706 = vpack.c.b16 %v1640, %v1637
        %v1707 = vpack.c.b16 %v1641, %v1638
        %v1708 = vpack.c.b16 %v1645, %v1642
        %v1709 = vpack.c.b16 %v1646, %v1643
        %v1710 = vpack.c.b16 %v1647, %v1644
        %v1711 = vpack.c.b16 %v1651, %v1648
        %v1712 = vpack.c.b16 %v1652, %v1649
        %v1713 = vpack.c.b16 %v1653, %v1650
        %v1774 = vunpack.c.l.b16 %v1654
        %v1775 = vunpack.c.l.b16 %v1655
        %v1776 = vunpack.c.l.b16 %v1656
        %v1777 = vunpack.c.l.b16 %v1657
        %v1778 = vunpack.c.l.b16 %v1658
        %v1779 = vunpack.c.l.b16 %v1659
        %v1780 = vunpack.c.l.b16 %v1660
        %v1781 = vunpack.c.l.b16 %v1661
        %v1782 = vunpack.c.l.b16 %v1662
        %v1783 = vunpack.c.l.b16 %v1663
        %v1784 = vunpack.c.l.b16 %v1664
        %v1785 = vunpack.c.l.b16 %v1665
        %v1786 = vunpack.c.l.b16 %v1666
        %v1787 = vunpack.c.l.b16 %v1667
        %v1788 = vunpack.c.l.b16 %v1668
        %v1789 = vunpack.c.l.b16 %v1669
        %v1790 = vunpack.c.l.b16 %v1670
        %v1791 = vunpack.c.l.b16 %v1671
        %v1792 = vunpack.c.l.b16 %v1672
        %v1793 = vunpack.c.l.b16 %v1673
        %v1794 = vunpack.c.l.b16 %v1674
        %v1795 = vunpack.c.l.b16 %v1675
        %v1796 = vunpack.c.l.b16 %v1676
        %v1797 = vunpack.c.l.b16 %v1677
        %v1798 = vunpack.c.l.b16 %v1678
        %v1799 = vunpack.c.l.b16 %v1679
        %v1800 = vunpack.c.l.b16 %v1680
        %v1801 = vunpack.c.l.b16 %v1681
        %v1802 = vunpack.c.l.b16 %v1682
        %v1803 = vunpack.c.l.b16 %v1683
        %v1804 = vunpack.c.l.b16 %v1684
        %v1805 = vunpack.c.l.b16 %v1685
        %v1806 = vunpack.c.l.b16 %v1686
        %v1807 = vunpack.c.l.b16 %v1687
        %v1808 = vunpack.c.l.b16 %v1688
        %v1809 = vunpack.c.l.b16 %v1689
        %v1810 = vunpack.c.l.b16 %v1690
        %v1811 = vunpack.c.l.b16 %v1691
        %v1812 = vunpack.c.l.b16 %v1692
        %v1813 = vunpack.c.l.b16 %v1693
        %v1814 = vunpack.c.l.b16 %v1694
        %v1815 = vunpack.c.l.b16 %v1695
        %v1816 = vunpack.c.l.b16 %v1696
        %v1817 = vunpack.c.l.b16 %v1697
        %v1818 = vunpack.c.l.b16 %v1698
        %v1819 = vunpack.c.l.b16 %v1699
        %v1820 = vunpack.c.l.b16 %v1700
        %v1821 = vunpack.c.l.b16 %v1701
        %v1822 = vpack.c.b16 %v1775, %v1774
        %v1823 = vpack.c.b16 %v1777, %v1776
        %v1824 = vpack.c.b16 %v1779, %v1778
        %v1825 = vpack.c.b16 %v1781, %v1780
        %v1826 = vpack.c.b16 %v1783, %v1782
        %v1827 = vpack.c.b16 %v1785, %v1784
        %v1828 = vpack.c.b16 %v1787, %v1786
        %v1829 = vpack.c.b16 %v1789, %v1788
        %v1830 = vpack.c.b16 %v1791, %v1790
        %v1831 = vpack.c.b16 %v1793, %v1792
        %v1832 = vpack.c.b16 %v1795, %v1794
        %v1833 = vpack.c.b16 %v1797, %v1796
        %v1834 = vpack.c.b16 %v1799, %v1798
        %v1835 = vpack.c.b16 %v1801, %v1800
        %v1836 = vpack.c.b16 %v1803, %v1802
        %v1837 = vpack.c.b16 %v1805, %v1804
        %v1838 = vpack.c.b16 %v1807, %v1806
        %v1839 = vpack.c.b16 %v1809, %v1808
        %v1840 = vpack.c.b16 %v1811, %v1810
        %v1841 = vpack.c.b16 %v1813, %v1812
        %v1842 = vpack.c.b16 %v1815, %v1814
        %v1843 = vpack.c.b16 %v1817, %v1816
        %v1844 = vpack.c.b16 %v1819, %v1818
        %v1845 = vpack.c.b16 %v1821, %v1820
        %1870 = vmatprep.subr.bf16.mxu0 0
        %1871 = vmatpush1.bf16.msra.mxu0 %v1829
        %1872 = vmatprep.subr.bf16.mxu0 0
        %1873 = vmatpush1.bf16.msra.mxu0 %v1828
        %1874 = vmatprep.subr.bf16.mxu0 0
        %1875 = vmatpush1.bf16.msra.mxu0 %v1827
        %1876 = vmatprep.subr.bf16.mxu0 0
        %1877 = vmatpush1.bf16.msra.mxu0 %v1826
        %1878 = vmatprep.subr.bf16.mxu0 0
        %1879 = vmatpush1.bf16.msra.mxu0 %v1825
        %1880 = vmatprep.subr.bf16.mxu0 0
        %1881 = vmatpush1.bf16.msra.mxu0 %v1824
        %1882 = vmatprep.subr.bf16.mxu0 0
        %1883 = vmatpush1.bf16.msra.mxu0 %v1823
        %1884 = vmatprep.subr.bf16.mxu0 0
        %1885 = vmatpush1.bf16.msra.mxu0 %v1822
        %1886 = vmatprep.subr.bf16.mxu0 0
        %1887 = vmatpush2.bf16.msra.mxu0 %v1837
        %1888 = vmatprep.subr.bf16.mxu0 0
        %1889 = vmatpush2.bf16.msra.mxu0 %v1836
        %1890 = vmatprep.subr.bf16.mxu0 0
        %1891 = vmatpush2.bf16.msra.mxu0 %v1835
        %1892 = vmatprep.subr.bf16.mxu0 0
        %1893 = vmatpush2.bf16.msra.mxu0 %v1834
        %1894 = vmatprep.subr.bf16.mxu0 0
        %1895 = vmatpush2.bf16.msra.mxu0 %v1833
        %1896 = vmatprep.subr.bf16.mxu0 0
        %1897 = vmatpush2.bf16.msra.mxu0 %v1832
        %1898 = vmatprep.subr.bf16.mxu0 0
        %1899 = vmatpush2.bf16.msra.mxu0 %v1831
        %1900 = vmatprep.subr.bf16.mxu0 0
        %1901 = vmatpush2.bf16.msra.mxu0 %v1830
        %1902 = vmatprep.mubr.bf16.mxu0 %v1703
        %1903 = vmatmul.mubr.bf16.gmra.mxu0 %v1702
        %v1904 = vpop.f32.mrf.mxu0
        %v1905 = vadd.f32 0.0, %v1904
        %v1906 = vpop.f32.mrf.mxu0
        %v1907 = vpop.f32.mrf.mxu0
        %v1908 = vadd.f32 0.0, %v1907
        %v1909 = vpop.f32.mrf.mxu0
        %1910 = vmatprep.mubr.bf16.mxu0 %v1706
        %1911 = vmatmul.mubr.bf16.gmra.mxu0 %v1705
        %v1912 = vpop.f32.mrf.mxu0
        %v1913 = vadd.f32 0.0, %v1912
        %v1914 = vpop.f32.mrf.mxu0
        %v1915 = vpop.f32.mrf.mxu0
        %v1916 = vadd.f32 0.0, %v1915
        %v1917 = vpop.f32.mrf.mxu0
        %1918 = vmatprep.mubr.bf16.mxu0 %v1709
        %1919 = vmatmul.mubr.bf16.gmra.mxu0 %v1708
        %v1920 = vpop.f32.mrf.mxu0
        %v1921 = vadd.f32 0.0, %v1920
        %v1922 = vpop.f32.mrf.mxu0
        %v1923 = vpop.f32.mrf.mxu0
        %v1924 = vadd.f32 0.0, %v1923
        %v1925 = vpop.f32.mrf.mxu0
        %1926 = vmatprep.mubr.bf16.mxu0 %v1712
        %1927 = vmatmul.mubr.bf16.gmra.mxu0 %v1711
        %v1928 = vpop.f32.mrf.mxu0
        %v1929 = vadd.f32 0.0, %v1928
        %v1930 = vpop.f32.mrf.mxu0
        %v1931 = vpop.f32.mrf.mxu0
        %v1932 = vadd.f32 0.0, %v1931
        %v1933 = vpop.f32.mrf.mxu0
        %1934 = vdwg.mxu0
        %1935 = vmatprep.subr.bf16.mxu0 0
        %1936 = vmatpush1.bf16.msra.mxu0 %v1845
        %1937 = vmatprep.subr.bf16.mxu0 0
        %1938 = vmatpush1.bf16.msra.mxu0 %v1844
        %1939 = vmatprep.subr.bf16.mxu0 0
        %1940 = vmatpush1.bf16.msra.mxu0 %v1843
        %1941 = vmatprep.subr.bf16.mxu0 0
        %1942 = vmatpush1.bf16.msra.mxu0 %v1842
        %1943 = vmatprep.subr.bf16.mxu0 0
        %1944 = vmatpush1.bf16.msra.mxu0 %v1841
        %1945 = vmatprep.subr.bf16.mxu0 0
        %1946 = vmatpush1.bf16.msra.mxu0 %v1840
        %1947 = vmatprep.subr.bf16.mxu0 0
        %1948 = vmatpush1.bf16.msra.mxu0 %v1839
        %1949 = vmatprep.subr.bf16.mxu0 0
        %1950 = vmatpush1.bf16.msra.mxu0 %v1838
        %1951 = vmatprep.subr.bf16.mxu0 0
        %1952 = vmatpush2.bf16.msra.mxu0 0
        %1953 = vmatprep.subr.bf16.mxu0 0
        %1954 = vmatpush2.bf16.msra.mxu0 0
        %1955 = vmatprep.subr.bf16.mxu0 0
        %1956 = vmatpush2.bf16.msra.mxu0 0
        %1957 = vmatprep.subr.bf16.mxu0 0
        %1958 = vmatpush2.bf16.msra.mxu0 0
        %1959 = vmatprep.subr.bf16.mxu0 0
        %1960 = vmatpush2.bf16.msra.mxu0 0
        %1961 = vmatprep.subr.bf16.mxu0 0
        %1962 = vmatpush2.bf16.msra.mxu0 0
        %1963 = vmatprep.subr.bf16.mxu0 0
        %1964 = vmatpush2.bf16.msra.mxu0 0
        %1965 = vmatprep.subr.bf16.mxu0 0
        %1966 = vmatpush2.bf16.msra.mxu0 0
        %1967 = vmatprep.mubr.bf16.mxu0 0
        %1968 = vmatmul.mubr.bf16.gmra.mxu0 %v1704
        %v1969 = vpop.f32.mrf.mxu0
        %v1970 = vadd.f32 %v1905, %v1969
        %v1971 = vpop.f32.mrf.mxu0
        %v1972 = vpop.f32.mrf.mxu0
        %v1973 = vadd.f32 %v1908, %v1972
        %v1974 = vpop.f32.mrf.mxu0
        %1975 = vmatprep.mubr.bf16.mxu0 0
        %1976 = vmatmul.mubr.bf16.gmra.mxu0 %v1707
        %v1977 = vpop.f32.mrf.mxu0
        %v1978 = vadd.f32 %v1913, %v1977
        %v1979 = vpop.f32.mrf.mxu0
        %v1980 = vpop.f32.mrf.mxu0
        %v1981 = vadd.f32 %v1916, %v1980
        %v1982 = vpop.f32.mrf.mxu0
        %1983 = vmatprep.mubr.bf16.mxu0 0
        %1984 = vmatmul.mubr.bf16.gmra.mxu0 %v1710
        %v1985 = vpop.f32.mrf.mxu0
        %v1986 = vadd.f32 %v1921, %v1985
        %v1987 = vpop.f32.mrf.mxu0
        %v1988 = vpop.f32.mrf.mxu0
        %v1989 = vadd.f32 %v1924, %v1988
        %v1990 = vpop.f32.mrf.mxu0
        %1991 = vmatprep.mubr.bf16.mxu0 0
        %1992 = vmatmul.mubr.bf16.gmra.mxu0 %v1713
        %v1993 = vpop.f32.mrf.mxu0
        %v1994 = vadd.f32 %v1929, %v1993
        %v1995 = vpop.f32.mrf.mxu0
        %v1996 = vpop.f32.mrf.mxu0
        %v1997 = vadd.f32 %v1932, %v1996
        %v1998 = vpop.f32.mrf.mxu0
        %1999 = vdwg.mxu0
        %v2000 = vpack.c.b16 %v1489, %v1486
        %v2001 = vpack.c.b16 %v1490, %v1487
        %v2002 = vpack.c.b16 %v1491, %v1488
        %v2003 = vpack.c.b16 %v1495, %v1492
        %v2004 = vpack.c.b16 %v1496, %v1493
        %v2005 = vpack.c.b16 %v1497, %v1494
        %v2006 = vpack.c.b16 %v1501, %v1498
        %v2007 = vpack.c.b16 %v1502, %v1499
        %v2008 = vpack.c.b16 %v1503, %v1500
        %v2009 = vpack.c.b16 %v1507, %v1504
        %v2010 = vpack.c.b16 %v1508, %v1505
        %v2011 = vpack.c.b16 %v1509, %v1506
        %v2072 = vunpack.c.l.b16 %v1510
        %v2073 = vunpack.c.l.b16 %v1511
        %v2074 = vunpack.c.l.b16 %v1512
        %v2075 = vunpack.c.l.b16 %v1513
        %v2076 = vunpack.c.l.b16 %v1514
        %v2077 = vunpack.c.l.b16 %v1515
        %v2078 = vunpack.c.l.b16 %v1516
        %v2079 = vunpack.c.l.b16 %v1517
        %v2080 = vunpack.c.l.b16 %v1518
        %v2081 = vunpack.c.l.b16 %v1519
        %v2082 = vunpack.c.l.b16 %v1520
        %v2083 = vunpack.c.l.b16 %v1521
        %v2084 = vunpack.c.l.b16 %v1522
        %v2085 = vunpack.c.l.b16 %v1523
        %v2086 = vunpack.c.l.b16 %v1524
        %v2087 = vunpack.c.l.b16 %v1525
        %v2088 = vunpack.c.l.b16 %v1526
        %v2089 = vunpack.c.l.b16 %v1527
        %v2090 = vunpack.c.l.b16 %v1528
        %v2091 = vunpack.c.l.b16 %v1529
        %v2092 = vunpack.c.l.b16 %v1530
        %v2093 = vunpack.c.l.b16 %v1531
        %v2094 = vunpack.c.l.b16 %v1532
        %v2095 = vunpack.c.l.b16 %v1533
        %v2096 = vunpack.c.l.b16 %v1534
        %v2097 = vunpack.c.l.b16 %v1535
        %v2098 = vunpack.c.l.b16 %v1536
        %v2099 = vunpack.c.l.b16 %v1537
        %v2100 = vunpack.c.l.b16 %v1538
        %v2101 = vunpack.c.l.b16 %v1539
        %v2102 = vunpack.c.l.b16 %v1540
        %v2103 = vunpack.c.l.b16 %v1541
        %v2104 = vunpack.c.l.b16 %v1542
        %v2105 = vunpack.c.l.b16 %v1543
        %v2106 = vunpack.c.l.b16 %v1544
        %v2107 = vunpack.c.l.b16 %v1545
        %v2108 = vunpack.c.l.b16 %v1546
        %v2109 = vunpack.c.l.b16 %v1547
        %v2110 = vunpack.c.l.b16 %v1548
        %v2111 = vunpack.c.l.b16 %v1549
        %v2112 = vunpack.c.l.b16 %v1550
        %v2113 = vunpack.c.l.b16 %v1551
        %v2114 = vunpack.c.l.b16 %v1552
        %v2115 = vunpack.c.l.b16 %v1553
        %v2116 = vunpack.c.l.b16 %v1554
        %v2117 = vunpack.c.l.b16 %v1555
        %v2118 = vunpack.c.l.b16 %v1556
        %v2119 = vunpack.c.l.b16 %v1557
        %v2120 = vpack.c.b16 %v2073, %v2072
        %v2121 = vpack.c.b16 %v2075, %v2074
        %v2122 = vpack.c.b16 %v2077, %v2076
        %v2123 = vpack.c.b16 %v2079, %v2078
        %v2124 = vpack.c.b16 %v2081, %v2080
        %v2125 = vpack.c.b16 %v2083, %v2082
        %v2126 = vpack.c.b16 %v2085, %v2084
        %v2127 = vpack.c.b16 %v2087, %v2086
        %v2128 = vpack.c.b16 %v2089, %v2088
        %v2129 = vpack.c.b16 %v2091, %v2090
        %v2130 = vpack.c.b16 %v2093, %v2092
        %v2131 = vpack.c.b16 %v2095, %v2094
        %v2132 = vpack.c.b16 %v2097, %v2096
        %v2133 = vpack.c.b16 %v2099, %v2098
        %v2134 = vpack.c.b16 %v2101, %v2100
        %v2135 = vpack.c.b16 %v2103, %v2102
        %v2136 = vpack.c.b16 %v2105, %v2104
        %v2137 = vpack.c.b16 %v2107, %v2106
        %v2138 = vpack.c.b16 %v2109, %v2108
        %v2139 = vpack.c.b16 %v2111, %v2110
        %v2140 = vpack.c.b16 %v2113, %v2112
        %v2141 = vpack.c.b16 %v2115, %v2114
        %v2142 = vpack.c.b16 %v2117, %v2116
        %v2143 = vpack.c.b16 %v2119, %v2118
        %2168 = vmatprep.subr.bf16.mxu0 0
        %2169 = vmatpush1.bf16.msra.mxu0 %v2127
        %2170 = vmatprep.subr.bf16.mxu0 0
        %2171 = vmatpush1.bf16.msra.mxu0 %v2126
        %2172 = vmatprep.subr.bf16.mxu0 0
        %2173 = vmatpush1.bf16.msra.mxu0 %v2125
        %2174 = vmatprep.subr.bf16.mxu0 0
        %2175 = vmatpush1.bf16.msra.mxu0 %v2124
        %2176 = vmatprep.subr.bf16.mxu0 0
        %2177 = vmatpush1.bf16.msra.mxu0 %v2123
        %2178 = vmatprep.subr.bf16.mxu0 0
        %2179 = vmatpush1.bf16.msra.mxu0 %v2122
        %2180 = vmatprep.subr.bf16.mxu0 0
        %2181 = vmatpush1.bf16.msra.mxu0 %v2121
        %2182 = vmatprep.subr.bf16.mxu0 0
        %2183 = vmatpush1.bf16.msra.mxu0 %v2120
        %2184 = vmatprep.subr.bf16.mxu0 0
        %2185 = vmatpush2.bf16.msra.mxu0 %v2135
        %2186 = vmatprep.subr.bf16.mxu0 0
        %2187 = vmatpush2.bf16.msra.mxu0 %v2134
        %2188 = vmatprep.subr.bf16.mxu0 0
        %2189 = vmatpush2.bf16.msra.mxu0 %v2133
        %2190 = vmatprep.subr.bf16.mxu0 0
        %2191 = vmatpush2.bf16.msra.mxu0 %v2132
        %2192 = vmatprep.subr.bf16.mxu0 0
        %2193 = vmatpush2.bf16.msra.mxu0 %v2131
        %2194 = vmatprep.subr.bf16.mxu0 0
        %2195 = vmatpush2.bf16.msra.mxu0 %v2130
        %2196 = vmatprep.subr.bf16.mxu0 0
        %2197 = vmatpush2.bf16.msra.mxu0 %v2129
        %2198 = vmatprep.subr.bf16.mxu0 0
        %2199 = vmatpush2.bf16.msra.mxu0 %v2128
        %2200 = vmatprep.mubr.bf16.mxu0 %v2001
        %2201 = vmatmul.mubr.bf16.gmra.mxu0 %v2000
        %v2202 = vpop.f32.mrf.mxu0
        %v2203 = vadd.f32 %v1970, %v2202
        %v2204 = vpop.f32.mrf.mxu0
        %v2205 = vpop.f32.mrf.mxu0
        %v2206 = vadd.f32 %v1973, %v2205
        %v2207 = vpop.f32.mrf.mxu0
        %2208 = vmatprep.mubr.bf16.mxu0 %v2004
        %2209 = vmatmul.mubr.bf16.gmra.mxu0 %v2003
        %v2210 = vpop.f32.mrf.mxu0
        %v2211 = vadd.f32 %v1978, %v2210
        %v2212 = vpop.f32.mrf.mxu0
        %v2213 = vpop.f32.mrf.mxu0
        %v2214 = vadd.f32 %v1981, %v2213
        %v2215 = vpop.f32.mrf.mxu0
        %2216 = vmatprep.mubr.bf16.mxu0 %v2007
        %2217 = vmatmul.mubr.bf16.gmra.mxu0 %v2006
        %v2218 = vpop.f32.mrf.mxu0
        %v2219 = vadd.f32 %v1986, %v2218
        %v2220 = vpop.f32.mrf.mxu0
        %v2221 = vpop.f32.mrf.mxu0
        %v2222 = vadd.f32 %v1989, %v2221
        %v2223 = vpop.f32.mrf.mxu0
        %2224 = vmatprep.mubr.bf16.mxu0 %v2010
        %2225 = vmatmul.mubr.bf16.gmra.mxu0 %v2009
        %v2226 = vpop.f32.mrf.mxu0
        %v2227 = vadd.f32 %v1994, %v2226
        %v2228 = vpop.f32.mrf.mxu0
        %v2229 = vpop.f32.mrf.mxu0
        %v2230 = vadd.f32 %v1997, %v2229
        %v2231 = vpop.f32.mrf.mxu0
        %2232 = vdwg.mxu0
        %2233 = vmatprep.subr.bf16.mxu0 0
        %2234 = vmatpush1.bf16.msra.mxu0 %v2143
        %2235 = vmatprep.subr.bf16.mxu0 0
        %2236 = vmatpush1.bf16.msra.mxu0 %v2142
        %2237 = vmatprep.subr.bf16.mxu0 0
        %2238 = vmatpush1.bf16.msra.mxu0 %v2141
        %2239 = vmatprep.subr.bf16.mxu0 0
        %2240 = vmatpush1.bf16.msra.mxu0 %v2140
        %2241 = vmatprep.subr.bf16.mxu0 0
        %2242 = vmatpush1.bf16.msra.mxu0 %v2139
        %2243 = vmatprep.subr.bf16.mxu0 0
        %2244 = vmatpush1.bf16.msra.mxu0 %v2138
        %2245 = vmatprep.subr.bf16.mxu0 0
        %2246 = vmatpush1.bf16.msra.mxu0 %v2137
        %2247 = vmatprep.subr.bf16.mxu0 0
        %2248 = vmatpush1.bf16.msra.mxu0 %v2136
        %2249 = vmatprep.subr.bf16.mxu0 0
        %2250 = vmatpush2.bf16.msra.mxu0 0
        %2251 = vmatprep.subr.bf16.mxu0 0
        %2252 = vmatpush2.bf16.msra.mxu0 0
        %2253 = vmatprep.subr.bf16.mxu0 0
        %2254 = vmatpush2.bf16.msra.mxu0 0
        %2255 = vmatprep.subr.bf16.mxu0 0
        %2256 = vmatpush2.bf16.msra.mxu0 0
        %2257 = vmatprep.subr.bf16.mxu0 0
        %2258 = vmatpush2.bf16.msra.mxu0 0
        %2259 = vmatprep.subr.bf16.mxu0 0
        %2260 = vmatpush2.bf16.msra.mxu0 0
        %2261 = vmatprep.subr.bf16.mxu0 0
        %2262 = vmatpush2.bf16.msra.mxu0 0
        %2263 = vmatprep.subr.bf16.mxu0 0
        %2264 = vmatpush2.bf16.msra.mxu0 0
        %2265 = vmatprep.mubr.bf16.mxu0 0
        %2266 = vmatmul.mubr.bf16.gmra.mxu0 %v2002
        %v2267 = vpop.f32.mrf.mxu0
        %v2268 = vadd.f32 %v2203, %v2267
        %v2269 = vpop.f32.mrf.mxu0
        %v2270 = vpop.f32.mrf.mxu0
        %v2271 = vadd.f32 %v2206, %v2270
        %v2272 = vpop.f32.mrf.mxu0
        %2273 = vmatprep.mubr.bf16.mxu0 0
        %2274 = vmatmul.mubr.bf16.gmra.mxu0 %v2005
        %v2275 = vpop.f32.mrf.mxu0
        %v2276 = vadd.f32 %v2211, %v2275
        %v2277 = vpop.f32.mrf.mxu0
        %v2278 = vpop.f32.mrf.mxu0
        %v2279 = vadd.f32 %v2214, %v2278
        %v2280 = vpop.f32.mrf.mxu0
        %2281 = vmatprep.mubr.bf16.mxu0 0
        %2282 = vmatmul.mubr.bf16.gmra.mxu0 %v2008
        %v2283 = vpop.f32.mrf.mxu0
        %v2284 = vadd.f32 %v2219, %v2283
        %v2285 = vpop.f32.mrf.mxu0
        %v2286 = vpop.f32.mrf.mxu0
        %v2287 = vadd.f32 %v2222, %v2286
        %v2288 = vpop.f32.mrf.mxu0
        %2289 = vmatprep.mubr.bf16.mxu0 0
        %2290 = vmatmul.mubr.bf16.gmra.mxu0 %v2011
        %v2291 = vpop.f32.mrf.mxu0
        %v2292 = vadd.f32 %v2227, %v2291
        %v2293 = vpop.f32.mrf.mxu0
        %v2294 = vpop.f32.mrf.mxu0
        %v2295 = vadd.f32 %v2230, %v2294
        %v2296 = vpop.f32.mrf.mxu0
        %2297 = vdwg.mxu0
        %s2298 = scalar_lea.vmem [#allocation2], 32
        %v2299 = vld [vmem:[%s2298] sm:$0xff]
        %v2300 = vld [vmem:[%s2298 + $0x10] sm:$0xff]
        %v2301 = vld [vmem:[%s2298 + $0x20] sm:$0xff]
        %v2302 = vld [vmem:[%s2298 + $0x30] sm:$0xff]
        %v2303 = vld [vmem:[%s2298 + $0x40] sm:$0xff]
        %v2304 = vld [vmem:[%s2298 + $0x50] sm:$0xff]
        %v2305 = vld [vmem:[%s2298 + $0x60] sm:$0xff]
        %v2306 = vld [vmem:[%s2298 + $0x70] sm:$0xff]
        %v2307 = vpack.c.bf16 %v2299, %v2299
        %v2308 = vpack.c.bf16 %v2300, %v2300
        %v2309 = vpack.c.bf16 %v2301, %v2301
        %v2310 = vpack.c.bf16 %v2302, %v2302
        %v2311 = vpack.c.bf16 %v2303, %v2303
        %v2312 = vpack.c.bf16 %v2304, %v2304
        %v2313 = vpack.c.bf16 %v2305, %v2305
        %v2314 = vpack.c.bf16 %v2306, %v2306
        %v2315 = vld [vmem:[%s2298 + $0x1] sm:$0xff]
        %v2316 = vld [vmem:[%s2298 + $0x11] sm:$0xff]
        %v2317 = vld [vmem:[%s2298 + $0x21] sm:$0xff]
        %v2318 = vld [vmem:[%s2298 + $0x31] sm:$0xff]
        %v2319 = vld [vmem:[%s2298 + $0x41] sm:$0xff]
        %v2320 = vld [vmem:[%s2298 + $0x51] sm:$0xff]
        %v2321 = vld [vmem:[%s2298 + $0x61] sm:$0xff]
        %v2322 = vld [vmem:[%s2298 + $0x71] sm:$0xff]
        %v2323 = vpack.c.bf16 %v2315, %v2315
        %v2324 = vpack.c.bf16 %v2316, %v2316
        %v2325 = vpack.c.bf16 %v2317, %v2317
        %v2326 = vpack.c.bf16 %v2318, %v2318
        %v2327 = vpack.c.bf16 %v2319, %v2319
        %v2328 = vpack.c.bf16 %v2320, %v2320
        %v2329 = vpack.c.bf16 %v2321, %v2321
        %v2330 = vpack.c.bf16 %v2322, %v2322
        %v2331 = vld [vmem:[%s2298 + $0x2] sm:$0xff]
        %v2332 = vld [vmem:[%s2298 + $0x12] sm:$0xff]
        %v2333 = vld [vmem:[%s2298 + $0x22] sm:$0xff]
        %v2334 = vld [vmem:[%s2298 + $0x32] sm:$0xff]
        %v2335 = vld [vmem:[%s2298 + $0x42] sm:$0xff]
        %v2336 = vld [vmem:[%s2298 + $0x52] sm:$0xff]
        %v2337 = vld [vmem:[%s2298 + $0x62] sm:$0xff]
        %v2338 = vld [vmem:[%s2298 + $0x72] sm:$0xff]
        %v2339 = vpack.c.bf16 %v2331, %v2331
        %v2340 = vpack.c.bf16 %v2332, %v2332
        %v2341 = vpack.c.bf16 %v2333, %v2333
        %v2342 = vpack.c.bf16 %v2334, %v2334
        %v2343 = vpack.c.bf16 %v2335, %v2335
        %v2344 = vpack.c.bf16 %v2336, %v2336
        %v2345 = vpack.c.bf16 %v2337, %v2337
        %v2346 = vpack.c.bf16 %v2338, %v2338
        %v2371 = vunpack.c.l.b16 %v2307
        %v2372 = vunpack.c.l.b16 %v2323
        %v2373 = vunpack.c.l.b16 %v2339
        %v2374 = vunpack.c.l.b16 %v2308
        %v2375 = vunpack.c.l.b16 %v2324
        %v2376 = vunpack.c.l.b16 %v2340
        %v2377 = vunpack.c.l.b16 %v2309
        %v2378 = vunpack.c.l.b16 %v2325
        %v2379 = vunpack.c.l.b16 %v2341
        %v2380 = vunpack.c.l.b16 %v2310
        %v2381 = vunpack.c.l.b16 %v2326
        %v2382 = vunpack.c.l.b16 %v2342
        %v2383 = vunpack.c.l.b16 %v2311
        %v2384 = vunpack.c.l.b16 %v2327
        %v2385 = vunpack.c.l.b16 %v2343
        %v2386 = vunpack.c.l.b16 %v2312
        %v2387 = vunpack.c.l.b16 %v2328
        %v2388 = vunpack.c.l.b16 %v2344
        %v2389 = vunpack.c.l.b16 %v2313
        %v2390 = vunpack.c.l.b16 %v2329
        %v2391 = vunpack.c.l.b16 %v2345
        %v2392 = vunpack.c.l.b16 %v2314
        %v2393 = vunpack.c.l.b16 %v2330
        %v2394 = vunpack.c.l.b16 %v2346
        %v2395 = vld [vmem:[#allocation3 + $0x180] sm:$0xf]
        %v2396 = vld [vmem:[#allocation3 + $0x184] sm:$0xf]
        %v2397 = vld [vmem:[#allocation3 + $0x188] sm:$0xf]
        %v2398 = vld [vmem:[#allocation3 + $0x18c] sm:$0xf]
        %v2399 = vld [vmem:[#allocation3 + $0x190] sm:$0xf]
        %v2400 = vld [vmem:[#allocation3 + $0x194] sm:$0xf]
        %v2401 = vld [vmem:[#allocation3 + $0x198] sm:$0xf]
        %v2402 = vld [vmem:[#allocation3 + $0x19c] sm:$0xf]
        %v2403 = vld [vmem:[#allocation3 + $0x1a0] sm:$0xf]
        %v2404 = vld [vmem:[#allocation3 + $0x1a4] sm:$0xf]
        %v2405 = vld [vmem:[#allocation3 + $0x1a8] sm:$0xf]
        %v2406 = vld [vmem:[#allocation3 + $0x1ac] sm:$0xf]
        %v2407 = vld [vmem:[#allocation3 + $0x1b0] sm:$0xf]
        %v2408 = vld [vmem:[#allocation3 + $0x1b4] sm:$0xf]
        %v2409 = vld [vmem:[#allocation3 + $0x1b8] sm:$0xf]
        %v2410 = vld [vmem:[#allocation3 + $0x1bc] sm:$0xf]
        %v2411 = vld [vmem:[#allocation3 + $0x1c0] sm:$0xf]
        %v2412 = vld [vmem:[#allocation3 + $0x1c4] sm:$0xf]
        %v2413 = vld [vmem:[#allocation3 + $0x1c8] sm:$0xf]
        %v2414 = vld [vmem:[#allocation3 + $0x1cc] sm:$0xf]
        %v2415 = vld [vmem:[#allocation3 + $0x1d0] sm:$0xf]
        %v2416 = vld [vmem:[#allocation3 + $0x1d4] sm:$0xf]
        %v2417 = vld [vmem:[#allocation3 + $0x1d8] sm:$0xf]
        %v2418 = vld [vmem:[#allocation3 + $0x1dc] sm:$0xf]
        %v2419 = vld [vmem:[#allocation3 + $0x1e0] sm:$0xf]
        %v2420 = vld [vmem:[#allocation3 + $0x1e4] sm:$0xf]
        %v2421 = vld [vmem:[#allocation3 + $0x1e8] sm:$0xf]
        %v2422 = vld [vmem:[#allocation3 + $0x1ec] sm:$0xf]
        %v2423 = vld [vmem:[#allocation3 + $0x1f0] sm:$0xf]
        %v2424 = vld [vmem:[#allocation3 + $0x1f4] sm:$0xf]
        %v2425 = vld [vmem:[#allocation3 + $0x1f8] sm:$0xf]
        %v2426 = vld [vmem:[#allocation3 + $0x1fc] sm:$0xf]
        %v2427 = vld [vmem:[#allocation3 + $0x200] sm:$0xf]
        %v2428 = vld [vmem:[#allocation3 + $0x204] sm:$0xf]
        %v2429 = vld [vmem:[#allocation3 + $0x208] sm:$0xf]
        %v2430 = vld [vmem:[#allocation3 + $0x20c] sm:$0xf]
        %v2431 = vld [vmem:[#allocation3 + $0x210] sm:$0xf]
        %v2432 = vld [vmem:[#allocation3 + $0x214] sm:$0xf]
        %v2433 = vld [vmem:[#allocation3 + $0x218] sm:$0xf]
        %v2434 = vld [vmem:[#allocation3 + $0x21c] sm:$0xf]
        %v2435 = vld [vmem:[#allocation3 + $0x220] sm:$0xf]
        %v2436 = vld [vmem:[#allocation3 + $0x224] sm:$0xf]
        %v2437 = vld [vmem:[#allocation3 + $0x228] sm:$0xf]
        %v2438 = vld [vmem:[#allocation3 + $0x22c] sm:$0xf]
        %v2439 = vld [vmem:[#allocation3 + $0x230] sm:$0xf]
        %v2440 = vld [vmem:[#allocation3 + $0x234] sm:$0xf]
        %v2441 = vld [vmem:[#allocation3 + $0x238] sm:$0xf]
        %v2442 = vld [vmem:[#allocation3 + $0x23c] sm:$0xf]
        %v2443 = vpack.c.b16 %v2374, %v2371
        %v2444 = vpack.c.b16 %v2375, %v2372
        %v2445 = vpack.c.b16 %v2376, %v2373
        %v2446 = vpack.c.b16 %v2380, %v2377
        %v2447 = vpack.c.b16 %v2381, %v2378
        %v2448 = vpack.c.b16 %v2382, %v2379
        %v2449 = vpack.c.b16 %v2386, %v2383
        %v2450 = vpack.c.b16 %v2387, %v2384
        %v2451 = vpack.c.b16 %v2388, %v2385
        %v2452 = vpack.c.b16 %v2392, %v2389
        %v2453 = vpack.c.b16 %v2393, %v2390
        %v2454 = vpack.c.b16 %v2394, %v2391
        %v2515 = vunpack.c.l.b16 %v2395
        %v2516 = vunpack.c.l.b16 %v2396
        %v2517 = vunpack.c.l.b16 %v2397
        %v2518 = vunpack.c.l.b16 %v2398
        %v2519 = vunpack.c.l.b16 %v2399
        %v2520 = vunpack.c.l.b16 %v2400
        %v2521 = vunpack.c.l.b16 %v2401
        %v2522 = vunpack.c.l.b16 %v2402
        %v2523 = vunpack.c.l.b16 %v2403
        %v2524 = vunpack.c.l.b16 %v2404
        %v2525 = vunpack.c.l.b16 %v2405
        %v2526 = vunpack.c.l.b16 %v2406
        %v2527 = vunpack.c.l.b16 %v2407
        %v2528 = vunpack.c.l.b16 %v2408
        %v2529 = vunpack.c.l.b16 %v2409
        %v2530 = vunpack.c.l.b16 %v2410
        %v2531 = vunpack.c.l.b16 %v2411
        %v2532 = vunpack.c.l.b16 %v2412
        %v2533 = vunpack.c.l.b16 %v2413
        %v2534 = vunpack.c.l.b16 %v2414
        %v2535 = vunpack.c.l.b16 %v2415
        %v2536 = vunpack.c.l.b16 %v2416
        %v2537 = vunpack.c.l.b16 %v2417
        %v2538 = vunpack.c.l.b16 %v2418
        %v2539 = vunpack.c.l.b16 %v2419
        %v2540 = vunpack.c.l.b16 %v2420
        %v2541 = vunpack.c.l.b16 %v2421
        %v2542 = vunpack.c.l.b16 %v2422
        %v2543 = vunpack.c.l.b16 %v2423
        %v2544 = vunpack.c.l.b16 %v2424
        %v2545 = vunpack.c.l.b16 %v2425
        %v2546 = vunpack.c.l.b16 %v2426
        %v2547 = vunpack.c.l.b16 %v2427
        %v2548 = vunpack.c.l.b16 %v2428
        %v2549 = vunpack.c.l.b16 %v2429
        %v2550 = vunpack.c.l.b16 %v2430
        %v2551 = vunpack.c.l.b16 %v2431
        %v2552 = vunpack.c.l.b16 %v2432
        %v2553 = vunpack.c.l.b16 %v2433
        %v2554 = vunpack.c.l.b16 %v2434
        %v2555 = vunpack.c.l.b16 %v2435
        %v2556 = vunpack.c.l.b16 %v2436
        %v2557 = vunpack.c.l.b16 %v2437
        %v2558 = vunpack.c.l.b16 %v2438
        %v2559 = vunpack.c.l.b16 %v2439
        %v2560 = vunpack.c.l.b16 %v2440
        %v2561 = vunpack.c.l.b16 %v2441
        %v2562 = vunpack.c.l.b16 %v2442
        %v2563 = vpack.c.b16 %v2516, %v2515
        %v2564 = vpack.c.b16 %v2518, %v2517
        %v2565 = vpack.c.b16 %v2520, %v2519
        %v2566 = vpack.c.b16 %v2522, %v2521
        %v2567 = vpack.c.b16 %v2524, %v2523
        %v2568 = vpack.c.b16 %v2526, %v2525
        %v2569 = vpack.c.b16 %v2528, %v2527
        %v2570 = vpack.c.b16 %v2530, %v2529
        %v2571 = vpack.c.b16 %v2532, %v2531
        %v2572 = vpack.c.b16 %v2534, %v2533
        %v2573 = vpack.c.b16 %v2536, %v2535
        %v2574 = vpack.c.b16 %v2538, %v2537
        %v2575 = vpack.c.b16 %v2540, %v2539
        %v2576 = vpack.c.b16 %v2542, %v2541
        %v2577 = vpack.c.b16 %v2544, %v2543
        %v2578 = vpack.c.b16 %v2546, %v2545
        %v2579 = vpack.c.b16 %v2548, %v2547
        %v2580 = vpack.c.b16 %v2550, %v2549
        %v2581 = vpack.c.b16 %v2552, %v2551
        %v2582 = vpack.c.b16 %v2554, %v2553
        %v2583 = vpack.c.b16 %v2556, %v2555
        %v2584 = vpack.c.b16 %v2558, %v2557
        %v2585 = vpack.c.b16 %v2560, %v2559
        %v2586 = vpack.c.b16 %v2562, %v2561
        %2611 = vmatprep.subr.bf16.mxu0 0
        %2612 = vmatpush1.bf16.msra.mxu0 %v2570
        %2613 = vmatprep.subr.bf16.mxu0 0
        %2614 = vmatpush1.bf16.msra.mxu0 %v2569
        %2615 = vmatprep.subr.bf16.mxu0 0
        %2616 = vmatpush1.bf16.msra.mxu0 %v2568
        %2617 = vmatprep.subr.bf16.mxu0 0
        %2618 = vmatpush1.bf16.msra.mxu0 %v2567
        %2619 = vmatprep.subr.bf16.mxu0 0
        %2620 = vmatpush1.bf16.msra.mxu0 %v2566
        %2621 = vmatprep.subr.bf16.mxu0 0
        %2622 = vmatpush1.bf16.msra.mxu0 %v2565
        %2623 = vmatprep.subr.bf16.mxu0 0
        %2624 = vmatpush1.bf16.msra.mxu0 %v2564
        %2625 = vmatprep.subr.bf16.mxu0 0
        %2626 = vmatpush1.bf16.msra.mxu0 %v2563
        %2627 = vmatprep.subr.bf16.mxu0 0
        %2628 = vmatpush2.bf16.msra.mxu0 %v2578
        %2629 = vmatprep.subr.bf16.mxu0 0
        %2630 = vmatpush2.bf16.msra.mxu0 %v2577
        %2631 = vmatprep.subr.bf16.mxu0 0
        %2632 = vmatpush2.bf16.msra.mxu0 %v2576
        %2633 = vmatprep.subr.bf16.mxu0 0
        %2634 = vmatpush2.bf16.msra.mxu0 %v2575
        %2635 = vmatprep.subr.bf16.mxu0 0
        %2636 = vmatpush2.bf16.msra.mxu0 %v2574
        %2637 = vmatprep.subr.bf16.mxu0 0
        %2638 = vmatpush2.bf16.msra.mxu0 %v2573
        %2639 = vmatprep.subr.bf16.mxu0 0
        %2640 = vmatpush2.bf16.msra.mxu0 %v2572
        %2641 = vmatprep.subr.bf16.mxu0 0
        %2642 = vmatpush2.bf16.msra.mxu0 %v2571
        %2643 = vmatprep.mubr.bf16.mxu0 %v2444
        %2644 = vmatmul.mubr.bf16.gmra.mxu0 %v2443
        %v2645 = vpop.f32.mrf.mxu0
        %v2646 = vadd.f32 0.0, %v2645
        %v2647 = vpop.f32.mrf.mxu0
        %v2648 = vpop.f32.mrf.mxu0
        %v2649 = vadd.f32 0.0, %v2648
        %v2650 = vpop.f32.mrf.mxu0
        %2651 = vmatprep.mubr.bf16.mxu0 %v2447
        %2652 = vmatmul.mubr.bf16.gmra.mxu0 %v2446
        %v2653 = vpop.f32.mrf.mxu0
        %v2654 = vadd.f32 0.0, %v2653
        %v2655 = vpop.f32.mrf.mxu0
        %v2656 = vpop.f32.mrf.mxu0
        %v2657 = vadd.f32 0.0, %v2656
        %v2658 = vpop.f32.mrf.mxu0
        %2659 = vmatprep.mubr.bf16.mxu0 %v2450
        %2660 = vmatmul.mubr.bf16.gmra.mxu0 %v2449
        %v2661 = vpop.f32.mrf.mxu0
        %v2662 = vadd.f32 0.0, %v2661
        %v2663 = vpop.f32.mrf.mxu0
        %v2664 = vpop.f32.mrf.mxu0
        %v2665 = vadd.f32 0.0, %v2664
        %v2666 = vpop.f32.mrf.mxu0
        %2667 = vmatprep.mubr.bf16.mxu0 %v2453
        %2668 = vmatmul.mubr.bf16.gmra.mxu0 %v2452
        %v2669 = vpop.f32.mrf.mxu0
        %v2670 = vadd.f32 0.0, %v2669
        %v2671 = vpop.f32.mrf.mxu0
        %v2672 = vpop.f32.mrf.mxu0
        %v2673 = vadd.f32 0.0, %v2672
        %v2674 = vpop.f32.mrf.mxu0
        %2675 = vdwg.mxu0
        %2676 = vmatprep.subr.bf16.mxu0 0
        %2677 = vmatpush1.bf16.msra.mxu0 %v2586
        %2678 = vmatprep.subr.bf16.mxu0 0
        %2679 = vmatpush1.bf16.msra.mxu0 %v2585
        %2680 = vmatprep.subr.bf16.mxu0 0
        %2681 = vmatpush1.bf16.msra.mxu0 %v2584
        %2682 = vmatprep.subr.bf16.mxu0 0
        %2683 = vmatpush1.bf16.msra.mxu0 %v2583
        %2684 = vmatprep.subr.bf16.mxu0 0
        %2685 = vmatpush1.bf16.msra.mxu0 %v2582
        %2686 = vmatprep.subr.bf16.mxu0 0
        %2687 = vmatpush1.bf16.msra.mxu0 %v2581
        %2688 = vmatprep.subr.bf16.mxu0 0
        %2689 = vmatpush1.bf16.msra.mxu0 %v2580
        %2690 = vmatprep.subr.bf16.mxu0 0
        %2691 = vmatpush1.bf16.msra.mxu0 %v2579
        %2692 = vmatprep.subr.bf16.mxu0 0
        %2693 = vmatpush2.bf16.msra.mxu0 0
        %2694 = vmatprep.subr.bf16.mxu0 0
        %2695 = vmatpush2.bf16.msra.mxu0 0
        %2696 = vmatprep.subr.bf16.mxu0 0
        %2697 = vmatpush2.bf16.msra.mxu0 0
        %2698 = vmatprep.subr.bf16.mxu0 0
        %2699 = vmatpush2.bf16.msra.mxu0 0
        %2700 = vmatprep.subr.bf16.mxu0 0
        %2701 = vmatpush2.bf16.msra.mxu0 0
        %2702 = vmatprep.subr.bf16.mxu0 0
        %2703 = vmatpush2.bf16.msra.mxu0 0
        %2704 = vmatprep.subr.bf16.mxu0 0
        %2705 = vmatpush2.bf16.msra.mxu0 0
        %2706 = vmatprep.subr.bf16.mxu0 0
        %2707 = vmatpush2.bf16.msra.mxu0 0
        %2708 = vmatprep.mubr.bf16.mxu0 0
        %2709 = vmatmul.mubr.bf16.gmra.mxu0 %v2445
        %v2710 = vpop.f32.mrf.mxu0
        %v2711 = vadd.f32 %v2646, %v2710
        %v2712 = vpop.f32.mrf.mxu0
        %v2713 = vpop.f32.mrf.mxu0
        %v2714 = vadd.f32 %v2649, %v2713
        %v2715 = vpop.f32.mrf.mxu0
        %2716 = vmatprep.mubr.bf16.mxu0 0
        %2717 = vmatmul.mubr.bf16.gmra.mxu0 %v2448
        %v2718 = vpop.f32.mrf.mxu0
        %v2719 = vadd.f32 %v2654, %v2718
        %v2720 = vpop.f32.mrf.mxu0
        %v2721 = vpop.f32.mrf.mxu0
        %v2722 = vadd.f32 %v2657, %v2721
        %v2723 = vpop.f32.mrf.mxu0
        %2724 = vmatprep.mubr.bf16.mxu0 0
        %2725 = vmatmul.mubr.bf16.gmra.mxu0 %v2451
        %v2726 = vpop.f32.mrf.mxu0
        %v2727 = vadd.f32 %v2662, %v2726
        %v2728 = vpop.f32.mrf.mxu0
        %v2729 = vpop.f32.mrf.mxu0
        %v2730 = vadd.f32 %v2665, %v2729
        %v2731 = vpop.f32.mrf.mxu0
        %2732 = vmatprep.mubr.bf16.mxu0 0
        %2733 = vmatmul.mubr.bf16.gmra.mxu0 %v2454
        %v2734 = vpop.f32.mrf.mxu0
        %v2735 = vadd.f32 %v2670, %v2734
        %v2736 = vpop.f32.mrf.mxu0
        %v2737 = vpop.f32.mrf.mxu0
        %v2738 = vadd.f32 %v2673, %v2737
        %v2739 = vpop.f32.mrf.mxu0
        %2740 = vdwg.mxu0
        %v2741 = vadd.f32 %v2268, %v2711
        %v2742 = vadd.f32 %v2271, %v2714
        %v2743 = vadd.f32 %v2276, %v2719
        %v2744 = vadd.f32 %v2279, %v2722
        %v2745 = vadd.f32 %v2284, %v2727
        %v2746 = vadd.f32 %v2287, %v2730
        %v2747 = vadd.f32 %v2292, %v2735
        %v2748 = vadd.f32 %v2295, %v2738
        %v2749 = vlaneseq
        %v2750 = vshrl.u32 %v2749, 7
        %v2751 = vsub.s32 2, %v2750
        %v2752 = vrot.slane %v239, %v2751
        %v2753 = vmul.f32 %v2741, %v2752
        %v2754 = vmul.f32 %v2742, %v2752
        %v2755 = vmul.f32 %v2743, %v2752
        %v2756 = vmul.f32 %v2744, %v2752
        %v2757 = vmul.f32 %v2745, %v2752
        %v2758 = vmul.f32 %v2746, %v2752
        %v2759 = vmul.f32 %v2747, %v2752
        %v2760 = vmul.f32 %v2748, %v2752
        %v2761 = vlaneseq
        %v2762 = vshrl.u32 %v2761, 7
        %v2763 = vsub.s32 3, %v2762
        %v2764 = vrot.slane %v239, %v2763
        %v2765 = vadd.f32 %v2753, %v2764
        %v2766 = vadd.f32 %v2754, %v2764
        %v2767 = vadd.f32 %v2755, %v2764
        %v2768 = vadd.f32 %v2756, %v2764
        %v2769 = vadd.f32 %v2757, %v2764
        %v2770 = vadd.f32 %v2758, %v2764
        %v2771 = vadd.f32 %v2759, %v2764
        %v2772 = vadd.f32 %v2760, %v2764
        %v2773 = vadd.f32 %v2765, %v280
        %v2774 = vadd.f32 %v2766, %v281
        %v2775 = vadd.f32 %v2767, %v282
        %v2776 = vadd.f32 %v2768, %v283
        %v2777 = vadd.f32 %v2769, %v284
        %v2778 = vadd.f32 %v2770, %v285
        %v2779 = vadd.f32 %v2771, %v286
        %v2780 = vadd.f32 %v2772, %v287
        %v2781 = vmax.f32 %v2773, 0.0
        %v2782 = vmax.f32 %v2774, 0.0
        %v2783 = vmax.f32 %v2775, 0.0
        %v2784 = vmax.f32 %v2776, 0.0
        %v2785 = vmax.f32 %v2777, 0.0
        %v2786 = vmax.f32 %v2778, 0.0
        %v2787 = vmax.f32 %v2779, 0.0
        %v2788 = vmax.f32 %v2780, 0.0
        %s2789 = scalar_lea.vmem %s3, 4
        %v2790 = vld [vmem:[%s2789] sm:$0xf]
        %2791 = vst [vmem:[%s1405 + $0x1] sm:$0xff] %v2781
        %2792 = vst [vmem:[%s1405 + $0x11] sm:$0xff] %v2782
        %2793 = vst [vmem:[%s1405 + $0x21] sm:$0xff] %v2783
        %2794 = vst [vmem:[%s1405 + $0x31] sm:$0xff] %v2784
        %2795 = vst [vmem:[%s1405 + $0x41] sm:$0xff] %v2785
        %2796 = vst [vmem:[%s1405 + $0x51] sm:$0xff] %v2786
        %2797 = vst [vmem:[%s1405 + $0x61] sm:$0xff] %v2787
        %2798 = vst [vmem:[%s1405 + $0x71] sm:$0xff] %v2788
        %v2799 = vld [vmem:[#allocation2] sm:$0xff]
        %v2800 = vld [vmem:[#allocation2 + $0x10] sm:$0xff]
        %v2801 = vld [vmem:[#allocation2 + $0x20] sm:$0xff]
        %v2802 = vld [vmem:[#allocation2 + $0x30] sm:$0xff]
        %v2803 = vld [vmem:[#allocation2 + $0x40] sm:$0xff]
        %v2804 = vld [vmem:[#allocation2 + $0x50] sm:$0xff]
        %v2805 = vld [vmem:[#allocation2 + $0x60] sm:$0xff]
        %v2806 = vld [vmem:[#allocation2 + $0x70] sm:$0xff]
        %v2807 = vpack.c.bf16 %v2799, %v2799
        %v2808 = vpack.c.bf16 %v2800, %v2800
        %v2809 = vpack.c.bf16 %v2801, %v2801
        %v2810 = vpack.c.bf16 %v2802, %v2802
        %v2811 = vpack.c.bf16 %v2803, %v2803
        %v2812 = vpack.c.bf16 %v2804, %v2804
        %v2813 = vpack.c.bf16 %v2805, %v2805
        %v2814 = vpack.c.bf16 %v2806, %v2806
        %v2815 = vld [vmem:[#allocation2 + $0x1] sm:$0xff]
        %v2816 = vld [vmem:[#allocation2 + $0x11] sm:$0xff]
        %v2817 = vld [vmem:[#allocation2 + $0x21] sm:$0xff]
        %v2818 = vld [vmem:[#allocation2 + $0x31] sm:$0xff]
        %v2819 = vld [vmem:[#allocation2 + $0x41] sm:$0xff]
        %v2820 = vld [vmem:[#allocation2 + $0x51] sm:$0xff]
        %v2821 = vld [vmem:[#allocation2 + $0x61] sm:$0xff]
        %v2822 = vld [vmem:[#allocation2 + $0x71] sm:$0xff]
        %v2823 = vpack.c.bf16 %v2815, %v2815
        %v2824 = vpack.c.bf16 %v2816, %v2816
        %v2825 = vpack.c.bf16 %v2817, %v2817
        %v2826 = vpack.c.bf16 %v2818, %v2818
        %v2827 = vpack.c.bf16 %v2819, %v2819
        %v2828 = vpack.c.bf16 %v2820, %v2820
        %v2829 = vpack.c.bf16 %v2821, %v2821
        %v2830 = vpack.c.bf16 %v2822, %v2822
        %v2831 = vld [vmem:[#allocation2 + $0x2] sm:$0xff]
        %v2832 = vld [vmem:[#allocation2 + $0x12] sm:$0xff]
        %v2833 = vld [vmem:[#allocation2 + $0x22] sm:$0xff]
        %v2834 = vld [vmem:[#allocation2 + $0x32] sm:$0xff]
        %v2835 = vld [vmem:[#allocation2 + $0x42] sm:$0xff]
        %v2836 = vld [vmem:[#allocation2 + $0x52] sm:$0xff]
        %v2837 = vld [vmem:[#allocation2 + $0x62] sm:$0xff]
        %v2838 = vld [vmem:[#allocation2 + $0x72] sm:$0xff]
        %v2839 = vpack.c.bf16 %v2831, %v2831
        %v2840 = vpack.c.bf16 %v2832, %v2832
        %v2841 = vpack.c.bf16 %v2833, %v2833
        %v2842 = vpack.c.bf16 %v2834, %v2834
        %v2843 = vpack.c.bf16 %v2835, %v2835
        %v2844 = vpack.c.bf16 %v2836, %v2836
        %v2845 = vpack.c.bf16 %v2837, %v2837
        %v2846 = vpack.c.bf16 %v2838, %v2838
        %v2871 = vunpack.c.l.b16 %v2807
        %v2872 = vunpack.c.l.b16 %v2823
        %v2873 = vunpack.c.l.b16 %v2839
        %v2874 = vunpack.c.l.b16 %v2808
        %v2875 = vunpack.c.l.b16 %v2824
        %v2876 = vunpack.c.l.b16 %v2840
        %v2877 = vunpack.c.l.b16 %v2809
        %v2878 = vunpack.c.l.b16 %v2825
        %v2879 = vunpack.c.l.b16 %v2841
        %v2880 = vunpack.c.l.b16 %v2810
        %v2881 = vunpack.c.l.b16 %v2826
        %v2882 = vunpack.c.l.b16 %v2842
        %v2883 = vunpack.c.l.b16 %v2811
        %v2884 = vunpack.c.l.b16 %v2827
        %v2885 = vunpack.c.l.b16 %v2843
        %v2886 = vunpack.c.l.b16 %v2812
        %v2887 = vunpack.c.l.b16 %v2828
        %v2888 = vunpack.c.l.b16 %v2844
        %v2889 = vunpack.c.l.b16 %v2813
        %v2890 = vunpack.c.l.b16 %v2829
        %v2891 = vunpack.c.l.b16 %v2845
        %v2892 = vunpack.c.l.b16 %v2814
        %v2893 = vunpack.c.l.b16 %v2830
        %v2894 = vunpack.c.l.b16 %v2846
        %s2895 = scalar_lea.vmem %s1, 576
        %v2896 = vld [vmem:[%s2895] sm:$0xf]
        %v2897 = vld [vmem:[%s2895 + $0x4] sm:$0xf]
        %v2898 = vld [vmem:[%s2895 + $0x8] sm:$0xf]
        %v2899 = vld [vmem:[%s2895 + $0xc] sm:$0xf]
        %v2900 = vld [vmem:[%s2895 + $0x10] sm:$0xf]
        %v2901 = vld [vmem:[%s2895 + $0x14] sm:$0xf]
        %v2902 = vld [vmem:[%s2895 + $0x18] sm:$0xf]
        %v2903 = vld [vmem:[%s2895 + $0x1c] sm:$0xf]
        %v2904 = vld [vmem:[%s2895 + $0x20] sm:$0xf]
        %v2905 = vld [vmem:[%s2895 + $0x24] sm:$0xf]
        %v2906 = vld [vmem:[%s2895 + $0x28] sm:$0xf]
        %v2907 = vld [vmem:[%s2895 + $0x2c] sm:$0xf]
        %v2908 = vld [vmem:[%s2895 + $0x30] sm:$0xf]
        %v2909 = vld [vmem:[%s2895 + $0x34] sm:$0xf]
        %v2910 = vld [vmem:[%s2895 + $0x38] sm:$0xf]
        %v2911 = vld [vmem:[%s2895 + $0x3c] sm:$0xf]
        %v2912 = vld [vmem:[%s2895 + $0x40] sm:$0xf]
        %v2913 = vld [vmem:[%s2895 + $0x44] sm:$0xf]
        %v2914 = vld [vmem:[%s2895 + $0x48] sm:$0xf]
        %v2915 = vld [vmem:[%s2895 + $0x4c] sm:$0xf]
        %v2916 = vld [vmem:[%s2895 + $0x50] sm:$0xf]
        %v2917 = vld [vmem:[%s2895 + $0x54] sm:$0xf]
        %v2918 = vld [vmem:[%s2895 + $0x58] sm:$0xf]
        %v2919 = vld [vmem:[%s2895 + $0x5c] sm:$0xf]
        %v2920 = vld [vmem:[%s2895 + $0x60] sm:$0xf]
        %v2921 = vld [vmem:[%s2895 + $0x64] sm:$0xf]
        %v2922 = vld [vmem:[%s2895 + $0x68] sm:$0xf]
        %v2923 = vld [vmem:[%s2895 + $0x6c] sm:$0xf]
        %v2924 = vld [vmem:[%s2895 + $0x70] sm:$0xf]
        %v2925 = vld [vmem:[%s2895 + $0x74] sm:$0xf]
        %v2926 = vld [vmem:[%s2895 + $0x78] sm:$0xf]
        %v2927 = vld [vmem:[%s2895 + $0x7c] sm:$0xf]
        %v2928 = vld [vmem:[%s2895 + $0x80] sm:$0xf]
        %v2929 = vld [vmem:[%s2895 + $0x84] sm:$0xf]
        %v2930 = vld [vmem:[%s2895 + $0x88] sm:$0xf]
        %v2931 = vld [vmem:[%s2895 + $0x8c] sm:$0xf]
        %v2932 = vld [vmem:[%s2895 + $0x90] sm:$0xf]
        %v2933 = vld [vmem:[%s2895 + $0x94] sm:$0xf]
        %v2934 = vld [vmem:[%s2895 + $0x98] sm:$0xf]
        %v2935 = vld [vmem:[%s2895 + $0x9c] sm:$0xf]
        %v2936 = vld [vmem:[%s2895 + $0xa0] sm:$0xf]
        %v2937 = vld [vmem:[%s2895 + $0xa4] sm:$0xf]
        %v2938 = vld [vmem:[%s2895 + $0xa8] sm:$0xf]
        %v2939 = vld [vmem:[%s2895 + $0xac] sm:$0xf]
        %v2940 = vld [vmem:[%s2895 + $0xb0] sm:$0xf]
        %v2941 = vld [vmem:[%s2895 + $0xb4] sm:$0xf]
        %v2942 = vld [vmem:[%s2895 + $0xb8] sm:$0xf]
        %v2943 = vld [vmem:[%s2895 + $0xbc] sm:$0xf]
        %v2944 = vld [vmem:[%s1405] sm:$0xff]
        %v2945 = vld [vmem:[%s1405 + $0x10] sm:$0xff]
        %v2946 = vld [vmem:[%s1405 + $0x20] sm:$0xff]
        %v2947 = vld [vmem:[%s1405 + $0x30] sm:$0xff]
        %v2948 = vld [vmem:[%s1405 + $0x40] sm:$0xff]
        %v2949 = vld [vmem:[%s1405 + $0x50] sm:$0xff]
        %v2950 = vld [vmem:[%s1405 + $0x60] sm:$0xff]
        %v2951 = vld [vmem:[%s1405 + $0x70] sm:$0xff]
        %v2952 = vpack.c.bf16 %v2944, %v2944
        %v2953 = vpack.c.bf16 %v2945, %v2945
        %v2954 = vpack.c.bf16 %v2946, %v2946
        %v2955 = vpack.c.bf16 %v2947, %v2947
        %v2956 = vpack.c.bf16 %v2948, %v2948
        %v2957 = vpack.c.bf16 %v2949, %v2949
        %v2958 = vpack.c.bf16 %v2950, %v2950
        %v2959 = vpack.c.bf16 %v2951, %v2951
        %v2960 = vld [vmem:[%s1405 + $0x1] sm:$0xff]
        %v2961 = vld [vmem:[%s1405 + $0x11] sm:$0xff]
        %v2962 = vld [vmem:[%s1405 + $0x21] sm:$0xff]
        %v2963 = vld [vmem:[%s1405 + $0x31] sm:$0xff]
        %v2964 = vld [vmem:[%s1405 + $0x41] sm:$0xff]
        %v2965 = vld [vmem:[%s1405 + $0x51] sm:$0xff]
        %v2966 = vld [vmem:[%s1405 + $0x61] sm:$0xff]
        %v2967 = vld [vmem:[%s1405 + $0x71] sm:$0xff]
        %v2968 = vpack.c.bf16 %v2960, %v2960
        %v2969 = vpack.c.bf16 %v2961, %v2961
        %v2970 = vpack.c.bf16 %v2962, %v2962
        %v2971 = vpack.c.bf16 %v2963, %v2963
        %v2972 = vpack.c.bf16 %v2964, %v2964
        %v2973 = vpack.c.bf16 %v2965, %v2965
        %v2974 = vpack.c.bf16 %v2966, %v2966
        %v2975 = vpack.c.bf16 %v2967, %v2967
        %v2976 = vld [vmem:[%s1405 + $0x2] sm:$0xff]
        %v2977 = vld [vmem:[%s1405 + $0x12] sm:$0xff]
        %v2978 = vld [vmem:[%s1405 + $0x22] sm:$0xff]
        %v2979 = vld [vmem:[%s1405 + $0x32] sm:$0xff]
        %v2980 = vld [vmem:[%s1405 + $0x42] sm:$0xff]
        %v2981 = vld [vmem:[%s1405 + $0x52] sm:$0xff]
        %v2982 = vld [vmem:[%s1405 + $0x62] sm:$0xff]
        %v2983 = vld [vmem:[%s1405 + $0x72] sm:$0xff]
        %v2984 = vpack.c.bf16 %v2976, %v2976
        %v2985 = vpack.c.bf16 %v2977, %v2977
        %v2986 = vpack.c.bf16 %v2978, %v2978
        %v2987 = vpack.c.bf16 %v2979, %v2979
        %v2988 = vpack.c.bf16 %v2980, %v2980
        %v2989 = vpack.c.bf16 %v2981, %v2981
        %v2990 = vpack.c.bf16 %v2982, %v2982
        %v2991 = vpack.c.bf16 %v2983, %v2983
        %v3016 = vunpack.c.l.b16 %v2952
        %v3017 = vunpack.c.l.b16 %v2968
        %v3018 = vunpack.c.l.b16 %v2984
        %v3019 = vunpack.c.l.b16 %v2953
        %v3020 = vunpack.c.l.b16 %v2969
        %v3021 = vunpack.c.l.b16 %v2985
        %v3022 = vunpack.c.l.b16 %v2954
        %v3023 = vunpack.c.l.b16 %v2970
        %v3024 = vunpack.c.l.b16 %v2986
        %v3025 = vunpack.c.l.b16 %v2955
        %v3026 = vunpack.c.l.b16 %v2971
        %v3027 = vunpack.c.l.b16 %v2987
        %v3028 = vunpack.c.l.b16 %v2956
        %v3029 = vunpack.c.l.b16 %v2972
        %v3030 = vunpack.c.l.b16 %v2988
        %v3031 = vunpack.c.l.b16 %v2957
        %v3032 = vunpack.c.l.b16 %v2973
        %v3033 = vunpack.c.l.b16 %v2989
        %v3034 = vunpack.c.l.b16 %v2958
        %v3035 = vunpack.c.l.b16 %v2974
        %v3036 = vunpack.c.l.b16 %v2990
        %v3037 = vunpack.c.l.b16 %v2959
        %v3038 = vunpack.c.l.b16 %v2975
        %v3039 = vunpack.c.l.b16 %v2991
        %v3040 = vld [vmem:[%s2895 + $0xc0] sm:$0xf]
        %v3041 = vld [vmem:[%s2895 + $0xc4] sm:$0xf]
        %v3042 = vld [vmem:[%s2895 + $0xc8] sm:$0xf]
        %v3043 = vld [vmem:[%s2895 + $0xcc] sm:$0xf]
        %v3044 = vld [vmem:[%s2895 + $0xd0] sm:$0xf]
        %v3045 = vld [vmem:[%s2895 + $0xd4] sm:$0xf]
        %v3046 = vld [vmem:[%s2895 + $0xd8] sm:$0xf]
        %v3047 = vld [vmem:[%s2895 + $0xdc] sm:$0xf]
        %v3048 = vld [vmem:[%s2895 + $0xe0] sm:$0xf]
        %v3049 = vld [vmem:[%s2895 + $0xe4] sm:$0xf]
        %v3050 = vld [vmem:[%s2895 + $0xe8] sm:$0xf]
        %v3051 = vld [vmem:[%s2895 + $0xec] sm:$0xf]
        %v3052 = vld [vmem:[%s2895 + $0xf0] sm:$0xf]
        %v3053 = vld [vmem:[%s2895 + $0xf4] sm:$0xf]
        %v3054 = vld [vmem:[%s2895 + $0xf8] sm:$0xf]
        %v3055 = vld [vmem:[%s2895 + $0xfc] sm:$0xf]
        %v3056 = vld [vmem:[%s2895 + $0x100] sm:$0xf]
        %v3057 = vld [vmem:[%s2895 + $0x104] sm:$0xf]
        %v3058 = vld [vmem:[%s2895 + $0x108] sm:$0xf]
        %v3059 = vld [vmem:[%s2895 + $0x10c] sm:$0xf]
        %v3060 = vld [vmem:[%s2895 + $0x110] sm:$0xf]
        %v3061 = vld [vmem:[%s2895 + $0x114] sm:$0xf]
        %v3062 = vld [vmem:[%s2895 + $0x118] sm:$0xf]
        %v3063 = vld [vmem:[%s2895 + $0x11c] sm:$0xf]
        %v3064 = vld [vmem:[%s2895 + $0x120] sm:$0xf]
        %v3065 = vld [vmem:[%s2895 + $0x124] sm:$0xf]
        %v3066 = vld [vmem:[%s2895 + $0x128] sm:$0xf]
        %v3067 = vld [vmem:[%s2895 + $0x12c] sm:$0xf]
        %v3068 = vld [vmem:[%s2895 + $0x130] sm:$0xf]
        %v3069 = vld [vmem:[%s2895 + $0x134] sm:$0xf]
        %v3070 = vld [vmem:[%s2895 + $0x138] sm:$0xf]
        %v3071 = vld [vmem:[%s2895 + $0x13c] sm:$0xf]
        %v3072 = vld [vmem:[%s2895 + $0x140] sm:$0xf]
        %v3073 = vld [vmem:[%s2895 + $0x144] sm:$0xf]
        %v3074 = vld [vmem:[%s2895 + $0x148] sm:$0xf]
        %v3075 = vld [vmem:[%s2895 + $0x14c] sm:$0xf]
        %v3076 = vld [vmem:[%s2895 + $0x150] sm:$0xf]
        %v3077 = vld [vmem:[%s2895 + $0x154] sm:$0xf]
        %v3078 = vld [vmem:[%s2895 + $0x158] sm:$0xf]
        %v3079 = vld [vmem:[%s2895 + $0x15c] sm:$0xf]
        %v3080 = vld [vmem:[%s2895 + $0x160] sm:$0xf]
        %v3081 = vld [vmem:[%s2895 + $0x164] sm:$0xf]
        %v3082 = vld [vmem:[%s2895 + $0x168] sm:$0xf]
        %v3083 = vld [vmem:[%s2895 + $0x16c] sm:$0xf]
        %v3084 = vld [vmem:[%s2895 + $0x170] sm:$0xf]
        %v3085 = vld [vmem:[%s2895 + $0x174] sm:$0xf]
        %v3086 = vld [vmem:[%s2895 + $0x178] sm:$0xf]
        %v3087 = vld [vmem:[%s2895 + $0x17c] sm:$0xf]
        %v3088 = vpack.c.b16 %v3019, %v3016
        %v3089 = vpack.c.b16 %v3020, %v3017
        %v3090 = vpack.c.b16 %v3021, %v3018
        %v3091 = vpack.c.b16 %v3025, %v3022
        %v3092 = vpack.c.b16 %v3026, %v3023
        %v3093 = vpack.c.b16 %v3027, %v3024
        %v3094 = vpack.c.b16 %v3031, %v3028
        %v3095 = vpack.c.b16 %v3032, %v3029
        %v3096 = vpack.c.b16 %v3033, %v3030
        %v3097 = vpack.c.b16 %v3037, %v3034
        %v3098 = vpack.c.b16 %v3038, %v3035
        %v3099 = vpack.c.b16 %v3039, %v3036
        %v3160 = vunpack.c.l.b16 %v3040
        %v3161 = vunpack.c.l.b16 %v3041
        %v3162 = vunpack.c.l.b16 %v3042
        %v3163 = vunpack.c.l.b16 %v3043
        %v3164 = vunpack.c.l.b16 %v3044
        %v3165 = vunpack.c.l.b16 %v3045
        %v3166 = vunpack.c.l.b16 %v3046
        %v3167 = vunpack.c.l.b16 %v3047
        %v3168 = vunpack.c.l.b16 %v3048
        %v3169 = vunpack.c.l.b16 %v3049
        %v3170 = vunpack.c.l.b16 %v3050
        %v3171 = vunpack.c.l.b16 %v3051
        %v3172 = vunpack.c.l.b16 %v3052
        %v3173 = vunpack.c.l.b16 %v3053
        %v3174 = vunpack.c.l.b16 %v3054
        %v3175 = vunpack.c.l.b16 %v3055
        %v3176 = vunpack.c.l.b16 %v3056
        %v3177 = vunpack.c.l.b16 %v3057
        %v3178 = vunpack.c.l.b16 %v3058
        %v3179 = vunpack.c.l.b16 %v3059
        %v3180 = vunpack.c.l.b16 %v3060
        %v3181 = vunpack.c.l.b16 %v3061
        %v3182 = vunpack.c.l.b16 %v3062
        %v3183 = vunpack.c.l.b16 %v3063
        %v3184 = vunpack.c.l.b16 %v3064
        %v3185 = vunpack.c.l.b16 %v3065
        %v3186 = vunpack.c.l.b16 %v3066
        %v3187 = vunpack.c.l.b16 %v3067
        %v3188 = vunpack.c.l.b16 %v3068
        %v3189 = vunpack.c.l.b16 %v3069
        %v3190 = vunpack.c.l.b16 %v3070
        %v3191 = vunpack.c.l.b16 %v3071
        %v3192 = vunpack.c.l.b16 %v3072
        %v3193 = vunpack.c.l.b16 %v3073
        %v3194 = vunpack.c.l.b16 %v3074
        %v3195 = vunpack.c.l.b16 %v3075
        %v3196 = vunpack.c.l.b16 %v3076
        %v3197 = vunpack.c.l.b16 %v3077
        %v3198 = vunpack.c.l.b16 %v3078
        %v3199 = vunpack.c.l.b16 %v3079
        %v3200 = vunpack.c.l.b16 %v3080
        %v3201 = vunpack.c.l.b16 %v3081
        %v3202 = vunpack.c.l.b16 %v3082
        %v3203 = vunpack.c.l.b16 %v3083
        %v3204 = vunpack.c.l.b16 %v3084
        %v3205 = vunpack.c.l.b16 %v3085
        %v3206 = vunpack.c.l.b16 %v3086
        %v3207 = vunpack.c.l.b16 %v3087
        %v3208 = vpack.c.b16 %v3161, %v3160
        %v3209 = vpack.c.b16 %v3163, %v3162
        %v3210 = vpack.c.b16 %v3165, %v3164
        %v3211 = vpack.c.b16 %v3167, %v3166
        %v3212 = vpack.c.b16 %v3169, %v3168
        %v3213 = vpack.c.b16 %v3171, %v3170
        %v3214 = vpack.c.b16 %v3173, %v3172
        %v3215 = vpack.c.b16 %v3175, %v3174
        %v3216 = vpack.c.b16 %v3177, %v3176
        %v3217 = vpack.c.b16 %v3179, %v3178
        %v3218 = vpack.c.b16 %v3181, %v3180
        %v3219 = vpack.c.b16 %v3183, %v3182
        %v3220 = vpack.c.b16 %v3185, %v3184
        %v3221 = vpack.c.b16 %v3187, %v3186
        %v3222 = vpack.c.b16 %v3189, %v3188
        %v3223 = vpack.c.b16 %v3191, %v3190
        %v3224 = vpack.c.b16 %v3193, %v3192
        %v3225 = vpack.c.b16 %v3195, %v3194
        %v3226 = vpack.c.b16 %v3197, %v3196
        %v3227 = vpack.c.b16 %v3199, %v3198
        %v3228 = vpack.c.b16 %v3201, %v3200
        %v3229 = vpack.c.b16 %v3203, %v3202
        %v3230 = vpack.c.b16 %v3205, %v3204
        %v3231 = vpack.c.b16 %v3207, %v3206
        %3256 = vmatprep.subr.bf16.mxu0 0
        %3257 = vmatpush1.bf16.msra.mxu0 %v3215
        %3258 = vmatprep.subr.bf16.mxu0 0
        %3259 = vmatpush1.bf16.msra.mxu0 %v3214
        %3260 = vmatprep.subr.bf16.mxu0 0
        %3261 = vmatpush1.bf16.msra.mxu0 %v3213
        %3262 = vmatprep.subr.bf16.mxu0 0
        %3263 = vmatpush1.bf16.msra.mxu0 %v3212
        %3264 = vmatprep.subr.bf16.mxu0 0
        %3265 = vmatpush1.bf16.msra.mxu0 %v3211
        %3266 = vmatprep.subr.bf16.mxu0 0
        %3267 = vmatpush1.bf16.msra.mxu0 %v3210
        %3268 = vmatprep.subr.bf16.mxu0 0
        %3269 = vmatpush1.bf16.msra.mxu0 %v3209
        %3270 = vmatprep.subr.bf16.mxu0 0
        %3271 = vmatpush1.bf16.msra.mxu0 %v3208
        %3272 = vmatprep.subr.bf16.mxu0 0
        %3273 = vmatpush2.bf16.msra.mxu0 %v3223
        %3274 = vmatprep.subr.bf16.mxu0 0
        %3275 = vmatpush2.bf16.msra.mxu0 %v3222
        %3276 = vmatprep.subr.bf16.mxu0 0
        %3277 = vmatpush2.bf16.msra.mxu0 %v3221
        %3278 = vmatprep.subr.bf16.mxu0 0
        %3279 = vmatpush2.bf16.msra.mxu0 %v3220
        %3280 = vmatprep.subr.bf16.mxu0 0
        %3281 = vmatpush2.bf16.msra.mxu0 %v3219
        %3282 = vmatprep.subr.bf16.mxu0 0
        %3283 = vmatpush2.bf16.msra.mxu0 %v3218
        %3284 = vmatprep.subr.bf16.mxu0 0
        %3285 = vmatpush2.bf16.msra.mxu0 %v3217
        %3286 = vmatprep.subr.bf16.mxu0 0
        %3287 = vmatpush2.bf16.msra.mxu0 %v3216
        %3288 = vmatprep.mubr.bf16.mxu0 %v3089
        %3289 = vmatmul.mubr.bf16.gmra.mxu0 %v3088
        %v3290 = vpop.f32.mrf.mxu0
        %v3291 = vadd.f32 0.0, %v3290
        %v3292 = vpop.f32.mrf.mxu0
        %v3293 = vpop.f32.mrf.mxu0
        %v3294 = vadd.f32 0.0, %v3293
        %v3295 = vpop.f32.mrf.mxu0
        %3296 = vmatprep.mubr.bf16.mxu0 %v3092
        %3297 = vmatmul.mubr.bf16.gmra.mxu0 %v3091
        %v3298 = vpop.f32.mrf.mxu0
        %v3299 = vadd.f32 0.0, %v3298
        %v3300 = vpop.f32.mrf.mxu0
        %v3301 = vpop.f32.mrf.mxu0
        %v3302 = vadd.f32 0.0, %v3301
        %v3303 = vpop.f32.mrf.mxu0
        %3304 = vmatprep.mubr.bf16.mxu0 %v3095
        %3305 = vmatmul.mubr.bf16.gmra.mxu0 %v3094
        %v3306 = vpop.f32.mrf.mxu0
        %v3307 = vadd.f32 0.0, %v3306
        %v3308 = vpop.f32.mrf.mxu0
        %v3309 = vpop.f32.mrf.mxu0
        %v3310 = vadd.f32 0.0, %v3309
        %v3311 = vpop.f32.mrf.mxu0
        %3312 = vmatprep.mubr.bf16.mxu0 %v3098
        %3313 = vmatmul.mubr.bf16.gmra.mxu0 %v3097
        %v3314 = vpop.f32.mrf.mxu0
        %v3315 = vadd.f32 0.0, %v3314
        %v3316 = vpop.f32.mrf.mxu0
        %v3317 = vpop.f32.mrf.mxu0
        %v3318 = vadd.f32 0.0, %v3317
        %v3319 = vpop.f32.mrf.mxu0
        %3320 = vdwg.mxu0
        %3321 = vmatprep.subr.bf16.mxu0 0
        %3322 = vmatpush1.bf16.msra.mxu0 %v3231
        %3323 = vmatprep.subr.bf16.mxu0 0
        %3324 = vmatpush1.bf16.msra.mxu0 %v3230
        %3325 = vmatprep.subr.bf16.mxu0 0
        %3326 = vmatpush1.bf16.msra.mxu0 %v3229
        %3327 = vmatprep.subr.bf16.mxu0 0
        %3328 = vmatpush1.bf16.msra.mxu0 %v3228
        %3329 = vmatprep.subr.bf16.mxu0 0
        %3330 = vmatpush1.bf16.msra.mxu0 %v3227
        %3331 = vmatprep.subr.bf16.mxu0 0
        %3332 = vmatpush1.bf16.msra.mxu0 %v3226
        %3333 = vmatprep.subr.bf16.mxu0 0
        %3334 = vmatpush1.bf16.msra.mxu0 %v3225
        %3335 = vmatprep.subr.bf16.mxu0 0
        %3336 = vmatpush1.bf16.msra.mxu0 %v3224
        %3337 = vmatprep.subr.bf16.mxu0 0
        %3338 = vmatpush2.bf16.msra.mxu0 0
        %3339 = vmatprep.subr.bf16.mxu0 0
        %3340 = vmatpush2.bf16.msra.mxu0 0
        %3341 = vmatprep.subr.bf16.mxu0 0
        %3342 = vmatpush2.bf16.msra.mxu0 0
        %3343 = vmatprep.subr.bf16.mxu0 0
        %3344 = vmatpush2.bf16.msra.mxu0 0
        %3345 = vmatprep.subr.bf16.mxu0 0
        %3346 = vmatpush2.bf16.msra.mxu0 0
        %3347 = vmatprep.subr.bf16.mxu0 0
        %3348 = vmatpush2.bf16.msra.mxu0 0
        %3349 = vmatprep.subr.bf16.mxu0 0
        %3350 = vmatpush2.bf16.msra.mxu0 0
        %3351 = vmatprep.subr.bf16.mxu0 0
        %3352 = vmatpush2.bf16.msra.mxu0 0
        %3353 = vmatprep.mubr.bf16.mxu0 0
        %3354 = vmatmul.mubr.bf16.gmra.mxu0 %v3090
        %v3355 = vpop.f32.mrf.mxu0
        %v3356 = vadd.f32 %v3291, %v3355
        %v3357 = vpop.f32.mrf.mxu0
        %v3358 = vpop.f32.mrf.mxu0
        %v3359 = vadd.f32 %v3294, %v3358
        %v3360 = vpop.f32.mrf.mxu0
        %3361 = vmatprep.mubr.bf16.mxu0 0
        %3362 = vmatmul.mubr.bf16.gmra.mxu0 %v3093
        %v3363 = vpop.f32.mrf.mxu0
        %v3364 = vadd.f32 %v3299, %v3363
        %v3365 = vpop.f32.mrf.mxu0
        %v3366 = vpop.f32.mrf.mxu0
        %v3367 = vadd.f32 %v3302, %v3366
        %v3368 = vpop.f32.mrf.mxu0
        %3369 = vmatprep.mubr.bf16.mxu0 0
        %3370 = vmatmul.mubr.bf16.gmra.mxu0 %v3096
        %v3371 = vpop.f32.mrf.mxu0
        %v3372 = vadd.f32 %v3307, %v3371
        %v3373 = vpop.f32.mrf.mxu0
        %v3374 = vpop.f32.mrf.mxu0
        %v3375 = vadd.f32 %v3310, %v3374
        %v3376 = vpop.f32.mrf.mxu0
        %3377 = vmatprep.mubr.bf16.mxu0 0
        %3378 = vmatmul.mubr.bf16.gmra.mxu0 %v3099
        %v3379 = vpop.f32.mrf.mxu0
        %v3380 = vadd.f32 %v3315, %v3379
        %v3381 = vpop.f32.mrf.mxu0
        %v3382 = vpop.f32.mrf.mxu0
        %v3383 = vadd.f32 %v3318, %v3382
        %v3384 = vpop.f32.mrf.mxu0
        %3385 = vdwg.mxu0
        %v3386 = vpack.c.b16 %v2874, %v2871
        %v3387 = vpack.c.b16 %v2875, %v2872
        %v3388 = vpack.c.b16 %v2876, %v2873
        %v3389 = vpack.c.b16 %v2880, %v2877
        %v3390 = vpack.c.b16 %v2881, %v2878
        %v3391 = vpack.c.b16 %v2882, %v2879
        %v3392 = vpack.c.b16 %v2886, %v2883
        %v3393 = vpack.c.b16 %v2887, %v2884
        %v3394 = vpack.c.b16 %v2888, %v2885
        %v3395 = vpack.c.b16 %v2892, %v2889
        %v3396 = vpack.c.b16 %v2893, %v2890
        %v3397 = vpack.c.b16 %v2894, %v2891
        %v3458 = vunpack.c.l.b16 %v2896
        %v3459 = vunpack.c.l.b16 %v2897
        %v3460 = vunpack.c.l.b16 %v2898
        %v3461 = vunpack.c.l.b16 %v2899
        %v3462 = vunpack.c.l.b16 %v2900
        %v3463 = vunpack.c.l.b16 %v2901
        %v3464 = vunpack.c.l.b16 %v2902
        %v3465 = vunpack.c.l.b16 %v2903
        %v3466 = vunpack.c.l.b16 %v2904
        %v3467 = vunpack.c.l.b16 %v2905
        %v3468 = vunpack.c.l.b16 %v2906
        %v3469 = vunpack.c.l.b16 %v2907
        %v3470 = vunpack.c.l.b16 %v2908
        %v3471 = vunpack.c.l.b16 %v2909
        %v3472 = vunpack.c.l.b16 %v2910
        %v3473 = vunpack.c.l.b16 %v2911
        %v3474 = vunpack.c.l.b16 %v2912
        %v3475 = vunpack.c.l.b16 %v2913
        %v3476 = vunpack.c.l.b16 %v2914
        %v3477 = vunpack.c.l.b16 %v2915
        %v3478 = vunpack.c.l.b16 %v2916
        %v3479 = vunpack.c.l.b16 %v2917
        %v3480 = vunpack.c.l.b16 %v2918
        %v3481 = vunpack.c.l.b16 %v2919
        %v3482 = vunpack.c.l.b16 %v2920
        %v3483 = vunpack.c.l.b16 %v2921
        %v3484 = vunpack.c.l.b16 %v2922
        %v3485 = vunpack.c.l.b16 %v2923
        %v3486 = vunpack.c.l.b16 %v2924
        %v3487 = vunpack.c.l.b16 %v2925
        %v3488 = vunpack.c.l.b16 %v2926
        %v3489 = vunpack.c.l.b16 %v2927
        %v3490 = vunpack.c.l.b16 %v2928
        %v3491 = vunpack.c.l.b16 %v2929
        %v3492 = vunpack.c.l.b16 %v2930
        %v3493 = vunpack.c.l.b16 %v2931
        %v3494 = vunpack.c.l.b16 %v2932
        %v3495 = vunpack.c.l.b16 %v2933
        %v3496 = vunpack.c.l.b16 %v2934
        %v3497 = vunpack.c.l.b16 %v2935
        %v3498 = vunpack.c.l.b16 %v2936
        %v3499 = vunpack.c.l.b16 %v2937
        %v3500 = vunpack.c.l.b16 %v2938
        %v3501 = vunpack.c.l.b16 %v2939
        %v3502 = vunpack.c.l.b16 %v2940
        %v3503 = vunpack.c.l.b16 %v2941
        %v3504 = vunpack.c.l.b16 %v2942
        %v3505 = vunpack.c.l.b16 %v2943
        %v3506 = vpack.c.b16 %v3459, %v3458
        %v3507 = vpack.c.b16 %v3461, %v3460
        %v3508 = vpack.c.b16 %v3463, %v3462
        %v3509 = vpack.c.b16 %v3465, %v3464
        %v3510 = vpack.c.b16 %v3467, %v3466
        %v3511 = vpack.c.b16 %v3469, %v3468
        %v3512 = vpack.c.b16 %v3471, %v3470
        %v3513 = vpack.c.b16 %v3473, %v3472
        %v3514 = vpack.c.b16 %v3475, %v3474
        %v3515 = vpack.c.b16 %v3477, %v3476
        %v3516 = vpack.c.b16 %v3479, %v3478
        %v3517 = vpack.c.b16 %v3481, %v3480
        %v3518 = vpack.c.b16 %v3483, %v3482
        %v3519 = vpack.c.b16 %v3485, %v3484
        %v3520 = vpack.c.b16 %v3487, %v3486
        %v3521 = vpack.c.b16 %v3489, %v3488
        %v3522 = vpack.c.b16 %v3491, %v3490
        %v3523 = vpack.c.b16 %v3493, %v3492
        %v3524 = vpack.c.b16 %v3495, %v3494
        %v3525 = vpack.c.b16 %v3497, %v3496
        %v3526 = vpack.c.b16 %v3499, %v3498
        %v3527 = vpack.c.b16 %v3501, %v3500
        %v3528 = vpack.c.b16 %v3503, %v3502
        %v3529 = vpack.c.b16 %v3505, %v3504
        %3554 = vmatprep.subr.bf16.mxu0 0
        %3555 = vmatpush1.bf16.msra.mxu0 %v3513
        %3556 = vmatprep.subr.bf16.mxu0 0
        %3557 = vmatpush1.bf16.msra.mxu0 %v3512
        %3558 = vmatprep.subr.bf16.mxu0 0
        %3559 = vmatpush1.bf16.msra.mxu0 %v3511
        %3560 = vmatprep.subr.bf16.mxu0 0
        %3561 = vmatpush1.bf16.msra.mxu0 %v3510
        %3562 = vmatprep.subr.bf16.mxu0 0
        %3563 = vmatpush1.bf16.msra.mxu0 %v3509
        %3564 = vmatprep.subr.bf16.mxu0 0
        %3565 = vmatpush1.bf16.msra.mxu0 %v3508
        %3566 = vmatprep.subr.bf16.mxu0 0
        %3567 = vmatpush1.bf16.msra.mxu0 %v3507
        %3568 = vmatprep.subr.bf16.mxu0 0
        %3569 = vmatpush1.bf16.msra.mxu0 %v3506
        %3570 = vmatprep.subr.bf16.mxu0 0
        %3571 = vmatpush2.bf16.msra.mxu0 %v3521
        %3572 = vmatprep.subr.bf16.mxu0 0
        %3573 = vmatpush2.bf16.msra.mxu0 %v3520
        %3574 = vmatprep.subr.bf16.mxu0 0
        %3575 = vmatpush2.bf16.msra.mxu0 %v3519
        %3576 = vmatprep.subr.bf16.mxu0 0
        %3577 = vmatpush2.bf16.msra.mxu0 %v3518
        %3578 = vmatprep.subr.bf16.mxu0 0
        %3579 = vmatpush2.bf16.msra.mxu0 %v3517
        %3580 = vmatprep.subr.bf16.mxu0 0
        %3581 = vmatpush2.bf16.msra.mxu0 %v3516
        %3582 = vmatprep.subr.bf16.mxu0 0
        %3583 = vmatpush2.bf16.msra.mxu0 %v3515
        %3584 = vmatprep.subr.bf16.mxu0 0
        %3585 = vmatpush2.bf16.msra.mxu0 %v3514
        %3586 = vmatprep.mubr.bf16.mxu0 %v3387
        %3587 = vmatmul.mubr.bf16.gmra.mxu0 %v3386
        %v3588 = vpop.f32.mrf.mxu0
        %v3589 = vadd.f32 %v3356, %v3588
        %v3590 = vpop.f32.mrf.mxu0
        %v3591 = vpop.f32.mrf.mxu0
        %v3592 = vadd.f32 %v3359, %v3591
        %v3593 = vpop.f32.mrf.mxu0
        %3594 = vmatprep.mubr.bf16.mxu0 %v3390
        %3595 = vmatmul.mubr.bf16.gmra.mxu0 %v3389
        %v3596 = vpop.f32.mrf.mxu0
        %v3597 = vadd.f32 %v3364, %v3596
        %v3598 = vpop.f32.mrf.mxu0
        %v3599 = vpop.f32.mrf.mxu0
        %v3600 = vadd.f32 %v3367, %v3599
        %v3601 = vpop.f32.mrf.mxu0
        %3602 = vmatprep.mubr.bf16.mxu0 %v3393
        %3603 = vmatmul.mubr.bf16.gmra.mxu0 %v3392
        %v3604 = vpop.f32.mrf.mxu0
        %v3605 = vadd.f32 %v3372, %v3604
        %v3606 = vpop.f32.mrf.mxu0
        %v3607 = vpop.f32.mrf.mxu0
        %v3608 = vadd.f32 %v3375, %v3607
        %v3609 = vpop.f32.mrf.mxu0
        %3610 = vmatprep.mubr.bf16.mxu0 %v3396
        %3611 = vmatmul.mubr.bf16.gmra.mxu0 %v3395
        %v3612 = vpop.f32.mrf.mxu0
        %v3613 = vadd.f32 %v3380, %v3612
        %v3614 = vpop.f32.mrf.mxu0
        %v3615 = vpop.f32.mrf.mxu0
        %v3616 = vadd.f32 %v3383, %v3615
        %v3617 = vpop.f32.mrf.mxu0
        %3618 = vdwg.mxu0
        %3619 = vmatprep.subr.bf16.mxu0 0
        %3620 = vmatpush1.bf16.msra.mxu0 %v3529
        %3621 = vmatprep.subr.bf16.mxu0 0
        %3622 = vmatpush1.bf16.msra.mxu0 %v3528
        %3623 = vmatprep.subr.bf16.mxu0 0
        %3624 = vmatpush1.bf16.msra.mxu0 %v3527
        %3625 = vmatprep.subr.bf16.mxu0 0
        %3626 = vmatpush1.bf16.msra.mxu0 %v3526
        %3627 = vmatprep.subr.bf16.mxu0 0
        %3628 = vmatpush1.bf16.msra.mxu0 %v3525
        %3629 = vmatprep.subr.bf16.mxu0 0
        %3630 = vmatpush1.bf16.msra.mxu0 %v3524
        %3631 = vmatprep.subr.bf16.mxu0 0
        %3632 = vmatpush1.bf16.msra.mxu0 %v3523
        %3633 = vmatprep.subr.bf16.mxu0 0
        %3634 = vmatpush1.bf16.msra.mxu0 %v3522
        %3635 = vmatprep.subr.bf16.mxu0 0
        %3636 = vmatpush2.bf16.msra.mxu0 0
        %3637 = vmatprep.subr.bf16.mxu0 0
        %3638 = vmatpush2.bf16.msra.mxu0 0
        %3639 = vmatprep.subr.bf16.mxu0 0
        %3640 = vmatpush2.bf16.msra.mxu0 0
        %3641 = vmatprep.subr.bf16.mxu0 0
        %3642 = vmatpush2.bf16.msra.mxu0 0
        %3643 = vmatprep.subr.bf16.mxu0 0
        %3644 = vmatpush2.bf16.msra.mxu0 0
        %3645 = vmatprep.subr.bf16.mxu0 0
        %3646 = vmatpush2.bf16.msra.mxu0 0
        %3647 = vmatprep.subr.bf16.mxu0 0
        %3648 = vmatpush2.bf16.msra.mxu0 0
        %3649 = vmatprep.subr.bf16.mxu0 0
        %3650 = vmatpush2.bf16.msra.mxu0 0
        %3651 = vmatprep.mubr.bf16.mxu0 0
        %3652 = vmatmul.mubr.bf16.gmra.mxu0 %v3388
        %v3653 = vpop.f32.mrf.mxu0
        %v3654 = vadd.f32 %v3589, %v3653
        %v3655 = vpop.f32.mrf.mxu0
        %v3656 = vpop.f32.mrf.mxu0
        %v3657 = vadd.f32 %v3592, %v3656
        %v3658 = vpop.f32.mrf.mxu0
        %3659 = vmatprep.mubr.bf16.mxu0 0
        %3660 = vmatmul.mubr.bf16.gmra.mxu0 %v3391
        %v3661 = vpop.f32.mrf.mxu0
        %v3662 = vadd.f32 %v3597, %v3661
        %v3663 = vpop.f32.mrf.mxu0
        %v3664 = vpop.f32.mrf.mxu0
        %v3665 = vadd.f32 %v3600, %v3664
        %v3666 = vpop.f32.mrf.mxu0
        %3667 = vmatprep.mubr.bf16.mxu0 0
        %3668 = vmatmul.mubr.bf16.gmra.mxu0 %v3394
        %v3669 = vpop.f32.mrf.mxu0
        %v3670 = vadd.f32 %v3605, %v3669
        %v3671 = vpop.f32.mrf.mxu0
        %v3672 = vpop.f32.mrf.mxu0
        %v3673 = vadd.f32 %v3608, %v3672
        %v3674 = vpop.f32.mrf.mxu0
        %3675 = vmatprep.mubr.bf16.mxu0 0
        %3676 = vmatmul.mubr.bf16.gmra.mxu0 %v3397
        %v3677 = vpop.f32.mrf.mxu0
        %v3678 = vadd.f32 %v3613, %v3677
        %v3679 = vpop.f32.mrf.mxu0
        %v3680 = vpop.f32.mrf.mxu0
        %v3681 = vadd.f32 %v3616, %v3680
        %v3682 = vpop.f32.mrf.mxu0
        %3683 = vdwg.mxu0
        %v3684 = vld [vmem:[%s2298] sm:$0xff]
        %v3685 = vld [vmem:[%s2298 + $0x10] sm:$0xff]
        %v3686 = vld [vmem:[%s2298 + $0x20] sm:$0xff]
        %v3687 = vld [vmem:[%s2298 + $0x30] sm:$0xff]
        %v3688 = vld [vmem:[%s2298 + $0x40] sm:$0xff]
        %v3689 = vld [vmem:[%s2298 + $0x50] sm:$0xff]
        %v3690 = vld [vmem:[%s2298 + $0x60] sm:$0xff]
        %v3691 = vld [vmem:[%s2298 + $0x70] sm:$0xff]
        %v3692 = vpack.c.bf16 %v3684, %v3684
        %v3693 = vpack.c.bf16 %v3685, %v3685
        %v3694 = vpack.c.bf16 %v3686, %v3686
        %v3695 = vpack.c.bf16 %v3687, %v3687
        %v3696 = vpack.c.bf16 %v3688, %v3688
        %v3697 = vpack.c.bf16 %v3689, %v3689
        %v3698 = vpack.c.bf16 %v3690, %v3690
        %v3699 = vpack.c.bf16 %v3691, %v3691
        %v3700 = vld [vmem:[%s2298 + $0x1] sm:$0xff]
        %v3701 = vld [vmem:[%s2298 + $0x11] sm:$0xff]
        %v3702 = vld [vmem:[%s2298 + $0x21] sm:$0xff]
        %v3703 = vld [vmem:[%s2298 + $0x31] sm:$0xff]
        %v3704 = vld [vmem:[%s2298 + $0x41] sm:$0xff]
        %v3705 = vld [vmem:[%s2298 + $0x51] sm:$0xff]
        %v3706 = vld [vmem:[%s2298 + $0x61] sm:$0xff]
        %v3707 = vld [vmem:[%s2298 + $0x71] sm:$0xff]
        %v3708 = vpack.c.bf16 %v3700, %v3700
        %v3709 = vpack.c.bf16 %v3701, %v3701
        %v3710 = vpack.c.bf16 %v3702, %v3702
        %v3711 = vpack.c.bf16 %v3703, %v3703
        %v3712 = vpack.c.bf16 %v3704, %v3704
        %v3713 = vpack.c.bf16 %v3705, %v3705
        %v3714 = vpack.c.bf16 %v3706, %v3706
        %v3715 = vpack.c.bf16 %v3707, %v3707
        %v3716 = vld [vmem:[%s2298 + $0x2] sm:$0xff]
        %v3717 = vld [vmem:[%s2298 + $0x12] sm:$0xff]
        %v3718 = vld [vmem:[%s2298 + $0x22] sm:$0xff]
        %v3719 = vld [vmem:[%s2298 + $0x32] sm:$0xff]
        %v3720 = vld [vmem:[%s2298 + $0x42] sm:$0xff]
        %v3721 = vld [vmem:[%s2298 + $0x52] sm:$0xff]
        %v3722 = vld [vmem:[%s2298 + $0x62] sm:$0xff]
        %v3723 = vld [vmem:[%s2298 + $0x72] sm:$0xff]
        %v3724 = vpack.c.bf16 %v3716, %v3716
        %v3725 = vpack.c.bf16 %v3717, %v3717
        %v3726 = vpack.c.bf16 %v3718, %v3718
        %v3727 = vpack.c.bf16 %v3719, %v3719
        %v3728 = vpack.c.bf16 %v3720, %v3720
        %v3729 = vpack.c.bf16 %v3721, %v3721
        %v3730 = vpack.c.bf16 %v3722, %v3722
        %v3731 = vpack.c.bf16 %v3723, %v3723
        %v3756 = vunpack.c.l.b16 %v3692
        %v3757 = vunpack.c.l.b16 %v3708
        %v3758 = vunpack.c.l.b16 %v3724
        %v3759 = vunpack.c.l.b16 %v3693
        %v3760 = vunpack.c.l.b16 %v3709
        %v3761 = vunpack.c.l.b16 %v3725
        %v3762 = vunpack.c.l.b16 %v3694
        %v3763 = vunpack.c.l.b16 %v3710
        %v3764 = vunpack.c.l.b16 %v3726
        %v3765 = vunpack.c.l.b16 %v3695
        %v3766 = vunpack.c.l.b16 %v3711
        %v3767 = vunpack.c.l.b16 %v3727
        %v3768 = vunpack.c.l.b16 %v3696
        %v3769 = vunpack.c.l.b16 %v3712
        %v3770 = vunpack.c.l.b16 %v3728
        %v3771 = vunpack.c.l.b16 %v3697
        %v3772 = vunpack.c.l.b16 %v3713
        %v3773 = vunpack.c.l.b16 %v3729
        %v3774 = vunpack.c.l.b16 %v3698
        %v3775 = vunpack.c.l.b16 %v3714
        %v3776 = vunpack.c.l.b16 %v3730
        %v3777 = vunpack.c.l.b16 %v3699
        %v3778 = vunpack.c.l.b16 %v3715
        %v3779 = vunpack.c.l.b16 %v3731
        %v3780 = vld [vmem:[%s2895 + $0x180] sm:$0xf]
        %v3781 = vld [vmem:[%s2895 + $0x184] sm:$0xf]
        %v3782 = vld [vmem:[%s2895 + $0x188] sm:$0xf]
        %v3783 = vld [vmem:[%s2895 + $0x18c] sm:$0xf]
        %v3784 = vld [vmem:[%s2895 + $0x190] sm:$0xf]
        %v3785 = vld [vmem:[%s2895 + $0x194] sm:$0xf]
        %v3786 = vld [vmem:[%s2895 + $0x198] sm:$0xf]
        %v3787 = vld [vmem:[%s2895 + $0x19c] sm:$0xf]
        %v3788 = vld [vmem:[%s2895 + $0x1a0] sm:$0xf]
        %v3789 = vld [vmem:[%s2895 + $0x1a4] sm:$0xf]
        %v3790 = vld [vmem:[%s2895 + $0x1a8] sm:$0xf]
        %v3791 = vld [vmem:[%s2895 + $0x1ac] sm:$0xf]
        %v3792 = vld [vmem:[%s2895 + $0x1b0] sm:$0xf]
        %v3793 = vld [vmem:[%s2895 + $0x1b4] sm:$0xf]
        %v3794 = vld [vmem:[%s2895 + $0x1b8] sm:$0xf]
        %v3795 = vld [vmem:[%s2895 + $0x1bc] sm:$0xf]
        %v3796 = vld [vmem:[%s2895 + $0x1c0] sm:$0xf]
        %v3797 = vld [vmem:[%s2895 + $0x1c4] sm:$0xf]
        %v3798 = vld [vmem:[%s2895 + $0x1c8] sm:$0xf]
        %v3799 = vld [vmem:[%s2895 + $0x1cc] sm:$0xf]
        %v3800 = vld [vmem:[%s2895 + $0x1d0] sm:$0xf]
        %v3801 = vld [vmem:[%s2895 + $0x1d4] sm:$0xf]
        %v3802 = vld [vmem:[%s2895 + $0x1d8] sm:$0xf]
        %v3803 = vld [vmem:[%s2895 + $0x1dc] sm:$0xf]
        %v3804 = vld [vmem:[%s2895 + $0x1e0] sm:$0xf]
        %v3805 = vld [vmem:[%s2895 + $0x1e4] sm:$0xf]
        %v3806 = vld [vmem:[%s2895 + $0x1e8] sm:$0xf]
        %v3807 = vld [vmem:[%s2895 + $0x1ec] sm:$0xf]
        %v3808 = vld [vmem:[%s2895 + $0x1f0] sm:$0xf]
        %v3809 = vld [vmem:[%s2895 + $0x1f4] sm:$0xf]
        %v3810 = vld [vmem:[%s2895 + $0x1f8] sm:$0xf]
        %v3811 = vld [vmem:[%s2895 + $0x1fc] sm:$0xf]
        %v3812 = vld [vmem:[%s2895 + $0x200] sm:$0xf]
        %v3813 = vld [vmem:[%s2895 + $0x204] sm:$0xf]
        %v3814 = vld [vmem:[%s2895 + $0x208] sm:$0xf]
        %v3815 = vld [vmem:[%s2895 + $0x20c] sm:$0xf]
        %v3816 = vld [vmem:[%s2895 + $0x210] sm:$0xf]
        %v3817 = vld [vmem:[%s2895 + $0x214] sm:$0xf]
        %v3818 = vld [vmem:[%s2895 + $0x218] sm:$0xf]
        %v3819 = vld [vmem:[%s2895 + $0x21c] sm:$0xf]
        %v3820 = vld [vmem:[%s2895 + $0x220] sm:$0xf]
        %v3821 = vld [vmem:[%s2895 + $0x224] sm:$0xf]
        %v3822 = vld [vmem:[%s2895 + $0x228] sm:$0xf]
        %v3823 = vld [vmem:[%s2895 + $0x22c] sm:$0xf]
        %v3824 = vld [vmem:[%s2895 + $0x230] sm:$0xf]
        %v3825 = vld [vmem:[%s2895 + $0x234] sm:$0xf]
        %v3826 = vld [vmem:[%s2895 + $0x238] sm:$0xf]
        %v3827 = vld [vmem:[%s2895 + $0x23c] sm:$0xf]
        %v3828 = vpack.c.b16 %v3759, %v3756
        %v3829 = vpack.c.b16 %v3760, %v3757
        %v3830 = vpack.c.b16 %v3761, %v3758
        %v3831 = vpack.c.b16 %v3765, %v3762
        %v3832 = vpack.c.b16 %v3766, %v3763
        %v3833 = vpack.c.b16 %v3767, %v3764
        %v3834 = vpack.c.b16 %v3771, %v3768
        %v3835 = vpack.c.b16 %v3772, %v3769
        %v3836 = vpack.c.b16 %v3773, %v3770
        %v3837 = vpack.c.b16 %v3777, %v3774
        %v3838 = vpack.c.b16 %v3778, %v3775
        %v3839 = vpack.c.b16 %v3779, %v3776
        %v3900 = vunpack.c.l.b16 %v3780
        %v3901 = vunpack.c.l.b16 %v3781
        %v3902 = vunpack.c.l.b16 %v3782
        %v3903 = vunpack.c.l.b16 %v3783
        %v3904 = vunpack.c.l.b16 %v3784
        %v3905 = vunpack.c.l.b16 %v3785
        %v3906 = vunpack.c.l.b16 %v3786
        %v3907 = vunpack.c.l.b16 %v3787
        %v3908 = vunpack.c.l.b16 %v3788
        %v3909 = vunpack.c.l.b16 %v3789
        %v3910 = vunpack.c.l.b16 %v3790
        %v3911 = vunpack.c.l.b16 %v3791
        %v3912 = vunpack.c.l.b16 %v3792
        %v3913 = vunpack.c.l.b16 %v3793
        %v3914 = vunpack.c.l.b16 %v3794
        %v3915 = vunpack.c.l.b16 %v3795
        %v3916 = vunpack.c.l.b16 %v3796
        %v3917 = vunpack.c.l.b16 %v3797
        %v3918 = vunpack.c.l.b16 %v3798
        %v3919 = vunpack.c.l.b16 %v3799
        %v3920 = vunpack.c.l.b16 %v3800
        %v3921 = vunpack.c.l.b16 %v3801
        %v3922 = vunpack.c.l.b16 %v3802
        %v3923 = vunpack.c.l.b16 %v3803
        %v3924 = vunpack.c.l.b16 %v3804
        %v3925 = vunpack.c.l.b16 %v3805
        %v3926 = vunpack.c.l.b16 %v3806
        %v3927 = vunpack.c.l.b16 %v3807
        %v3928 = vunpack.c.l.b16 %v3808
        %v3929 = vunpack.c.l.b16 %v3809
        %v3930 = vunpack.c.l.b16 %v3810
        %v3931 = vunpack.c.l.b16 %v3811
        %v3932 = vunpack.c.l.b16 %v3812
        %v3933 = vunpack.c.l.b16 %v3813
        %v3934 = vunpack.c.l.b16 %v3814
        %v3935 = vunpack.c.l.b16 %v3815
        %v3936 = vunpack.c.l.b16 %v3816
        %v3937 = vunpack.c.l.b16 %v3817
        %v3938 = vunpack.c.l.b16 %v3818
        %v3939 = vunpack.c.l.b16 %v3819
        %v3940 = vunpack.c.l.b16 %v3820
        %v3941 = vunpack.c.l.b16 %v3821
        %v3942 = vunpack.c.l.b16 %v3822
        %v3943 = vunpack.c.l.b16 %v3823
        %v3944 = vunpack.c.l.b16 %v3824
        %v3945 = vunpack.c.l.b16 %v3825
        %v3946 = vunpack.c.l.b16 %v3826
        %v3947 = vunpack.c.l.b16 %v3827
        %v3948 = vpack.c.b16 %v3901, %v3900
        %v3949 = vpack.c.b16 %v3903, %v3902
        %v3950 = vpack.c.b16 %v3905, %v3904
        %v3951 = vpack.c.b16 %v3907, %v3906
        %v3952 = vpack.c.b16 %v3909, %v3908
        %v3953 = vpack.c.b16 %v3911, %v3910
        %v3954 = vpack.c.b16 %v3913, %v3912
        %v3955 = vpack.c.b16 %v3915, %v3914
        %v3956 = vpack.c.b16 %v3917, %v3916
        %v3957 = vpack.c.b16 %v3919, %v3918
        %v3958 = vpack.c.b16 %v3921, %v3920
        %v3959 = vpack.c.b16 %v3923, %v3922
        %v3960 = vpack.c.b16 %v3925, %v3924
        %v3961 = vpack.c.b16 %v3927, %v3926
        %v3962 = vpack.c.b16 %v3929, %v3928
        %v3963 = vpack.c.b16 %v3931, %v3930
        %v3964 = vpack.c.b16 %v3933, %v3932
        %v3965 = vpack.c.b16 %v3935, %v3934
        %v3966 = vpack.c.b16 %v3937, %v3936
        %v3967 = vpack.c.b16 %v3939, %v3938
        %v3968 = vpack.c.b16 %v3941, %v3940
        %v3969 = vpack.c.b16 %v3943, %v3942
        %v3970 = vpack.c.b16 %v3945, %v3944
        %v3971 = vpack.c.b16 %v3947, %v3946
        %3996 = vmatprep.subr.bf16.mxu0 0
        %3997 = vmatpush1.bf16.msra.mxu0 %v3955
        %3998 = vmatprep.subr.bf16.mxu0 0
        %3999 = vmatpush1.bf16.msra.mxu0 %v3954
        %4000 = vmatprep.subr.bf16.mxu0 0
        %4001 = vmatpush1.bf16.msra.mxu0 %v3953
        %4002 = vmatprep.subr.bf16.mxu0 0
        %4003 = vmatpush1.bf16.msra.mxu0 %v3952
        %4004 = vmatprep.subr.bf16.mxu0 0
        %4005 = vmatpush1.bf16.msra.mxu0 %v3951
        %4006 = vmatprep.subr.bf16.mxu0 0
        %4007 = vmatpush1.bf16.msra.mxu0 %v3950
        %4008 = vmatprep.subr.bf16.mxu0 0
        %4009 = vmatpush1.bf16.msra.mxu0 %v3949
        %4010 = vmatprep.subr.bf16.mxu0 0
        %4011 = vmatpush1.bf16.msra.mxu0 %v3948
        %4012 = vmatprep.subr.bf16.mxu0 0
        %4013 = vmatpush2.bf16.msra.mxu0 %v3963
        %4014 = vmatprep.subr.bf16.mxu0 0
        %4015 = vmatpush2.bf16.msra.mxu0 %v3962
        %4016 = vmatprep.subr.bf16.mxu0 0
        %4017 = vmatpush2.bf16.msra.mxu0 %v3961
        %4018 = vmatprep.subr.bf16.mxu0 0
        %4019 = vmatpush2.bf16.msra.mxu0 %v3960
        %4020 = vmatprep.subr.bf16.mxu0 0
        %4021 = vmatpush2.bf16.msra.mxu0 %v3959
        %4022 = vmatprep.subr.bf16.mxu0 0
        %4023 = vmatpush2.bf16.msra.mxu0 %v3958
        %4024 = vmatprep.subr.bf16.mxu0 0
        %4025 = vmatpush2.bf16.msra.mxu0 %v3957
        %4026 = vmatprep.subr.bf16.mxu0 0
        %4027 = vmatpush2.bf16.msra.mxu0 %v3956
        %4028 = vmatprep.mubr.bf16.mxu0 %v3829
        %4029 = vmatmul.mubr.bf16.gmra.mxu0 %v3828
        %v4030 = vpop.f32.mrf.mxu0
        %v4031 = vadd.f32 0.0, %v4030
        %v4032 = vpop.f32.mrf.mxu0
        %v4033 = vpop.f32.mrf.mxu0
        %v4034 = vadd.f32 0.0, %v4033
        %v4035 = vpop.f32.mrf.mxu0
        %4036 = vmatprep.mubr.bf16.mxu0 %v3832
        %4037 = vmatmul.mubr.bf16.gmra.mxu0 %v3831
        %v4038 = vpop.f32.mrf.mxu0
        %v4039 = vadd.f32 0.0, %v4038
        %v4040 = vpop.f32.mrf.mxu0
        %v4041 = vpop.f32.mrf.mxu0
        %v4042 = vadd.f32 0.0, %v4041
        %v4043 = vpop.f32.mrf.mxu0
        %4044 = vmatprep.mubr.bf16.mxu0 %v3835
        %4045 = vmatmul.mubr.bf16.gmra.mxu0 %v3834
        %v4046 = vpop.f32.mrf.mxu0
        %v4047 = vadd.f32 0.0, %v4046
        %v4048 = vpop.f32.mrf.mxu0
        %v4049 = vpop.f32.mrf.mxu0
        %v4050 = vadd.f32 0.0, %v4049
        %v4051 = vpop.f32.mrf.mxu0
        %4052 = vmatprep.mubr.bf16.mxu0 %v3838
        %4053 = vmatmul.mubr.bf16.gmra.mxu0 %v3837
        %v4054 = vpop.f32.mrf.mxu0
        %v4055 = vadd.f32 0.0, %v4054
        %v4056 = vpop.f32.mrf.mxu0
        %v4057 = vpop.f32.mrf.mxu0
        %v4058 = vadd.f32 0.0, %v4057
        %v4059 = vpop.f32.mrf.mxu0
        %4060 = vdwg.mxu0
        %4061 = vmatprep.subr.bf16.mxu0 0
        %4062 = vmatpush1.bf16.msra.mxu0 %v3971
        %4063 = vmatprep.subr.bf16.mxu0 0
        %4064 = vmatpush1.bf16.msra.mxu0 %v3970
        %4065 = vmatprep.subr.bf16.mxu0 0
        %4066 = vmatpush1.bf16.msra.mxu0 %v3969
        %4067 = vmatprep.subr.bf16.mxu0 0
        %4068 = vmatpush1.bf16.msra.mxu0 %v3968
        %4069 = vmatprep.subr.bf16.mxu0 0
        %4070 = vmatpush1.bf16.msra.mxu0 %v3967
        %4071 = vmatprep.subr.bf16.mxu0 0
        %4072 = vmatpush1.bf16.msra.mxu0 %v3966
        %4073 = vmatprep.subr.bf16.mxu0 0
        %4074 = vmatpush1.bf16.msra.mxu0 %v3965
        %4075 = vmatprep.subr.bf16.mxu0 0
        %4076 = vmatpush1.bf16.msra.mxu0 %v3964
        %4077 = vmatprep.subr.bf16.mxu0 0
        %4078 = vmatpush2.bf16.msra.mxu0 0
        %4079 = vmatprep.subr.bf16.mxu0 0
        %4080 = vmatpush2.bf16.msra.mxu0 0
        %4081 = vmatprep.subr.bf16.mxu0 0
        %4082 = vmatpush2.bf16.msra.mxu0 0
        %4083 = vmatprep.subr.bf16.mxu0 0
        %4084 = vmatpush2.bf16.msra.mxu0 0
        %4085 = vmatprep.subr.bf16.mxu0 0
        %4086 = vmatpush2.bf16.msra.mxu0 0
        %4087 = vmatprep.subr.bf16.mxu0 0
        %4088 = vmatpush2.bf16.msra.mxu0 0
        %4089 = vmatprep.subr.bf16.mxu0 0
        %4090 = vmatpush2.bf16.msra.mxu0 0
        %4091 = vmatprep.subr.bf16.mxu0 0
        %4092 = vmatpush2.bf16.msra.mxu0 0
        %4093 = vmatprep.mubr.bf16.mxu0 0
        %4094 = vmatmul.mubr.bf16.gmra.mxu0 %v3830
        %v4095 = vpop.f32.mrf.mxu0
        %v4096 = vadd.f32 %v4031, %v4095
        %v4097 = vpop.f32.mrf.mxu0
        %v4098 = vpop.f32.mrf.mxu0
        %v4099 = vadd.f32 %v4034, %v4098
        %v4100 = vpop.f32.mrf.mxu0
        %4101 = vmatprep.mubr.bf16.mxu0 0
        %4102 = vmatmul.mubr.bf16.gmra.mxu0 %v3833
        %v4103 = vpop.f32.mrf.mxu0
        %v4104 = vadd.f32 %v4039, %v4103
        %v4105 = vpop.f32.mrf.mxu0
        %v4106 = vpop.f32.mrf.mxu0
        %v4107 = vadd.f32 %v4042, %v4106
        %v4108 = vpop.f32.mrf.mxu0
        %4109 = vmatprep.mubr.bf16.mxu0 0
        %4110 = vmatmul.mubr.bf16.gmra.mxu0 %v3836
        %v4111 = vpop.f32.mrf.mxu0
        %v4112 = vadd.f32 %v4047, %v4111
        %v4113 = vpop.f32.mrf.mxu0
        %v4114 = vpop.f32.mrf.mxu0
        %v4115 = vadd.f32 %v4050, %v4114
        %v4116 = vpop.f32.mrf.mxu0
        %4117 = vmatprep.mubr.bf16.mxu0 0
        %4118 = vmatmul.mubr.bf16.gmra.mxu0 %v3839
        %v4119 = vpop.f32.mrf.mxu0
        %v4120 = vadd.f32 %v4055, %v4119
        %v4121 = vpop.f32.mrf.mxu0
        %v4122 = vpop.f32.mrf.mxu0
        %v4123 = vadd.f32 %v4058, %v4122
        %v4124 = vpop.f32.mrf.mxu0
        %4125 = vdwg.mxu0
        %v4126 = vadd.f32 %v3654, %v4096
        %v4127 = vadd.f32 %v3657, %v4099
        %v4128 = vadd.f32 %v3662, %v4104
        %v4129 = vadd.f32 %v3665, %v4107
        %v4130 = vadd.f32 %v3670, %v4112
        %v4131 = vadd.f32 %v3673, %v4115
        %v4132 = vadd.f32 %v3678, %v4120
        %v4133 = vadd.f32 %v3681, %v4123
        %v4134 = vlaneseq
        %v4135 = vshrl.u32 %v4134, 7
        %v4136 = vsub.s32 0, %v4135
        %v4137 = vrot.slane %v2790, %v4136
        %v4138 = vmul.f32 %v4126, %v4137
        %v4139 = vmul.f32 %v4127, %v4137
        %v4140 = vmul.f32 %v4128, %v4137
        %v4141 = vmul.f32 %v4129, %v4137
        %v4142 = vmul.f32 %v4130, %v4137
        %v4143 = vmul.f32 %v4131, %v4137
        %v4144 = vmul.f32 %v4132, %v4137
        %v4145 = vmul.f32 %v4133, %v4137
        %v4146 = vlaneseq
        %v4147 = vshrl.u32 %v4146, 7
        %v4148 = vsub.s32 1, %v4147
        %v4149 = vrot.slane %v2790, %v4148
        %v4150 = vadd.f32 %v4138, %v4149
        %v4151 = vadd.f32 %v4139, %v4149
        %v4152 = vadd.f32 %v4140, %v4149
        %v4153 = vadd.f32 %v4141, %v4149
        %v4154 = vadd.f32 %v4142, %v4149
        %v4155 = vadd.f32 %v4143, %v4149
        %v4156 = vadd.f32 %v4144, %v4149
        %v4157 = vadd.f32 %v4145, %v4149
        %v4158 = vmax.f32 %v4150, 0.0
        %v4159 = vmax.f32 %v4151, 0.0
        %v4160 = vmax.f32 %v4152, 0.0
        %v4161 = vmax.f32 %v4153, 0.0
        %v4162 = vmax.f32 %v4154, 0.0
        %v4163 = vmax.f32 %v4155, 0.0
        %v4164 = vmax.f32 %v4156, 0.0
        %v4165 = vmax.f32 %v4157, 0.0
        %4166 = vst [vmem:[%s1405 + $0x1] sm:$0xff] %v4158
        %4167 = vst [vmem:[%s1405 + $0x11] sm:$0xff] %v4159
        %4168 = vst [vmem:[%s1405 + $0x21] sm:$0xff] %v4160
        %4169 = vst [vmem:[%s1405 + $0x31] sm:$0xff] %v4161
        %4170 = vst [vmem:[%s1405 + $0x41] sm:$0xff] %v4162
        %4171 = vst [vmem:[%s1405 + $0x51] sm:$0xff] %v4163
        %4172 = vst [vmem:[%s1405 + $0x61] sm:$0xff] %v4164
        %4173 = vst [vmem:[%s1405 + $0x71] sm:$0xff] %v4165
        %v4174 = vld [vmem:[#allocation2] sm:$0xff]
        %v4175 = vld [vmem:[#allocation2 + $0x10] sm:$0xff]
        %v4176 = vld [vmem:[#allocation2 + $0x20] sm:$0xff]
        %v4177 = vld [vmem:[#allocation2 + $0x30] sm:$0xff]
        %v4178 = vld [vmem:[#allocation2 + $0x40] sm:$0xff]
        %v4179 = vld [vmem:[#allocation2 + $0x50] sm:$0xff]
        %v4180 = vld [vmem:[#allocation2 + $0x60] sm:$0xff]
        %v4181 = vld [vmem:[#allocation2 + $0x70] sm:$0xff]
        %v4182 = vpack.c.bf16 %v4174, %v4174
        %v4183 = vpack.c.bf16 %v4175, %v4175
        %v4184 = vpack.c.bf16 %v4176, %v4176
        %v4185 = vpack.c.bf16 %v4177, %v4177
        %v4186 = vpack.c.bf16 %v4178, %v4178
        %v4187 = vpack.c.bf16 %v4179, %v4179
        %v4188 = vpack.c.bf16 %v4180, %v4180
        %v4189 = vpack.c.bf16 %v4181, %v4181
        %v4190 = vld [vmem:[#allocation2 + $0x1] sm:$0xff]
        %v4191 = vld [vmem:[#allocation2 + $0x11] sm:$0xff]
        %v4192 = vld [vmem:[#allocation2 + $0x21] sm:$0xff]
        %v4193 = vld [vmem:[#allocation2 + $0x31] sm:$0xff]
        %v4194 = vld [vmem:[#allocation2 + $0x41] sm:$0xff]
        %v4195 = vld [vmem:[#allocation2 + $0x51] sm:$0xff]
        %v4196 = vld [vmem:[#allocation2 + $0x61] sm:$0xff]
        %v4197 = vld [vmem:[#allocation2 + $0x71] sm:$0xff]
        %v4198 = vpack.c.bf16 %v4190, %v4190
        %v4199 = vpack.c.bf16 %v4191, %v4191
        %v4200 = vpack.c.bf16 %v4192, %v4192
        %v4201 = vpack.c.bf16 %v4193, %v4193
        %v4202 = vpack.c.bf16 %v4194, %v4194
        %v4203 = vpack.c.bf16 %v4195, %v4195
        %v4204 = vpack.c.bf16 %v4196, %v4196
        %v4205 = vpack.c.bf16 %v4197, %v4197
        %v4206 = vld [vmem:[#allocation2 + $0x2] sm:$0xff]
        %v4207 = vld [vmem:[#allocation2 + $0x12] sm:$0xff]
        %v4208 = vld [vmem:[#allocation2 + $0x22] sm:$0xff]
        %v4209 = vld [vmem:[#allocation2 + $0x32] sm:$0xff]
        %v4210 = vld [vmem:[#allocation2 + $0x42] sm:$0xff]
        %v4211 = vld [vmem:[#allocation2 + $0x52] sm:$0xff]
        %v4212 = vld [vmem:[#allocation2 + $0x62] sm:$0xff]
        %v4213 = vld [vmem:[#allocation2 + $0x72] sm:$0xff]
        %v4214 = vpack.c.bf16 %v4206, %v4206
        %v4215 = vpack.c.bf16 %v4207, %v4207
        %v4216 = vpack.c.bf16 %v4208, %v4208
        %v4217 = vpack.c.bf16 %v4209, %v4209
        %v4218 = vpack.c.bf16 %v4210, %v4210
        %v4219 = vpack.c.bf16 %v4211, %v4211
        %v4220 = vpack.c.bf16 %v4212, %v4212
        %v4221 = vpack.c.bf16 %v4213, %v4213
        %v4246 = vunpack.c.l.b16 %v4182
        %v4247 = vunpack.c.l.b16 %v4198
        %v4248 = vunpack.c.l.b16 %v4214
        %v4249 = vunpack.c.l.b16 %v4183
        %v4250 = vunpack.c.l.b16 %v4199
        %v4251 = vunpack.c.l.b16 %v4215
        %v4252 = vunpack.c.l.b16 %v4184
        %v4253 = vunpack.c.l.b16 %v4200
        %v4254 = vunpack.c.l.b16 %v4216
        %v4255 = vunpack.c.l.b16 %v4185
        %v4256 = vunpack.c.l.b16 %v4201
        %v4257 = vunpack.c.l.b16 %v4217
        %v4258 = vunpack.c.l.b16 %v4186
        %v4259 = vunpack.c.l.b16 %v4202
        %v4260 = vunpack.c.l.b16 %v4218
        %v4261 = vunpack.c.l.b16 %v4187
        %v4262 = vunpack.c.l.b16 %v4203
        %v4263 = vunpack.c.l.b16 %v4219
        %v4264 = vunpack.c.l.b16 %v4188
        %v4265 = vunpack.c.l.b16 %v4204
        %v4266 = vunpack.c.l.b16 %v4220
        %v4267 = vunpack.c.l.b16 %v4189
        %v4268 = vunpack.c.l.b16 %v4205
        %v4269 = vunpack.c.l.b16 %v4221
        %s4270 = scalar_lea.vmem [#allocation3], 576
        %v4271 = vld [vmem:[%s4270] sm:$0xf]
        %v4272 = vld [vmem:[%s4270 + $0x4] sm:$0xf]
        %v4273 = vld [vmem:[%s4270 + $0x8] sm:$0xf]
        %v4274 = vld [vmem:[%s4270 + $0xc] sm:$0xf]
        %v4275 = vld [vmem:[%s4270 + $0x10] sm:$0xf]
        %v4276 = vld [vmem:[%s4270 + $0x14] sm:$0xf]
        %v4277 = vld [vmem:[%s4270 + $0x18] sm:$0xf]
        %v4278 = vld [vmem:[%s4270 + $0x1c] sm:$0xf]
        %v4279 = vld [vmem:[%s4270 + $0x20] sm:$0xf]
        %v4280 = vld [vmem:[%s4270 + $0x24] sm:$0xf]
        %v4281 = vld [vmem:[%s4270 + $0x28] sm:$0xf]
        %v4282 = vld [vmem:[%s4270 + $0x2c] sm:$0xf]
        %v4283 = vld [vmem:[%s4270 + $0x30] sm:$0xf]
        %v4284 = vld [vmem:[%s4270 + $0x34] sm:$0xf]
        %v4285 = vld [vmem:[%s4270 + $0x38] sm:$0xf]
        %v4286 = vld [vmem:[%s4270 + $0x3c] sm:$0xf]
        %v4287 = vld [vmem:[%s4270 + $0x40] sm:$0xf]
        %v4288 = vld [vmem:[%s4270 + $0x44] sm:$0xf]
        %v4289 = vld [vmem:[%s4270 + $0x48] sm:$0xf]
        %v4290 = vld [vmem:[%s4270 + $0x4c] sm:$0xf]
        %v4291 = vld [vmem:[%s4270 + $0x50] sm:$0xf]
        %v4292 = vld [vmem:[%s4270 + $0x54] sm:$0xf]
        %v4293 = vld [vmem:[%s4270 + $0x58] sm:$0xf]
        %v4294 = vld [vmem:[%s4270 + $0x5c] sm:$0xf]
        %v4295 = vld [vmem:[%s4270 + $0x60] sm:$0xf]
        %v4296 = vld [vmem:[%s4270 + $0x64] sm:$0xf]
        %v4297 = vld [vmem:[%s4270 + $0x68] sm:$0xf]
        %v4298 = vld [vmem:[%s4270 + $0x6c] sm:$0xf]
        %v4299 = vld [vmem:[%s4270 + $0x70] sm:$0xf]
        %v4300 = vld [vmem:[%s4270 + $0x74] sm:$0xf]
        %v4301 = vld [vmem:[%s4270 + $0x78] sm:$0xf]
        %v4302 = vld [vmem:[%s4270 + $0x7c] sm:$0xf]
        %v4303 = vld [vmem:[%s4270 + $0x80] sm:$0xf]
        %v4304 = vld [vmem:[%s4270 + $0x84] sm:$0xf]
        %v4305 = vld [vmem:[%s4270 + $0x88] sm:$0xf]
        %v4306 = vld [vmem:[%s4270 + $0x8c] sm:$0xf]
        %v4307 = vld [vmem:[%s4270 + $0x90] sm:$0xf]
        %v4308 = vld [vmem:[%s4270 + $0x94] sm:$0xf]
        %v4309 = vld [vmem:[%s4270 + $0x98] sm:$0xf]
        %v4310 = vld [vmem:[%s4270 + $0x9c] sm:$0xf]
        %v4311 = vld [vmem:[%s4270 + $0xa0] sm:$0xf]
        %v4312 = vld [vmem:[%s4270 + $0xa4] sm:$0xf]
        %v4313 = vld [vmem:[%s4270 + $0xa8] sm:$0xf]
        %v4314 = vld [vmem:[%s4270 + $0xac] sm:$0xf]
        %v4315 = vld [vmem:[%s4270 + $0xb0] sm:$0xf]
        %v4316 = vld [vmem:[%s4270 + $0xb4] sm:$0xf]
        %v4317 = vld [vmem:[%s4270 + $0xb8] sm:$0xf]
        %v4318 = vld [vmem:[%s4270 + $0xbc] sm:$0xf]
        %v4319 = vld [vmem:[%s1405] sm:$0xff]
        %v4320 = vld [vmem:[%s1405 + $0x10] sm:$0xff]
        %v4321 = vld [vmem:[%s1405 + $0x20] sm:$0xff]
        %v4322 = vld [vmem:[%s1405 + $0x30] sm:$0xff]
        %v4323 = vld [vmem:[%s1405 + $0x40] sm:$0xff]
        %v4324 = vld [vmem:[%s1405 + $0x50] sm:$0xff]
        %v4325 = vld [vmem:[%s1405 + $0x60] sm:$0xff]
        %v4326 = vld [vmem:[%s1405 + $0x70] sm:$0xff]
        %v4327 = vpack.c.bf16 %v4319, %v4319
        %v4328 = vpack.c.bf16 %v4320, %v4320
        %v4329 = vpack.c.bf16 %v4321, %v4321
        %v4330 = vpack.c.bf16 %v4322, %v4322
        %v4331 = vpack.c.bf16 %v4323, %v4323
        %v4332 = vpack.c.bf16 %v4324, %v4324
        %v4333 = vpack.c.bf16 %v4325, %v4325
        %v4334 = vpack.c.bf16 %v4326, %v4326
        %v4335 = vld [vmem:[%s1405 + $0x1] sm:$0xff]
        %v4336 = vld [vmem:[%s1405 + $0x11] sm:$0xff]
        %v4337 = vld [vmem:[%s1405 + $0x21] sm:$0xff]
        %v4338 = vld [vmem:[%s1405 + $0x31] sm:$0xff]
        %v4339 = vld [vmem:[%s1405 + $0x41] sm:$0xff]
        %v4340 = vld [vmem:[%s1405 + $0x51] sm:$0xff]
        %v4341 = vld [vmem:[%s1405 + $0x61] sm:$0xff]
        %v4342 = vld [vmem:[%s1405 + $0x71] sm:$0xff]
        %v4343 = vpack.c.bf16 %v4335, %v4335
        %v4344 = vpack.c.bf16 %v4336, %v4336
        %v4345 = vpack.c.bf16 %v4337, %v4337
        %v4346 = vpack.c.bf16 %v4338, %v4338
        %v4347 = vpack.c.bf16 %v4339, %v4339
        %v4348 = vpack.c.bf16 %v4340, %v4340
        %v4349 = vpack.c.bf16 %v4341, %v4341
        %v4350 = vpack.c.bf16 %v4342, %v4342
        %v4351 = vld [vmem:[%s1405 + $0x2] sm:$0xff]
        %v4352 = vld [vmem:[%s1405 + $0x12] sm:$0xff]
        %v4353 = vld [vmem:[%s1405 + $0x22] sm:$0xff]
        %v4354 = vld [vmem:[%s1405 + $0x32] sm:$0xff]
        %v4355 = vld [vmem:[%s1405 + $0x42] sm:$0xff]
        %v4356 = vld [vmem:[%s1405 + $0x52] sm:$0xff]
        %v4357 = vld [vmem:[%s1405 + $0x62] sm:$0xff]
        %v4358 = vld [vmem:[%s1405 + $0x72] sm:$0xff]
        %v4359 = vpack.c.bf16 %v4351, %v4351
        %v4360 = vpack.c.bf16 %v4352, %v4352
        %v4361 = vpack.c.bf16 %v4353, %v4353
        %v4362 = vpack.c.bf16 %v4354, %v4354
        %v4363 = vpack.c.bf16 %v4355, %v4355
        %v4364 = vpack.c.bf16 %v4356, %v4356
        %v4365 = vpack.c.bf16 %v4357, %v4357
        %v4366 = vpack.c.bf16 %v4358, %v4358
        %v4391 = vunpack.c.l.b16 %v4327
        %v4392 = vunpack.c.l.b16 %v4343
        %v4393 = vunpack.c.l.b16 %v4359
        %v4394 = vunpack.c.l.b16 %v4328
        %v4395 = vunpack.c.l.b16 %v4344
        %v4396 = vunpack.c.l.b16 %v4360
        %v4397 = vunpack.c.l.b16 %v4329
        %v4398 = vunpack.c.l.b16 %v4345
        %v4399 = vunpack.c.l.b16 %v4361
        %v4400 = vunpack.c.l.b16 %v4330
        %v4401 = vunpack.c.l.b16 %v4346
        %v4402 = vunpack.c.l.b16 %v4362
        %v4403 = vunpack.c.l.b16 %v4331
        %v4404 = vunpack.c.l.b16 %v4347
        %v4405 = vunpack.c.l.b16 %v4363
        %v4406 = vunpack.c.l.b16 %v4332
        %v4407 = vunpack.c.l.b16 %v4348
        %v4408 = vunpack.c.l.b16 %v4364
        %v4409 = vunpack.c.l.b16 %v4333
        %v4410 = vunpack.c.l.b16 %v4349
        %v4411 = vunpack.c.l.b16 %v4365
        %v4412 = vunpack.c.l.b16 %v4334
        %v4413 = vunpack.c.l.b16 %v4350
        %v4414 = vunpack.c.l.b16 %v4366
        %v4415 = vld [vmem:[%s4270 + $0xc0] sm:$0xf]
        %v4416 = vld [vmem:[%s4270 + $0xc4] sm:$0xf]
        %v4417 = vld [vmem:[%s4270 + $0xc8] sm:$0xf]
        %v4418 = vld [vmem:[%s4270 + $0xcc] sm:$0xf]
        %v4419 = vld [vmem:[%s4270 + $0xd0] sm:$0xf]
        %v4420 = vld [vmem:[%s4270 + $0xd4] sm:$0xf]
        %v4421 = vld [vmem:[%s4270 + $0xd8] sm:$0xf]
        %v4422 = vld [vmem:[%s4270 + $0xdc] sm:$0xf]
        %v4423 = vld [vmem:[%s4270 + $0xe0] sm:$0xf]
        %v4424 = vld [vmem:[%s4270 + $0xe4] sm:$0xf]
        %v4425 = vld [vmem:[%s4270 + $0xe8] sm:$0xf]
        %v4426 = vld [vmem:[%s4270 + $0xec] sm:$0xf]
        %v4427 = vld [vmem:[%s4270 + $0xf0] sm:$0xf]
        %v4428 = vld [vmem:[%s4270 + $0xf4] sm:$0xf]
        %v4429 = vld [vmem:[%s4270 + $0xf8] sm:$0xf]
        %v4430 = vld [vmem:[%s4270 + $0xfc] sm:$0xf]
        %v4431 = vld [vmem:[%s4270 + $0x100] sm:$0xf]
        %v4432 = vld [vmem:[%s4270 + $0x104] sm:$0xf]
        %v4433 = vld [vmem:[%s4270 + $0x108] sm:$0xf]
        %v4434 = vld [vmem:[%s4270 + $0x10c] sm:$0xf]
        %v4435 = vld [vmem:[%s4270 + $0x110] sm:$0xf]
        %v4436 = vld [vmem:[%s4270 + $0x114] sm:$0xf]
        %v4437 = vld [vmem:[%s4270 + $0x118] sm:$0xf]
        %v4438 = vld [vmem:[%s4270 + $0x11c] sm:$0xf]
        %v4439 = vld [vmem:[%s4270 + $0x120] sm:$0xf]
        %v4440 = vld [vmem:[%s4270 + $0x124] sm:$0xf]
        %v4441 = vld [vmem:[%s4270 + $0x128] sm:$0xf]
        %v4442 = vld [vmem:[%s4270 + $0x12c] sm:$0xf]
        %v4443 = vld [vmem:[%s4270 + $0x130] sm:$0xf]
        %v4444 = vld [vmem:[%s4270 + $0x134] sm:$0xf]
        %v4445 = vld [vmem:[%s4270 + $0x138] sm:$0xf]
        %v4446 = vld [vmem:[%s4270 + $0x13c] sm:$0xf]
        %v4447 = vld [vmem:[%s4270 + $0x140] sm:$0xf]
        %v4448 = vld [vmem:[%s4270 + $0x144] sm:$0xf]
        %v4449 = vld [vmem:[%s4270 + $0x148] sm:$0xf]
        %v4450 = vld [vmem:[%s4270 + $0x14c] sm:$0xf]
        %v4451 = vld [vmem:[%s4270 + $0x150] sm:$0xf]
        %v4452 = vld [vmem:[%s4270 + $0x154] sm:$0xf]
        %v4453 = vld [vmem:[%s4270 + $0x158] sm:$0xf]
        %v4454 = vld [vmem:[%s4270 + $0x15c] sm:$0xf]
        %v4455 = vld [vmem:[%s4270 + $0x160] sm:$0xf]
        %v4456 = vld [vmem:[%s4270 + $0x164] sm:$0xf]
        %v4457 = vld [vmem:[%s4270 + $0x168] sm:$0xf]
        %v4458 = vld [vmem:[%s4270 + $0x16c] sm:$0xf]
        %v4459 = vld [vmem:[%s4270 + $0x170] sm:$0xf]
        %v4460 = vld [vmem:[%s4270 + $0x174] sm:$0xf]
        %v4461 = vld [vmem:[%s4270 + $0x178] sm:$0xf]
        %v4462 = vld [vmem:[%s4270 + $0x17c] sm:$0xf]
        %v4463 = vpack.c.b16 %v4394, %v4391
        %v4464 = vpack.c.b16 %v4395, %v4392
        %v4465 = vpack.c.b16 %v4396, %v4393
        %v4466 = vpack.c.b16 %v4400, %v4397
        %v4467 = vpack.c.b16 %v4401, %v4398
        %v4468 = vpack.c.b16 %v4402, %v4399
        %v4469 = vpack.c.b16 %v4406, %v4403
        %v4470 = vpack.c.b16 %v4407, %v4404
        %v4471 = vpack.c.b16 %v4408, %v4405
        %v4472 = vpack.c.b16 %v4412, %v4409
        %v4473 = vpack.c.b16 %v4413, %v4410
        %v4474 = vpack.c.b16 %v4414, %v4411
        %v4535 = vunpack.c.l.b16 %v4415
        %v4536 = vunpack.c.l.b16 %v4416
        %v4537 = vunpack.c.l.b16 %v4417
        %v4538 = vunpack.c.l.b16 %v4418
        %v4539 = vunpack.c.l.b16 %v4419
        %v4540 = vunpack.c.l.b16 %v4420
        %v4541 = vunpack.c.l.b16 %v4421
        %v4542 = vunpack.c.l.b16 %v4422
        %v4543 = vunpack.c.l.b16 %v4423
        %v4544 = vunpack.c.l.b16 %v4424
        %v4545 = vunpack.c.l.b16 %v4425
        %v4546 = vunpack.c.l.b16 %v4426
        %v4547 = vunpack.c.l.b16 %v4427
        %v4548 = vunpack.c.l.b16 %v4428
        %v4549 = vunpack.c.l.b16 %v4429
        %v4550 = vunpack.c.l.b16 %v4430
        %v4551 = vunpack.c.l.b16 %v4431
        %v4552 = vunpack.c.l.b16 %v4432
        %v4553 = vunpack.c.l.b16 %v4433
        %v4554 = vunpack.c.l.b16 %v4434
        %v4555 = vunpack.c.l.b16 %v4435
        %v4556 = vunpack.c.l.b16 %v4436
        %v4557 = vunpack.c.l.b16 %v4437
        %v4558 = vunpack.c.l.b16 %v4438
        %v4559 = vunpack.c.l.b16 %v4439
        %v4560 = vunpack.c.l.b16 %v4440
        %v4561 = vunpack.c.l.b16 %v4441
        %v4562 = vunpack.c.l.b16 %v4442
        %v4563 = vunpack.c.l.b16 %v4443
        %v4564 = vunpack.c.l.b16 %v4444
        %v4565 = vunpack.c.l.b16 %v4445
        %v4566 = vunpack.c.l.b16 %v4446
        %v4567 = vunpack.c.l.b16 %v4447
        %v4568 = vunpack.c.l.b16 %v4448
        %v4569 = vunpack.c.l.b16 %v4449
        %v4570 = vunpack.c.l.b16 %v4450
        %v4571 = vunpack.c.l.b16 %v4451
        %v4572 = vunpack.c.l.b16 %v4452
        %v4573 = vunpack.c.l.b16 %v4453
        %v4574 = vunpack.c.l.b16 %v4454
        %v4575 = vunpack.c.l.b16 %v4455
        %v4576 = vunpack.c.l.b16 %v4456
        %v4577 = vunpack.c.l.b16 %v4457
        %v4578 = vunpack.c.l.b16 %v4458
        %v4579 = vunpack.c.l.b16 %v4459
        %v4580 = vunpack.c.l.b16 %v4460
        %v4581 = vunpack.c.l.b16 %v4461
        %v4582 = vunpack.c.l.b16 %v4462
        %v4583 = vpack.c.b16 %v4536, %v4535
        %v4584 = vpack.c.b16 %v4538, %v4537
        %v4585 = vpack.c.b16 %v4540, %v4539
        %v4586 = vpack.c.b16 %v4542, %v4541
        %v4587 = vpack.c.b16 %v4544, %v4543
        %v4588 = vpack.c.b16 %v4546, %v4545
        %v4589 = vpack.c.b16 %v4548, %v4547
        %v4590 = vpack.c.b16 %v4550, %v4549
        %v4591 = vpack.c.b16 %v4552, %v4551
        %v4592 = vpack.c.b16 %v4554, %v4553
        %v4593 = vpack.c.b16 %v4556, %v4555
        %v4594 = vpack.c.b16 %v4558, %v4557
        %v4595 = vpack.c.b16 %v4560, %v4559
        %v4596 = vpack.c.b16 %v4562, %v4561
        %v4597 = vpack.c.b16 %v4564, %v4563
        %v4598 = vpack.c.b16 %v4566, %v4565
        %v4599 = vpack.c.b16 %v4568, %v4567
        %v4600 = vpack.c.b16 %v4570, %v4569
        %v4601 = vpack.c.b16 %v4572, %v4571
        %v4602 = vpack.c.b16 %v4574, %v4573
        %v4603 = vpack.c.b16 %v4576, %v4575
        %v4604 = vpack.c.b16 %v4578, %v4577
        %v4605 = vpack.c.b16 %v4580, %v4579
        %v4606 = vpack.c.b16 %v4582, %v4581
        %4631 = vmatprep.subr.bf16.mxu0 0
        %4632 = vmatpush1.bf16.msra.mxu0 %v4590
        %4633 = vmatprep.subr.bf16.mxu0 0
        %4634 = vmatpush1.bf16.msra.mxu0 %v4589
        %4635 = vmatprep.subr.bf16.mxu0 0
        %4636 = vmatpush1.bf16.msra.mxu0 %v4588
        %4637 = vmatprep.subr.bf16.mxu0 0
        %4638 = vmatpush1.bf16.msra.mxu0 %v4587
        %4639 = vmatprep.subr.bf16.mxu0 0
        %4640 = vmatpush1.bf16.msra.mxu0 %v4586
        %4641 = vmatprep.subr.bf16.mxu0 0
        %4642 = vmatpush1.bf16.msra.mxu0 %v4585
        %4643 = vmatprep.subr.bf16.mxu0 0
        %4644 = vmatpush1.bf16.msra.mxu0 %v4584
        %4645 = vmatprep.subr.bf16.mxu0 0
        %4646 = vmatpush1.bf16.msra.mxu0 %v4583
        %4647 = vmatprep.subr.bf16.mxu0 0
        %4648 = vmatpush2.bf16.msra.mxu0 %v4598
        %4649 = vmatprep.subr.bf16.mxu0 0
        %4650 = vmatpush2.bf16.msra.mxu0 %v4597
        %4651 = vmatprep.subr.bf16.mxu0 0
        %4652 = vmatpush2.bf16.msra.mxu0 %v4596
        %4653 = vmatprep.subr.bf16.mxu0 0
        %4654 = vmatpush2.bf16.msra.mxu0 %v4595
        %4655 = vmatprep.subr.bf16.mxu0 0
        %4656 = vmatpush2.bf16.msra.mxu0 %v4594
        %4657 = vmatprep.subr.bf16.mxu0 0
        %4658 = vmatpush2.bf16.msra.mxu0 %v4593
        %4659 = vmatprep.subr.bf16.mxu0 0
        %4660 = vmatpush2.bf16.msra.mxu0 %v4592
        %4661 = vmatprep.subr.bf16.mxu0 0
        %4662 = vmatpush2.bf16.msra.mxu0 %v4591
        %4663 = vmatprep.mubr.bf16.mxu0 %v4464
        %4664 = vmatmul.mubr.bf16.gmra.mxu0 %v4463
        %v4665 = vpop.f32.mrf.mxu0
        %v4666 = vadd.f32 0.0, %v4665
        %v4667 = vpop.f32.mrf.mxu0
        %v4668 = vpop.f32.mrf.mxu0
        %v4669 = vadd.f32 0.0, %v4668
        %v4670 = vpop.f32.mrf.mxu0
        %4671 = vmatprep.mubr.bf16.mxu0 %v4467
        %4672 = vmatmul.mubr.bf16.gmra.mxu0 %v4466
        %v4673 = vpop.f32.mrf.mxu0
        %v4674 = vadd.f32 0.0, %v4673
        %v4675 = vpop.f32.mrf.mxu0
        %v4676 = vpop.f32.mrf.mxu0
        %v4677 = vadd.f32 0.0, %v4676
        %v4678 = vpop.f32.mrf.mxu0
        %4679 = vmatprep.mubr.bf16.mxu0 %v4470
        %4680 = vmatmul.mubr.bf16.gmra.mxu0 %v4469
        %v4681 = vpop.f32.mrf.mxu0
        %v4682 = vadd.f32 0.0, %v4681
        %v4683 = vpop.f32.mrf.mxu0
        %v4684 = vpop.f32.mrf.mxu0
        %v4685 = vadd.f32 0.0, %v4684
        %v4686 = vpop.f32.mrf.mxu0
        %4687 = vmatprep.mubr.bf16.mxu0 %v4473
        %4688 = vmatmul.mubr.bf16.gmra.mxu0 %v4472
        %v4689 = vpop.f32.mrf.mxu0
        %v4690 = vadd.f32 0.0, %v4689
        %v4691 = vpop.f32.mrf.mxu0
        %v4692 = vpop.f32.mrf.mxu0
        %v4693 = vadd.f32 0.0, %v4692
        %v4694 = vpop.f32.mrf.mxu0
        %4695 = vdwg.mxu0
        %4696 = vmatprep.subr.bf16.mxu0 0
        %4697 = vmatpush1.bf16.msra.mxu0 %v4606
        %4698 = vmatprep.subr.bf16.mxu0 0
        %4699 = vmatpush1.bf16.msra.mxu0 %v4605
        %4700 = vmatprep.subr.bf16.mxu0 0
        %4701 = vmatpush1.bf16.msra.mxu0 %v4604
        %4702 = vmatprep.subr.bf16.mxu0 0
        %4703 = vmatpush1.bf16.msra.mxu0 %v4603
        %4704 = vmatprep.subr.bf16.mxu0 0
        %4705 = vmatpush1.bf16.msra.mxu0 %v4602
        %4706 = vmatprep.subr.bf16.mxu0 0
        %4707 = vmatpush1.bf16.msra.mxu0 %v4601
        %4708 = vmatprep.subr.bf16.mxu0 0
        %4709 = vmatpush1.bf16.msra.mxu0 %v4600
        %4710 = vmatprep.subr.bf16.mxu0 0
        %4711 = vmatpush1.bf16.msra.mxu0 %v4599
        %4712 = vmatprep.subr.bf16.mxu0 0
        %4713 = vmatpush2.bf16.msra.mxu0 0
        %4714 = vmatprep.subr.bf16.mxu0 0
        %4715 = vmatpush2.bf16.msra.mxu0 0
        %4716 = vmatprep.subr.bf16.mxu0 0
        %4717 = vmatpush2.bf16.msra.mxu0 0
        %4718 = vmatprep.subr.bf16.mxu0 0
        %4719 = vmatpush2.bf16.msra.mxu0 0
        %4720 = vmatprep.subr.bf16.mxu0 0
        %4721 = vmatpush2.bf16.msra.mxu0 0
        %4722 = vmatprep.subr.bf16.mxu0 0
        %4723 = vmatpush2.bf16.msra.mxu0 0
        %4724 = vmatprep.subr.bf16.mxu0 0
        %4725 = vmatpush2.bf16.msra.mxu0 0
        %4726 = vmatprep.subr.bf16.mxu0 0
        %4727 = vmatpush2.bf16.msra.mxu0 0
        %4728 = vmatprep.mubr.bf16.mxu0 0
        %4729 = vmatmul.mubr.bf16.gmra.mxu0 %v4465
        %v4730 = vpop.f32.mrf.mxu0
        %v4731 = vadd.f32 %v4666, %v4730
        %v4732 = vpop.f32.mrf.mxu0
        %v4733 = vpop.f32.mrf.mxu0
        %v4734 = vadd.f32 %v4669, %v4733
        %v4735 = vpop.f32.mrf.mxu0
        %4736 = vmatprep.mubr.bf16.mxu0 0
        %4737 = vmatmul.mubr.bf16.gmra.mxu0 %v4468
        %v4738 = vpop.f32.mrf.mxu0
        %v4739 = vadd.f32 %v4674, %v4738
        %v4740 = vpop.f32.mrf.mxu0
        %v4741 = vpop.f32.mrf.mxu0
        %v4742 = vadd.f32 %v4677, %v4741
        %v4743 = vpop.f32.mrf.mxu0
        %4744 = vmatprep.mubr.bf16.mxu0 0
        %4745 = vmatmul.mubr.bf16.gmra.mxu0 %v4471
        %v4746 = vpop.f32.mrf.mxu0
        %v4747 = vadd.f32 %v4682, %v4746
        %v4748 = vpop.f32.mrf.mxu0
        %v4749 = vpop.f32.mrf.mxu0
        %v4750 = vadd.f32 %v4685, %v4749
        %v4751 = vpop.f32.mrf.mxu0
        %4752 = vmatprep.mubr.bf16.mxu0 0
        %4753 = vmatmul.mubr.bf16.gmra.mxu0 %v4474
        %v4754 = vpop.f32.mrf.mxu0
        %v4755 = vadd.f32 %v4690, %v4754
        %v4756 = vpop.f32.mrf.mxu0
        %v4757 = vpop.f32.mrf.mxu0
        %v4758 = vadd.f32 %v4693, %v4757
        %v4759 = vpop.f32.mrf.mxu0
        %4760 = vdwg.mxu0
        %v4761 = vpack.c.b16 %v4249, %v4246
        %v4762 = vpack.c.b16 %v4250, %v4247
        %v4763 = vpack.c.b16 %v4251, %v4248
        %v4764 = vpack.c.b16 %v4255, %v4252
        %v4765 = vpack.c.b16 %v4256, %v4253
        %v4766 = vpack.c.b16 %v4257, %v4254
        %v4767 = vpack.c.b16 %v4261, %v4258
        %v4768 = vpack.c.b16 %v4262, %v4259
        %v4769 = vpack.c.b16 %v4263, %v4260
        %v4770 = vpack.c.b16 %v4267, %v4264
        %v4771 = vpack.c.b16 %v4268, %v4265
        %v4772 = vpack.c.b16 %v4269, %v4266
        %v4833 = vunpack.c.l.b16 %v4271
        %v4834 = vunpack.c.l.b16 %v4272
        %v4835 = vunpack.c.l.b16 %v4273
        %v4836 = vunpack.c.l.b16 %v4274
        %v4837 = vunpack.c.l.b16 %v4275
        %v4838 = vunpack.c.l.b16 %v4276
        %v4839 = vunpack.c.l.b16 %v4277
        %v4840 = vunpack.c.l.b16 %v4278
        %v4841 = vunpack.c.l.b16 %v4279
        %v4842 = vunpack.c.l.b16 %v4280
        %v4843 = vunpack.c.l.b16 %v4281
        %v4844 = vunpack.c.l.b16 %v4282
        %v4845 = vunpack.c.l.b16 %v4283
        %v4846 = vunpack.c.l.b16 %v4284
        %v4847 = vunpack.c.l.b16 %v4285
        %v4848 = vunpack.c.l.b16 %v4286
        %v4849 = vunpack.c.l.b16 %v4287
        %v4850 = vunpack.c.l.b16 %v4288
        %v4851 = vunpack.c.l.b16 %v4289
        %v4852 = vunpack.c.l.b16 %v4290
        %v4853 = vunpack.c.l.b16 %v4291
        %v4854 = vunpack.c.l.b16 %v4292
        %v4855 = vunpack.c.l.b16 %v4293
        %v4856 = vunpack.c.l.b16 %v4294
        %v4857 = vunpack.c.l.b16 %v4295
        %v4858 = vunpack.c.l.b16 %v4296
        %v4859 = vunpack.c.l.b16 %v4297
        %v4860 = vunpack.c.l.b16 %v4298
        %v4861 = vunpack.c.l.b16 %v4299
        %v4862 = vunpack.c.l.b16 %v4300
        %v4863 = vunpack.c.l.b16 %v4301
        %v4864 = vunpack.c.l.b16 %v4302
        %v4865 = vunpack.c.l.b16 %v4303
        %v4866 = vunpack.c.l.b16 %v4304
        %v4867 = vunpack.c.l.b16 %v4305
        %v4868 = vunpack.c.l.b16 %v4306
        %v4869 = vunpack.c.l.b16 %v4307
        %v4870 = vunpack.c.l.b16 %v4308
        %v4871 = vunpack.c.l.b16 %v4309
        %v4872 = vunpack.c.l.b16 %v4310
        %v4873 = vunpack.c.l.b16 %v4311
        %v4874 = vunpack.c.l.b16 %v4312
        %v4875 = vunpack.c.l.b16 %v4313
        %v4876 = vunpack.c.l.b16 %v4314
        %v4877 = vunpack.c.l.b16 %v4315
        %v4878 = vunpack.c.l.b16 %v4316
        %v4879 = vunpack.c.l.b16 %v4317
        %v4880 = vunpack.c.l.b16 %v4318
        %v4881 = vpack.c.b16 %v4834, %v4833
        %v4882 = vpack.c.b16 %v4836, %v4835
        %v4883 = vpack.c.b16 %v4838, %v4837
        %v4884 = vpack.c.b16 %v4840, %v4839
        %v4885 = vpack.c.b16 %v4842, %v4841
        %v4886 = vpack.c.b16 %v4844, %v4843
        %v4887 = vpack.c.b16 %v4846, %v4845
        %v4888 = vpack.c.b16 %v4848, %v4847
        %v4889 = vpack.c.b16 %v4850, %v4849
        %v4890 = vpack.c.b16 %v4852, %v4851
        %v4891 = vpack.c.b16 %v4854, %v4853
        %v4892 = vpack.c.b16 %v4856, %v4855
        %v4893 = vpack.c.b16 %v4858, %v4857
        %v4894 = vpack.c.b16 %v4860, %v4859
        %v4895 = vpack.c.b16 %v4862, %v4861
        %v4896 = vpack.c.b16 %v4864, %v4863
        %v4897 = vpack.c.b16 %v4866, %v4865
        %v4898 = vpack.c.b16 %v4868, %v4867
        %v4899 = vpack.c.b16 %v4870, %v4869
        %v4900 = vpack.c.b16 %v4872, %v4871
        %v4901 = vpack.c.b16 %v4874, %v4873
        %v4902 = vpack.c.b16 %v4876, %v4875
        %v4903 = vpack.c.b16 %v4878, %v4877
        %v4904 = vpack.c.b16 %v4880, %v4879
        %4929 = vmatprep.subr.bf16.mxu0 0
        %4930 = vmatpush1.bf16.msra.mxu0 %v4888
        %4931 = vmatprep.subr.bf16.mxu0 0
        %4932 = vmatpush1.bf16.msra.mxu0 %v4887
        %4933 = vmatprep.subr.bf16.mxu0 0
        %4934 = vmatpush1.bf16.msra.mxu0 %v4886
        %4935 = vmatprep.subr.bf16.mxu0 0
        %4936 = vmatpush1.bf16.msra.mxu0 %v4885
        %4937 = vmatprep.subr.bf16.mxu0 0
        %4938 = vmatpush1.bf16.msra.mxu0 %v4884
        %4939 = vmatprep.subr.bf16.mxu0 0
        %4940 = vmatpush1.bf16.msra.mxu0 %v4883
        %4941 = vmatprep.subr.bf16.mxu0 0
        %4942 = vmatpush1.bf16.msra.mxu0 %v4882
        %4943 = vmatprep.subr.bf16.mxu0 0
        %4944 = vmatpush1.bf16.msra.mxu0 %v4881
        %4945 = vmatprep.subr.bf16.mxu0 0
        %4946 = vmatpush2.bf16.msra.mxu0 %v4896
        %4947 = vmatprep.subr.bf16.mxu0 0
        %4948 = vmatpush2.bf16.msra.mxu0 %v4895
        %4949 = vmatprep.subr.bf16.mxu0 0
        %4950 = vmatpush2.bf16.msra.mxu0 %v4894
        %4951 = vmatprep.subr.bf16.mxu0 0
        %4952 = vmatpush2.bf16.msra.mxu0 %v4893
        %4953 = vmatprep.subr.bf16.mxu0 0
        %4954 = vmatpush2.bf16.msra.mxu0 %v4892
        %4955 = vmatprep.subr.bf16.mxu0 0
        %4956 = vmatpush2.bf16.msra.mxu0 %v4891
        %4957 = vmatprep.subr.bf16.mxu0 0
        %4958 = vmatpush2.bf16.msra.mxu0 %v4890
        %4959 = vmatprep.subr.bf16.mxu0 0
        %4960 = vmatpush2.bf16.msra.mxu0 %v4889
        %4961 = vmatprep.mubr.bf16.mxu0 %v4762
        %4962 = vmatmul.mubr.bf16.gmra.mxu0 %v4761
        %v4963 = vpop.f32.mrf.mxu0
        %v4964 = vadd.f32 %v4731, %v4963
        %v4965 = vpop.f32.mrf.mxu0
        %v4966 = vpop.f32.mrf.mxu0
        %v4967 = vadd.f32 %v4734, %v4966
        %v4968 = vpop.f32.mrf.mxu0
        %4969 = vmatprep.mubr.bf16.mxu0 %v4765
        %4970 = vmatmul.mubr.bf16.gmra.mxu0 %v4764
        %v4971 = vpop.f32.mrf.mxu0
        %v4972 = vadd.f32 %v4739, %v4971
        %v4973 = vpop.f32.mrf.mxu0
        %v4974 = vpop.f32.mrf.mxu0
        %v4975 = vadd.f32 %v4742, %v4974
        %v4976 = vpop.f32.mrf.mxu0
        %4977 = vmatprep.mubr.bf16.mxu0 %v4768
        %4978 = vmatmul.mubr.bf16.gmra.mxu0 %v4767
        %v4979 = vpop.f32.mrf.mxu0
        %v4980 = vadd.f32 %v4747, %v4979
        %v4981 = vpop.f32.mrf.mxu0
        %v4982 = vpop.f32.mrf.mxu0
        %v4983 = vadd.f32 %v4750, %v4982
        %v4984 = vpop.f32.mrf.mxu0
        %4985 = vmatprep.mubr.bf16.mxu0 %v4771
        %4986 = vmatmul.mubr.bf16.gmra.mxu0 %v4770
        %v4987 = vpop.f32.mrf.mxu0
        %v4988 = vadd.f32 %v4755, %v4987
        %v4989 = vpop.f32.mrf.mxu0
        %v4990 = vpop.f32.mrf.mxu0
        %v4991 = vadd.f32 %v4758, %v4990
        %v4992 = vpop.f32.mrf.mxu0
        %4993 = vdwg.mxu0
        %4994 = vmatprep.subr.bf16.mxu0 0
        %4995 = vmatpush1.bf16.msra.mxu0 %v4904
        %4996 = vmatprep.subr.bf16.mxu0 0
        %4997 = vmatpush1.bf16.msra.mxu0 %v4903
        %4998 = vmatprep.subr.bf16.mxu0 0
        %4999 = vmatpush1.bf16.msra.mxu0 %v4902
        %5000 = vmatprep.subr.bf16.mxu0 0
        %5001 = vmatpush1.bf16.msra.mxu0 %v4901
        %5002 = vmatprep.subr.bf16.mxu0 0
        %5003 = vmatpush1.bf16.msra.mxu0 %v4900
        %5004 = vmatprep.subr.bf16.mxu0 0
        %5005 = vmatpush1.bf16.msra.mxu0 %v4899
        %5006 = vmatprep.subr.bf16.mxu0 0
        %5007 = vmatpush1.bf16.msra.mxu0 %v4898
        %5008 = vmatprep.subr.bf16.mxu0 0
        %5009 = vmatpush1.bf16.msra.mxu0 %v4897
        %5010 = vmatprep.subr.bf16.mxu0 0
        %5011 = vmatpush2.bf16.msra.mxu0 0
        %5012 = vmatprep.subr.bf16.mxu0 0
        %5013 = vmatpush2.bf16.msra.mxu0 0
        %5014 = vmatprep.subr.bf16.mxu0 0
        %5015 = vmatpush2.bf16.msra.mxu0 0
        %5016 = vmatprep.subr.bf16.mxu0 0
        %5017 = vmatpush2.bf16.msra.mxu0 0
        %5018 = vmatprep.subr.bf16.mxu0 0
        %5019 = vmatpush2.bf16.msra.mxu0 0
        %5020 = vmatprep.subr.bf16.mxu0 0
        %5021 = vmatpush2.bf16.msra.mxu0 0
        %5022 = vmatprep.subr.bf16.mxu0 0
        %5023 = vmatpush2.bf16.msra.mxu0 0
        %5024 = vmatprep.subr.bf16.mxu0 0
        %5025 = vmatpush2.bf16.msra.mxu0 0
        %5026 = vmatprep.mubr.bf16.mxu0 0
        %5027 = vmatmul.mubr.bf16.gmra.mxu0 %v4763
        %v5028 = vpop.f32.mrf.mxu0
        %v5029 = vadd.f32 %v4964, %v5028
        %v5030 = vpop.f32.mrf.mxu0
        %v5031 = vpop.f32.mrf.mxu0
        %v5032 = vadd.f32 %v4967, %v5031
        %v5033 = vpop.f32.mrf.mxu0
        %5034 = vmatprep.mubr.bf16.mxu0 0
        %5035 = vmatmul.mubr.bf16.gmra.mxu0 %v4766
        %v5036 = vpop.f32.mrf.mxu0
        %v5037 = vadd.f32 %v4972, %v5036
        %v5038 = vpop.f32.mrf.mxu0
        %v5039 = vpop.f32.mrf.mxu0
        %v5040 = vadd.f32 %v4975, %v5039
        %v5041 = vpop.f32.mrf.mxu0
        %5042 = vmatprep.mubr.bf16.mxu0 0
        %5043 = vmatmul.mubr.bf16.gmra.mxu0 %v4769
        %v5044 = vpop.f32.mrf.mxu0
        %v5045 = vadd.f32 %v4980, %v5044
        %v5046 = vpop.f32.mrf.mxu0
        %v5047 = vpop.f32.mrf.mxu0
        %v5048 = vadd.f32 %v4983, %v5047
        %v5049 = vpop.f32.mrf.mxu0
        %5050 = vmatprep.mubr.bf16.mxu0 0
        %5051 = vmatmul.mubr.bf16.gmra.mxu0 %v4772
        %v5052 = vpop.f32.mrf.mxu0
        %v5053 = vadd.f32 %v4988, %v5052
        %v5054 = vpop.f32.mrf.mxu0
        %v5055 = vpop.f32.mrf.mxu0
        %v5056 = vadd.f32 %v4991, %v5055
        %v5057 = vpop.f32.mrf.mxu0
        %5058 = vdwg.mxu0
        %v5059 = vld [vmem:[%s2298] sm:$0xff]
        %v5060 = vld [vmem:[%s2298 + $0x10] sm:$0xff]
        %v5061 = vld [vmem:[%s2298 + $0x20] sm:$0xff]
        %v5062 = vld [vmem:[%s2298 + $0x30] sm:$0xff]
        %v5063 = vld [vmem:[%s2298 + $0x40] sm:$0xff]
        %v5064 = vld [vmem:[%s2298 + $0x50] sm:$0xff]
        %v5065 = vld [vmem:[%s2298 + $0x60] sm:$0xff]
        %v5066 = vld [vmem:[%s2298 + $0x70] sm:$0xff]
        %v5067 = vpack.c.bf16 %v5059, %v5059
        %v5068 = vpack.c.bf16 %v5060, %v5060
        %v5069 = vpack.c.bf16 %v5061, %v5061
        %v5070 = vpack.c.bf16 %v5062, %v5062
        %v5071 = vpack.c.bf16 %v5063, %v5063
        %v5072 = vpack.c.bf16 %v5064, %v5064
        %v5073 = vpack.c.bf16 %v5065, %v5065
        %v5074 = vpack.c.bf16 %v5066, %v5066
        %v5075 = vld [vmem:[%s2298 + $0x1] sm:$0xff]
        %v5076 = vld [vmem:[%s2298 + $0x11] sm:$0xff]
        %v5077 = vld [vmem:[%s2298 + $0x21] sm:$0xff]
        %v5078 = vld [vmem:[%s2298 + $0x31] sm:$0xff]
        %v5079 = vld [vmem:[%s2298 + $0x41] sm:$0xff]
        %v5080 = vld [vmem:[%s2298 + $0x51] sm:$0xff]
        %v5081 = vld [vmem:[%s2298 + $0x61] sm:$0xff]
        %v5082 = vld [vmem:[%s2298 + $0x71] sm:$0xff]
        %v5083 = vpack.c.bf16 %v5075, %v5075
        %v5084 = vpack.c.bf16 %v5076, %v5076
        %v5085 = vpack.c.bf16 %v5077, %v5077
        %v5086 = vpack.c.bf16 %v5078, %v5078
        %v5087 = vpack.c.bf16 %v5079, %v5079
        %v5088 = vpack.c.bf16 %v5080, %v5080
        %v5089 = vpack.c.bf16 %v5081, %v5081
        %v5090 = vpack.c.bf16 %v5082, %v5082
        %v5091 = vld [vmem:[%s2298 + $0x2] sm:$0xff]
        %v5092 = vld [vmem:[%s2298 + $0x12] sm:$0xff]
        %v5093 = vld [vmem:[%s2298 + $0x22] sm:$0xff]
        %v5094 = vld [vmem:[%s2298 + $0x32] sm:$0xff]
        %v5095 = vld [vmem:[%s2298 + $0x42] sm:$0xff]
        %v5096 = vld [vmem:[%s2298 + $0x52] sm:$0xff]
        %v5097 = vld [vmem:[%s2298 + $0x62] sm:$0xff]
        %v5098 = vld [vmem:[%s2298 + $0x72] sm:$0xff]
        %v5099 = vpack.c.bf16 %v5091, %v5091
        %v5100 = vpack.c.bf16 %v5092, %v5092
        %v5101 = vpack.c.bf16 %v5093, %v5093
        %v5102 = vpack.c.bf16 %v5094, %v5094
        %v5103 = vpack.c.bf16 %v5095, %v5095
        %v5104 = vpack.c.bf16 %v5096, %v5096
        %v5105 = vpack.c.bf16 %v5097, %v5097
        %v5106 = vpack.c.bf16 %v5098, %v5098
        %v5131 = vunpack.c.l.b16 %v5067
        %v5132 = vunpack.c.l.b16 %v5083
        %v5133 = vunpack.c.l.b16 %v5099
        %v5134 = vunpack.c.l.b16 %v5068
        %v5135 = vunpack.c.l.b16 %v5084
        %v5136 = vunpack.c.l.b16 %v5100
        %v5137 = vunpack.c.l.b16 %v5069
        %v5138 = vunpack.c.l.b16 %v5085
        %v5139 = vunpack.c.l.b16 %v5101
        %v5140 = vunpack.c.l.b16 %v5070
        %v5141 = vunpack.c.l.b16 %v5086
        %v5142 = vunpack.c.l.b16 %v5102
        %v5143 = vunpack.c.l.b16 %v5071
        %v5144 = vunpack.c.l.b16 %v5087
        %v5145 = vunpack.c.l.b16 %v5103
        %v5146 = vunpack.c.l.b16 %v5072
        %v5147 = vunpack.c.l.b16 %v5088
        %v5148 = vunpack.c.l.b16 %v5104
        %v5149 = vunpack.c.l.b16 %v5073
        %v5150 = vunpack.c.l.b16 %v5089
        %v5151 = vunpack.c.l.b16 %v5105
        %v5152 = vunpack.c.l.b16 %v5074
        %v5153 = vunpack.c.l.b16 %v5090
        %v5154 = vunpack.c.l.b16 %v5106
        %v5155 = vld [vmem:[%s4270 + $0x180] sm:$0xf]
        %v5156 = vld [vmem:[%s4270 + $0x184] sm:$0xf]
        %v5157 = vld [vmem:[%s4270 + $0x188] sm:$0xf]
        %v5158 = vld [vmem:[%s4270 + $0x18c] sm:$0xf]
        %v5159 = vld [vmem:[%s4270 + $0x190] sm:$0xf]
        %v5160 = vld [vmem:[%s4270 + $0x194] sm:$0xf]
        %v5161 = vld [vmem:[%s4270 + $0x198] sm:$0xf]
        %v5162 = vld [vmem:[%s4270 + $0x19c] sm:$0xf]
        %v5163 = vld [vmem:[%s4270 + $0x1a0] sm:$0xf]
        %v5164 = vld [vmem:[%s4270 + $0x1a4] sm:$0xf]
        %v5165 = vld [vmem:[%s4270 + $0x1a8] sm:$0xf]
        %v5166 = vld [vmem:[%s4270 + $0x1ac] sm:$0xf]
        %v5167 = vld [vmem:[%s4270 + $0x1b0] sm:$0xf]
        %v5168 = vld [vmem:[%s4270 + $0x1b4] sm:$0xf]
        %v5169 = vld [vmem:[%s4270 + $0x1b8] sm:$0xf]
        %v5170 = vld [vmem:[%s4270 + $0x1bc] sm:$0xf]
        %v5171 = vld [vmem:[%s4270 + $0x1c0] sm:$0xf]
        %v5172 = vld [vmem:[%s4270 + $0x1c4] sm:$0xf]
        %v5173 = vld [vmem:[%s4270 + $0x1c8] sm:$0xf]
        %v5174 = vld [vmem:[%s4270 + $0x1cc] sm:$0xf]
        %v5175 = vld [vmem:[%s4270 + $0x1d0] sm:$0xf]
        %v5176 = vld [vmem:[%s4270 + $0x1d4] sm:$0xf]
        %v5177 = vld [vmem:[%s4270 + $0x1d8] sm:$0xf]
        %v5178 = vld [vmem:[%s4270 + $0x1dc] sm:$0xf]
        %v5179 = vld [vmem:[%s4270 + $0x1e0] sm:$0xf]
        %v5180 = vld [vmem:[%s4270 + $0x1e4] sm:$0xf]
        %v5181 = vld [vmem:[%s4270 + $0x1e8] sm:$0xf]
        %v5182 = vld [vmem:[%s4270 + $0x1ec] sm:$0xf]
        %v5183 = vld [vmem:[%s4270 + $0x1f0] sm:$0xf]
        %v5184 = vld [vmem:[%s4270 + $0x1f4] sm:$0xf]
        %v5185 = vld [vmem:[%s4270 + $0x1f8] sm:$0xf]
        %v5186 = vld [vmem:[%s4270 + $0x1fc] sm:$0xf]
        %v5187 = vld [vmem:[%s4270 + $0x200] sm:$0xf]
        %v5188 = vld [vmem:[%s4270 + $0x204] sm:$0xf]
        %v5189 = vld [vmem:[%s4270 + $0x208] sm:$0xf]
        %v5190 = vld [vmem:[%s4270 + $0x20c] sm:$0xf]
        %v5191 = vld [vmem:[%s4270 + $0x210] sm:$0xf]
        %v5192 = vld [vmem:[%s4270 + $0x214] sm:$0xf]
        %v5193 = vld [vmem:[%s4270 + $0x218] sm:$0xf]
        %v5194 = vld [vmem:[%s4270 + $0x21c] sm:$0xf]
        %v5195 = vld [vmem:[%s4270 + $0x220] sm:$0xf]
        %v5196 = vld [vmem:[%s4270 + $0x224] sm:$0xf]
        %v5197 = vld [vmem:[%s4270 + $0x228] sm:$0xf]
        %v5198 = vld [vmem:[%s4270 + $0x22c] sm:$0xf]
        %v5199 = vld [vmem:[%s4270 + $0x230] sm:$0xf]
        %v5200 = vld [vmem:[%s4270 + $0x234] sm:$0xf]
        %v5201 = vld [vmem:[%s4270 + $0x238] sm:$0xf]
        %v5202 = vld [vmem:[%s4270 + $0x23c] sm:$0xf]
        %v5203 = vpack.c.b16 %v5134, %v5131
        %v5204 = vpack.c.b16 %v5135, %v5132
        %v5205 = vpack.c.b16 %v5136, %v5133
        %v5206 = vpack.c.b16 %v5140, %v5137
        %v5207 = vpack.c.b16 %v5141, %v5138
        %v5208 = vpack.c.b16 %v5142, %v5139
        %v5209 = vpack.c.b16 %v5146, %v5143
        %v5210 = vpack.c.b16 %v5147, %v5144
        %v5211 = vpack.c.b16 %v5148, %v5145
        %v5212 = vpack.c.b16 %v5152, %v5149
        %v5213 = vpack.c.b16 %v5153, %v5150
        %v5214 = vpack.c.b16 %v5154, %v5151
        %v5275 = vunpack.c.l.b16 %v5155
        %v5276 = vunpack.c.l.b16 %v5156
        %v5277 = vunpack.c.l.b16 %v5157
        %v5278 = vunpack.c.l.b16 %v5158
        %v5279 = vunpack.c.l.b16 %v5159
        %v5280 = vunpack.c.l.b16 %v5160
        %v5281 = vunpack.c.l.b16 %v5161
        %v5282 = vunpack.c.l.b16 %v5162
        %v5283 = vunpack.c.l.b16 %v5163
        %v5284 = vunpack.c.l.b16 %v5164
        %v5285 = vunpack.c.l.b16 %v5165
        %v5286 = vunpack.c.l.b16 %v5166
        %v5287 = vunpack.c.l.b16 %v5167
        %v5288 = vunpack.c.l.b16 %v5168
        %v5289 = vunpack.c.l.b16 %v5169
        %v5290 = vunpack.c.l.b16 %v5170
        %v5291 = vunpack.c.l.b16 %v5171
        %v5292 = vunpack.c.l.b16 %v5172
        %v5293 = vunpack.c.l.b16 %v5173
        %v5294 = vunpack.c.l.b16 %v5174
        %v5295 = vunpack.c.l.b16 %v5175
        %v5296 = vunpack.c.l.b16 %v5176
        %v5297 = vunpack.c.l.b16 %v5177
        %v5298 = vunpack.c.l.b16 %v5178
        %v5299 = vunpack.c.l.b16 %v5179
        %v5300 = vunpack.c.l.b16 %v5180
        %v5301 = vunpack.c.l.b16 %v5181
        %v5302 = vunpack.c.l.b16 %v5182
        %v5303 = vunpack.c.l.b16 %v5183
        %v5304 = vunpack.c.l.b16 %v5184
        %v5305 = vunpack.c.l.b16 %v5185
        %v5306 = vunpack.c.l.b16 %v5186
        %v5307 = vunpack.c.l.b16 %v5187
        %v5308 = vunpack.c.l.b16 %v5188
        %v5309 = vunpack.c.l.b16 %v5189
        %v5310 = vunpack.c.l.b16 %v5190
        %v5311 = vunpack.c.l.b16 %v5191
        %v5312 = vunpack.c.l.b16 %v5192
        %v5313 = vunpack.c.l.b16 %v5193
        %v5314 = vunpack.c.l.b16 %v5194
        %v5315 = vunpack.c.l.b16 %v5195
        %v5316 = vunpack.c.l.b16 %v5196
        %v5317 = vunpack.c.l.b16 %v5197
        %v5318 = vunpack.c.l.b16 %v5198
        %v5319 = vunpack.c.l.b16 %v5199
        %v5320 = vunpack.c.l.b16 %v5200
        %v5321 = vunpack.c.l.b16 %v5201
        %v5322 = vunpack.c.l.b16 %v5202
        %v5323 = vpack.c.b16 %v5276, %v5275
        %v5324 = vpack.c.b16 %v5278, %v5277
        %v5325 = vpack.c.b16 %v5280, %v5279
        %v5326 = vpack.c.b16 %v5282, %v5281
        %v5327 = vpack.c.b16 %v5284, %v5283
        %v5328 = vpack.c.b16 %v5286, %v5285
        %v5329 = vpack.c.b16 %v5288, %v5287
        %v5330 = vpack.c.b16 %v5290, %v5289
        %v5331 = vpack.c.b16 %v5292, %v5291
        %v5332 = vpack.c.b16 %v5294, %v5293
        %v5333 = vpack.c.b16 %v5296, %v5295
        %v5334 = vpack.c.b16 %v5298, %v5297
        %v5335 = vpack.c.b16 %v5300, %v5299
        %v5336 = vpack.c.b16 %v5302, %v5301
        %v5337 = vpack.c.b16 %v5304, %v5303
        %v5338 = vpack.c.b16 %v5306, %v5305
        %v5339 = vpack.c.b16 %v5308, %v5307
        %v5340 = vpack.c.b16 %v5310, %v5309
        %v5341 = vpack.c.b16 %v5312, %v5311
        %v5342 = vpack.c.b16 %v5314, %v5313
        %v5343 = vpack.c.b16 %v5316, %v5315
        %v5344 = vpack.c.b16 %v5318, %v5317
        %v5345 = vpack.c.b16 %v5320, %v5319
        %v5346 = vpack.c.b16 %v5322, %v5321
        %5371 = vmatprep.subr.bf16.mxu0 0
        %5372 = vmatpush1.bf16.msra.mxu0 %v5330
        %5373 = vmatprep.subr.bf16.mxu0 0
        %5374 = vmatpush1.bf16.msra.mxu0 %v5329
        %5375 = vmatprep.subr.bf16.mxu0 0
        %5376 = vmatpush1.bf16.msra.mxu0 %v5328
        %5377 = vmatprep.subr.bf16.mxu0 0
        %5378 = vmatpush1.bf16.msra.mxu0 %v5327
        %5379 = vmatprep.subr.bf16.mxu0 0
        %5380 = vmatpush1.bf16.msra.mxu0 %v5326
        %5381 = vmatprep.subr.bf16.mxu0 0
        %5382 = vmatpush1.bf16.msra.mxu0 %v5325
        %5383 = vmatprep.subr.bf16.mxu0 0
        %5384 = vmatpush1.bf16.msra.mxu0 %v5324
        %5385 = vmatprep.subr.bf16.mxu0 0
        %5386 = vmatpush1.bf16.msra.mxu0 %v5323
        %5387 = vmatprep.subr.bf16.mxu0 0
        %5388 = vmatpush2.bf16.msra.mxu0 %v5338
        %5389 = vmatprep.subr.bf16.mxu0 0
        %5390 = vmatpush2.bf16.msra.mxu0 %v5337
        %5391 = vmatprep.subr.bf16.mxu0 0
        %5392 = vmatpush2.bf16.msra.mxu0 %v5336
        %5393 = vmatprep.subr.bf16.mxu0 0
        %5394 = vmatpush2.bf16.msra.mxu0 %v5335
        %5395 = vmatprep.subr.bf16.mxu0 0
        %5396 = vmatpush2.bf16.msra.mxu0 %v5334
        %5397 = vmatprep.subr.bf16.mxu0 0
        %5398 = vmatpush2.bf16.msra.mxu0 %v5333
        %5399 = vmatprep.subr.bf16.mxu0 0
        %5400 = vmatpush2.bf16.msra.mxu0 %v5332
        %5401 = vmatprep.subr.bf16.mxu0 0
        %5402 = vmatpush2.bf16.msra.mxu0 %v5331
        %5403 = vmatprep.mubr.bf16.mxu0 %v5204
        %5404 = vmatmul.mubr.bf16.gmra.mxu0 %v5203
        %v5405 = vpop.f32.mrf.mxu0
        %v5406 = vadd.f32 0.0, %v5405
        %v5407 = vpop.f32.mrf.mxu0
        %v5408 = vpop.f32.mrf.mxu0
        %v5409 = vadd.f32 0.0, %v5408
        %v5410 = vpop.f32.mrf.mxu0
        %5411 = vmatprep.mubr.bf16.mxu0 %v5207
        %5412 = vmatmul.mubr.bf16.gmra.mxu0 %v5206
        %v5413 = vpop.f32.mrf.mxu0
        %v5414 = vadd.f32 0.0, %v5413
        %v5415 = vpop.f32.mrf.mxu0
        %v5416 = vpop.f32.mrf.mxu0
        %v5417 = vadd.f32 0.0, %v5416
        %v5418 = vpop.f32.mrf.mxu0
        %5419 = vmatprep.mubr.bf16.mxu0 %v5210
        %5420 = vmatmul.mubr.bf16.gmra.mxu0 %v5209
        %v5421 = vpop.f32.mrf.mxu0
        %v5422 = vadd.f32 0.0, %v5421
        %v5423 = vpop.f32.mrf.mxu0
        %v5424 = vpop.f32.mrf.mxu0
        %v5425 = vadd.f32 0.0, %v5424
        %v5426 = vpop.f32.mrf.mxu0
        %5427 = vmatprep.mubr.bf16.mxu0 %v5213
        %5428 = vmatmul.mubr.bf16.gmra.mxu0 %v5212
        %v5429 = vpop.f32.mrf.mxu0
        %v5430 = vadd.f32 0.0, %v5429
        %v5431 = vpop.f32.mrf.mxu0
        %v5432 = vpop.f32.mrf.mxu0
        %v5433 = vadd.f32 0.0, %v5432
        %v5434 = vpop.f32.mrf.mxu0
        %5435 = vdwg.mxu0
        %5436 = vmatprep.subr.bf16.mxu0 0
        %5437 = vmatpush1.bf16.msra.mxu0 %v5346
        %5438 = vmatprep.subr.bf16.mxu0 0
        %5439 = vmatpush1.bf16.msra.mxu0 %v5345
        %5440 = vmatprep.subr.bf16.mxu0 0
        %5441 = vmatpush1.bf16.msra.mxu0 %v5344
        %5442 = vmatprep.subr.bf16.mxu0 0
        %5443 = vmatpush1.bf16.msra.mxu0 %v5343
        %5444 = vmatprep.subr.bf16.mxu0 0
        %5445 = vmatpush1.bf16.msra.mxu0 %v5342
        %5446 = vmatprep.subr.bf16.mxu0 0
        %5447 = vmatpush1.bf16.msra.mxu0 %v5341
        %5448 = vmatprep.subr.bf16.mxu0 0
        %5449 = vmatpush1.bf16.msra.mxu0 %v5340
        %5450 = vmatprep.subr.bf16.mxu0 0
        %5451 = vmatpush1.bf16.msra.mxu0 %v5339
        %5452 = vmatprep.subr.bf16.mxu0 0
        %5453 = vmatpush2.bf16.msra.mxu0 0
        %5454 = vmatprep.subr.bf16.mxu0 0
        %5455 = vmatpush2.bf16.msra.mxu0 0
        %5456 = vmatprep.subr.bf16.mxu0 0
        %5457 = vmatpush2.bf16.msra.mxu0 0
        %5458 = vmatprep.subr.bf16.mxu0 0
        %5459 = vmatpush2.bf16.msra.mxu0 0
        %5460 = vmatprep.subr.bf16.mxu0 0
        %5461 = vmatpush2.bf16.msra.mxu0 0
        %5462 = vmatprep.subr.bf16.mxu0 0
        %5463 = vmatpush2.bf16.msra.mxu0 0
        %5464 = vmatprep.subr.bf16.mxu0 0
        %5465 = vmatpush2.bf16.msra.mxu0 0
        %5466 = vmatprep.subr.bf16.mxu0 0
        %5467 = vmatpush2.bf16.msra.mxu0 0
        %5468 = vmatprep.mubr.bf16.mxu0 0
        %5469 = vmatmul.mubr.bf16.gmra.mxu0 %v5205
        %v5470 = vpop.f32.mrf.mxu0
        %v5471 = vadd.f32 %v5406, %v5470
        %v5472 = vpop.f32.mrf.mxu0
        %v5473 = vpop.f32.mrf.mxu0
        %v5474 = vadd.f32 %v5409, %v5473
        %v5475 = vpop.f32.mrf.mxu0
        %5476 = vmatprep.mubr.bf16.mxu0 0
        %5477 = vmatmul.mubr.bf16.gmra.mxu0 %v5208
        %v5478 = vpop.f32.mrf.mxu0
        %v5479 = vadd.f32 %v5414, %v5478
        %v5480 = vpop.f32.mrf.mxu0
        %v5481 = vpop.f32.mrf.mxu0
        %v5482 = vadd.f32 %v5417, %v5481
        %v5483 = vpop.f32.mrf.mxu0
        %5484 = vmatprep.mubr.bf16.mxu0 0
        %5485 = vmatmul.mubr.bf16.gmra.mxu0 %v5211
        %v5486 = vpop.f32.mrf.mxu0
        %v5487 = vadd.f32 %v5422, %v5486
        %v5488 = vpop.f32.mrf.mxu0
        %v5489 = vpop.f32.mrf.mxu0
        %v5490 = vadd.f32 %v5425, %v5489
        %v5491 = vpop.f32.mrf.mxu0
        %5492 = vmatprep.mubr.bf16.mxu0 0
        %5493 = vmatmul.mubr.bf16.gmra.mxu0 %v5214
        %v5494 = vpop.f32.mrf.mxu0
        %v5495 = vadd.f32 %v5430, %v5494
        %v5496 = vpop.f32.mrf.mxu0
        %v5497 = vpop.f32.mrf.mxu0
        %v5498 = vadd.f32 %v5433, %v5497
        %v5499 = vpop.f32.mrf.mxu0
        %5500 = vdwg.mxu0
        %v5501 = vadd.f32 %v5029, %v5471
        %v5502 = vadd.f32 %v5032, %v5474
        %v5503 = vadd.f32 %v5037, %v5479
        %v5504 = vadd.f32 %v5040, %v5482
        %v5505 = vadd.f32 %v5045, %v5487
        %v5506 = vadd.f32 %v5048, %v5490
        %v5507 = vadd.f32 %v5053, %v5495
        %v5508 = vadd.f32 %v5056, %v5498
        %v5509 = vlaneseq
        %v5510 = vshrl.u32 %v5509, 7
        %v5511 = vsub.s32 2, %v5510
        %v5512 = vrot.slane %v2790, %v5511
        %v5513 = vmul.f32 %v5501, %v5512
        %v5514 = vmul.f32 %v5502, %v5512
        %v5515 = vmul.f32 %v5503, %v5512
        %v5516 = vmul.f32 %v5504, %v5512
        %v5517 = vmul.f32 %v5505, %v5512
        %v5518 = vmul.f32 %v5506, %v5512
        %v5519 = vmul.f32 %v5507, %v5512
        %v5520 = vmul.f32 %v5508, %v5512
        %v5521 = vlaneseq
        %v5522 = vshrl.u32 %v5521, 7
        %v5523 = vsub.s32 3, %v5522
        %v5524 = vrot.slane %v2790, %v5523
        %v5525 = vadd.f32 %v5513, %v5524
        %v5526 = vadd.f32 %v5514, %v5524
        %v5527 = vadd.f32 %v5515, %v5524
        %v5528 = vadd.f32 %v5516, %v5524
        %v5529 = vadd.f32 %v5517, %v5524
        %v5530 = vadd.f32 %v5518, %v5524
        %v5531 = vadd.f32 %v5519, %v5524
        %v5532 = vadd.f32 %v5520, %v5524
        %v5533 = vadd.f32 %v5525, %v2781
        %v5534 = vadd.f32 %v5526, %v2782
        %v5535 = vadd.f32 %v5527, %v2783
        %v5536 = vadd.f32 %v5528, %v2784
        %v5537 = vadd.f32 %v5529, %v2785
        %v5538 = vadd.f32 %v5530, %v2786
        %v5539 = vadd.f32 %v5531, %v2787
        %v5540 = vadd.f32 %v5532, %v2788
        %v5541 = vmax.f32 %v5533, 0.0
        %v5542 = vmax.f32 %v5534, 0.0
        %v5543 = vmax.f32 %v5535, 0.0
        %v5544 = vmax.f32 %v5536, 0.0
        %v5545 = vmax.f32 %v5537, 0.0
        %v5546 = vmax.f32 %v5538, 0.0
        %v5547 = vmax.f32 %v5539, 0.0
        %v5548 = vmax.f32 %v5540, 0.0
        %s5549 = scalar_lea.vmem %s3, 8
        %v5550 = vld [vmem:[%s5549] sm:$0xf]
        %5551 = vst [vmem:[%s1405 + $0x1] sm:$0xff] %v5541
        %5552 = vst [vmem:[%s1405 + $0x11] sm:$0xff] %v5542
        %5553 = vst [vmem:[%s1405 + $0x21] sm:$0xff] %v5543
        %5554 = vst [vmem:[%s1405 + $0x31] sm:$0xff] %v5544
        %5555 = vst [vmem:[%s1405 + $0x41] sm:$0xff] %v5545
        %5556 = vst [vmem:[%s1405 + $0x51] sm:$0xff] %v5546
        %5557 = vst [vmem:[%s1405 + $0x61] sm:$0xff] %v5547
        %5558 = vst [vmem:[%s1405 + $0x71] sm:$0xff] %v5548
        %v5559 = vld [vmem:[#allocation2] sm:$0xff]
        %v5560 = vld [vmem:[#allocation2 + $0x10] sm:$0xff]
        %v5561 = vld [vmem:[#allocation2 + $0x20] sm:$0xff]
        %v5562 = vld [vmem:[#allocation2 + $0x30] sm:$0xff]
        %v5563 = vld [vmem:[#allocation2 + $0x40] sm:$0xff]
        %v5564 = vld [vmem:[#allocation2 + $0x50] sm:$0xff]
        %v5565 = vld [vmem:[#allocation2 + $0x60] sm:$0xff]
        %v5566 = vld [vmem:[#allocation2 + $0x70] sm:$0xff]
        %v5567 = vpack.c.bf16 %v5559, %v5559
        %v5568 = vpack.c.bf16 %v5560, %v5560
        %v5569 = vpack.c.bf16 %v5561, %v5561
        %v5570 = vpack.c.bf16 %v5562, %v5562
        %v5571 = vpack.c.bf16 %v5563, %v5563
        %v5572 = vpack.c.bf16 %v5564, %v5564
        %v5573 = vpack.c.bf16 %v5565, %v5565
        %v5574 = vpack.c.bf16 %v5566, %v5566
        %v5575 = vld [vmem:[#allocation2 + $0x1] sm:$0xff]
        %v5576 = vld [vmem:[#allocation2 + $0x11] sm:$0xff]
        %v5577 = vld [vmem:[#allocation2 + $0x21] sm:$0xff]
        %v5578 = vld [vmem:[#allocation2 + $0x31] sm:$0xff]
        %v5579 = vld [vmem:[#allocation2 + $0x41] sm:$0xff]
        %v5580 = vld [vmem:[#allocation2 + $0x51] sm:$0xff]
        %v5581 = vld [vmem:[#allocation2 + $0x61] sm:$0xff]
        %v5582 = vld [vmem:[#allocation2 + $0x71] sm:$0xff]
        %v5583 = vpack.c.bf16 %v5575, %v5575
        %v5584 = vpack.c.bf16 %v5576, %v5576
        %v5585 = vpack.c.bf16 %v5577, %v5577
        %v5586 = vpack.c.bf16 %v5578, %v5578
        %v5587 = vpack.c.bf16 %v5579, %v5579
        %v5588 = vpack.c.bf16 %v5580, %v5580
        %v5589 = vpack.c.bf16 %v5581, %v5581
        %v5590 = vpack.c.bf16 %v5582, %v5582
        %v5591 = vld [vmem:[#allocation2 + $0x2] sm:$0xff]
        %v5592 = vld [vmem:[#allocation2 + $0x12] sm:$0xff]
        %v5593 = vld [vmem:[#allocation2 + $0x22] sm:$0xff]
        %v5594 = vld [vmem:[#allocation2 + $0x32] sm:$0xff]
        %v5595 = vld [vmem:[#allocation2 + $0x42] sm:$0xff]
        %v5596 = vld [vmem:[#allocation2 + $0x52] sm:$0xff]
        %v5597 = vld [vmem:[#allocation2 + $0x62] sm:$0xff]
        %v5598 = vld [vmem:[#allocation2 + $0x72] sm:$0xff]
        %v5599 = vpack.c.bf16 %v5591, %v5591
        %v5600 = vpack.c.bf16 %v5592, %v5592
        %v5601 = vpack.c.bf16 %v5593, %v5593
        %v5602 = vpack.c.bf16 %v5594, %v5594
        %v5603 = vpack.c.bf16 %v5595, %v5595
        %v5604 = vpack.c.bf16 %v5596, %v5596
        %v5605 = vpack.c.bf16 %v5597, %v5597
        %v5606 = vpack.c.bf16 %v5598, %v5598
        %v5631 = vunpack.c.l.b16 %v5567
        %v5632 = vunpack.c.l.b16 %v5583
        %v5633 = vunpack.c.l.b16 %v5599
        %v5634 = vunpack.c.l.b16 %v5568
        %v5635 = vunpack.c.l.b16 %v5584
        %v5636 = vunpack.c.l.b16 %v5600
        %v5637 = vunpack.c.l.b16 %v5569
        %v5638 = vunpack.c.l.b16 %v5585
        %v5639 = vunpack.c.l.b16 %v5601
        %v5640 = vunpack.c.l.b16 %v5570
        %v5641 = vunpack.c.l.b16 %v5586
        %v5642 = vunpack.c.l.b16 %v5602
        %v5643 = vunpack.c.l.b16 %v5571
        %v5644 = vunpack.c.l.b16 %v5587
        %v5645 = vunpack.c.l.b16 %v5603
        %v5646 = vunpack.c.l.b16 %v5572
        %v5647 = vunpack.c.l.b16 %v5588
        %v5648 = vunpack.c.l.b16 %v5604
        %v5649 = vunpack.c.l.b16 %v5573
        %v5650 = vunpack.c.l.b16 %v5589
        %v5651 = vunpack.c.l.b16 %v5605
        %v5652 = vunpack.c.l.b16 %v5574
        %v5653 = vunpack.c.l.b16 %v5590
        %v5654 = vunpack.c.l.b16 %v5606
        %s5655 = scalar_lea.vmem %s1, 1152
        %v5656 = vld [vmem:[%s5655] sm:$0xf]
        %v5657 = vld [vmem:[%s5655 + $0x4] sm:$0xf]
        %v5658 = vld [vmem:[%s5655 + $0x8] sm:$0xf]
        %v5659 = vld [vmem:[%s5655 + $0xc] sm:$0xf]
        %v5660 = vld [vmem:[%s5655 + $0x10] sm:$0xf]
        %v5661 = vld [vmem:[%s5655 + $0x14] sm:$0xf]
        %v5662 = vld [vmem:[%s5655 + $0x18] sm:$0xf]
        %v5663 = vld [vmem:[%s5655 + $0x1c] sm:$0xf]
        %v5664 = vld [vmem:[%s5655 + $0x20] sm:$0xf]
        %v5665 = vld [vmem:[%s5655 + $0x24] sm:$0xf]
        %v5666 = vld [vmem:[%s5655 + $0x28] sm:$0xf]
        %v5667 = vld [vmem:[%s5655 + $0x2c] sm:$0xf]
        %v5668 = vld [vmem:[%s5655 + $0x30] sm:$0xf]
        %v5669 = vld [vmem:[%s5655 + $0x34] sm:$0xf]
        %v5670 = vld [vmem:[%s5655 + $0x38] sm:$0xf]
        %v5671 = vld [vmem:[%s5655 + $0x3c] sm:$0xf]
        %v5672 = vld [vmem:[%s5655 + $0x40] sm:$0xf]
        %v5673 = vld [vmem:[%s5655 + $0x44] sm:$0xf]
        %v5674 = vld [vmem:[%s5655 + $0x48] sm:$0xf]
        %v5675 = vld [vmem:[%s5655 + $0x4c] sm:$0xf]
        %v5676 = vld [vmem:[%s5655 + $0x50] sm:$0xf]
        %v5677 = vld [vmem:[%s5655 + $0x54] sm:$0xf]
        %v5678 = vld [vmem:[%s5655 + $0x58] sm:$0xf]
        %v5679 = vld [vmem:[%s5655 + $0x5c] sm:$0xf]
        %v5680 = vld [vmem:[%s5655 + $0x60] sm:$0xf]
        %v5681 = vld [vmem:[%s5655 + $0x64] sm:$0xf]
        %v5682 = vld [vmem:[%s5655 + $0x68] sm:$0xf]
        %v5683 = vld [vmem:[%s5655 + $0x6c] sm:$0xf]
        %v5684 = vld [vmem:[%s5655 + $0x70] sm:$0xf]
        %v5685 = vld [vmem:[%s5655 + $0x74] sm:$0xf]
        %v5686 = vld [vmem:[%s5655 + $0x78] sm:$0xf]
        %v5687 = vld [vmem:[%s5655 + $0x7c] sm:$0xf]
        %v5688 = vld [vmem:[%s5655 + $0x80] sm:$0xf]
        %v5689 = vld [vmem:[%s5655 + $0x84] sm:$0xf]
        %v5690 = vld [vmem:[%s5655 + $0x88] sm:$0xf]
        %v5691 = vld [vmem:[%s5655 + $0x8c] sm:$0xf]
        %v5692 = vld [vmem:[%s5655 + $0x90] sm:$0xf]
        %v5693 = vld [vmem:[%s5655 + $0x94] sm:$0xf]
        %v5694 = vld [vmem:[%s5655 + $0x98] sm:$0xf]
        %v5695 = vld [vmem:[%s5655 + $0x9c] sm:$0xf]
        %v5696 = vld [vmem:[%s5655 + $0xa0] sm:$0xf]
        %v5697 = vld [vmem:[%s5655 + $0xa4] sm:$0xf]
        %v5698 = vld [vmem:[%s5655 + $0xa8] sm:$0xf]
        %v5699 = vld [vmem:[%s5655 + $0xac] sm:$0xf]
        %v5700 = vld [vmem:[%s5655 + $0xb0] sm:$0xf]
        %v5701 = vld [vmem:[%s5655 + $0xb4] sm:$0xf]
        %v5702 = vld [vmem:[%s5655 + $0xb8] sm:$0xf]
        %v5703 = vld [vmem:[%s5655 + $0xbc] sm:$0xf]
        %v5704 = vld [vmem:[%s1405] sm:$0xff]
        %v5705 = vld [vmem:[%s1405 + $0x10] sm:$0xff]
        %v5706 = vld [vmem:[%s1405 + $0x20] sm:$0xff]
        %v5707 = vld [vmem:[%s1405 + $0x30] sm:$0xff]
        %v5708 = vld [vmem:[%s1405 + $0x40] sm:$0xff]
        %v5709 = vld [vmem:[%s1405 + $0x50] sm:$0xff]
        %v5710 = vld [vmem:[%s1405 + $0x60] sm:$0xff]
        %v5711 = vld [vmem:[%s1405 + $0x70] sm:$0xff]
        %v5712 = vpack.c.bf16 %v5704, %v5704
        %v5713 = vpack.c.bf16 %v5705, %v5705
        %v5714 = vpack.c.bf16 %v5706, %v5706
        %v5715 = vpack.c.bf16 %v5707, %v5707
        %v5716 = vpack.c.bf16 %v5708, %v5708
        %v5717 = vpack.c.bf16 %v5709, %v5709
        %v5718 = vpack.c.bf16 %v5710, %v5710
        %v5719 = vpack.c.bf16 %v5711, %v5711
        %v5720 = vld [vmem:[%s1405 + $0x1] sm:$0xff]
        %v5721 = vld [vmem:[%s1405 + $0x11] sm:$0xff]
        %v5722 = vld [vmem:[%s1405 + $0x21] sm:$0xff]
        %v5723 = vld [vmem:[%s1405 + $0x31] sm:$0xff]
        %v5724 = vld [vmem:[%s1405 + $0x41] sm:$0xff]
        %v5725 = vld [vmem:[%s1405 + $0x51] sm:$0xff]
        %v5726 = vld [vmem:[%s1405 + $0x61] sm:$0xff]
        %v5727 = vld [vmem:[%s1405 + $0x71] sm:$0xff]
        %v5728 = vpack.c.bf16 %v5720, %v5720
        %v5729 = vpack.c.bf16 %v5721, %v5721
        %v5730 = vpack.c.bf16 %v5722, %v5722
        %v5731 = vpack.c.bf16 %v5723, %v5723
        %v5732 = vpack.c.bf16 %v5724, %v5724
        %v5733 = vpack.c.bf16 %v5725, %v5725
        %v5734 = vpack.c.bf16 %v5726, %v5726
        %v5735 = vpack.c.bf16 %v5727, %v5727
        %v5736 = vld [vmem:[%s1405 + $0x2] sm:$0xff]
        %v5737 = vld [vmem:[%s1405 + $0x12] sm:$0xff]
        %v5738 = vld [vmem:[%s1405 + $0x22] sm:$0xff]
        %v5739 = vld [vmem:[%s1405 + $0x32] sm:$0xff]
        %v5740 = vld [vmem:[%s1405 + $0x42] sm:$0xff]
        %v5741 = vld [vmem:[%s1405 + $0x52] sm:$0xff]
        %v5742 = vld [vmem:[%s1405 + $0x62] sm:$0xff]
        %v5743 = vld [vmem:[%s1405 + $0x72] sm:$0xff]
        %v5744 = vpack.c.bf16 %v5736, %v5736
        %v5745 = vpack.c.bf16 %v5737, %v5737
        %v5746 = vpack.c.bf16 %v5738, %v5738
        %v5747 = vpack.c.bf16 %v5739, %v5739
        %v5748 = vpack.c.bf16 %v5740, %v5740
        %v5749 = vpack.c.bf16 %v5741, %v5741
        %v5750 = vpack.c.bf16 %v5742, %v5742
        %v5751 = vpack.c.bf16 %v5743, %v5743
        %v5776 = vunpack.c.l.b16 %v5712
        %v5777 = vunpack.c.l.b16 %v5728
        %v5778 = vunpack.c.l.b16 %v5744
        %v5779 = vunpack.c.l.b16 %v5713
        %v5780 = vunpack.c.l.b16 %v5729
        %v5781 = vunpack.c.l.b16 %v5745
        %v5782 = vunpack.c.l.b16 %v5714
        %v5783 = vunpack.c.l.b16 %v5730
        %v5784 = vunpack.c.l.b16 %v5746
        %v5785 = vunpack.c.l.b16 %v5715
        %v5786 = vunpack.c.l.b16 %v5731
        %v5787 = vunpack.c.l.b16 %v5747
        %v5788 = vunpack.c.l.b16 %v5716
        %v5789 = vunpack.c.l.b16 %v5732
        %v5790 = vunpack.c.l.b16 %v5748
        %v5791 = vunpack.c.l.b16 %v5717
        %v5792 = vunpack.c.l.b16 %v5733
        %v5793 = vunpack.c.l.b16 %v5749
        %v5794 = vunpack.c.l.b16 %v5718
        %v5795 = vunpack.c.l.b16 %v5734
        %v5796 = vunpack.c.l.b16 %v5750
        %v5797 = vunpack.c.l.b16 %v5719
        %v5798 = vunpack.c.l.b16 %v5735
        %v5799 = vunpack.c.l.b16 %v5751
        %v5800 = vld [vmem:[%s5655 + $0xc0] sm:$0xf]
        %v5801 = vld [vmem:[%s5655 + $0xc4] sm:$0xf]
        %v5802 = vld [vmem:[%s5655 + $0xc8] sm:$0xf]
        %v5803 = vld [vmem:[%s5655 + $0xcc] sm:$0xf]
        %v5804 = vld [vmem:[%s5655 + $0xd0] sm:$0xf]
        %v5805 = vld [vmem:[%s5655 + $0xd4] sm:$0xf]
        %v5806 = vld [vmem:[%s5655 + $0xd8] sm:$0xf]
        %v5807 = vld [vmem:[%s5655 + $0xdc] sm:$0xf]
        %v5808 = vld [vmem:[%s5655 + $0xe0] sm:$0xf]
        %v5809 = vld [vmem:[%s5655 + $0xe4] sm:$0xf]
        %v5810 = vld [vmem:[%s5655 + $0xe8] sm:$0xf]
        %v5811 = vld [vmem:[%s5655 + $0xec] sm:$0xf]
        %v5812 = vld [vmem:[%s5655 + $0xf0] sm:$0xf]
        %v5813 = vld [vmem:[%s5655 + $0xf4] sm:$0xf]
        %v5814 = vld [vmem:[%s5655 + $0xf8] sm:$0xf]
        %v5815 = vld [vmem:[%s5655 + $0xfc] sm:$0xf]
        %v5816 = vld [vmem:[%s5655 + $0x100] sm:$0xf]
        %v5817 = vld [vmem:[%s5655 + $0x104] sm:$0xf]
        %v5818 = vld [vmem:[%s5655 + $0x108] sm:$0xf]
        %v5819 = vld [vmem:[%s5655 + $0x10c] sm:$0xf]
        %v5820 = vld [vmem:[%s5655 + $0x110] sm:$0xf]
        %v5821 = vld [vmem:[%s5655 + $0x114] sm:$0xf]
        %v5822 = vld [vmem:[%s5655 + $0x118] sm:$0xf]
        %v5823 = vld [vmem:[%s5655 + $0x11c] sm:$0xf]
        %v5824 = vld [vmem:[%s5655 + $0x120] sm:$0xf]
        %v5825 = vld [vmem:[%s5655 + $0x124] sm:$0xf]
        %v5826 = vld [vmem:[%s5655 + $0x128] sm:$0xf]
        %v5827 = vld [vmem:[%s5655 + $0x12c] sm:$0xf]
        %v5828 = vld [vmem:[%s5655 + $0x130] sm:$0xf]
        %v5829 = vld [vmem:[%s5655 + $0x134] sm:$0xf]
        %v5830 = vld [vmem:[%s5655 + $0x138] sm:$0xf]
        %v5831 = vld [vmem:[%s5655 + $0x13c] sm:$0xf]
        %v5832 = vld [vmem:[%s5655 + $0x140] sm:$0xf]
        %v5833 = vld [vmem:[%s5655 + $0x144] sm:$0xf]
        %v5834 = vld [vmem:[%s5655 + $0x148] sm:$0xf]
        %v5835 = vld [vmem:[%s5655 + $0x14c] sm:$0xf]
        %v5836 = vld [vmem:[%s5655 + $0x150] sm:$0xf]
        %v5837 = vld [vmem:[%s5655 + $0x154] sm:$0xf]
        %v5838 = vld [vmem:[%s5655 + $0x158] sm:$0xf]
        %v5839 = vld [vmem:[%s5655 + $0x15c] sm:$0xf]
        %v5840 = vld [vmem:[%s5655 + $0x160] sm:$0xf]
        %v5841 = vld [vmem:[%s5655 + $0x164] sm:$0xf]
        %v5842 = vld [vmem:[%s5655 + $0x168] sm:$0xf]
        %v5843 = vld [vmem:[%s5655 + $0x16c] sm:$0xf]
        %v5844 = vld [vmem:[%s5655 + $0x170] sm:$0xf]
        %v5845 = vld [vmem:[%s5655 + $0x174] sm:$0xf]
        %v5846 = vld [vmem:[%s5655 + $0x178] sm:$0xf]
        %v5847 = vld [vmem:[%s5655 + $0x17c] sm:$0xf]
        %v5848 = vpack.c.b16 %v5779, %v5776
        %v5849 = vpack.c.b16 %v5780, %v5777
        %v5850 = vpack.c.b16 %v5781, %v5778
        %v5851 = vpack.c.b16 %v5785, %v5782
        %v5852 = vpack.c.b16 %v5786, %v5783
        %v5853 = vpack.c.b16 %v5787, %v5784
        %v5854 = vpack.c.b16 %v5791, %v5788
        %v5855 = vpack.c.b16 %v5792, %v5789
        %v5856 = vpack.c.b16 %v5793, %v5790
        %v5857 = vpack.c.b16 %v5797, %v5794
        %v5858 = vpack.c.b16 %v5798, %v5795
        %v5859 = vpack.c.b16 %v5799, %v5796
        %v5920 = vunpack.c.l.b16 %v5800
        %v5921 = vunpack.c.l.b16 %v5801
        %v5922 = vunpack.c.l.b16 %v5802
        %v5923 = vunpack.c.l.b16 %v5803
        %v5924 = vunpack.c.l.b16 %v5804
        %v5925 = vunpack.c.l.b16 %v5805
        %v5926 = vunpack.c.l.b16 %v5806
        %v5927 = vunpack.c.l.b16 %v5807
        %v5928 = vunpack.c.l.b16 %v5808
        %v5929 = vunpack.c.l.b16 %v5809
        %v5930 = vunpack.c.l.b16 %v5810
        %v5931 = vunpack.c.l.b16 %v5811
        %v5932 = vunpack.c.l.b16 %v5812
        %v5933 = vunpack.c.l.b16 %v5813
        %v5934 = vunpack.c.l.b16 %v5814
        %v5935 = vunpack.c.l.b16 %v5815
        %v5936 = vunpack.c.l.b16 %v5816
        %v5937 = vunpack.c.l.b16 %v5817
        %v5938 = vunpack.c.l.b16 %v5818
        %v5939 = vunpack.c.l.b16 %v5819
        %v5940 = vunpack.c.l.b16 %v5820
        %v5941 = vunpack.c.l.b16 %v5821
        %v5942 = vunpack.c.l.b16 %v5822
        %v5943 = vunpack.c.l.b16 %v5823
        %v5944 = vunpack.c.l.b16 %v5824
        %v5945 = vunpack.c.l.b16 %v5825
        %v5946 = vunpack.c.l.b16 %v5826
        %v5947 = vunpack.c.l.b16 %v5827
        %v5948 = vunpack.c.l.b16 %v5828
        %v5949 = vunpack.c.l.b16 %v5829
        %v5950 = vunpack.c.l.b16 %v5830
        %v5951 = vunpack.c.l.b16 %v5831
        %v5952 = vunpack.c.l.b16 %v5832
        %v5953 = vunpack.c.l.b16 %v5833
        %v5954 = vunpack.c.l.b16 %v5834
        %v5955 = vunpack.c.l.b16 %v5835
        %v5956 = vunpack.c.l.b16 %v5836
        %v5957 = vunpack.c.l.b16 %v5837
        %v5958 = vunpack.c.l.b16 %v5838
        %v5959 = vunpack.c.l.b16 %v5839
        %v5960 = vunpack.c.l.b16 %v5840
        %v5961 = vunpack.c.l.b16 %v5841
        %v5962 = vunpack.c.l.b16 %v5842
        %v5963 = vunpack.c.l.b16 %v5843
        %v5964 = vunpack.c.l.b16 %v5844
        %v5965 = vunpack.c.l.b16 %v5845
        %v5966 = vunpack.c.l.b16 %v5846
        %v5967 = vunpack.c.l.b16 %v5847
        %v5968 = vpack.c.b16 %v5921, %v5920
        %v5969 = vpack.c.b16 %v5923, %v5922
        %v5970 = vpack.c.b16 %v5925, %v5924
        %v5971 = vpack.c.b16 %v5927, %v5926
        %v5972 = vpack.c.b16 %v5929, %v5928
        %v5973 = vpack.c.b16 %v5931, %v5930
        %v5974 = vpack.c.b16 %v5933, %v5932
        %v5975 = vpack.c.b16 %v5935, %v5934
        %v5976 = vpack.c.b16 %v5937, %v5936
        %v5977 = vpack.c.b16 %v5939, %v5938
        %v5978 = vpack.c.b16 %v5941, %v5940
        %v5979 = vpack.c.b16 %v5943, %v5942
        %v5980 = vpack.c.b16 %v5945, %v5944
        %v5981 = vpack.c.b16 %v5947, %v5946
        %v5982 = vpack.c.b16 %v5949, %v5948
        %v5983 = vpack.c.b16 %v5951, %v5950
        %v5984 = vpack.c.b16 %v5953, %v5952
        %v5985 = vpack.c.b16 %v5955, %v5954
        %v5986 = vpack.c.b16 %v5957, %v5956
        %v5987 = vpack.c.b16 %v5959, %v5958
        %v5988 = vpack.c.b16 %v5961, %v5960
        %v5989 = vpack.c.b16 %v5963, %v5962
        %v5990 = vpack.c.b16 %v5965, %v5964
        %v5991 = vpack.c.b16 %v5967, %v5966
        %6016 = vmatprep.subr.bf16.mxu0 0
        %6017 = vmatpush1.bf16.msra.mxu0 %v5975
        %6018 = vmatprep.subr.bf16.mxu0 0
        %6019 = vmatpush1.bf16.msra.mxu0 %v5974
        %6020 = vmatprep.subr.bf16.mxu0 0
        %6021 = vmatpush1.bf16.msra.mxu0 %v5973
        %6022 = vmatprep.subr.bf16.mxu0 0
        %6023 = vmatpush1.bf16.msra.mxu0 %v5972
        %6024 = vmatprep.subr.bf16.mxu0 0
        %6025 = vmatpush1.bf16.msra.mxu0 %v5971
        %6026 = vmatprep.subr.bf16.mxu0 0
        %6027 = vmatpush1.bf16.msra.mxu0 %v5970
        %6028 = vmatprep.subr.bf16.mxu0 0
        %6029 = vmatpush1.bf16.msra.mxu0 %v5969
        %6030 = vmatprep.subr.bf16.mxu0 0
        %6031 = vmatpush1.bf16.msra.mxu0 %v5968
        %6032 = vmatprep.subr.bf16.mxu0 0
        %6033 = vmatpush2.bf16.msra.mxu0 %v5983
        %6034 = vmatprep.subr.bf16.mxu0 0
        %6035 = vmatpush2.bf16.msra.mxu0 %v5982
        %6036 = vmatprep.subr.bf16.mxu0 0
        %6037 = vmatpush2.bf16.msra.mxu0 %v5981
        %6038 = vmatprep.subr.bf16.mxu0 0
        %6039 = vmatpush2.bf16.msra.mxu0 %v5980
        %6040 = vmatprep.subr.bf16.mxu0 0
        %6041 = vmatpush2.bf16.msra.mxu0 %v5979
        %6042 = vmatprep.subr.bf16.mxu0 0
        %6043 = vmatpush2.bf16.msra.mxu0 %v5978
        %6044 = vmatprep.subr.bf16.mxu0 0
        %6045 = vmatpush2.bf16.msra.mxu0 %v5977
        %6046 = vmatprep.subr.bf16.mxu0 0
        %6047 = vmatpush2.bf16.msra.mxu0 %v5976
        %6048 = vmatprep.mubr.bf16.mxu0 %v5849
        %6049 = vmatmul.mubr.bf16.gmra.mxu0 %v5848
        %v6050 = vpop.f32.mrf.mxu0
        %v6051 = vadd.f32 0.0, %v6050
        %v6052 = vpop.f32.mrf.mxu0
        %v6053 = vpop.f32.mrf.mxu0
        %v6054 = vadd.f32 0.0, %v6053
        %v6055 = vpop.f32.mrf.mxu0
        %6056 = vmatprep.mubr.bf16.mxu0 %v5852
        %6057 = vmatmul.mubr.bf16.gmra.mxu0 %v5851
        %v6058 = vpop.f32.mrf.mxu0
        %v6059 = vadd.f32 0.0, %v6058
        %v6060 = vpop.f32.mrf.mxu0
        %v6061 = vpop.f32.mrf.mxu0
        %v6062 = vadd.f32 0.0, %v6061
        %v6063 = vpop.f32.mrf.mxu0
        %6064 = vmatprep.mubr.bf16.mxu0 %v5855
        %6065 = vmatmul.mubr.bf16.gmra.mxu0 %v5854
        %v6066 = vpop.f32.mrf.mxu0
        %v6067 = vadd.f32 0.0, %v6066
        %v6068 = vpop.f32.mrf.mxu0
        %v6069 = vpop.f32.mrf.mxu0
        %v6070 = vadd.f32 0.0, %v6069
        %v6071 = vpop.f32.mrf.mxu0
        %6072 = vmatprep.mubr.bf16.mxu0 %v5858
        %6073 = vmatmul.mubr.bf16.gmra.mxu0 %v5857
        %v6074 = vpop.f32.mrf.mxu0
        %v6075 = vadd.f32 0.0, %v6074
        %v6076 = vpop.f32.mrf.mxu0
        %v6077 = vpop.f32.mrf.mxu0
        %v6078 = vadd.f32 0.0, %v6077
        %v6079 = vpop.f32.mrf.mxu0
        %6080 = vdwg.mxu0
        %6081 = vmatprep.subr.bf16.mxu0 0
        %6082 = vmatpush1.bf16.msra.mxu0 %v5991
        %6083 = vmatprep.subr.bf16.mxu0 0
        %6084 = vmatpush1.bf16.msra.mxu0 %v5990
        %6085 = vmatprep.subr.bf16.mxu0 0
        %6086 = vmatpush1.bf16.msra.mxu0 %v5989
        %6087 = vmatprep.subr.bf16.mxu0 0
        %6088 = vmatpush1.bf16.msra.mxu0 %v5988
        %6089 = vmatprep.subr.bf16.mxu0 0
        %6090 = vmatpush1.bf16.msra.mxu0 %v5987
        %6091 = vmatprep.subr.bf16.mxu0 0
        %6092 = vmatpush1.bf16.msra.mxu0 %v5986
        %6093 = vmatprep.subr.bf16.mxu0 0
        %6094 = vmatpush1.bf16.msra.mxu0 %v5985
        %6095 = vmatprep.subr.bf16.mxu0 0
        %6096 = vmatpush1.bf16.msra.mxu0 %v5984
        %6097 = vmatprep.subr.bf16.mxu0 0
        %6098 = vmatpush2.bf16.msra.mxu0 0
        %6099 = vmatprep.subr.bf16.mxu0 0
        %6100 = vmatpush2.bf16.msra.mxu0 0
        %6101 = vmatprep.subr.bf16.mxu0 0
        %6102 = vmatpush2.bf16.msra.mxu0 0
        %6103 = vmatprep.subr.bf16.mxu0 0
        %6104 = vmatpush2.bf16.msra.mxu0 0
        %6105 = vmatprep.subr.bf16.mxu0 0
        %6106 = vmatpush2.bf16.msra.mxu0 0
        %6107 = vmatprep.subr.bf16.mxu0 0
        %6108 = vmatpush2.bf16.msra.mxu0 0
        %6109 = vmatprep.subr.bf16.mxu0 0
        %6110 = vmatpush2.bf16.msra.mxu0 0
        %6111 = vmatprep.subr.bf16.mxu0 0
        %6112 = vmatpush2.bf16.msra.mxu0 0
        %6113 = vmatprep.mubr.bf16.mxu0 0
        %6114 = vmatmul.mubr.bf16.gmra.mxu0 %v5850
        %v6115 = vpop.f32.mrf.mxu0
        %v6116 = vadd.f32 %v6051, %v6115
        %v6117 = vpop.f32.mrf.mxu0
        %v6118 = vpop.f32.mrf.mxu0
        %v6119 = vadd.f32 %v6054, %v6118
        %v6120 = vpop.f32.mrf.mxu0
        %6121 = vmatprep.mubr.bf16.mxu0 0
        %6122 = vmatmul.mubr.bf16.gmra.mxu0 %v5853
        %v6123 = vpop.f32.mrf.mxu0
        %v6124 = vadd.f32 %v6059, %v6123
        %v6125 = vpop.f32.mrf.mxu0
        %v6126 = vpop.f32.mrf.mxu0
        %v6127 = vadd.f32 %v6062, %v6126
        %v6128 = vpop.f32.mrf.mxu0
        %6129 = vmatprep.mubr.bf16.mxu0 0
        %6130 = vmatmul.mubr.bf16.gmra.mxu0 %v5856
        %v6131 = vpop.f32.mrf.mxu0
        %v6132 = vadd.f32 %v6067, %v6131
        %v6133 = vpop.f32.mrf.mxu0
        %v6134 = vpop.f32.mrf.mxu0
        %v6135 = vadd.f32 %v6070, %v6134
        %v6136 = vpop.f32.mrf.mxu0
        %6137 = vmatprep.mubr.bf16.mxu0 0
        %6138 = vmatmul.mubr.bf16.gmra.mxu0 %v5859
        %v6139 = vpop.f32.mrf.mxu0
        %v6140 = vadd.f32 %v6075, %v6139
        %v6141 = vpop.f32.mrf.mxu0
        %v6142 = vpop.f32.mrf.mxu0
        %v6143 = vadd.f32 %v6078, %v6142
        %v6144 = vpop.f32.mrf.mxu0
        %6145 = vdwg.mxu0
        %v6146 = vpack.c.b16 %v5634, %v5631
        %v6147 = vpack.c.b16 %v5635, %v5632
        %v6148 = vpack.c.b16 %v5636, %v5633
        %v6149 = vpack.c.b16 %v5640, %v5637
        %v6150 = vpack.c.b16 %v5641, %v5638
        %v6151 = vpack.c.b16 %v5642, %v5639
        %v6152 = vpack.c.b16 %v5646, %v5643
        %v6153 = vpack.c.b16 %v5647, %v5644
        %v6154 = vpack.c.b16 %v5648, %v5645
        %v6155 = vpack.c.b16 %v5652, %v5649
        %v6156 = vpack.c.b16 %v5653, %v5650
        %v6157 = vpack.c.b16 %v5654, %v5651
        %v6218 = vunpack.c.l.b16 %v5656
        %v6219 = vunpack.c.l.b16 %v5657
        %v6220 = vunpack.c.l.b16 %v5658
        %v6221 = vunpack.c.l.b16 %v5659
        %v6222 = vunpack.c.l.b16 %v5660
        %v6223 = vunpack.c.l.b16 %v5661
        %v6224 = vunpack.c.l.b16 %v5662
        %v6225 = vunpack.c.l.b16 %v5663
        %v6226 = vunpack.c.l.b16 %v5664
        %v6227 = vunpack.c.l.b16 %v5665
        %v6228 = vunpack.c.l.b16 %v5666
        %v6229 = vunpack.c.l.b16 %v5667
        %v6230 = vunpack.c.l.b16 %v5668
        %v6231 = vunpack.c.l.b16 %v5669
        %v6232 = vunpack.c.l.b16 %v5670
        %v6233 = vunpack.c.l.b16 %v5671
        %v6234 = vunpack.c.l.b16 %v5672
        %v6235 = vunpack.c.l.b16 %v5673
        %v6236 = vunpack.c.l.b16 %v5674
        %v6237 = vunpack.c.l.b16 %v5675
        %v6238 = vunpack.c.l.b16 %v5676
        %v6239 = vunpack.c.l.b16 %v5677
        %v6240 = vunpack.c.l.b16 %v5678
        %v6241 = vunpack.c.l.b16 %v5679
        %v6242 = vunpack.c.l.b16 %v5680
        %v6243 = vunpack.c.l.b16 %v5681
        %v6244 = vunpack.c.l.b16 %v5682
        %v6245 = vunpack.c.l.b16 %v5683
        %v6246 = vunpack.c.l.b16 %v5684
        %v6247 = vunpack.c.l.b16 %v5685
        %v6248 = vunpack.c.l.b16 %v5686
        %v6249 = vunpack.c.l.b16 %v5687
        %v6250 = vunpack.c.l.b16 %v5688
        %v6251 = vunpack.c.l.b16 %v5689
        %v6252 = vunpack.c.l.b16 %v5690
        %v6253 = vunpack.c.l.b16 %v5691
        %v6254 = vunpack.c.l.b16 %v5692
        %v6255 = vunpack.c.l.b16 %v5693
        %v6256 = vunpack.c.l.b16 %v5694
        %v6257 = vunpack.c.l.b16 %v5695
        %v6258 = vunpack.c.l.b16 %v5696
        %v6259 = vunpack.c.l.b16 %v5697
        %v6260 = vunpack.c.l.b16 %v5698
        %v6261 = vunpack.c.l.b16 %v5699
        %v6262 = vunpack.c.l.b16 %v5700
        %v6263 = vunpack.c.l.b16 %v5701
        %v6264 = vunpack.c.l.b16 %v5702
        %v6265 = vunpack.c.l.b16 %v5703
        %v6266 = vpack.c.b16 %v6219, %v6218
        %v6267 = vpack.c.b16 %v6221, %v6220
        %v6268 = vpack.c.b16 %v6223, %v6222
        %v6269 = vpack.c.b16 %v6225, %v6224
        %v6270 = vpack.c.b16 %v6227, %v6226
        %v6271 = vpack.c.b16 %v6229, %v6228
        %v6272 = vpack.c.b16 %v6231, %v6230
        %v6273 = vpack.c.b16 %v6233, %v6232
        %v6274 = vpack.c.b16 %v6235, %v6234
        %v6275 = vpack.c.b16 %v6237, %v6236
        %v6276 = vpack.c.b16 %v6239, %v6238
        %v6277 = vpack.c.b16 %v6241, %v6240
        %v6278 = vpack.c.b16 %v6243, %v6242
        %v6279 = vpack.c.b16 %v6245, %v6244
        %v6280 = vpack.c.b16 %v6247, %v6246
        %v6281 = vpack.c.b16 %v6249, %v6248
        %v6282 = vpack.c.b16 %v6251, %v6250
        %v6283 = vpack.c.b16 %v6253, %v6252
        %v6284 = vpack.c.b16 %v6255, %v6254
        %v6285 = vpack.c.b16 %v6257, %v6256
        %v6286 = vpack.c.b16 %v6259, %v6258
        %v6287 = vpack.c.b16 %v6261, %v6260
        %v6288 = vpack.c.b16 %v6263, %v6262
        %v6289 = vpack.c.b16 %v6265, %v6264
        %6314 = vmatprep.subr.bf16.mxu0 0
        %6315 = vmatpush1.bf16.msra.mxu0 %v6273
        %6316 = vmatprep.subr.bf16.mxu0 0
        %6317 = vmatpush1.bf16.msra.mxu0 %v6272
        %6318 = vmatprep.subr.bf16.mxu0 0
        %6319 = vmatpush1.bf16.msra.mxu0 %v6271
        %6320 = vmatprep.subr.bf16.mxu0 0
        %6321 = vmatpush1.bf16.msra.mxu0 %v6270
        %6322 = vmatprep.subr.bf16.mxu0 0
        %6323 = vmatpush1.bf16.msra.mxu0 %v6269
        %6324 = vmatprep.subr.bf16.mxu0 0
        %6325 = vmatpush1.bf16.msra.mxu0 %v6268
        %6326 = vmatprep.subr.bf16.mxu0 0
        %6327 = vmatpush1.bf16.msra.mxu0 %v6267
        %6328 = vmatprep.subr.bf16.mxu0 0
        %6329 = vmatpush1.bf16.msra.mxu0 %v6266
        %6330 = vmatprep.subr.bf16.mxu0 0
        %6331 = vmatpush2.bf16.msra.mxu0 %v6281
        %6332 = vmatprep.subr.bf16.mxu0 0
        %6333 = vmatpush2.bf16.msra.mxu0 %v6280
        %6334 = vmatprep.subr.bf16.mxu0 0
        %6335 = vmatpush2.bf16.msra.mxu0 %v6279
        %6336 = vmatprep.subr.bf16.mxu0 0
        %6337 = vmatpush2.bf16.msra.mxu0 %v6278
        %6338 = vmatprep.subr.bf16.mxu0 0
        %6339 = vmatpush2.bf16.msra.mxu0 %v6277
        %6340 = vmatprep.subr.bf16.mxu0 0
        %6341 = vmatpush2.bf16.msra.mxu0 %v6276
        %6342 = vmatprep.subr.bf16.mxu0 0
        %6343 = vmatpush2.bf16.msra.mxu0 %v6275
        %6344 = vmatprep.subr.bf16.mxu0 0
        %6345 = vmatpush2.bf16.msra.mxu0 %v6274
        %6346 = vmatprep.mubr.bf16.mxu0 %v6147
        %6347 = vmatmul.mubr.bf16.gmra.mxu0 %v6146
        %v6348 = vpop.f32.mrf.mxu0
        %v6349 = vadd.f32 %v6116, %v6348
        %v6350 = vpop.f32.mrf.mxu0
        %v6351 = vpop.f32.mrf.mxu0
        %v6352 = vadd.f32 %v6119, %v6351
        %v6353 = vpop.f32.mrf.mxu0
        %6354 = vmatprep.mubr.bf16.mxu0 %v6150
        %6355 = vmatmul.mubr.bf16.gmra.mxu0 %v6149
        %v6356 = vpop.f32.mrf.mxu0
        %v6357 = vadd.f32 %v6124, %v6356
        %v6358 = vpop.f32.mrf.mxu0
        %v6359 = vpop.f32.mrf.mxu0
        %v6360 = vadd.f32 %v6127, %v6359
        %v6361 = vpop.f32.mrf.mxu0
        %6362 = vmatprep.mubr.bf16.mxu0 %v6153
        %6363 = vmatmul.mubr.bf16.gmra.mxu0 %v6152
        %v6364 = vpop.f32.mrf.mxu0
        %v6365 = vadd.f32 %v6132, %v6364
        %v6366 = vpop.f32.mrf.mxu0
        %v6367 = vpop.f32.mrf.mxu0
        %v6368 = vadd.f32 %v6135, %v6367
        %v6369 = vpop.f32.mrf.mxu0
        %6370 = vmatprep.mubr.bf16.mxu0 %v6156
        %6371 = vmatmul.mubr.bf16.gmra.mxu0 %v6155
        %v6372 = vpop.f32.mrf.mxu0
        %v6373 = vadd.f32 %v6140, %v6372
        %v6374 = vpop.f32.mrf.mxu0
        %v6375 = vpop.f32.mrf.mxu0
        %v6376 = vadd.f32 %v6143, %v6375
        %v6377 = vpop.f32.mrf.mxu0
        %6378 = vdwg.mxu0
        %6379 = vmatprep.subr.bf16.mxu0 0
        %6380 = vmatpush1.bf16.msra.mxu0 %v6289
        %6381 = vmatprep.subr.bf16.mxu0 0
        %6382 = vmatpush1.bf16.msra.mxu0 %v6288
        %6383 = vmatprep.subr.bf16.mxu0 0
        %6384 = vmatpush1.bf16.msra.mxu0 %v6287
        %6385 = vmatprep.subr.bf16.mxu0 0
        %6386 = vmatpush1.bf16.msra.mxu0 %v6286
        %6387 = vmatprep.subr.bf16.mxu0 0
        %6388 = vmatpush1.bf16.msra.mxu0 %v6285
        %6389 = vmatprep.subr.bf16.mxu0 0
        %6390 = vmatpush1.bf16.msra.mxu0 %v6284
        %6391 = vmatprep.subr.bf16.mxu0 0
        %6392 = vmatpush1.bf16.msra.mxu0 %v6283
        %6393 = vmatprep.subr.bf16.mxu0 0
        %6394 = vmatpush1.bf16.msra.mxu0 %v6282
        %6395 = vmatprep.subr.bf16.mxu0 0
        %6396 = vmatpush2.bf16.msra.mxu0 0
        %6397 = vmatprep.subr.bf16.mxu0 0
        %6398 = vmatpush2.bf16.msra.mxu0 0
        %6399 = vmatprep.subr.bf16.mxu0 0
        %6400 = vmatpush2.bf16.msra.mxu0 0
        %6401 = vmatprep.subr.bf16.mxu0 0
        %6402 = vmatpush2.bf16.msra.mxu0 0
        %6403 = vmatprep.subr.bf16.mxu0 0
        %6404 = vmatpush2.bf16.msra.mxu0 0
        %6405 = vmatprep.subr.bf16.mxu0 0
        %6406 = vmatpush2.bf16.msra.mxu0 0
        %6407 = vmatprep.subr.bf16.mxu0 0
        %6408 = vmatpush2.bf16.msra.mxu0 0
        %6409 = vmatprep.subr.bf16.mxu0 0
        %6410 = vmatpush2.bf16.msra.mxu0 0
        %6411 = vmatprep.mubr.bf16.mxu0 0
        %6412 = vmatmul.mubr.bf16.gmra.mxu0 %v6148
        %v6413 = vpop.f32.mrf.mxu0
        %v6414 = vadd.f32 %v6349, %v6413
        %v6415 = vpop.f32.mrf.mxu0
        %v6416 = vpop.f32.mrf.mxu0
        %v6417 = vadd.f32 %v6352, %v6416
        %v6418 = vpop.f32.mrf.mxu0
        %6419 = vmatprep.mubr.bf16.mxu0 0
        %6420 = vmatmul.mubr.bf16.gmra.mxu0 %v6151
        %v6421 = vpop.f32.mrf.mxu0
        %v6422 = vadd.f32 %v6357, %v6421
        %v6423 = vpop.f32.mrf.mxu0
        %v6424 = vpop.f32.mrf.mxu0
        %v6425 = vadd.f32 %v6360, %v6424
        %v6426 = vpop.f32.mrf.mxu0
        %6427 = vmatprep.mubr.bf16.mxu0 0
        %6428 = vmatmul.mubr.bf16.gmra.mxu0 %v6154
        %v6429 = vpop.f32.mrf.mxu0
        %v6430 = vadd.f32 %v6365, %v6429
        %v6431 = vpop.f32.mrf.mxu0
        %v6432 = vpop.f32.mrf.mxu0
        %v6433 = vadd.f32 %v6368, %v6432
        %v6434 = vpop.f32.mrf.mxu0
        %6435 = vmatprep.mubr.bf16.mxu0 0
        %6436 = vmatmul.mubr.bf16.gmra.mxu0 %v6157
        %v6437 = vpop.f32.mrf.mxu0
        %v6438 = vadd.f32 %v6373, %v6437
        %v6439 = vpop.f32.mrf.mxu0
        %v6440 = vpop.f32.mrf.mxu0
        %v6441 = vadd.f32 %v6376, %v6440
        %v6442 = vpop.f32.mrf.mxu0
        %6443 = vdwg.mxu0
        %v6444 = vld [vmem:[%s2298] sm:$0xff]
        %v6445 = vld [vmem:[%s2298 + $0x10] sm:$0xff]
        %v6446 = vld [vmem:[%s2298 + $0x20] sm:$0xff]
        %v6447 = vld [vmem:[%s2298 + $0x30] sm:$0xff]
        %v6448 = vld [vmem:[%s2298 + $0x40] sm:$0xff]
        %v6449 = vld [vmem:[%s2298 + $0x50] sm:$0xff]
        %v6450 = vld [vmem:[%s2298 + $0x60] sm:$0xff]
        %v6451 = vld [vmem:[%s2298 + $0x70] sm:$0xff]
        %v6452 = vpack.c.bf16 %v6444, %v6444
        %v6453 = vpack.c.bf16 %v6445, %v6445
        %v6454 = vpack.c.bf16 %v6446, %v6446
        %v6455 = vpack.c.bf16 %v6447, %v6447
        %v6456 = vpack.c.bf16 %v6448, %v6448
        %v6457 = vpack.c.bf16 %v6449, %v6449
        %v6458 = vpack.c.bf16 %v6450, %v6450
        %v6459 = vpack.c.bf16 %v6451, %v6451
        %v6460 = vld [vmem:[%s2298 + $0x1] sm:$0xff]
        %v6461 = vld [vmem:[%s2298 + $0x11] sm:$0xff]
        %v6462 = vld [vmem:[%s2298 + $0x21] sm:$0xff]
        %v6463 = vld [vmem:[%s2298 + $0x31] sm:$0xff]
        %v6464 = vld [vmem:[%s2298 + $0x41] sm:$0xff]
        %v6465 = vld [vmem:[%s2298 + $0x51] sm:$0xff]
        %v6466 = vld [vmem:[%s2298 + $0x61] sm:$0xff]
        %v6467 = vld [vmem:[%s2298 + $0x71] sm:$0xff]
        %v6468 = vpack.c.bf16 %v6460, %v6460
        %v6469 = vpack.c.bf16 %v6461, %v6461
        %v6470 = vpack.c.bf16 %v6462, %v6462
        %v6471 = vpack.c.bf16 %v6463, %v6463
        %v6472 = vpack.c.bf16 %v6464, %v6464
        %v6473 = vpack.c.bf16 %v6465, %v6465
        %v6474 = vpack.c.bf16 %v6466, %v6466
        %v6475 = vpack.c.bf16 %v6467, %v6467
        %v6476 = vld [vmem:[%s2298 + $0x2] sm:$0xff]
        %v6477 = vld [vmem:[%s2298 + $0x12] sm:$0xff]
        %v6478 = vld [vmem:[%s2298 + $0x22] sm:$0xff]
        %v6479 = vld [vmem:[%s2298 + $0x32] sm:$0xff]
        %v6480 = vld [vmem:[%s2298 + $0x42] sm:$0xff]
        %v6481 = vld [vmem:[%s2298 + $0x52] sm:$0xff]
        %v6482 = vld [vmem:[%s2298 + $0x62] sm:$0xff]
        %v6483 = vld [vmem:[%s2298 + $0x72] sm:$0xff]
        %v6484 = vpack.c.bf16 %v6476, %v6476
        %v6485 = vpack.c.bf16 %v6477, %v6477
        %v6486 = vpack.c.bf16 %v6478, %v6478
        %v6487 = vpack.c.bf16 %v6479, %v6479
        %v6488 = vpack.c.bf16 %v6480, %v6480
        %v6489 = vpack.c.bf16 %v6481, %v6481
        %v6490 = vpack.c.bf16 %v6482, %v6482
        %v6491 = vpack.c.bf16 %v6483, %v6483
        %v6516 = vunpack.c.l.b16 %v6452
        %v6517 = vunpack.c.l.b16 %v6468
        %v6518 = vunpack.c.l.b16 %v6484
        %v6519 = vunpack.c.l.b16 %v6453
        %v6520 = vunpack.c.l.b16 %v6469
        %v6521 = vunpack.c.l.b16 %v6485
        %v6522 = vunpack.c.l.b16 %v6454
        %v6523 = vunpack.c.l.b16 %v6470
        %v6524 = vunpack.c.l.b16 %v6486
        %v6525 = vunpack.c.l.b16 %v6455
        %v6526 = vunpack.c.l.b16 %v6471
        %v6527 = vunpack.c.l.b16 %v6487
        %v6528 = vunpack.c.l.b16 %v6456
        %v6529 = vunpack.c.l.b16 %v6472
        %v6530 = vunpack.c.l.b16 %v6488
        %v6531 = vunpack.c.l.b16 %v6457
        %v6532 = vunpack.c.l.b16 %v6473
        %v6533 = vunpack.c.l.b16 %v6489
        %v6534 = vunpack.c.l.b16 %v6458
        %v6535 = vunpack.c.l.b16 %v6474
        %v6536 = vunpack.c.l.b16 %v6490
        %v6537 = vunpack.c.l.b16 %v6459
        %v6538 = vunpack.c.l.b16 %v6475
        %v6539 = vunpack.c.l.b16 %v6491
        %v6540 = vld [vmem:[%s5655 + $0x180] sm:$0xf]
        %v6541 = vld [vmem:[%s5655 + $0x184] sm:$0xf]
        %v6542 = vld [vmem:[%s5655 + $0x188] sm:$0xf]
        %v6543 = vld [vmem:[%s5655 + $0x18c] sm:$0xf]
        %v6544 = vld [vmem:[%s5655 + $0x190] sm:$0xf]
        %v6545 = vld [vmem:[%s5655 + $0x194] sm:$0xf]
        %v6546 = vld [vmem:[%s5655 + $0x198] sm:$0xf]
        %v6547 = vld [vmem:[%s5655 + $0x19c] sm:$0xf]
        %v6548 = vld [vmem:[%s5655 + $0x1a0] sm:$0xf]
        %v6549 = vld [vmem:[%s5655 + $0x1a4] sm:$0xf]
        %v6550 = vld [vmem:[%s5655 + $0x1a8] sm:$0xf]
        %v6551 = vld [vmem:[%s5655 + $0x1ac] sm:$0xf]
        %v6552 = vld [vmem:[%s5655 + $0x1b0] sm:$0xf]
        %v6553 = vld [vmem:[%s5655 + $0x1b4] sm:$0xf]
        %v6554 = vld [vmem:[%s5655 + $0x1b8] sm:$0xf]
        %v6555 = vld [vmem:[%s5655 + $0x1bc] sm:$0xf]
        %v6556 = vld [vmem:[%s5655 + $0x1c0] sm:$0xf]
        %v6557 = vld [vmem:[%s5655 + $0x1c4] sm:$0xf]
        %v6558 = vld [vmem:[%s5655 + $0x1c8] sm:$0xf]
        %v6559 = vld [vmem:[%s5655 + $0x1cc] sm:$0xf]
        %v6560 = vld [vmem:[%s5655 + $0x1d0] sm:$0xf]
        %v6561 = vld [vmem:[%s5655 + $0x1d4] sm:$0xf]
        %v6562 = vld [vmem:[%s5655 + $0x1d8] sm:$0xf]
        %v6563 = vld [vmem:[%s5655 + $0x1dc] sm:$0xf]
        %v6564 = vld [vmem:[%s5655 + $0x1e0] sm:$0xf]
        %v6565 = vld [vmem:[%s5655 + $0x1e4] sm:$0xf]
        %v6566 = vld [vmem:[%s5655 + $0x1e8] sm:$0xf]
        %v6567 = vld [vmem:[%s5655 + $0x1ec] sm:$0xf]
        %v6568 = vld [vmem:[%s5655 + $0x1f0] sm:$0xf]
        %v6569 = vld [vmem:[%s5655 + $0x1f4] sm:$0xf]
        %v6570 = vld [vmem:[%s5655 + $0x1f8] sm:$0xf]
        %v6571 = vld [vmem:[%s5655 + $0x1fc] sm:$0xf]
        %v6572 = vld [vmem:[%s5655 + $0x200] sm:$0xf]
        %v6573 = vld [vmem:[%s5655 + $0x204] sm:$0xf]
        %v6574 = vld [vmem:[%s5655 + $0x208] sm:$0xf]
        %v6575 = vld [vmem:[%s5655 + $0x20c] sm:$0xf]
        %v6576 = vld [vmem:[%s5655 + $0x210] sm:$0xf]
        %v6577 = vld [vmem:[%s5655 + $0x214] sm:$0xf]
        %v6578 = vld [vmem:[%s5655 + $0x218] sm:$0xf]
        %v6579 = vld [vmem:[%s5655 + $0x21c] sm:$0xf]
        %v6580 = vld [vmem:[%s5655 + $0x220] sm:$0xf]
        %v6581 = vld [vmem:[%s5655 + $0x224] sm:$0xf]
        %v6582 = vld [vmem:[%s5655 + $0x228] sm:$0xf]
        %v6583 = vld [vmem:[%s5655 + $0x22c] sm:$0xf]
        %v6584 = vld [vmem:[%s5655 + $0x230] sm:$0xf]
        %v6585 = vld [vmem:[%s5655 + $0x234] sm:$0xf]
        %v6586 = vld [vmem:[%s5655 + $0x238] sm:$0xf]
        %v6587 = vld [vmem:[%s5655 + $0x23c] sm:$0xf]
        %v6588 = vpack.c.b16 %v6519, %v6516
        %v6589 = vpack.c.b16 %v6520, %v6517
        %v6590 = vpack.c.b16 %v6521, %v6518
        %v6591 = vpack.c.b16 %v6525, %v6522
        %v6592 = vpack.c.b16 %v6526, %v6523
        %v6593 = vpack.c.b16 %v6527, %v6524
        %v6594 = vpack.c.b16 %v6531, %v6528
        %v6595 = vpack.c.b16 %v6532, %v6529
        %v6596 = vpack.c.b16 %v6533, %v6530
        %v6597 = vpack.c.b16 %v6537, %v6534
        %v6598 = vpack.c.b16 %v6538, %v6535
        %v6599 = vpack.c.b16 %v6539, %v6536
        %v6660 = vunpack.c.l.b16 %v6540
        %v6661 = vunpack.c.l.b16 %v6541
        %v6662 = vunpack.c.l.b16 %v6542
        %v6663 = vunpack.c.l.b16 %v6543
        %v6664 = vunpack.c.l.b16 %v6544
        %v6665 = vunpack.c.l.b16 %v6545
        %v6666 = vunpack.c.l.b16 %v6546
        %v6667 = vunpack.c.l.b16 %v6547
        %v6668 = vunpack.c.l.b16 %v6548
        %v6669 = vunpack.c.l.b16 %v6549
        %v6670 = vunpack.c.l.b16 %v6550
        %v6671 = vunpack.c.l.b16 %v6551
        %v6672 = vunpack.c.l.b16 %v6552
        %v6673 = vunpack.c.l.b16 %v6553
        %v6674 = vunpack.c.l.b16 %v6554
        %v6675 = vunpack.c.l.b16 %v6555
        %v6676 = vunpack.c.l.b16 %v6556
        %v6677 = vunpack.c.l.b16 %v6557
        %v6678 = vunpack.c.l.b16 %v6558
        %v6679 = vunpack.c.l.b16 %v6559
        %v6680 = vunpack.c.l.b16 %v6560
        %v6681 = vunpack.c.l.b16 %v6561
        %v6682 = vunpack.c.l.b16 %v6562
        %v6683 = vunpack.c.l.b16 %v6563
        %v6684 = vunpack.c.l.b16 %v6564
        %v6685 = vunpack.c.l.b16 %v6565
        %v6686 = vunpack.c.l.b16 %v6566
        %v6687 = vunpack.c.l.b16 %v6567
        %v6688 = vunpack.c.l.b16 %v6568
        %v6689 = vunpack.c.l.b16 %v6569
        %v6690 = vunpack.c.l.b16 %v6570
        %v6691 = vunpack.c.l.b16 %v6571
        %v6692 = vunpack.c.l.b16 %v6572
        %v6693 = vunpack.c.l.b16 %v6573
        %v6694 = vunpack.c.l.b16 %v6574
        %v6695 = vunpack.c.l.b16 %v6575
        %v6696 = vunpack.c.l.b16 %v6576
        %v6697 = vunpack.c.l.b16 %v6577
        %v6698 = vunpack.c.l.b16 %v6578
        %v6699 = vunpack.c.l.b16 %v6579
        %v6700 = vunpack.c.l.b16 %v6580
        %v6701 = vunpack.c.l.b16 %v6581
        %v6702 = vunpack.c.l.b16 %v6582
        %v6703 = vunpack.c.l.b16 %v6583
        %v6704 = vunpack.c.l.b16 %v6584
        %v6705 = vunpack.c.l.b16 %v6585
        %v6706 = vunpack.c.l.b16 %v6586
        %v6707 = vunpack.c.l.b16 %v6587
        %v6708 = vpack.c.b16 %v6661, %v6660
        %v6709 = vpack.c.b16 %v6663, %v6662
        %v6710 = vpack.c.b16 %v6665, %v6664
        %v6711 = vpack.c.b16 %v6667, %v6666
        %v6712 = vpack.c.b16 %v6669, %v6668
        %v6713 = vpack.c.b16 %v6671, %v6670
        %v6714 = vpack.c.b16 %v6673, %v6672
        %v6715 = vpack.c.b16 %v6675, %v6674
        %v6716 = vpack.c.b16 %v6677, %v6676
        %v6717 = vpack.c.b16 %v6679, %v6678
        %v6718 = vpack.c.b16 %v6681, %v6680
        %v6719 = vpack.c.b16 %v6683, %v6682
        %v6720 = vpack.c.b16 %v6685, %v6684
        %v6721 = vpack.c.b16 %v6687, %v6686
        %v6722 = vpack.c.b16 %v6689, %v6688
        %v6723 = vpack.c.b16 %v6691, %v6690
        %v6724 = vpack.c.b16 %v6693, %v6692
        %v6725 = vpack.c.b16 %v6695, %v6694
        %v6726 = vpack.c.b16 %v6697, %v6696
        %v6727 = vpack.c.b16 %v6699, %v6698
        %v6728 = vpack.c.b16 %v6701, %v6700
        %v6729 = vpack.c.b16 %v6703, %v6702
        %v6730 = vpack.c.b16 %v6705, %v6704
        %v6731 = vpack.c.b16 %v6707, %v6706
        %6756 = vmatprep.subr.bf16.mxu0 0
        %6757 = vmatpush1.bf16.msra.mxu0 %v6715
        %6758 = vmatprep.subr.bf16.mxu0 0
        %6759 = vmatpush1.bf16.msra.mxu0 %v6714
        %6760 = vmatprep.subr.bf16.mxu0 0
        %6761 = vmatpush1.bf16.msra.mxu0 %v6713
        %6762 = vmatprep.subr.bf16.mxu0 0
        %6763 = vmatpush1.bf16.msra.mxu0 %v6712
        %6764 = vmatprep.subr.bf16.mxu0 0
        %6765 = vmatpush1.bf16.msra.mxu0 %v6711
        %6766 = vmatprep.subr.bf16.mxu0 0
        %6767 = vmatpush1.bf16.msra.mxu0 %v6710
        %6768 = vmatprep.subr.bf16.mxu0 0
        %6769 = vmatpush1.bf16.msra.mxu0 %v6709
        %6770 = vmatprep.subr.bf16.mxu0 0
        %6771 = vmatpush1.bf16.msra.mxu0 %v6708
        %6772 = vmatprep.subr.bf16.mxu0 0
        %6773 = vmatpush2.bf16.msra.mxu0 %v6723
        %6774 = vmatprep.subr.bf16.mxu0 0
        %6775 = vmatpush2.bf16.msra.mxu0 %v6722
        %6776 = vmatprep.subr.bf16.mxu0 0
        %6777 = vmatpush2.bf16.msra.mxu0 %v6721
        %6778 = vmatprep.subr.bf16.mxu0 0
        %6779 = vmatpush2.bf16.msra.mxu0 %v6720
        %6780 = vmatprep.subr.bf16.mxu0 0
        %6781 = vmatpush2.bf16.msra.mxu0 %v6719
        %6782 = vmatprep.subr.bf16.mxu0 0
        %6783 = vmatpush2.bf16.msra.mxu0 %v6718
        %6784 = vmatprep.subr.bf16.mxu0 0
        %6785 = vmatpush2.bf16.msra.mxu0 %v6717
        %6786 = vmatprep.subr.bf16.mxu0 0
        %6787 = vmatpush2.bf16.msra.mxu0 %v6716
        %6788 = vmatprep.mubr.bf16.mxu0 %v6589
        %6789 = vmatmul.mubr.bf16.gmra.mxu0 %v6588
        %v6790 = vpop.f32.mrf.mxu0
        %v6791 = vadd.f32 0.0, %v6790
        %v6792 = vpop.f32.mrf.mxu0
        %v6793 = vpop.f32.mrf.mxu0
        %v6794 = vadd.f32 0.0, %v6793
        %v6795 = vpop.f32.mrf.mxu0
        %6796 = vmatprep.mubr.bf16.mxu0 %v6592
        %6797 = vmatmul.mubr.bf16.gmra.mxu0 %v6591
        %v6798 = vpop.f32.mrf.mxu0
        %v6799 = vadd.f32 0.0, %v6798
        %v6800 = vpop.f32.mrf.mxu0
        %v6801 = vpop.f32.mrf.mxu0
        %v6802 = vadd.f32 0.0, %v6801
        %v6803 = vpop.f32.mrf.mxu0
        %6804 = vmatprep.mubr.bf16.mxu0 %v6595
        %6805 = vmatmul.mubr.bf16.gmra.mxu0 %v6594
        %v6806 = vpop.f32.mrf.mxu0
        %v6807 = vadd.f32 0.0, %v6806
        %v6808 = vpop.f32.mrf.mxu0
        %v6809 = vpop.f32.mrf.mxu0
        %v6810 = vadd.f32 0.0, %v6809
        %v6811 = vpop.f32.mrf.mxu0
        %6812 = vmatprep.mubr.bf16.mxu0 %v6598
        %6813 = vmatmul.mubr.bf16.gmra.mxu0 %v6597
        %v6814 = vpop.f32.mrf.mxu0
        %v6815 = vadd.f32 0.0, %v6814
        %v6816 = vpop.f32.mrf.mxu0
        %v6817 = vpop.f32.mrf.mxu0
        %v6818 = vadd.f32 0.0, %v6817
        %v6819 = vpop.f32.mrf.mxu0
        %6820 = vdwg.mxu0
        %6821 = vmatprep.subr.bf16.mxu0 0
        %6822 = vmatpush1.bf16.msra.mxu0 %v6731
        %6823 = vmatprep.subr.bf16.mxu0 0
        %6824 = vmatpush1.bf16.msra.mxu0 %v6730
        %6825 = vmatprep.subr.bf16.mxu0 0
        %6826 = vmatpush1.bf16.msra.mxu0 %v6729
        %6827 = vmatprep.subr.bf16.mxu0 0
        %6828 = vmatpush1.bf16.msra.mxu0 %v6728
        %6829 = vmatprep.subr.bf16.mxu0 0
        %6830 = vmatpush1.bf16.msra.mxu0 %v6727
        %6831 = vmatprep.subr.bf16.mxu0 0
        %6832 = vmatpush1.bf16.msra.mxu0 %v6726
        %6833 = vmatprep.subr.bf16.mxu0 0
        %6834 = vmatpush1.bf16.msra.mxu0 %v6725
        %6835 = vmatprep.subr.bf16.mxu0 0
        %6836 = vmatpush1.bf16.msra.mxu0 %v6724
        %6837 = vmatprep.subr.bf16.mxu0 0
        %6838 = vmatpush2.bf16.msra.mxu0 0
        %6839 = vmatprep.subr.bf16.mxu0 0
        %6840 = vmatpush2.bf16.msra.mxu0 0
        %6841 = vmatprep.subr.bf16.mxu0 0
        %6842 = vmatpush2.bf16.msra.mxu0 0
        %6843 = vmatprep.subr.bf16.mxu0 0
        %6844 = vmatpush2.bf16.msra.mxu0 0
        %6845 = vmatprep.subr.bf16.mxu0 0
        %6846 = vmatpush2.bf16.msra.mxu0 0
        %6847 = vmatprep.subr.bf16.mxu0 0
        %6848 = vmatpush2.bf16.msra.mxu0 0
        %6849 = vmatprep.subr.bf16.mxu0 0
        %6850 = vmatpush2.bf16.msra.mxu0 0
        %6851 = vmatprep.subr.bf16.mxu0 0
        %6852 = vmatpush2.bf16.msra.mxu0 0
        %6853 = vmatprep.mubr.bf16.mxu0 0
        %6854 = vmatmul.mubr.bf16.gmra.mxu0 %v6590
        %v6855 = vpop.f32.mrf.mxu0
        %v6856 = vadd.f32 %v6791, %v6855
        %v6857 = vpop.f32.mrf.mxu0
        %v6858 = vpop.f32.mrf.mxu0
        %v6859 = vadd.f32 %v6794, %v6858
        %v6860 = vpop.f32.mrf.mxu0
        %6861 = vmatprep.mubr.bf16.mxu0 0
        %6862 = vmatmul.mubr.bf16.gmra.mxu0 %v6593
        %v6863 = vpop.f32.mrf.mxu0
        %v6864 = vadd.f32 %v6799, %v6863
        %v6865 = vpop.f32.mrf.mxu0
        %v6866 = vpop.f32.mrf.mxu0
        %v6867 = vadd.f32 %v6802, %v6866
        %v6868 = vpop.f32.mrf.mxu0
        %6869 = vmatprep.mubr.bf16.mxu0 0
        %6870 = vmatmul.mubr.bf16.gmra.mxu0 %v6596
        %v6871 = vpop.f32.mrf.mxu0
        %v6872 = vadd.f32 %v6807, %v6871
        %v6873 = vpop.f32.mrf.mxu0
        %v6874 = vpop.f32.mrf.mxu0
        %v6875 = vadd.f32 %v6810, %v6874
        %v6876 = vpop.f32.mrf.mxu0
        %6877 = vmatprep.mubr.bf16.mxu0 0
        %6878 = vmatmul.mubr.bf16.gmra.mxu0 %v6599
        %v6879 = vpop.f32.mrf.mxu0
        %v6880 = vadd.f32 %v6815, %v6879
        %v6881 = vpop.f32.mrf.mxu0
        %v6882 = vpop.f32.mrf.mxu0
        %v6883 = vadd.f32 %v6818, %v6882
        %v6884 = vpop.f32.mrf.mxu0
        %6885 = vdwg.mxu0
        %v6886 = vadd.f32 %v6414, %v6856
        %v6887 = vadd.f32 %v6417, %v6859
        %v6888 = vadd.f32 %v6422, %v6864
        %v6889 = vadd.f32 %v6425, %v6867
        %v6890 = vadd.f32 %v6430, %v6872
        %v6891 = vadd.f32 %v6433, %v6875
        %v6892 = vadd.f32 %v6438, %v6880
        %v6893 = vadd.f32 %v6441, %v6883
        %v6894 = vlaneseq
        %v6895 = vshrl.u32 %v6894, 7
        %v6896 = vsub.s32 0, %v6895
        %v6897 = vrot.slane %v5550, %v6896
        %v6898 = vmul.f32 %v6886, %v6897
        %v6899 = vmul.f32 %v6887, %v6897
        %v6900 = vmul.f32 %v6888, %v6897
        %v6901 = vmul.f32 %v6889, %v6897
        %v6902 = vmul.f32 %v6890, %v6897
        %v6903 = vmul.f32 %v6891, %v6897
        %v6904 = vmul.f32 %v6892, %v6897
        %v6905 = vmul.f32 %v6893, %v6897
        %v6906 = vlaneseq
        %v6907 = vshrl.u32 %v6906, 7
        %v6908 = vsub.s32 1, %v6907
        %v6909 = vrot.slane %v5550, %v6908
        %v6910 = vadd.f32 %v6898, %v6909
        %v6911 = vadd.f32 %v6899, %v6909
        %v6912 = vadd.f32 %v6900, %v6909
        %v6913 = vadd.f32 %v6901, %v6909
        %v6914 = vadd.f32 %v6902, %v6909
        %v6915 = vadd.f32 %v6903, %v6909
        %v6916 = vadd.f32 %v6904, %v6909
        %v6917 = vadd.f32 %v6905, %v6909
        %v6918 = vmax.f32 %v6910, 0.0
        %v6919 = vmax.f32 %v6911, 0.0
        %v6920 = vmax.f32 %v6912, 0.0
        %v6921 = vmax.f32 %v6913, 0.0
        %v6922 = vmax.f32 %v6914, 0.0
        %v6923 = vmax.f32 %v6915, 0.0
        %v6924 = vmax.f32 %v6916, 0.0
        %v6925 = vmax.f32 %v6917, 0.0
        %6926 = vst [vmem:[%s1405 + $0x1] sm:$0xff] %v6918
        %6927 = vst [vmem:[%s1405 + $0x11] sm:$0xff] %v6919
        %6928 = vst [vmem:[%s1405 + $0x21] sm:$0xff] %v6920
        %6929 = vst [vmem:[%s1405 + $0x31] sm:$0xff] %v6921
        %6930 = vst [vmem:[%s1405 + $0x41] sm:$0xff] %v6922
        %6931 = vst [vmem:[%s1405 + $0x51] sm:$0xff] %v6923
        %6932 = vst [vmem:[%s1405 + $0x61] sm:$0xff] %v6924
        %6933 = vst [vmem:[%s1405 + $0x71] sm:$0xff] %v6925
        %v6934 = vld [vmem:[#allocation2] sm:$0xff]
        %v6935 = vld [vmem:[#allocation2 + $0x10] sm:$0xff]
        %v6936 = vld [vmem:[#allocation2 + $0x20] sm:$0xff]
        %v6937 = vld [vmem:[#allocation2 + $0x30] sm:$0xff]
        %v6938 = vld [vmem:[#allocation2 + $0x40] sm:$0xff]
        %v6939 = vld [vmem:[#allocation2 + $0x50] sm:$0xff]
        %v6940 = vld [vmem:[#allocation2 + $0x60] sm:$0xff]
        %v6941 = vld [vmem:[#allocation2 + $0x70] sm:$0xff]
        %v6942 = vpack.c.bf16 %v6934, %v6934
        %v6943 = vpack.c.bf16 %v6935, %v6935
        %v6944 = vpack.c.bf16 %v6936, %v6936
        %v6945 = vpack.c.bf16 %v6937, %v6937
        %v6946 = vpack.c.bf16 %v6938, %v6938
        %v6947 = vpack.c.bf16 %v6939, %v6939
        %v6948 = vpack.c.bf16 %v6940, %v6940
        %v6949 = vpack.c.bf16 %v6941, %v6941
        %v6950 = vld [vmem:[#allocation2 + $0x1] sm:$0xff]
        %v6951 = vld [vmem:[#allocation2 + $0x11] sm:$0xff]
        %v6952 = vld [vmem:[#allocation2 + $0x21] sm:$0xff]
        %v6953 = vld [vmem:[#allocation2 + $0x31] sm:$0xff]
        %v6954 = vld [vmem:[#allocation2 + $0x41] sm:$0xff]
        %v6955 = vld [vmem:[#allocation2 + $0x51] sm:$0xff]
        %v6956 = vld [vmem:[#allocation2 + $0x61] sm:$0xff]
        %v6957 = vld [vmem:[#allocation2 + $0x71] sm:$0xff]
        %v6958 = vpack.c.bf16 %v6950, %v6950
        %v6959 = vpack.c.bf16 %v6951, %v6951
        %v6960 = vpack.c.bf16 %v6952, %v6952
        %v6961 = vpack.c.bf16 %v6953, %v6953
        %v6962 = vpack.c.bf16 %v6954, %v6954
        %v6963 = vpack.c.bf16 %v6955, %v6955
        %v6964 = vpack.c.bf16 %v6956, %v6956
        %v6965 = vpack.c.bf16 %v6957, %v6957
        %v6966 = vld [vmem:[#allocation2 + $0x2] sm:$0xff]
        %v6967 = vld [vmem:[#allocation2 + $0x12] sm:$0xff]
        %v6968 = vld [vmem:[#allocation2 + $0x22] sm:$0xff]
        %v6969 = vld [vmem:[#allocation2 + $0x32] sm:$0xff]
        %v6970 = vld [vmem:[#allocation2 + $0x42] sm:$0xff]
        %v6971 = vld [vmem:[#allocation2 + $0x52] sm:$0xff]
        %v6972 = vld [vmem:[#allocation2 + $0x62] sm:$0xff]
        %v6973 = vld [vmem:[#allocation2 + $0x72] sm:$0xff]
        %v6974 = vpack.c.bf16 %v6966, %v6966
        %v6975 = vpack.c.bf16 %v6967, %v6967
        %v6976 = vpack.c.bf16 %v6968, %v6968
        %v6977 = vpack.c.bf16 %v6969, %v6969
        %v6978 = vpack.c.bf16 %v6970, %v6970
        %v6979 = vpack.c.bf16 %v6971, %v6971
        %v6980 = vpack.c.bf16 %v6972, %v6972
        %v6981 = vpack.c.bf16 %v6973, %v6973
        %v7006 = vunpack.c.l.b16 %v6942
        %v7007 = vunpack.c.l.b16 %v6958
        %v7008 = vunpack.c.l.b16 %v6974
        %v7009 = vunpack.c.l.b16 %v6943
        %v7010 = vunpack.c.l.b16 %v6959
        %v7011 = vunpack.c.l.b16 %v6975
        %v7012 = vunpack.c.l.b16 %v6944
        %v7013 = vunpack.c.l.b16 %v6960
        %v7014 = vunpack.c.l.b16 %v6976
        %v7015 = vunpack.c.l.b16 %v6945
        %v7016 = vunpack.c.l.b16 %v6961
        %v7017 = vunpack.c.l.b16 %v6977
        %v7018 = vunpack.c.l.b16 %v6946
        %v7019 = vunpack.c.l.b16 %v6962
        %v7020 = vunpack.c.l.b16 %v6978
        %v7021 = vunpack.c.l.b16 %v6947
        %v7022 = vunpack.c.l.b16 %v6963
        %v7023 = vunpack.c.l.b16 %v6979
        %v7024 = vunpack.c.l.b16 %v6948
        %v7025 = vunpack.c.l.b16 %v6964
        %v7026 = vunpack.c.l.b16 %v6980
        %v7027 = vunpack.c.l.b16 %v6949
        %v7028 = vunpack.c.l.b16 %v6965
        %v7029 = vunpack.c.l.b16 %v6981
        %s7030 = scalar_lea.vmem [#allocation3], 1152
        %v7031 = vld [vmem:[%s7030] sm:$0xf]
        %v7032 = vld [vmem:[%s7030 + $0x4] sm:$0xf]
        %v7033 = vld [vmem:[%s7030 + $0x8] sm:$0xf]
        %v7034 = vld [vmem:[%s7030 + $0xc] sm:$0xf]
        %v7035 = vld [vmem:[%s7030 + $0x10] sm:$0xf]
        %v7036 = vld [vmem:[%s7030 + $0x14] sm:$0xf]
        %v7037 = vld [vmem:[%s7030 + $0x18] sm:$0xf]
        %v7038 = vld [vmem:[%s7030 + $0x1c] sm:$0xf]
        %v7039 = vld [vmem:[%s7030 + $0x20] sm:$0xf]
        %v7040 = vld [vmem:[%s7030 + $0x24] sm:$0xf]
        %v7041 = vld [vmem:[%s7030 + $0x28] sm:$0xf]
        %v7042 = vld [vmem:[%s7030 + $0x2c] sm:$0xf]
        %v7043 = vld [vmem:[%s7030 + $0x30] sm:$0xf]
        %v7044 = vld [vmem:[%s7030 + $0x34] sm:$0xf]
        %v7045 = vld [vmem:[%s7030 + $0x38] sm:$0xf]
        %v7046 = vld [vmem:[%s7030 + $0x3c] sm:$0xf]
        %v7047 = vld [vmem:[%s7030 + $0x40] sm:$0xf]
        %v7048 = vld [vmem:[%s7030 + $0x44] sm:$0xf]
        %v7049 = vld [vmem:[%s7030 + $0x48] sm:$0xf]
        %v7050 = vld [vmem:[%s7030 + $0x4c] sm:$0xf]
        %v7051 = vld [vmem:[%s7030 + $0x50] sm:$0xf]
        %v7052 = vld [vmem:[%s7030 + $0x54] sm:$0xf]
        %v7053 = vld [vmem:[%s7030 + $0x58] sm:$0xf]
        %v7054 = vld [vmem:[%s7030 + $0x5c] sm:$0xf]
        %v7055 = vld [vmem:[%s7030 + $0x60] sm:$0xf]
        %v7056 = vld [vmem:[%s7030 + $0x64] sm:$0xf]
        %v7057 = vld [vmem:[%s7030 + $0x68] sm:$0xf]
        %v7058 = vld [vmem:[%s7030 + $0x6c] sm:$0xf]
        %v7059 = vld [vmem:[%s7030 + $0x70] sm:$0xf]
        %v7060 = vld [vmem:[%s7030 + $0x74] sm:$0xf]
        %v7061 = vld [vmem:[%s7030 + $0x78] sm:$0xf]
        %v7062 = vld [vmem:[%s7030 + $0x7c] sm:$0xf]
        %v7063 = vld [vmem:[%s7030 + $0x80] sm:$0xf]
        %v7064 = vld [vmem:[%s7030 + $0x84] sm:$0xf]
        %v7065 = vld [vmem:[%s7030 + $0x88] sm:$0xf]
        %v7066 = vld [vmem:[%s7030 + $0x8c] sm:$0xf]
        %v7067 = vld [vmem:[%s7030 + $0x90] sm:$0xf]
        %v7068 = vld [vmem:[%s7030 + $0x94] sm:$0xf]
        %v7069 = vld [vmem:[%s7030 + $0x98] sm:$0xf]
        %v7070 = vld [vmem:[%s7030 + $0x9c] sm:$0xf]
        %v7071 = vld [vmem:[%s7030 + $0xa0] sm:$0xf]
        %v7072 = vld [vmem:[%s7030 + $0xa4] sm:$0xf]
        %v7073 = vld [vmem:[%s7030 + $0xa8] sm:$0xf]
        %v7074 = vld [vmem:[%s7030 + $0xac] sm:$0xf]
        %v7075 = vld [vmem:[%s7030 + $0xb0] sm:$0xf]
        %v7076 = vld [vmem:[%s7030 + $0xb4] sm:$0xf]
        %v7077 = vld [vmem:[%s7030 + $0xb8] sm:$0xf]
        %v7078 = vld [vmem:[%s7030 + $0xbc] sm:$0xf]
        %v7079 = vld [vmem:[%s1405] sm:$0xff]
        %v7080 = vld [vmem:[%s1405 + $0x10] sm:$0xff]
        %v7081 = vld [vmem:[%s1405 + $0x20] sm:$0xff]
        %v7082 = vld [vmem:[%s1405 + $0x30] sm:$0xff]
        %v7083 = vld [vmem:[%s1405 + $0x40] sm:$0xff]
        %v7084 = vld [vmem:[%s1405 + $0x50] sm:$0xff]
        %v7085 = vld [vmem:[%s1405 + $0x60] sm:$0xff]
        %v7086 = vld [vmem:[%s1405 + $0x70] sm:$0xff]
        %v7087 = vpack.c.bf16 %v7079, %v7079
        %v7088 = vpack.c.bf16 %v7080, %v7080
        %v7089 = vpack.c.bf16 %v7081, %v7081
        %v7090 = vpack.c.bf16 %v7082, %v7082
        %v7091 = vpack.c.bf16 %v7083, %v7083
        %v7092 = vpack.c.bf16 %v7084, %v7084
        %v7093 = vpack.c.bf16 %v7085, %v7085
        %v7094 = vpack.c.bf16 %v7086, %v7086
        %v7095 = vld [vmem:[%s1405 + $0x1] sm:$0xff]
        %v7096 = vld [vmem:[%s1405 + $0x11] sm:$0xff]
        %v7097 = vld [vmem:[%s1405 + $0x21] sm:$0xff]
        %v7098 = vld [vmem:[%s1405 + $0x31] sm:$0xff]
        %v7099 = vld [vmem:[%s1405 + $0x41] sm:$0xff]
        %v7100 = vld [vmem:[%s1405 + $0x51] sm:$0xff]
        %v7101 = vld [vmem:[%s1405 + $0x61] sm:$0xff]
        %v7102 = vld [vmem:[%s1405 + $0x71] sm:$0xff]
        %v7103 = vpack.c.bf16 %v7095, %v7095
        %v7104 = vpack.c.bf16 %v7096, %v7096
        %v7105 = vpack.c.bf16 %v7097, %v7097
        %v7106 = vpack.c.bf16 %v7098, %v7098
        %v7107 = vpack.c.bf16 %v7099, %v7099
        %v7108 = vpack.c.bf16 %v7100, %v7100
        %v7109 = vpack.c.bf16 %v7101, %v7101
        %v7110 = vpack.c.bf16 %v7102, %v7102
        %v7111 = vld [vmem:[%s1405 + $0x2] sm:$0xff]
        %v7112 = vld [vmem:[%s1405 + $0x12] sm:$0xff]
        %v7113 = vld [vmem:[%s1405 + $0x22] sm:$0xff]
        %v7114 = vld [vmem:[%s1405 + $0x32] sm:$0xff]
        %v7115 = vld [vmem:[%s1405 + $0x42] sm:$0xff]
        %v7116 = vld [vmem:[%s1405 + $0x52] sm:$0xff]
        %v7117 = vld [vmem:[%s1405 + $0x62] sm:$0xff]
        %v7118 = vld [vmem:[%s1405 + $0x72] sm:$0xff]
        %v7119 = vpack.c.bf16 %v7111, %v7111
        %v7120 = vpack.c.bf16 %v7112, %v7112
        %v7121 = vpack.c.bf16 %v7113, %v7113
        %v7122 = vpack.c.bf16 %v7114, %v7114
        %v7123 = vpack.c.bf16 %v7115, %v7115
        %v7124 = vpack.c.bf16 %v7116, %v7116
        %v7125 = vpack.c.bf16 %v7117, %v7117
        %v7126 = vpack.c.bf16 %v7118, %v7118
        %v7151 = vunpack.c.l.b16 %v7087
        %v7152 = vunpack.c.l.b16 %v7103
        %v7153 = vunpack.c.l.b16 %v7119
        %v7154 = vunpack.c.l.b16 %v7088
        %v7155 = vunpack.c.l.b16 %v7104
        %v7156 = vunpack.c.l.b16 %v7120
        %v7157 = vunpack.c.l.b16 %v7089
        %v7158 = vunpack.c.l.b16 %v7105
        %v7159 = vunpack.c.l.b16 %v7121
        %v7160 = vunpack.c.l.b16 %v7090
        %v7161 = vunpack.c.l.b16 %v7106
        %v7162 = vunpack.c.l.b16 %v7122
        %v7163 = vunpack.c.l.b16 %v7091
        %v7164 = vunpack.c.l.b16 %v7107
        %v7165 = vunpack.c.l.b16 %v7123
        %v7166 = vunpack.c.l.b16 %v7092
        %v7167 = vunpack.c.l.b16 %v7108
        %v7168 = vunpack.c.l.b16 %v7124
        %v7169 = vunpack.c.l.b16 %v7093
        %v7170 = vunpack.c.l.b16 %v7109
        %v7171 = vunpack.c.l.b16 %v7125
        %v7172 = vunpack.c.l.b16 %v7094
        %v7173 = vunpack.c.l.b16 %v7110
        %v7174 = vunpack.c.l.b16 %v7126
        %v7175 = vld [vmem:[%s7030 + $0xc0] sm:$0xf]
        %v7176 = vld [vmem:[%s7030 + $0xc4] sm:$0xf]
        %v7177 = vld [vmem:[%s7030 + $0xc8] sm:$0xf]
        %v7178 = vld [vmem:[%s7030 + $0xcc] sm:$0xf]
        %v7179 = vld [vmem:[%s7030 + $0xd0] sm:$0xf]
        %v7180 = vld [vmem:[%s7030 + $0xd4] sm:$0xf]
        %v7181 = vld [vmem:[%s7030 + $0xd8] sm:$0xf]
        %v7182 = vld [vmem:[%s7030 + $0xdc] sm:$0xf]
        %v7183 = vld [vmem:[%s7030 + $0xe0] sm:$0xf]
        %v7184 = vld [vmem:[%s7030 + $0xe4] sm:$0xf]
        %v7185 = vld [vmem:[%s7030 + $0xe8] sm:$0xf]
        %v7186 = vld [vmem:[%s7030 + $0xec] sm:$0xf]
        %v7187 = vld [vmem:[%s7030 + $0xf0] sm:$0xf]
        %v7188 = vld [vmem:[%s7030 + $0xf4] sm:$0xf]
        %v7189 = vld [vmem:[%s7030 + $0xf8] sm:$0xf]
        %v7190 = vld [vmem:[%s7030 + $0xfc] sm:$0xf]
        %v7191 = vld [vmem:[%s7030 + $0x100] sm:$0xf]
        %v7192 = vld [vmem:[%s7030 + $0x104] sm:$0xf]
        %v7193 = vld [vmem:[%s7030 + $0x108] sm:$0xf]
        %v7194 = vld [vmem:[%s7030 + $0x10c] sm:$0xf]
        %v7195 = vld [vmem:[%s7030 + $0x110] sm:$0xf]
        %v7196 = vld [vmem:[%s7030 + $0x114] sm:$0xf]
        %v7197 = vld [vmem:[%s7030 + $0x118] sm:$0xf]
        %v7198 = vld [vmem:[%s7030 + $0x11c] sm:$0xf]
        %v7199 = vld [vmem:[%s7030 + $0x120] sm:$0xf]
        %v7200 = vld [vmem:[%s7030 + $0x124] sm:$0xf]
        %v7201 = vld [vmem:[%s7030 + $0x128] sm:$0xf]
        %v7202 = vld [vmem:[%s7030 + $0x12c] sm:$0xf]
        %v7203 = vld [vmem:[%s7030 + $0x130] sm:$0xf]
        %v7204 = vld [vmem:[%s7030 + $0x134] sm:$0xf]
        %v7205 = vld [vmem:[%s7030 + $0x138] sm:$0xf]
        %v7206 = vld [vmem:[%s7030 + $0x13c] sm:$0xf]
        %v7207 = vld [vmem:[%s7030 + $0x140] sm:$0xf]
        %v7208 = vld [vmem:[%s7030 + $0x144] sm:$0xf]
        %v7209 = vld [vmem:[%s7030 + $0x148] sm:$0xf]
        %v7210 = vld [vmem:[%s7030 + $0x14c] sm:$0xf]
        %v7211 = vld [vmem:[%s7030 + $0x150] sm:$0xf]
        %v7212 = vld [vmem:[%s7030 + $0x154] sm:$0xf]
        %v7213 = vld [vmem:[%s7030 + $0x158] sm:$0xf]
        %v7214 = vld [vmem:[%s7030 + $0x15c] sm:$0xf]
        %v7215 = vld [vmem:[%s7030 + $0x160] sm:$0xf]
        %v7216 = vld [vmem:[%s7030 + $0x164] sm:$0xf]
        %v7217 = vld [vmem:[%s7030 + $0x168] sm:$0xf]
        %v7218 = vld [vmem:[%s7030 + $0x16c] sm:$0xf]
        %v7219 = vld [vmem:[%s7030 + $0x170] sm:$0xf]
        %v7220 = vld [vmem:[%s7030 + $0x174] sm:$0xf]
        %v7221 = vld [vmem:[%s7030 + $0x178] sm:$0xf]
        %v7222 = vld [vmem:[%s7030 + $0x17c] sm:$0xf]
        %v7223 = vpack.c.b16 %v7154, %v7151
        %v7224 = vpack.c.b16 %v7155, %v7152
        %v7225 = vpack.c.b16 %v7156, %v7153
        %v7226 = vpack.c.b16 %v7160, %v7157
        %v7227 = vpack.c.b16 %v7161, %v7158
        %v7228 = vpack.c.b16 %v7162, %v7159
        %v7229 = vpack.c.b16 %v7166, %v7163
        %v7230 = vpack.c.b16 %v7167, %v7164
        %v7231 = vpack.c.b16 %v7168, %v7165
        %v7232 = vpack.c.b16 %v7172, %v7169
        %v7233 = vpack.c.b16 %v7173, %v7170
        %v7234 = vpack.c.b16 %v7174, %v7171
        %v7295 = vunpack.c.l.b16 %v7175
        %v7296 = vunpack.c.l.b16 %v7176
        %v7297 = vunpack.c.l.b16 %v7177
        %v7298 = vunpack.c.l.b16 %v7178
        %v7299 = vunpack.c.l.b16 %v7179
        %v7300 = vunpack.c.l.b16 %v7180
        %v7301 = vunpack.c.l.b16 %v7181
        %v7302 = vunpack.c.l.b16 %v7182
        %v7303 = vunpack.c.l.b16 %v7183
        %v7304 = vunpack.c.l.b16 %v7184
        %v7305 = vunpack.c.l.b16 %v7185
        %v7306 = vunpack.c.l.b16 %v7186
        %v7307 = vunpack.c.l.b16 %v7187
        %v7308 = vunpack.c.l.b16 %v7188
        %v7309 = vunpack.c.l.b16 %v7189
        %v7310 = vunpack.c.l.b16 %v7190
        %v7311 = vunpack.c.l.b16 %v7191
        %v7312 = vunpack.c.l.b16 %v7192
        %v7313 = vunpack.c.l.b16 %v7193
        %v7314 = vunpack.c.l.b16 %v7194
        %v7315 = vunpack.c.l.b16 %v7195
        %v7316 = vunpack.c.l.b16 %v7196
        %v7317 = vunpack.c.l.b16 %v7197
        %v7318 = vunpack.c.l.b16 %v7198
        %v7319 = vunpack.c.l.b16 %v7199
        %v7320 = vunpack.c.l.b16 %v7200
        %v7321 = vunpack.c.l.b16 %v7201
        %v7322 = vunpack.c.l.b16 %v7202
        %v7323 = vunpack.c.l.b16 %v7203
        %v7324 = vunpack.c.l.b16 %v7204
        %v7325 = vunpack.c.l.b16 %v7205
        %v7326 = vunpack.c.l.b16 %v7206
        %v7327 = vunpack.c.l.b16 %v7207
        %v7328 = vunpack.c.l.b16 %v7208
        %v7329 = vunpack.c.l.b16 %v7209
        %v7330 = vunpack.c.l.b16 %v7210
        %v7331 = vunpack.c.l.b16 %v7211
        %v7332 = vunpack.c.l.b16 %v7212
        %v7333 = vunpack.c.l.b16 %v7213
        %v7334 = vunpack.c.l.b16 %v7214
        %v7335 = vunpack.c.l.b16 %v7215
        %v7336 = vunpack.c.l.b16 %v7216
        %v7337 = vunpack.c.l.b16 %v7217
        %v7338 = vunpack.c.l.b16 %v7218
        %v7339 = vunpack.c.l.b16 %v7219
        %v7340 = vunpack.c.l.b16 %v7220
        %v7341 = vunpack.c.l.b16 %v7221
        %v7342 = vunpack.c.l.b16 %v7222
        %v7343 = vpack.c.b16 %v7296, %v7295
        %v7344 = vpack.c.b16 %v7298, %v7297
        %v7345 = vpack.c.b16 %v7300, %v7299
        %v7346 = vpack.c.b16 %v7302, %v7301
        %v7347 = vpack.c.b16 %v7304, %v7303
        %v7348 = vpack.c.b16 %v7306, %v7305
        %v7349 = vpack.c.b16 %v7308, %v7307
        %v7350 = vpack.c.b16 %v7310, %v7309
        %v7351 = vpack.c.b16 %v7312, %v7311
        %v7352 = vpack.c.b16 %v7314, %v7313
        %v7353 = vpack.c.b16 %v7316, %v7315
        %v7354 = vpack.c.b16 %v7318, %v7317
        %v7355 = vpack.c.b16 %v7320, %v7319
        %v7356 = vpack.c.b16 %v7322, %v7321
        %v7357 = vpack.c.b16 %v7324, %v7323
        %v7358 = vpack.c.b16 %v7326, %v7325
        %v7359 = vpack.c.b16 %v7328, %v7327
        %v7360 = vpack.c.b16 %v7330, %v7329
        %v7361 = vpack.c.b16 %v7332, %v7331
        %v7362 = vpack.c.b16 %v7334, %v7333
        %v7363 = vpack.c.b16 %v7336, %v7335
        %v7364 = vpack.c.b16 %v7338, %v7337
        %v7365 = vpack.c.b16 %v7340, %v7339
        %v7366 = vpack.c.b16 %v7342, %v7341
        %7391 = vmatprep.subr.bf16.mxu0 0
        %7392 = vmatpush1.bf16.msra.mxu0 %v7350
        %7393 = vmatprep.subr.bf16.mxu0 0
        %7394 = vmatpush1.bf16.msra.mxu0 %v7349
        %7395 = vmatprep.subr.bf16.mxu0 0
        %7396 = vmatpush1.bf16.msra.mxu0 %v7348
        %7397 = vmatprep.subr.bf16.mxu0 0
        %7398 = vmatpush1.bf16.msra.mxu0 %v7347
        %7399 = vmatprep.subr.bf16.mxu0 0
        %7400 = vmatpush1.bf16.msra.mxu0 %v7346
        %7401 = vmatprep.subr.bf16.mxu0 0
        %7402 = vmatpush1.bf16.msra.mxu0 %v7345
        %7403 = vmatprep.subr.bf16.mxu0 0
        %7404 = vmatpush1.bf16.msra.mxu0 %v7344
        %7405 = vmatprep.subr.bf16.mxu0 0
        %7406 = vmatpush1.bf16.msra.mxu0 %v7343
        %7407 = vmatprep.subr.bf16.mxu0 0
        %7408 = vmatpush2.bf16.msra.mxu0 %v7358
        %7409 = vmatprep.subr.bf16.mxu0 0
        %7410 = vmatpush2.bf16.msra.mxu0 %v7357
        %7411 = vmatprep.subr.bf16.mxu0 0
        %7412 = vmatpush2.bf16.msra.mxu0 %v7356
        %7413 = vmatprep.subr.bf16.mxu0 0
        %7414 = vmatpush2.bf16.msra.mxu0 %v7355
        %7415 = vmatprep.subr.bf16.mxu0 0
        %7416 = vmatpush2.bf16.msra.mxu0 %v7354
        %7417 = vmatprep.subr.bf16.mxu0 0
        %7418 = vmatpush2.bf16.msra.mxu0 %v7353
        %7419 = vmatprep.subr.bf16.mxu0 0
        %7420 = vmatpush2.bf16.msra.mxu0 %v7352
        %7421 = vmatprep.subr.bf16.mxu0 0
        %7422 = vmatpush2.bf16.msra.mxu0 %v7351
        %7423 = vmatprep.mubr.bf16.mxu0 %v7224
        %7424 = vmatmul.mubr.bf16.gmra.mxu0 %v7223
        %v7425 = vpop.f32.mrf.mxu0
        %v7426 = vadd.f32 0.0, %v7425
        %v7427 = vpop.f32.mrf.mxu0
        %v7428 = vpop.f32.mrf.mxu0
        %v7429 = vadd.f32 0.0, %v7428
        %v7430 = vpop.f32.mrf.mxu0
        %7431 = vmatprep.mubr.bf16.mxu0 %v7227
        %7432 = vmatmul.mubr.bf16.gmra.mxu0 %v7226
        %v7433 = vpop.f32.mrf.mxu0
        %v7434 = vadd.f32 0.0, %v7433
        %v7435 = vpop.f32.mrf.mxu0
        %v7436 = vpop.f32.mrf.mxu0
        %v7437 = vadd.f32 0.0, %v7436
        %v7438 = vpop.f32.mrf.mxu0
        %7439 = vmatprep.mubr.bf16.mxu0 %v7230
        %7440 = vmatmul.mubr.bf16.gmra.mxu0 %v7229
        %v7441 = vpop.f32.mrf.mxu0
        %v7442 = vadd.f32 0.0, %v7441
        %v7443 = vpop.f32.mrf.mxu0
        %v7444 = vpop.f32.mrf.mxu0
        %v7445 = vadd.f32 0.0, %v7444
        %v7446 = vpop.f32.mrf.mxu0
        %7447 = vmatprep.mubr.bf16.mxu0 %v7233
        %7448 = vmatmul.mubr.bf16.gmra.mxu0 %v7232
        %v7449 = vpop.f32.mrf.mxu0
        %v7450 = vadd.f32 0.0, %v7449
        %v7451 = vpop.f32.mrf.mxu0
        %v7452 = vpop.f32.mrf.mxu0
        %v7453 = vadd.f32 0.0, %v7452
        %v7454 = vpop.f32.mrf.mxu0
        %7455 = vdwg.mxu0
        %7456 = vmatprep.subr.bf16.mxu0 0
        %7457 = vmatpush1.bf16.msra.mxu0 %v7366
        %7458 = vmatprep.subr.bf16.mxu0 0
        %7459 = vmatpush1.bf16.msra.mxu0 %v7365
        %7460 = vmatprep.subr.bf16.mxu0 0
        %7461 = vmatpush1.bf16.msra.mxu0 %v7364
        %7462 = vmatprep.subr.bf16.mxu0 0
        %7463 = vmatpush1.bf16.msra.mxu0 %v7363
        %7464 = vmatprep.subr.bf16.mxu0 0
        %7465 = vmatpush1.bf16.msra.mxu0 %v7362
        %7466 = vmatprep.subr.bf16.mxu0 0
        %7467 = vmatpush1.bf16.msra.mxu0 %v7361
        %7468 = vmatprep.subr.bf16.mxu0 0
        %7469 = vmatpush1.bf16.msra.mxu0 %v7360
        %7470 = vmatprep.subr.bf16.mxu0 0
        %7471 = vmatpush1.bf16.msra.mxu0 %v7359
        %7472 = vmatprep.subr.bf16.mxu0 0
        %7473 = vmatpush2.bf16.msra.mxu0 0
        %7474 = vmatprep.subr.bf16.mxu0 0
        %7475 = vmatpush2.bf16.msra.mxu0 0
        %7476 = vmatprep.subr.bf16.mxu0 0
        %7477 = vmatpush2.bf16.msra.mxu0 0
        %7478 = vmatprep.subr.bf16.mxu0 0
        %7479 = vmatpush2.bf16.msra.mxu0 0
        %7480 = vmatprep.subr.bf16.mxu0 0
        %7481 = vmatpush2.bf16.msra.mxu0 0
        %7482 = vmatprep.subr.bf16.mxu0 0
        %7483 = vmatpush2.bf16.msra.mxu0 0
        %7484 = vmatprep.subr.bf16.mxu0 0
        %7485 = vmatpush2.bf16.msra.mxu0 0
        %7486 = vmatprep.subr.bf16.mxu0 0
        %7487 = vmatpush2.bf16.msra.mxu0 0
        %7488 = vmatprep.mubr.bf16.mxu0 0
        %7489 = vmatmul.mubr.bf16.gmra.mxu0 %v7225
        %v7490 = vpop.f32.mrf.mxu0
        %v7491 = vadd.f32 %v7426, %v7490
        %v7492 = vpop.f32.mrf.mxu0
        %v7493 = vpop.f32.mrf.mxu0
        %v7494 = vadd.f32 %v7429, %v7493
        %v7495 = vpop.f32.mrf.mxu0
        %7496 = vmatprep.mubr.bf16.mxu0 0
        %7497 = vmatmul.mubr.bf16.gmra.mxu0 %v7228
        %v7498 = vpop.f32.mrf.mxu0
        %v7499 = vadd.f32 %v7434, %v7498
        %v7500 = vpop.f32.mrf.mxu0
        %v7501 = vpop.f32.mrf.mxu0
        %v7502 = vadd.f32 %v7437, %v7501
        %v7503 = vpop.f32.mrf.mxu0
        %7504 = vmatprep.mubr.bf16.mxu0 0
        %7505 = vmatmul.mubr.bf16.gmra.mxu0 %v7231
        %v7506 = vpop.f32.mrf.mxu0
        %v7507 = vadd.f32 %v7442, %v7506
        %v7508 = vpop.f32.mrf.mxu0
        %v7509 = vpop.f32.mrf.mxu0
        %v7510 = vadd.f32 %v7445, %v7509
        %v7511 = vpop.f32.mrf.mxu0
        %7512 = vmatprep.mubr.bf16.mxu0 0
        %7513 = vmatmul.mubr.bf16.gmra.mxu0 %v7234
        %v7514 = vpop.f32.mrf.mxu0
        %v7515 = vadd.f32 %v7450, %v7514
        %v7516 = vpop.f32.mrf.mxu0
        %v7517 = vpop.f32.mrf.mxu0
        %v7518 = vadd.f32 %v7453, %v7517
        %v7519 = vpop.f32.mrf.mxu0
        %7520 = vdwg.mxu0
        %v7521 = vpack.c.b16 %v7009, %v7006
        %v7522 = vpack.c.b16 %v7010, %v7007
        %v7523 = vpack.c.b16 %v7011, %v7008
        %v7524 = vpack.c.b16 %v7015, %v7012
        %v7525 = vpack.c.b16 %v7016, %v7013
        %v7526 = vpack.c.b16 %v7017, %v7014
        %v7527 = vpack.c.b16 %v7021, %v7018
        %v7528 = vpack.c.b16 %v7022, %v7019
        %v7529 = vpack.c.b16 %v7023, %v7020
        %v7530 = vpack.c.b16 %v7027, %v7024
        %v7531 = vpack.c.b16 %v7028, %v7025
        %v7532 = vpack.c.b16 %v7029, %v7026
        %v7593 = vunpack.c.l.b16 %v7031
        %v7594 = vunpack.c.l.b16 %v7032
        %v7595 = vunpack.c.l.b16 %v7033
        %v7596 = vunpack.c.l.b16 %v7034
        %v7597 = vunpack.c.l.b16 %v7035
        %v7598 = vunpack.c.l.b16 %v7036
        %v7599 = vunpack.c.l.b16 %v7037
        %v7600 = vunpack.c.l.b16 %v7038
        %v7601 = vunpack.c.l.b16 %v7039
        %v7602 = vunpack.c.l.b16 %v7040
        %v7603 = vunpack.c.l.b16 %v7041
        %v7604 = vunpack.c.l.b16 %v7042
        %v7605 = vunpack.c.l.b16 %v7043
        %v7606 = vunpack.c.l.b16 %v7044
        %v7607 = vunpack.c.l.b16 %v7045
        %v7608 = vunpack.c.l.b16 %v7046
        %v7609 = vunpack.c.l.b16 %v7047
        %v7610 = vunpack.c.l.b16 %v7048
        %v7611 = vunpack.c.l.b16 %v7049
        %v7612 = vunpack.c.l.b16 %v7050
        %v7613 = vunpack.c.l.b16 %v7051
        %v7614 = vunpack.c.l.b16 %v7052
        %v7615 = vunpack.c.l.b16 %v7053
        %v7616 = vunpack.c.l.b16 %v7054
        %v7617 = vunpack.c.l.b16 %v7055
        %v7618 = vunpack.c.l.b16 %v7056
        %v7619 = vunpack.c.l.b16 %v7057
        %v7620 = vunpack.c.l.b16 %v7058
        %v7621 = vunpack.c.l.b16 %v7059
        %v7622 = vunpack.c.l.b16 %v7060
        %v7623 = vunpack.c.l.b16 %v7061
        %v7624 = vunpack.c.l.b16 %v7062
        %v7625 = vunpack.c.l.b16 %v7063
        %v7626 = vunpack.c.l.b16 %v7064
        %v7627 = vunpack.c.l.b16 %v7065
        %v7628 = vunpack.c.l.b16 %v7066
        %v7629 = vunpack.c.l.b16 %v7067
        %v7630 = vunpack.c.l.b16 %v7068
        %v7631 = vunpack.c.l.b16 %v7069
        %v7632 = vunpack.c.l.b16 %v7070
        %v7633 = vunpack.c.l.b16 %v7071
        %v7634 = vunpack.c.l.b16 %v7072
        %v7635 = vunpack.c.l.b16 %v7073
        %v7636 = vunpack.c.l.b16 %v7074
        %v7637 = vunpack.c.l.b16 %v7075
        %v7638 = vunpack.c.l.b16 %v7076
        %v7639 = vunpack.c.l.b16 %v7077
        %v7640 = vunpack.c.l.b16 %v7078
        %v7641 = vpack.c.b16 %v7594, %v7593
        %v7642 = vpack.c.b16 %v7596, %v7595
        %v7643 = vpack.c.b16 %v7598, %v7597
        %v7644 = vpack.c.b16 %v7600, %v7599
        %v7645 = vpack.c.b16 %v7602, %v7601
        %v7646 = vpack.c.b16 %v7604, %v7603
        %v7647 = vpack.c.b16 %v7606, %v7605
        %v7648 = vpack.c.b16 %v7608, %v7607
        %v7649 = vpack.c.b16 %v7610, %v7609
        %v7650 = vpack.c.b16 %v7612, %v7611
        %v7651 = vpack.c.b16 %v7614, %v7613
        %v7652 = vpack.c.b16 %v7616, %v7615
        %v7653 = vpack.c.b16 %v7618, %v7617
        %v7654 = vpack.c.b16 %v7620, %v7619
        %v7655 = vpack.c.b16 %v7622, %v7621
        %v7656 = vpack.c.b16 %v7624, %v7623
        %v7657 = vpack.c.b16 %v7626, %v7625
        %v7658 = vpack.c.b16 %v7628, %v7627
        %v7659 = vpack.c.b16 %v7630, %v7629
        %v7660 = vpack.c.b16 %v7632, %v7631
        %v7661 = vpack.c.b16 %v7634, %v7633
        %v7662 = vpack.c.b16 %v7636, %v7635
        %v7663 = vpack.c.b16 %v7638, %v7637
        %v7664 = vpack.c.b16 %v7640, %v7639
        %7689 = vmatprep.subr.bf16.mxu0 0
        %7690 = vmatpush1.bf16.msra.mxu0 %v7648
        %7691 = vmatprep.subr.bf16.mxu0 0
        %7692 = vmatpush1.bf16.msra.mxu0 %v7647
        %7693 = vmatprep.subr.bf16.mxu0 0
        %7694 = vmatpush1.bf16.msra.mxu0 %v7646
        %7695 = vmatprep.subr.bf16.mxu0 0
        %7696 = vmatpush1.bf16.msra.mxu0 %v7645
        %7697 = vmatprep.subr.bf16.mxu0 0
        %7698 = vmatpush1.bf16.msra.mxu0 %v7644
        %7699 = vmatprep.subr.bf16.mxu0 0
        %7700 = vmatpush1.bf16.msra.mxu0 %v7643
        %7701 = vmatprep.subr.bf16.mxu0 0
        %7702 = vmatpush1.bf16.msra.mxu0 %v7642
        %7703 = vmatprep.subr.bf16.mxu0 0
        %7704 = vmatpush1.bf16.msra.mxu0 %v7641
        %7705 = vmatprep.subr.bf16.mxu0 0
        %7706 = vmatpush2.bf16.msra.mxu0 %v7656
        %7707 = vmatprep.subr.bf16.mxu0 0
        %7708 = vmatpush2.bf16.msra.mxu0 %v7655
        %7709 = vmatprep.subr.bf16.mxu0 0
        %7710 = vmatpush2.bf16.msra.mxu0 %v7654
        %7711 = vmatprep.subr.bf16.mxu0 0
        %7712 = vmatpush2.bf16.msra.mxu0 %v7653
        %7713 = vmatprep.subr.bf16.mxu0 0
        %7714 = vmatpush2.bf16.msra.mxu0 %v7652
        %7715 = vmatprep.subr.bf16.mxu0 0
        %7716 = vmatpush2.bf16.msra.mxu0 %v7651
        %7717 = vmatprep.subr.bf16.mxu0 0
        %7718 = vmatpush2.bf16.msra.mxu0 %v7650
        %7719 = vmatprep.subr.bf16.mxu0 0
        %7720 = vmatpush2.bf16.msra.mxu0 %v7649
        %7721 = vmatprep.mubr.bf16.mxu0 %v7522
        %7722 = vmatmul.mubr.bf16.gmra.mxu0 %v7521
        %v7723 = vpop.f32.mrf.mxu0
        %v7724 = vadd.f32 %v7491, %v7723
        %v7725 = vpop.f32.mrf.mxu0
        %v7726 = vpop.f32.mrf.mxu0
        %v7727 = vadd.f32 %v7494, %v7726
        %v7728 = vpop.f32.mrf.mxu0
        %7729 = vmatprep.mubr.bf16.mxu0 %v7525
        %7730 = vmatmul.mubr.bf16.gmra.mxu0 %v7524
        %v7731 = vpop.f32.mrf.mxu0
        %v7732 = vadd.f32 %v7499, %v7731
        %v7733 = vpop.f32.mrf.mxu0
        %v7734 = vpop.f32.mrf.mxu0
        %v7735 = vadd.f32 %v7502, %v7734
        %v7736 = vpop.f32.mrf.mxu0
        %7737 = vmatprep.mubr.bf16.mxu0 %v7528
        %7738 = vmatmul.mubr.bf16.gmra.mxu0 %v7527
        %v7739 = vpop.f32.mrf.mxu0
        %v7740 = vadd.f32 %v7507, %v7739
        %v7741 = vpop.f32.mrf.mxu0
        %v7742 = vpop.f32.mrf.mxu0
        %v7743 = vadd.f32 %v7510, %v7742
        %v7744 = vpop.f32.mrf.mxu0
        %7745 = vmatprep.mubr.bf16.mxu0 %v7531
        %7746 = vmatmul.mubr.bf16.gmra.mxu0 %v7530
        %v7747 = vpop.f32.mrf.mxu0
        %v7748 = vadd.f32 %v7515, %v7747
        %v7749 = vpop.f32.mrf.mxu0
        %v7750 = vpop.f32.mrf.mxu0
        %v7751 = vadd.f32 %v7518, %v7750
        %v7752 = vpop.f32.mrf.mxu0
        %7753 = vdwg.mxu0
        %7754 = vmatprep.subr.bf16.mxu0 0
        %7755 = vmatpush1.bf16.msra.mxu0 %v7664
        %7756 = vmatprep.subr.bf16.mxu0 0
        %7757 = vmatpush1.bf16.msra.mxu0 %v7663
        %7758 = vmatprep.subr.bf16.mxu0 0
        %7759 = vmatpush1.bf16.msra.mxu0 %v7662
        %7760 = vmatprep.subr.bf16.mxu0 0
        %7761 = vmatpush1.bf16.msra.mxu0 %v7661
        %7762 = vmatprep.subr.bf16.mxu0 0
        %7763 = vmatpush1.bf16.msra.mxu0 %v7660
        %7764 = vmatprep.subr.bf16.mxu0 0
        %7765 = vmatpush1.bf16.msra.mxu0 %v7659
        %7766 = vmatprep.subr.bf16.mxu0 0
        %7767 = vmatpush1.bf16.msra.mxu0 %v7658
        %7768 = vmatprep.subr.bf16.mxu0 0
        %7769 = vmatpush1.bf16.msra.mxu0 %v7657
        %7770 = vmatprep.subr.bf16.mxu0 0
        %7771 = vmatpush2.bf16.msra.mxu0 0
        %7772 = vmatprep.subr.bf16.mxu0 0
        %7773 = vmatpush2.bf16.msra.mxu0 0
        %7774 = vmatprep.subr.bf16.mxu0 0
        %7775 = vmatpush2.bf16.msra.mxu0 0
        %7776 = vmatprep.subr.bf16.mxu0 0
        %7777 = vmatpush2.bf16.msra.mxu0 0
        %7778 = vmatprep.subr.bf16.mxu0 0
        %7779 = vmatpush2.bf16.msra.mxu0 0
        %7780 = vmatprep.subr.bf16.mxu0 0
        %7781 = vmatpush2.bf16.msra.mxu0 0
        %7782 = vmatprep.subr.bf16.mxu0 0
        %7783 = vmatpush2.bf16.msra.mxu0 0
        %7784 = vmatprep.subr.bf16.mxu0 0
        %7785 = vmatpush2.bf16.msra.mxu0 0
        %7786 = vmatprep.mubr.bf16.mxu0 0
        %7787 = vmatmul.mubr.bf16.gmra.mxu0 %v7523
        %v7788 = vpop.f32.mrf.mxu0
        %v7789 = vadd.f32 %v7724, %v7788
        %v7790 = vpop.f32.mrf.mxu0
        %v7791 = vpop.f32.mrf.mxu0
        %v7792 = vadd.f32 %v7727, %v7791
        %v7793 = vpop.f32.mrf.mxu0
        %7794 = vmatprep.mubr.bf16.mxu0 0
        %7795 = vmatmul.mubr.bf16.gmra.mxu0 %v7526
        %v7796 = vpop.f32.mrf.mxu0
        %v7797 = vadd.f32 %v7732, %v7796
        %v7798 = vpop.f32.mrf.mxu0
        %v7799 = vpop.f32.mrf.mxu0
        %v7800 = vadd.f32 %v7735, %v7799
        %v7801 = vpop.f32.mrf.mxu0
        %7802 = vmatprep.mubr.bf16.mxu0 0
        %7803 = vmatmul.mubr.bf16.gmra.mxu0 %v7529
        %v7804 = vpop.f32.mrf.mxu0
        %v7805 = vadd.f32 %v7740, %v7804
        %v7806 = vpop.f32.mrf.mxu0
        %v7807 = vpop.f32.mrf.mxu0
        %v7808 = vadd.f32 %v7743, %v7807
        %v7809 = vpop.f32.mrf.mxu0
        %7810 = vmatprep.mubr.bf16.mxu0 0
        %7811 = vmatmul.mubr.bf16.gmra.mxu0 %v7532
        %v7812 = vpop.f32.mrf.mxu0
        %v7813 = vadd.f32 %v7748, %v7812
        %v7814 = vpop.f32.mrf.mxu0
        %v7815 = vpop.f32.mrf.mxu0
        %v7816 = vadd.f32 %v7751, %v7815
        %v7817 = vpop.f32.mrf.mxu0
        %7818 = vdwg.mxu0
        %v7819 = vld [vmem:[%s2298] sm:$0xff]
        %v7820 = vld [vmem:[%s2298 + $0x10] sm:$0xff]
        %v7821 = vld [vmem:[%s2298 + $0x20] sm:$0xff]
        %v7822 = vld [vmem:[%s2298 + $0x30] sm:$0xff]
        %v7823 = vld [vmem:[%s2298 + $0x40] sm:$0xff]
        %v7824 = vld [vmem:[%s2298 + $0x50] sm:$0xff]
        %v7825 = vld [vmem:[%s2298 + $0x60] sm:$0xff]
        %v7826 = vld [vmem:[%s2298 + $0x70] sm:$0xff]
        %v7827 = vpack.c.bf16 %v7819, %v7819
        %v7828 = vpack.c.bf16 %v7820, %v7820
        %v7829 = vpack.c.bf16 %v7821, %v7821
        %v7830 = vpack.c.bf16 %v7822, %v7822
        %v7831 = vpack.c.bf16 %v7823, %v7823
        %v7832 = vpack.c.bf16 %v7824, %v7824
        %v7833 = vpack.c.bf16 %v7825, %v7825
        %v7834 = vpack.c.bf16 %v7826, %v7826
        %v7835 = vld [vmem:[%s2298 + $0x1] sm:$0xff]
        %v7836 = vld [vmem:[%s2298 + $0x11] sm:$0xff]
        %v7837 = vld [vmem:[%s2298 + $0x21] sm:$0xff]
        %v7838 = vld [vmem:[%s2298 + $0x31] sm:$0xff]
        %v7839 = vld [vmem:[%s2298 + $0x41] sm:$0xff]
        %v7840 = vld [vmem:[%s2298 + $0x51] sm:$0xff]
        %v7841 = vld [vmem:[%s2298 + $0x61] sm:$0xff]
        %v7842 = vld [vmem:[%s2298 + $0x71] sm:$0xff]
        %v7843 = vpack.c.bf16 %v7835, %v7835
        %v7844 = vpack.c.bf16 %v7836, %v7836
        %v7845 = vpack.c.bf16 %v7837, %v7837
        %v7846 = vpack.c.bf16 %v7838, %v7838
        %v7847 = vpack.c.bf16 %v7839, %v7839
        %v7848 = vpack.c.bf16 %v7840, %v7840
        %v7849 = vpack.c.bf16 %v7841, %v7841
        %v7850 = vpack.c.bf16 %v7842, %v7842
        %v7851 = vld [vmem:[%s2298 + $0x2] sm:$0xff]
        %v7852 = vld [vmem:[%s2298 + $0x12] sm:$0xff]
        %v7853 = vld [vmem:[%s2298 + $0x22] sm:$0xff]
        %v7854 = vld [vmem:[%s2298 + $0x32] sm:$0xff]
        %v7855 = vld [vmem:[%s2298 + $0x42] sm:$0xff]
        %v7856 = vld [vmem:[%s2298 + $0x52] sm:$0xff]
        %v7857 = vld [vmem:[%s2298 + $0x62] sm:$0xff]
        %v7858 = vld [vmem:[%s2298 + $0x72] sm:$0xff]
        %v7859 = vpack.c.bf16 %v7851, %v7851
        %v7860 = vpack.c.bf16 %v7852, %v7852
        %v7861 = vpack.c.bf16 %v7853, %v7853
        %v7862 = vpack.c.bf16 %v7854, %v7854
        %v7863 = vpack.c.bf16 %v7855, %v7855
        %v7864 = vpack.c.bf16 %v7856, %v7856
        %v7865 = vpack.c.bf16 %v7857, %v7857
        %v7866 = vpack.c.bf16 %v7858, %v7858
        %v7891 = vunpack.c.l.b16 %v7827
        %v7892 = vunpack.c.l.b16 %v7843
        %v7893 = vunpack.c.l.b16 %v7859
        %v7894 = vunpack.c.l.b16 %v7828
        %v7895 = vunpack.c.l.b16 %v7844
        %v7896 = vunpack.c.l.b16 %v7860
        %v7897 = vunpack.c.l.b16 %v7829
        %v7898 = vunpack.c.l.b16 %v7845
        %v7899 = vunpack.c.l.b16 %v7861
        %v7900 = vunpack.c.l.b16 %v7830
        %v7901 = vunpack.c.l.b16 %v7846
        %v7902 = vunpack.c.l.b16 %v7862
        %v7903 = vunpack.c.l.b16 %v7831
        %v7904 = vunpack.c.l.b16 %v7847
        %v7905 = vunpack.c.l.b16 %v7863
        %v7906 = vunpack.c.l.b16 %v7832
        %v7907 = vunpack.c.l.b16 %v7848
        %v7908 = vunpack.c.l.b16 %v7864
        %v7909 = vunpack.c.l.b16 %v7833
        %v7910 = vunpack.c.l.b16 %v7849
        %v7911 = vunpack.c.l.b16 %v7865
        %v7912 = vunpack.c.l.b16 %v7834
        %v7913 = vunpack.c.l.b16 %v7850
        %v7914 = vunpack.c.l.b16 %v7866
        %v7915 = vld [vmem:[%s7030 + $0x180] sm:$0xf]
        %v7916 = vld [vmem:[%s7030 + $0x184] sm:$0xf]
        %v7917 = vld [vmem:[%s7030 + $0x188] sm:$0xf]
        %v7918 = vld [vmem:[%s7030 + $0x18c] sm:$0xf]
        %v7919 = vld [vmem:[%s7030 + $0x190] sm:$0xf]
        %v7920 = vld [vmem:[%s7030 + $0x194] sm:$0xf]
        %v7921 = vld [vmem:[%s7030 + $0x198] sm:$0xf]
        %v7922 = vld [vmem:[%s7030 + $0x19c] sm:$0xf]
        %v7923 = vld [vmem:[%s7030 + $0x1a0] sm:$0xf]
        %v7924 = vld [vmem:[%s7030 + $0x1a4] sm:$0xf]
        %v7925 = vld [vmem:[%s7030 + $0x1a8] sm:$0xf]
        %v7926 = vld [vmem:[%s7030 + $0x1ac] sm:$0xf]
        %v7927 = vld [vmem:[%s7030 + $0x1b0] sm:$0xf]
        %v7928 = vld [vmem:[%s7030 + $0x1b4] sm:$0xf]
        %v7929 = vld [vmem:[%s7030 + $0x1b8] sm:$0xf]
        %v7930 = vld [vmem:[%s7030 + $0x1bc] sm:$0xf]
        %v7931 = vld [vmem:[%s7030 + $0x1c0] sm:$0xf]
        %v7932 = vld [vmem:[%s7030 + $0x1c4] sm:$0xf]
        %v7933 = vld [vmem:[%s7030 + $0x1c8] sm:$0xf]
        %v7934 = vld [vmem:[%s7030 + $0x1cc] sm:$0xf]
        %v7935 = vld [vmem:[%s7030 + $0x1d0] sm:$0xf]
        %v7936 = vld [vmem:[%s7030 + $0x1d4] sm:$0xf]
        %v7937 = vld [vmem:[%s7030 + $0x1d8] sm:$0xf]
        %v7938 = vld [vmem:[%s7030 + $0x1dc] sm:$0xf]
        %v7939 = vld [vmem:[%s7030 + $0x1e0] sm:$0xf]
        %v7940 = vld [vmem:[%s7030 + $0x1e4] sm:$0xf]
        %v7941 = vld [vmem:[%s7030 + $0x1e8] sm:$0xf]
        %v7942 = vld [vmem:[%s7030 + $0x1ec] sm:$0xf]
        %v7943 = vld [vmem:[%s7030 + $0x1f0] sm:$0xf]
        %v7944 = vld [vmem:[%s7030 + $0x1f4] sm:$0xf]
        %v7945 = vld [vmem:[%s7030 + $0x1f8] sm:$0xf]
        %v7946 = vld [vmem:[%s7030 + $0x1fc] sm:$0xf]
        %v7947 = vld [vmem:[%s7030 + $0x200] sm:$0xf]
        %v7948 = vld [vmem:[%s7030 + $0x204] sm:$0xf]
        %v7949 = vld [vmem:[%s7030 + $0x208] sm:$0xf]
        %v7950 = vld [vmem:[%s7030 + $0x20c] sm:$0xf]
        %v7951 = vld [vmem:[%s7030 + $0x210] sm:$0xf]
        %v7952 = vld [vmem:[%s7030 + $0x214] sm:$0xf]
        %v7953 = vld [vmem:[%s7030 + $0x218] sm:$0xf]
        %v7954 = vld [vmem:[%s7030 + $0x21c] sm:$0xf]
        %v7955 = vld [vmem:[%s7030 + $0x220] sm:$0xf]
        %v7956 = vld [vmem:[%s7030 + $0x224] sm:$0xf]
        %v7957 = vld [vmem:[%s7030 + $0x228] sm:$0xf]
        %v7958 = vld [vmem:[%s7030 + $0x22c] sm:$0xf]
        %v7959 = vld [vmem:[%s7030 + $0x230] sm:$0xf]
        %v7960 = vld [vmem:[%s7030 + $0x234] sm:$0xf]
        %v7961 = vld [vmem:[%s7030 + $0x238] sm:$0xf]
        %v7962 = vld [vmem:[%s7030 + $0x23c] sm:$0xf]
        %v7963 = vpack.c.b16 %v7894, %v7891
        %v7964 = vpack.c.b16 %v7895, %v7892
        %v7965 = vpack.c.b16 %v7896, %v7893
        %v7966 = vpack.c.b16 %v7900, %v7897
        %v7967 = vpack.c.b16 %v7901, %v7898
        %v7968 = vpack.c.b16 %v7902, %v7899
        %v7969 = vpack.c.b16 %v7906, %v7903
        %v7970 = vpack.c.b16 %v7907, %v7904
        %v7971 = vpack.c.b16 %v7908, %v7905
        %v7972 = vpack.c.b16 %v7912, %v7909
        %v7973 = vpack.c.b16 %v7913, %v7910
        %v7974 = vpack.c.b16 %v7914, %v7911
        %v8035 = vunpack.c.l.b16 %v7915
        %v8036 = vunpack.c.l.b16 %v7916
        %v8037 = vunpack.c.l.b16 %v7917
        %v8038 = vunpack.c.l.b16 %v7918
        %v8039 = vunpack.c.l.b16 %v7919
        %v8040 = vunpack.c.l.b16 %v7920
        %v8041 = vunpack.c.l.b16 %v7921
        %v8042 = vunpack.c.l.b16 %v7922
        %v8043 = vunpack.c.l.b16 %v7923
        %v8044 = vunpack.c.l.b16 %v7924
        %v8045 = vunpack.c.l.b16 %v7925
        %v8046 = vunpack.c.l.b16 %v7926
        %v8047 = vunpack.c.l.b16 %v7927
        %v8048 = vunpack.c.l.b16 %v7928
        %v8049 = vunpack.c.l.b16 %v7929
        %v8050 = vunpack.c.l.b16 %v7930
        %v8051 = vunpack.c.l.b16 %v7931
        %v8052 = vunpack.c.l.b16 %v7932
        %v8053 = vunpack.c.l.b16 %v7933
        %v8054 = vunpack.c.l.b16 %v7934
        %v8055 = vunpack.c.l.b16 %v7935
        %v8056 = vunpack.c.l.b16 %v7936
        %v8057 = vunpack.c.l.b16 %v7937
        %v8058 = vunpack.c.l.b16 %v7938
        %v8059 = vunpack.c.l.b16 %v7939
        %v8060 = vunpack.c.l.b16 %v7940
        %v8061 = vunpack.c.l.b16 %v7941
        %v8062 = vunpack.c.l.b16 %v7942
        %v8063 = vunpack.c.l.b16 %v7943
        %v8064 = vunpack.c.l.b16 %v7944
        %v8065 = vunpack.c.l.b16 %v7945
        %v8066 = vunpack.c.l.b16 %v7946
        %v8067 = vunpack.c.l.b16 %v7947
        %v8068 = vunpack.c.l.b16 %v7948
        %v8069 = vunpack.c.l.b16 %v7949
        %v8070 = vunpack.c.l.b16 %v7950
        %v8071 = vunpack.c.l.b16 %v7951
        %v8072 = vunpack.c.l.b16 %v7952
        %v8073 = vunpack.c.l.b16 %v7953
        %v8074 = vunpack.c.l.b16 %v7954
        %v8075 = vunpack.c.l.b16 %v7955
        %v8076 = vunpack.c.l.b16 %v7956
        %v8077 = vunpack.c.l.b16 %v7957
        %v8078 = vunpack.c.l.b16 %v7958
        %v8079 = vunpack.c.l.b16 %v7959
        %v8080 = vunpack.c.l.b16 %v7960
        %v8081 = vunpack.c.l.b16 %v7961
        %v8082 = vunpack.c.l.b16 %v7962
        %v8083 = vpack.c.b16 %v8036, %v8035
        %v8084 = vpack.c.b16 %v8038, %v8037
        %v8085 = vpack.c.b16 %v8040, %v8039
        %v8086 = vpack.c.b16 %v8042, %v8041
        %v8087 = vpack.c.b16 %v8044, %v8043
        %v8088 = vpack.c.b16 %v8046, %v8045
        %v8089 = vpack.c.b16 %v8048, %v8047
        %v8090 = vpack.c.b16 %v8050, %v8049
        %v8091 = vpack.c.b16 %v8052, %v8051
        %v8092 = vpack.c.b16 %v8054, %v8053
        %v8093 = vpack.c.b16 %v8056, %v8055
        %v8094 = vpack.c.b16 %v8058, %v8057
        %v8095 = vpack.c.b16 %v8060, %v8059
        %v8096 = vpack.c.b16 %v8062, %v8061
        %v8097 = vpack.c.b16 %v8064, %v8063
        %v8098 = vpack.c.b16 %v8066, %v8065
        %v8099 = vpack.c.b16 %v8068, %v8067
        %v8100 = vpack.c.b16 %v8070, %v8069
        %v8101 = vpack.c.b16 %v8072, %v8071
        %v8102 = vpack.c.b16 %v8074, %v8073
        %v8103 = vpack.c.b16 %v8076, %v8075
        %v8104 = vpack.c.b16 %v8078, %v8077
        %v8105 = vpack.c.b16 %v8080, %v8079
        %v8106 = vpack.c.b16 %v8082, %v8081
        %8131 = vmatprep.subr.bf16.mxu0 0
        %8132 = vmatpush1.bf16.msra.mxu0 %v8090
        %8133 = vmatprep.subr.bf16.mxu0 0
        %8134 = vmatpush1.bf16.msra.mxu0 %v8089
        %8135 = vmatprep.subr.bf16.mxu0 0
        %8136 = vmatpush1.bf16.msra.mxu0 %v8088
        %8137 = vmatprep.subr.bf16.mxu0 0
        %8138 = vmatpush1.bf16.msra.mxu0 %v8087
        %8139 = vmatprep.subr.bf16.mxu0 0
        %8140 = vmatpush1.bf16.msra.mxu0 %v8086
        %8141 = vmatprep.subr.bf16.mxu0 0
        %8142 = vmatpush1.bf16.msra.mxu0 %v8085
        %8143 = vmatprep.subr.bf16.mxu0 0
        %8144 = vmatpush1.bf16.msra.mxu0 %v8084
        %8145 = vmatprep.subr.bf16.mxu0 0
        %8146 = vmatpush1.bf16.msra.mxu0 %v8083
        %8147 = vmatprep.subr.bf16.mxu0 0
        %8148 = vmatpush2.bf16.msra.mxu0 %v8098
        %8149 = vmatprep.subr.bf16.mxu0 0
        %8150 = vmatpush2.bf16.msra.mxu0 %v8097
        %8151 = vmatprep.subr.bf16.mxu0 0
        %8152 = vmatpush2.bf16.msra.mxu0 %v8096
        %8153 = vmatprep.subr.bf16.mxu0 0
        %8154 = vmatpush2.bf16.msra.mxu0 %v8095
        %8155 = vmatprep.subr.bf16.mxu0 0
        %8156 = vmatpush2.bf16.msra.mxu0 %v8094
        %8157 = vmatprep.subr.bf16.mxu0 0
        %8158 = vmatpush2.bf16.msra.mxu0 %v8093
        %8159 = vmatprep.subr.bf16.mxu0 0
        %8160 = vmatpush2.bf16.msra.mxu0 %v8092
        %8161 = vmatprep.subr.bf16.mxu0 0
        %8162 = vmatpush2.bf16.msra.mxu0 %v8091
        %8163 = vmatprep.mubr.bf16.mxu0 %v7964
        %8164 = vmatmul.mubr.bf16.gmra.mxu0 %v7963
        %v8165 = vpop.f32.mrf.mxu0
        %v8166 = vadd.f32 0.0, %v8165
        %v8167 = vpop.f32.mrf.mxu0
        %v8168 = vpop.f32.mrf.mxu0
        %v8169 = vadd.f32 0.0, %v8168
        %v8170 = vpop.f32.mrf.mxu0
        %8171 = vmatprep.mubr.bf16.mxu0 %v7967
        %8172 = vmatmul.mubr.bf16.gmra.mxu0 %v7966
        %v8173 = vpop.f32.mrf.mxu0
        %v8174 = vadd.f32 0.0, %v8173
        %v8175 = vpop.f32.mrf.mxu0
        %v8176 = vpop.f32.mrf.mxu0
        %v8177 = vadd.f32 0.0, %v8176
        %v8178 = vpop.f32.mrf.mxu0
        %8179 = vmatprep.mubr.bf16.mxu0 %v7970
        %8180 = vmatmul.mubr.bf16.gmra.mxu0 %v7969
        %v8181 = vpop.f32.mrf.mxu0
        %v8182 = vadd.f32 0.0, %v8181
        %v8183 = vpop.f32.mrf.mxu0
        %v8184 = vpop.f32.mrf.mxu0
        %v8185 = vadd.f32 0.0, %v8184
        %v8186 = vpop.f32.mrf.mxu0
        %8187 = vmatprep.mubr.bf16.mxu0 %v7973
        %8188 = vmatmul.mubr.bf16.gmra.mxu0 %v7972
        %v8189 = vpop.f32.mrf.mxu0
        %v8190 = vadd.f32 0.0, %v8189
        %v8191 = vpop.f32.mrf.mxu0
        %v8192 = vpop.f32.mrf.mxu0
        %v8193 = vadd.f32 0.0, %v8192
        %v8194 = vpop.f32.mrf.mxu0
        %8195 = vdwg.mxu0
        %8196 = vmatprep.subr.bf16.mxu0 0
        %8197 = vmatpush1.bf16.msra.mxu0 %v8106
        %8198 = vmatprep.subr.bf16.mxu0 0
        %8199 = vmatpush1.bf16.msra.mxu0 %v8105
        %8200 = vmatprep.subr.bf16.mxu0 0
        %8201 = vmatpush1.bf16.msra.mxu0 %v8104
        %8202 = vmatprep.subr.bf16.mxu0 0
        %8203 = vmatpush1.bf16.msra.mxu0 %v8103
        %8204 = vmatprep.subr.bf16.mxu0 0
        %8205 = vmatpush1.bf16.msra.mxu0 %v8102
        %8206 = vmatprep.subr.bf16.mxu0 0
        %8207 = vmatpush1.bf16.msra.mxu0 %v8101
        %8208 = vmatprep.subr.bf16.mxu0 0
        %8209 = vmatpush1.bf16.msra.mxu0 %v8100
        %8210 = vmatprep.subr.bf16.mxu0 0
        %8211 = vmatpush1.bf16.msra.mxu0 %v8099
        %8212 = vmatprep.subr.bf16.mxu0 0
        %8213 = vmatpush2.bf16.msra.mxu0 0
        %8214 = vmatprep.subr.bf16.mxu0 0
        %8215 = vmatpush2.bf16.msra.mxu0 0
        %8216 = vmatprep.subr.bf16.mxu0 0
        %8217 = vmatpush2.bf16.msra.mxu0 0
        %8218 = vmatprep.subr.bf16.mxu0 0
        %8219 = vmatpush2.bf16.msra.mxu0 0
        %8220 = vmatprep.subr.bf16.mxu0 0
        %8221 = vmatpush2.bf16.msra.mxu0 0
        %8222 = vmatprep.subr.bf16.mxu0 0
        %8223 = vmatpush2.bf16.msra.mxu0 0
        %8224 = vmatprep.subr.bf16.mxu0 0
        %8225 = vmatpush2.bf16.msra.mxu0 0
        %8226 = vmatprep.subr.bf16.mxu0 0
        %8227 = vmatpush2.bf16.msra.mxu0 0
        %8228 = vmatprep.mubr.bf16.mxu0 0
        %8229 = vmatmul.mubr.bf16.gmra.mxu0 %v7965
        %v8230 = vpop.f32.mrf.mxu0
        %v8231 = vadd.f32 %v8166, %v8230
        %v8232 = vpop.f32.mrf.mxu0
        %v8233 = vpop.f32.mrf.mxu0
        %v8234 = vadd.f32 %v8169, %v8233
        %v8235 = vpop.f32.mrf.mxu0
        %8236 = vmatprep.mubr.bf16.mxu0 0
        %8237 = vmatmul.mubr.bf16.gmra.mxu0 %v7968
        %v8238 = vpop.f32.mrf.mxu0
        %v8239 = vadd.f32 %v8174, %v8238
        %v8240 = vpop.f32.mrf.mxu0
        %v8241 = vpop.f32.mrf.mxu0
        %v8242 = vadd.f32 %v8177, %v8241
        %v8243 = vpop.f32.mrf.mxu0
        %8244 = vmatprep.mubr.bf16.mxu0 0
        %8245 = vmatmul.mubr.bf16.gmra.mxu0 %v7971
        %v8246 = vpop.f32.mrf.mxu0
        %v8247 = vadd.f32 %v8182, %v8246
        %v8248 = vpop.f32.mrf.mxu0
        %v8249 = vpop.f32.mrf.mxu0
        %v8250 = vadd.f32 %v8185, %v8249
        %v8251 = vpop.f32.mrf.mxu0
        %8252 = vmatprep.mubr.bf16.mxu0 0
        %8253 = vmatmul.mubr.bf16.gmra.mxu0 %v7974
        %v8254 = vpop.f32.mrf.mxu0
        %v8255 = vadd.f32 %v8190, %v8254
        %v8256 = vpop.f32.mrf.mxu0
        %v8257 = vpop.f32.mrf.mxu0
        %v8258 = vadd.f32 %v8193, %v8257
        %v8259 = vpop.f32.mrf.mxu0
        %8260 = vdwg.mxu0
        %v8261 = vadd.f32 %v7789, %v8231
        %v8262 = vadd.f32 %v7792, %v8234
        %v8263 = vadd.f32 %v7797, %v8239
        %v8264 = vadd.f32 %v7800, %v8242
        %v8265 = vadd.f32 %v7805, %v8247
        %v8266 = vadd.f32 %v7808, %v8250
        %v8267 = vadd.f32 %v7813, %v8255
        %v8268 = vadd.f32 %v7816, %v8258
        %v8269 = vlaneseq
        %v8270 = vshrl.u32 %v8269, 7
        %v8271 = vsub.s32 2, %v8270
        %v8272 = vrot.slane %v5550, %v8271
        %v8273 = vmul.f32 %v8261, %v8272
        %v8274 = vmul.f32 %v8262, %v8272
        %v8275 = vmul.f32 %v8263, %v8272
        %v8276 = vmul.f32 %v8264, %v8272
        %v8277 = vmul.f32 %v8265, %v8272
        %v8278 = vmul.f32 %v8266, %v8272
        %v8279 = vmul.f32 %v8267, %v8272
        %v8280 = vmul.f32 %v8268, %v8272
        %v8281 = vlaneseq
        %v8282 = vshrl.u32 %v8281, 7
        %v8283 = vsub.s32 3, %v8282
        %v8284 = vrot.slane %v5550, %v8283
        %v8285 = vadd.f32 %v8273, %v8284
        %v8286 = vadd.f32 %v8274, %v8284
        %v8287 = vadd.f32 %v8275, %v8284
        %v8288 = vadd.f32 %v8276, %v8284
        %v8289 = vadd.f32 %v8277, %v8284
        %v8290 = vadd.f32 %v8278, %v8284
        %v8291 = vadd.f32 %v8279, %v8284
        %v8292 = vadd.f32 %v8280, %v8284
        %v8293 = vadd.f32 %v8285, %v5541
        %v8294 = vadd.f32 %v8286, %v5542
        %v8295 = vadd.f32 %v8287, %v5543
        %v8296 = vadd.f32 %v8288, %v5544
        %v8297 = vadd.f32 %v8289, %v5545
        %v8298 = vadd.f32 %v8290, %v5546
        %v8299 = vadd.f32 %v8291, %v5547
        %v8300 = vadd.f32 %v8292, %v5548
        %v8301 = vmax.f32 %v8293, 0.0
        %v8302 = vmax.f32 %v8294, 0.0
        %v8303 = vmax.f32 %v8295, 0.0
        %v8304 = vmax.f32 %v8296, 0.0
        %v8305 = vmax.f32 %v8297, 0.0
        %v8306 = vmax.f32 %v8298, 0.0
        %v8307 = vmax.f32 %v8299, 0.0
        %v8308 = vmax.f32 %v8300, 0.0
        %8309 = vst [vmem:[%s212] sm:$0xff] %v8301
        %8310 = vst [vmem:[%s212 + $0x8] sm:$0xff] %v8302
        %8311 = vst [vmem:[%s212 + $0x10] sm:$0xff] %v8303
        %8312 = vst [vmem:[%s212 + $0x18] sm:$0xff] %v8304
        %8313 = vst [vmem:[%s212 + $0x20] sm:$0xff] %v8305
        %8314 = vst [vmem:[%s212 + $0x28] sm:$0xff] %v8306
        %8315 = vst [vmem:[%s212 + $0x30] sm:$0xff] %v8307
        %8316 = vst [vmem:[%s212 + $0x38] sm:$0xff] %v8308
        %p8317 = scmp.lt.s32.totalorder %s16, 1
        %s8318 = scalar_select %p8317, %s16, 1
        %s8319 = smul.addr %s8318, 8
        %s8320 = smul.addr %s8319, 8
        %s8321 = scalar_lea.vmem %s4, %s8320
        // Predicated region
        $region41: #{_lambda_.1} parent=35 // pred_check
          %p8322 = pneg %p123
        $region42: #{_lambda_.1} parent=35 // pred_check_branch
          %8324 = sbr.rel (%p8322) target = $region44
        $region43: #{_lambda_.1} parent=35 // pred_region
          _
        $region44: #{_lambda_.1} parent=35 // pred_fallthru
          _
      $region36: #{_lambda_.1} parent=5 // pred_fallthru
        _
      %p8325 = scmp.le.s32.totalorder 2, %s11
      // Predicated region
      $region45: #{_lambda_.1} parent=5 // pred_check
        %p8326 = pneg %p8325
      $region46: #{_lambda_.1} parent=5 // pred_check_branch
        %8328 = sbr.rel (%p8326) target = $region48
      $region47: #{_lambda_.1} parent=5 // pred_region
        %s8329 = ssub.s32 %s11, 2
        // Predicated region
        $region49: #{_lambda_.1} parent=47 // pred_check
          %p8330 = pneg %p129
        $region50: #{_lambda_.1} parent=47 // pred_check_branch
          %8332 = sbr.rel (%p8330) target = $region52
        $region51: #{_lambda_.1} parent=47 // pred_region
          %p8333 = scmp.lt.s32.totalorder %s17, 1
          %s8334 = scalar_select %p8333, %s17, 1
          %s8335 = smul.addr %s8334, 8
          %s8336 = smul.addr %s8335, 8
          %s8337 = scalar_lea.vmem %s4, %s8336
        $region52: #{_lambda_.1} parent=47 // pred_fallthru
          _
      $region48: #{_lambda_.1} parent=5 // pred_fallthru
        _
    $region6: #{_lambda_.1} parent=1 // loop_footer
      %s15 = sadd.s32 1, %s11
    $region7: #{_lambda_.1} parent=1 // loop_footer_branch
      %10 = sbr.rel target = $region3
    $region8: #{_lambda_.1} parent=1 // loop_exit
      _
    %8338 = vsyncpa [#allocation4], 1
    %s8339 = scalar_lea.sflag [#allocation4], 1
    %8340 = vsyncpa %s8339, 1

</llo_original>
